<compile_context>
chip_gen: v7x
topology: tpu7x:2x2x1
jax: 0.10.0
libtpu: 0.0.40
codegen_flags: <defaults>
</compile_context>

<pallas_src>
import functools

import numpy as np
import jax
import jax.numpy as jnp
from jax.experimental import pallas as pl
from jax.experimental.pallas import tpu as pltpu


# ----------------------------------------------------------------------------
# Pallas kernel: whole HQImgRecon forward for one batch element
# ----------------------------------------------------------------------------
def _hq_kernel(x_ref, m_ref,
               w1_ref, b1_ref, w2_ref, b2_ref,
               w3_ref, b3_ref, w4_ref, b4_ref,
               o_ref, halo_ref, col_ref, *, W, L, PAD):
    """x_ref:  (1, Cin_pad, L)   input, spatial flattened on lanes
    m_ref:     (2, L)            0/1 column-validity masks for dx = -1 / +1
    w*_ref:    (Cout, 9*Cin)     (phase-expanded, channel-padded) conv weights
    b*_ref:    (Cout, 1)         biases
    o_ref:     (1, 48, L)        3 output channels x 16 phases at coarse res
    halo_ref:  (Cmax, L+2*PAD)   VMEM scratch with a zero halo (SAME padding)
    col_ref:   (9*Cmax, L)       VMEM scratch holding the im2col block
    """
    # Zero once; only the lane-aligned [PAD, PAD+L) columns are ever written
    # below, so the halo columns stay zero for every layer.
    halo_ref[...] = jnp.zeros_like(halo_ref)
    m0 = m_ref[0:1, :]
    m1 = m_ref[1:2, :]

    def conv3x3(x, w_ref, b_ref):
        cin = x.shape[0]                                    # multiple of 8
        halo_ref[0:cin, PAD:PAD + L] = x                    # aligned store
        t = 0
        for dy in (-1, 0, 1):
            for dx in (-1, 0, 1):
                s = dy * W + dx
                tap = halo_ref[0:cin, PAD + s:PAD + s + L]  # (Cin, L)
                if dx == -1:
                    tap = tap * m0
                elif dx == 1:
                    tap = tap * m1
                col_ref[t * cin:(t + 1) * cin, :] = tap     # aligned rows
                t += 1
        return jnp.dot(w_ref[...], col_ref[0:9 * cin, :],
                       preferred_element_type=jnp.float32,
                       precision=jax.lax.Precision.HIGHEST) + b_ref[...]

    a = conv3x3(x_ref[0], w1_ref, b1_ref)
    a = jnp.where(a >= 0.0, a, 0.01 * a)                    # LeakyReLU(0.01)
    a = conv3x3(a, w2_ref, b2_ref)                          # conv2 (+shuffle1)
    a = conv3x3(a, w3_ref, b3_ref)                          # conv3, 2x phases
    a = conv3x3(a, w4_ref, b4_ref)                          # conv4, 4x phases
    o_ref[0] = a


# ----------------------------------------------------------------------------
# Host-side weight preparation (runs once)
# ----------------------------------------------------------------------------
def _pad8(n):
    return -(-n // 8) * 8


def _phase_expand(w, s):
    """Rewrite a 3x3 conv at fine scale `s` as a coarse 3x3 conv over
    phase-expanded channels.  w: (Cout, Cin, 3, 3) -> (Cout*s*s, Cin*s*s, 3, 3).
    Row (co*s + a)*s + b = output phase (a, b); col (ci*s + a2)*s + b2 = input
    phase (a2, b2)."""
    w = np.asarray(w, np.float32)
    cout, cin = w.shape[:2]
    we = np.zeros((cout * s * s, cin * s * s, 3, 3), np.float32)
    for a in range(s):
        for b in range(s):
            for dy in (-1, 0, 1):
                for dx in (-1, 0, 1):
                    a2, oy = (a + dy) % s, (a + dy) // s
                    b2, ox = (b + dx) % s, (b + dx) // s
                    rows = np.arange(cout) * s * s + a * s + b
                    cols = np.arange(cin) * s * s + a2 * s + b2
                    we[np.ix_(rows, cols, [oy + 1], [ox + 1])] += \
                        w[:, :, dy + 1, dx + 1][:, :, None, None]
    return we


def _shuffle2_perm(mid):
    """Row permutation realising PixelShuffle(2) from conv3's 2x phase layout
    (rows 4*co3 + 2*a3 + b3) to conv4's 4x phase input layout (rows c*16+A*4+B)."""
    perm = np.empty(16 * mid, np.int64)
    for c in range(mid):
        for A in range(4):
            for B in range(4):
                perm[c * 16 + A * 4 + B] = (16 * c + 8 * (A % 2) + 4 * (B % 2)
                                            + 2 * (A // 2) + (B // 2))
    return perm


def prepare_params(params):
    """Precompute phase-expanded, channel-padded, matmul-ready weights/biases."""
    (w1, b1), (w2, b2), (w3, b3), (w4, b4) = params
    mid = np.asarray(w4).shape[1]

    w1e = _phase_expand(w1, 1)
    b1e = np.asarray(b1, np.float32)
    w2e = _phase_expand(w2, 1)                 # PixelShuffle #1 == identity here
    b2e = np.asarray(b2, np.float32)
    w3e = _phase_expand(w3, 2)
    b3e = np.repeat(np.asarray(b3, np.float32), 4)
    # Fold PixelShuffle #2 (a row permutation in phase layout) into conv4.
    w4e = _phase_expand(w4, 4)
    perm = _shuffle2_perm(mid)
    w4f = np.zeros_like(w4e)
    w4f[:, perm, :, :] = w4e
    b4e = np.repeat(np.asarray(b4, np.float32), 16)

    flat = []
    for we, be in ((w1e, b1e), (w2e, b2e), (w3e, b3e), (w4f, b4e)):
        co, ci = we.shape[:2]
        cop, cip = _pad8(co), _pad8(ci)        # sublane-align every conv
        wp = np.zeros((cop, cip, 3, 3), np.float32)
        wp[:co, :ci] = we
        bp = np.zeros((cop, 1), np.float32)
        bp[:co, 0] = be
        # (Cout, Cin, 3, 3) -> (Cout, 9*Cin) with tap-major columns t*Cin + ci
        wm = np.ascontiguousarray(wp.transpose(0, 2, 3, 1)).reshape(cop, 9 * cip)
        flat.append(jnp.asarray(wm))
        flat.append(jnp.asarray(bp))
    return tuple(flat)


# ----------------------------------------------------------------------------
# Forward wrapper
# ----------------------------------------------------------------------------
def hq_img_recon(img_nchw, eff_params):
    """HQImgRecon forward: (N, C, H, W) -> (N, 3, 4H, 4W), one fused kernel."""
    (w1m, b1e, w2m, b2e, w3m, b3e, w4m, b4e) = eff_params
    N, C, H, W = img_nchw.shape
    L = H * W
    PAD = ((W + 1 + 127) // 128) * 128                      # lane-aligned halo
    cin1 = w1m.shape[1] // 9
    cout_e = w4m.shape[0]                                   # 3 channels * 16 phases
    cmax = max(w.shape[1] // 9 for w in (w1m, w2m, w3m, w4m))

    col = np.arange(L) % W
    masks = jnp.asarray(np.stack([(col >= 1), (col <= W - 2)]).astype(np.float32))

    x = img_nchw.reshape(N, C, L).astype(jnp.float32)
    if cin1 > C:                                            # zero-pad input chans
        x = jnp.pad(x, ((0, 0), (0, cin1 - C), (0, 0)))

    const = lambda n: (0, 0)
    out = pl.pallas_call(
        functools.partial(_hq_kernel, W=W, L=L, PAD=PAD),
        out_shape=jax.ShapeDtypeStruct((N, cout_e, L), jnp.float32),
        grid=(N,),
        in_specs=[
            pl.BlockSpec((1, cin1, L), lambda n: (n, 0, 0)),
            pl.BlockSpec(masks.shape, const),
            pl.BlockSpec(w1m.shape, const), pl.BlockSpec(b1e.shape, const),
            pl.BlockSpec(w2m.shape, const), pl.BlockSpec(b2e.shape, const),
            pl.BlockSpec(w3m.shape, const), pl.BlockSpec(b3e.shape, const),
            pl.BlockSpec(w4m.shape, const), pl.BlockSpec(b4e.shape, const),
        ],
        out_specs=pl.BlockSpec((1, cout_e, L), lambda n: (n, 0, 0)),
        scratch_shapes=[
            pltpu.VMEM((cmax, L + 2 * PAD), jnp.float32),   # halo buffer
            pltpu.VMEM((9 * cmax, L), jnp.float32),         # im2col block
        ],
        compiler_params=pltpu.CompilerParams(
            dimension_semantics=("parallel",)),
    )(x, masks, w1m, b1e, w2m, b2e, w3m, b3e, w4m, b4e)

    # depth-to-space: (N, 3*4*4 phases, H*W) -> (N, 3, 4H, 4W)
    out = out[:, :48, :]
    out = out.reshape(N, 3, 4, 4, H, W)
    out = out.transpose(0, 1, 4, 2, 5, 3).reshape(N, 3, 4 * H, 4 * W)
    return out


# ----------------------------------------------------------------------------
# Parameter init (torch Conv2d-style, OIHW) and pure-JAX reference
# ----------------------------------------------------------------------------
def init_params(key, channel):
    mid = channel // 3
    shapes = [
        (mid, channel, 3, 3),        # conv1
        (4 * mid, mid, 3, 3),        # conv2 (before PixelShuffle #1)
        (4 * mid, mid, 3, 3),        # conv3 (before PixelShuffle #2)
        (3, mid, 3, 3),              # conv4
    ]
    params = []
    for i, s in enumerate(shapes):
        kw, kb = jax.random.split(jax.random.fold_in(key, i))
        fan_in = s[1] * s[2] * s[3]
        bound = 1.0 / (fan_in ** 0.5)
        w = jax.random.uniform(kw, s, jnp.float32, -bound, bound)
        b = jax.random.uniform(kb, (s[0],), jnp.float32, -bound, bound)
        params.append((w, b))
    return params


def _conv3x3_ref(x, w, b):
    y = jax.lax.conv_general_dilated(
        x, w, window_strides=(1, 1), padding='SAME',
        dimension_numbers=('NCHW', 'OIHW', 'NCHW'),
        precision=jax.lax.Precision.HIGHEST)
    return y + b[None, :, None, None]


def _pixel_shuffle_ref(x, r):
    n, c, h, w = x.shape
    x = x.reshape(n, c // (r * r), r, r, h, w)
    x = x.transpose(0, 1, 4, 2, 5, 3)
    return x.reshape(n, c // (r * r), h * r, w * r)


def hq_img_recon_ref(img_nchw, params):
    (w1, b1), (w2, b2), (w3, b3), (w4, b4) = params
    x = img_nchw.astype(jnp.float32)
    x = _conv3x3_ref(x, w1, b1)
    x = jnp.where(x >= 0.0, x, 0.01 * x)
    x = _pixel_shuffle_ref(_conv3x3_ref(x, w2, b2), 2)
    x = _pixel_shuffle_ref(_conv3x3_ref(x, w3, b3), 2)
    x = _conv3x3_ref(x, w4, b4)
    return x


if __name__ == "__main__":
    key = jax.random.PRNGKey(0)
    channel = 12                      # HQImgRecon(channel): channel // 3 = 4
    N, H, W = 2, 16, 16
    img = jax.random.normal(jax.random.fold_in(key, 100),
                            (N, channel, H, W), jnp.float32)
    params = init_params(key, channel)
    eff = prepare_params(params)      # one-time host-side weight rework

    fwd = jax.jit(hq_img_recon)
    out = jax.block_until_ready(fwd(img, eff))
    assert out.shape == (N, 3, 4 * H, 4 * W), out.shape

    ref = jax.block_until_ready(hq_img_recon_ref(img, params))
    max_err = float(jnp.max(jnp.abs(out - ref)))
    assert jnp.allclose(out, ref, atol=1e-3, rtol=1e-3), max_err

    print("KERNEL_OK")
</pallas_src>

<mosaic_0001>
module attributes {stable_mosaic.version = 11 : i64} {
  func.func @_hq_kernel(%arg0: i32, %arg1: memref<1x16x256xf32, #tpu.memory_space<vmem>>, %arg2: memref<2x256xf32, #tpu.memory_space<vmem>>, %arg3: memref<8x144xf32, #tpu.memory_space<vmem>>, %arg4: memref<8x1xf32, #tpu.memory_space<vmem>>, %arg5: memref<16x72xf32, #tpu.memory_space<vmem>>, %arg6: memref<16x1xf32, #tpu.memory_space<vmem>>, %arg7: memref<64x144xf32, #tpu.memory_space<vmem>>, %arg8: memref<64x1xf32, #tpu.memory_space<vmem>>, %arg9: memref<48x576xf32, #tpu.memory_space<vmem>>, %arg10: memref<48x1xf32, #tpu.memory_space<vmem>>, %arg11: memref<1x48x256xf32, #tpu.memory_space<vmem>>, %arg12: memref<64x512xf32, #tpu.memory_space<vmem>>, %arg13: memref<576x256xf32, #tpu.memory_space<vmem>>) attributes {dimension_semantics = [#tpu.dimension_semantics<parallel>], iteration_bounds = array<i64: 2>, scalar_prefetch = 0 : i64, scratch_operands = 2 : i64, tpu.core_type = #tpu.core_type<tc>, window_params = [{transform_indices = @transform_0, window_bounds = array<i64: 1, 16, 256>}, {pipeline_mode = #tpu.pipeline_mode<synchronous>, transform_indices = @transform_1, window_bounds = array<i64: 2, 256>}, {pipeline_mode = #tpu.pipeline_mode<synchronous>, transform_indices = @transform_2, window_bounds = array<i64: 8, 144>}, {pipeline_mode = #tpu.pipeline_mode<synchronous>, transform_indices = @transform_3, window_bounds = array<i64: 8, 1>}, {pipeline_mode = #tpu.pipeline_mode<synchronous>, transform_indices = @transform_4, window_bounds = array<i64: 16, 72>}, {pipeline_mode = #tpu.pipeline_mode<synchronous>, transform_indices = @transform_5, window_bounds = array<i64: 16, 1>}, {pipeline_mode = #tpu.pipeline_mode<synchronous>, transform_indices = @transform_6, window_bounds = array<i64: 64, 144>}, {pipeline_mode = #tpu.pipeline_mode<synchronous>, transform_indices = @transform_7, window_bounds = array<i64: 64, 1>}, {pipeline_mode = #tpu.pipeline_mode<synchronous>, transform_indices = @transform_8, window_bounds = array<i64: 48, 576>}, {pipeline_mode = #tpu.pipeline_mode<synchronous>, transform_indices = @transform_9, window_bounds = array<i64: 48, 1>}, {transform_indices = @transform_10, window_bounds = array<i64: 1, 48, 256>}]} {
    %cst = arith.constant 0.000000e+00 : f32
    %0 = vector.broadcast %cst : f32 to vector<64x512xf32>
    %c0 = arith.constant 0 : index
    %c0_0 = arith.constant 0 : index
    %1 = vector.load %arg12[%c0, %c0_0] : memref<64x512xf32, #tpu.memory_space<vmem>>, vector<64x512xf32>
    tpu.vector_store %arg12[%c0, %c0_0], %0 {strides = array<i32>} : memref<64x512xf32, #tpu.memory_space<vmem>>, vector<64x512xf32>,
    %c0_1 = arith.constant 0 : index
    %c0_2 = arith.constant 0 : index
    %2 = vector.load %arg2[%c0_1, %c0_2] : memref<2x256xf32, #tpu.memory_space<vmem>>, vector<1x256xf32>
    %c1 = arith.constant 1 : index
    %c0_3 = arith.constant 0 : index
    %3 = vector.load %arg2[%c1, %c0_3] : memref<2x256xf32, #tpu.memory_space<vmem>>, vector<1x256xf32>
    %c0_4 = arith.constant 0 : index
    %c0_5 = arith.constant 0 : index
    %c0_6 = arith.constant 0 : index
    %4 = vector.load %arg1[%c0_4, %c0_5, %c0_6] : memref<1x16x256xf32, #tpu.memory_space<vmem>>, vector<1x16x256xf32>
    %5 = vector.shape_cast %4 : vector<1x16x256xf32> to vector<16x256xf32>
    %c0_7 = arith.constant 0 : index
    %c128 = arith.constant 128 : index
    %6 = vector.load %arg12[%c0_7, %c128] : memref<64x512xf32, #tpu.memory_space<vmem>>, vector<16x256xf32>
    tpu.vector_store %arg12[%c0_7, %c128], %5 {strides = array<i32>} : memref<64x512xf32, #tpu.memory_space<vmem>>, vector<16x256xf32>,
    %c0_8 = arith.constant 0 : index
    %c111 = arith.constant 111 : index
    %7 = vector.load %arg12[%c0_8, %c111] : memref<64x512xf32, #tpu.memory_space<vmem>>, vector<16x256xf32>
    %8 = vector.broadcast %2 : vector<1x256xf32> to vector<16x256xf32>
    %9 = arith.mulf %7, %8 : vector<16x256xf32>
    %c0_9 = arith.constant 0 : index
    %c0_10 = arith.constant 0 : index
    %10 = vector.load %arg13[%c0_9, %c0_10] : memref<576x256xf32, #tpu.memory_space<vmem>>, vector<16x256xf32>
    tpu.vector_store %arg13[%c0_9, %c0_10], %9 {strides = array<i32>} : memref<576x256xf32, #tpu.memory_space<vmem>>, vector<16x256xf32>,
    %c0_11 = arith.constant 0 : index
    %c112 = arith.constant 112 : index
    %11 = vector.load %arg12[%c0_11, %c112] : memref<64x512xf32, #tpu.memory_space<vmem>>, vector<16x256xf32>
    %c16 = arith.constant 16 : index
    %c0_12 = arith.constant 0 : index
    %12 = vector.load %arg13[%c16, %c0_12] : memref<576x256xf32, #tpu.memory_space<vmem>>, vector<16x256xf32>
    tpu.vector_store %arg13[%c16, %c0_12], %11 {strides = array<i32>} : memref<576x256xf32, #tpu.memory_space<vmem>>, vector<16x256xf32>,
    %c0_13 = arith.constant 0 : index
    %c113 = arith.constant 113 : index
    %13 = vector.load %arg12[%c0_13, %c113] : memref<64x512xf32, #tpu.memory_space<vmem>>, vector<16x256xf32>
    %14 = vector.broadcast %3 : vector<1x256xf32> to vector<16x256xf32>
    %15 = arith.mulf %13, %14 : vector<16x256xf32>
    %c32 = arith.constant 32 : index
    %c0_14 = arith.constant 0 : index
    %16 = vector.load %arg13[%c32, %c0_14] : memref<576x256xf32, #tpu.memory_space<vmem>>, vector<16x256xf32>
    tpu.vector_store %arg13[%c32, %c0_14], %15 {strides = array<i32>} : memref<576x256xf32, #tpu.memory_space<vmem>>, vector<16x256xf32>,
    %c0_15 = arith.constant 0 : index
    %c127 = arith.constant 127 : index
    %17 = vector.load %arg12[%c0_15, %c127] : memref<64x512xf32, #tpu.memory_space<vmem>>, vector<16x256xf32>
    %18 = vector.broadcast %2 : vector<1x256xf32> to vector<16x256xf32>
    %19 = arith.mulf %17, %18 : vector<16x256xf32>
    %c48 = arith.constant 48 : index
    %c0_16 = arith.constant 0 : index
    %20 = vector.load %arg13[%c48, %c0_16] : memref<576x256xf32, #tpu.memory_space<vmem>>, vector<16x256xf32>
    tpu.vector_store %arg13[%c48, %c0_16], %19 {strides = array<i32>} : memref<576x256xf32, #tpu.memory_space<vmem>>, vector<16x256xf32>,
    %c0_17 = arith.constant 0 : index
    %c128_18 = arith.constant 128 : index
    %21 = vector.load %arg12[%c0_17, %c128_18] : memref<64x512xf32, #tpu.memory_space<vmem>>, vector<16x256xf32>
    %c64 = arith.constant 64 : index
    %c0_19 = arith.constant 0 : index
    %22 = vector.load %arg13[%c64, %c0_19] : memref<576x256xf32, #tpu.memory_space<vmem>>, vector<16x256xf32>
    tpu.vector_store %arg13[%c64, %c0_19], %21 {strides = array<i32>} : memref<576x256xf32, #tpu.memory_space<vmem>>, vector<16x256xf32>,
    %c0_20 = arith.constant 0 : index
    %c129 = arith.constant 129 : index
    %23 = vector.load %arg12[%c0_20, %c129] : memref<64x512xf32, #tpu.memory_space<vmem>>, vector<16x256xf32>
    %24 = vector.broadcast %3 : vector<1x256xf32> to vector<16x256xf32>
    %25 = arith.mulf %23, %24 : vector<16x256xf32>
    %c80 = arith.constant 80 : index
    %c0_21 = arith.constant 0 : index
    %26 = vector.load %arg13[%c80, %c0_21] : memref<576x256xf32, #tpu.memory_space<vmem>>, vector<16x256xf32>
    tpu.vector_store %arg13[%c80, %c0_21], %25 {strides = array<i32>} : memref<576x256xf32, #tpu.memory_space<vmem>>, vector<16x256xf32>,
    %c0_22 = arith.constant 0 : index
    %c143 = arith.constant 143 : index
    %27 = vector.load %arg12[%c0_22, %c143] : memref<64x512xf32, #tpu.memory_space<vmem>>, vector<16x256xf32>
    %28 = vector.broadcast %2 : vector<1x256xf32> to vector<16x256xf32>
    %29 = arith.mulf %27, %28 : vector<16x256xf32>
    %c96 = arith.constant 96 : index
    %c0_23 = arith.constant 0 : index
    %30 = vector.load %arg13[%c96, %c0_23] : memref<576x256xf32, #tpu.memory_space<vmem>>, vector<16x256xf32>
    tpu.vector_store %arg13[%c96, %c0_23], %29 {strides = array<i32>} : memref<576x256xf32, #tpu.memory_space<vmem>>, vector<16x256xf32>,
    %c0_24 = arith.constant 0 : index
    %c144 = arith.constant 144 : index
    %31 = vector.load %arg12[%c0_24, %c144] : memref<64x512xf32, #tpu.memory_space<vmem>>, vector<16x256xf32>
    %c112_25 = arith.constant 112 : index
    %c0_26 = arith.constant 0 : index
    %32 = vector.load %arg13[%c112_25, %c0_26] : memref<576x256xf32, #tpu.memory_space<vmem>>, vector<16x256xf32>
    tpu.vector_store %arg13[%c112_25, %c0_26], %31 {strides = array<i32>} : memref<576x256xf32, #tpu.memory_space<vmem>>, vector<16x256xf32>,
    %c0_27 = arith.constant 0 : index
    %c145 = arith.constant 145 : index
    %33 = vector.load %arg12[%c0_27, %c145] : memref<64x512xf32, #tpu.memory_space<vmem>>, vector<16x256xf32>
    %34 = vector.broadcast %3 : vector<1x256xf32> to vector<16x256xf32>
    %35 = arith.mulf %33, %34 : vector<16x256xf32>
    %c128_28 = arith.constant 128 : index
    %c0_29 = arith.constant 0 : index
    %36 = vector.load %arg13[%c128_28, %c0_29] : memref<576x256xf32, #tpu.memory_space<vmem>>, vector<16x256xf32>
    tpu.vector_store %arg13[%c128_28, %c0_29], %35 {strides = array<i32>} : memref<576x256xf32, #tpu.memory_space<vmem>>, vector<16x256xf32>,
    %c0_30 = arith.constant 0 : index
    %c0_31 = arith.constant 0 : index
    %37 = vector.load %arg3[%c0_30, %c0_31] : memref<8x144xf32, #tpu.memory_space<vmem>>, vector<8x144xf32>
    %c0_32 = arith.constant 0 : index
    %c0_33 = arith.constant 0 : index
    %38 = vector.load %arg13[%c0_32, %c0_33] : memref<576x256xf32, #tpu.memory_space<vmem>>, vector<144x256xf32>
    %cst_34 = arith.constant dense<0.000000e+00> : vector<8x256xf32>
    %39 = tpu.matmul %37, %38, %cst_34 {dimension_numbers = #tpu.dot_dimension_numbers<[1], [0], [0], [1], [0, 0, 1, 1], [], []>, precision = #tpu.contract_precision<fp32>} : vector<8x144xf32>, vector<144x256xf32>, vector<8x256xf32> -> vector<8x256xf32>
    %c0_35 = arith.constant 0 : index
    %c0_36 = arith.constant 0 : index
    %40 = vector.load %arg4[%c0_35, %c0_36] : memref<8x1xf32, #tpu.memory_space<vmem>>, vector<8x1xf32>
    %41 = vector.broadcast %40 : vector<8x1xf32> to vector<8x256xf32>
    %42 = arith.addf %39, %41 : vector<8x256xf32>
    %cst_37 = arith.constant 0.000000e+00 : f32
    %43 = vector.broadcast %cst_37 : f32 to vector<8x256xf32>
    %44 = arith.cmpf oge, %42, %43 : vector<8x256xf32>
    %cst_38 = arith.constant 0.00999999977 : f32
    %45 = vector.broadcast %cst_38 : f32 to vector<8x256xf32>
    %46 = arith.mulf %45, %42 : vector<8x256xf32>
    %47 = arith.select %44, %42, %46 : vector<8x256xi1>, vector<8x256xf32>
    %c0_39 = arith.constant 0 : index
    %c128_40 = arith.constant 128 : index
    %48 = vector.load %arg12[%c0_39, %c128_40] : memref<64x512xf32, #tpu.memory_space<vmem>>, vector<8x256xf32>
    tpu.vector_store %arg12[%c0_39, %c128_40], %47 {strides = array<i32>} : memref<64x512xf32, #tpu.memory_space<vmem>>, vector<8x256xf32>,
    %c0_41 = arith.constant 0 : index
    %c111_42 = arith.constant 111 : index
    %49 = vector.load %arg12[%c0_41, %c111_42] : memref<64x512xf32, #tpu.memory_space<vmem>>, vector<8x256xf32>
    %50 = vector.broadcast %2 : vector<1x256xf32> to vector<8x256xf32>
    %51 = arith.mulf %49, %50 : vector<8x256xf32>
    %c0_43 = arith.constant 0 : index
    %c0_44 = arith.constant 0 : index
    %52 = vector.load %arg13[%c0_43, %c0_44] : memref<576x256xf32, #tpu.memory_space<vmem>>, vector<8x256xf32>
    tpu.vector_store %arg13[%c0_43, %c0_44], %51 {strides = array<i32>} : memref<576x256xf32, #tpu.memory_space<vmem>>, vector<8x256xf32>,
    %c0_45 = arith.constant 0 : index
    %c112_46 = arith.constant 112 : index
    %53 = vector.load %arg12[%c0_45, %c112_46] : memref<64x512xf32, #tpu.memory_space<vmem>>, vector<8x256xf32>
    %c8 = arith.constant 8 : index
    %c0_47 = arith.constant 0 : index
    %54 = vector.load %arg13[%c8, %c0_47] : memref<576x256xf32, #tpu.memory_space<vmem>>, vector<8x256xf32>
    tpu.vector_store %arg13[%c8, %c0_47], %53 {strides = array<i32>} : memref<576x256xf32, #tpu.memory_space<vmem>>, vector<8x256xf32>,
    %c0_48 = arith.constant 0 : index
    %c113_49 = arith.constant 113 : index
    %55 = vector.load %arg12[%c0_48, %c113_49] : memref<64x512xf32, #tpu.memory_space<vmem>>, vector<8x256xf32>
    %56 = vector.broadcast %3 : vector<1x256xf32> to vector<8x256xf32>
    %57 = arith.mulf %55, %56 : vector<8x256xf32>
    %c16_50 = arith.constant 16 : index
    %c0_51 = arith.constant 0 : index
    %58 = vector.load %arg13[%c16_50, %c0_51] : memref<576x256xf32, #tpu.memory_space<vmem>>, vector<8x256xf32>
    tpu.vector_store %arg13[%c16_50, %c0_51], %57 {strides = array<i32>} : memref<576x256xf32, #tpu.memory_space<vmem>>, vector<8x256xf32>,
    %c0_52 = arith.constant 0 : index
    %c127_53 = arith.constant 127 : index
    %59 = vector.load %arg12[%c0_52, %c127_53] : memref<64x512xf32, #tpu.memory_space<vmem>>, vector<8x256xf32>
    %60 = vector.broadcast %2 : vector<1x256xf32> to vector<8x256xf32>
    %61 = arith.mulf %59, %60 : vector<8x256xf32>
    %c24 = arith.constant 24 : index
    %c0_54 = arith.constant 0 : index
    %62 = vector.load %arg13[%c24, %c0_54] : memref<576x256xf32, #tpu.memory_space<vmem>>, vector<8x256xf32>
    tpu.vector_store %arg13[%c24, %c0_54], %61 {strides = array<i32>} : memref<576x256xf32, #tpu.memory_space<vmem>>, vector<8x256xf32>,
    %c0_55 = arith.constant 0 : index
    %c128_56 = arith.constant 128 : index
    %63 = vector.load %arg12[%c0_55, %c128_56] : memref<64x512xf32, #tpu.memory_space<vmem>>, vector<8x256xf32>
    %c32_57 = arith.constant 32 : index
    %c0_58 = arith.constant 0 : index
    %64 = vector.load %arg13[%c32_57, %c0_58] : memref<576x256xf32, #tpu.memory_space<vmem>>, vector<8x256xf32>
    tpu.vector_store %arg13[%c32_57, %c0_58], %63 {strides = array<i32>} : memref<576x256xf32, #tpu.memory_space<vmem>>, vector<8x256xf32>,
    %c0_59 = arith.constant 0 : index
    %c129_60 = arith.constant 129 : index
    %65 = vector.load %arg12[%c0_59, %c129_60] : memref<64x512xf32, #tpu.memory_space<vmem>>, vector<8x256xf32>
    %66 = vector.broadcast %3 : vector<1x256xf32> to vector<8x256xf32>
    %67 = arith.mulf %65, %66 : vector<8x256xf32>
    %c40 = arith.constant 40 : index
    %c0_61 = arith.constant 0 : index
    %68 = vector.load %arg13[%c40, %c0_61] : memref<576x256xf32, #tpu.memory_space<vmem>>, vector<8x256xf32>
    tpu.vector_store %arg13[%c40, %c0_61], %67 {strides = array<i32>} : memref<576x256xf32, #tpu.memory_space<vmem>>, vector<8x256xf32>,
    %c0_62 = arith.constant 0 : index
    %c143_63 = arith.constant 143 : index
    %69 = vector.load %arg12[%c0_62, %c143_63] : memref<64x512xf32, #tpu.memory_space<vmem>>, vector<8x256xf32>
    %70 = vector.broadcast %2 : vector<1x256xf32> to vector<8x256xf32>
    %71 = arith.mulf %69, %70 : vector<8x256xf32>
    %c48_64 = arith.constant 48 : index
    %c0_65 = arith.constant 0 : index
    %72 = vector.load %arg13[%c48_64, %c0_65] : memref<576x256xf32, #tpu.memory_space<vmem>>, vector<8x256xf32>
    tpu.vector_store %arg13[%c48_64, %c0_65], %71 {strides = array<i32>} : memref<576x256xf32, #tpu.memory_space<vmem>>, vector<8x256xf32>,
    %c0_66 = arith.constant 0 : index
    %c144_67 = arith.constant 144 : index
    %73 = vector.load %arg12[%c0_66, %c144_67] : memref<64x512xf32, #tpu.memory_space<vmem>>, vector<8x256xf32>
    %c56 = arith.constant 56 : index
    %c0_68 = arith.constant 0 : index
    %74 = vector.load %arg13[%c56, %c0_68] : memref<576x256xf32, #tpu.memory_space<vmem>>, vector<8x256xf32>
    tpu.vector_store %arg13[%c56, %c0_68], %73 {strides = array<i32>} : memref<576x256xf32, #tpu.memory_space<vmem>>, vector<8x256xf32>,
    %c0_69 = arith.constant 0 : index
    %c145_70 = arith.constant 145 : index
    %75 = vector.load %arg12[%c0_69, %c145_70] : memref<64x512xf32, #tpu.memory_space<vmem>>, vector<8x256xf32>
    %76 = vector.broadcast %3 : vector<1x256xf32> to vector<8x256xf32>
    %77 = arith.mulf %75, %76 : vector<8x256xf32>
    %c64_71 = arith.constant 64 : index
    %c0_72 = arith.constant 0 : index
    %78 = vector.load %arg13[%c64_71, %c0_72] : memref<576x256xf32, #tpu.memory_space<vmem>>, vector<8x256xf32>
    tpu.vector_store %arg13[%c64_71, %c0_72], %77 {strides = array<i32>} : memref<576x256xf32, #tpu.memory_space<vmem>>, vector<8x256xf32>,
    %c0_73 = arith.constant 0 : index
    %c0_74 = arith.constant 0 : index
    %79 = vector.load %arg5[%c0_73, %c0_74] : memref<16x72xf32, #tpu.memory_space<vmem>>, vector<16x72xf32>
    %c0_75 = arith.constant 0 : index
    %c0_76 = arith.constant 0 : index
    %80 = vector.load %arg13[%c0_75, %c0_76] : memref<576x256xf32, #tpu.memory_space<vmem>>, vector<72x256xf32>
    %cst_77 = arith.constant dense<0.000000e+00> : vector<16x256xf32>
    %81 = tpu.matmul %79, %80, %cst_77 {dimension_numbers = #tpu.dot_dimension_numbers<[1], [0], [0], [1], [0, 0, 1, 1], [], []>, precision = #tpu.contract_precision<fp32>} : vector<16x72xf32>, vector<72x256xf32>, vector<16x256xf32> -> vector<16x256xf32>
    %c0_78 = arith.constant 0 : index
    %c0_79 = arith.constant 0 : index
    %82 = vector.load %arg6[%c0_78, %c0_79] : memref<16x1xf32, #tpu.memory_space<vmem>>, vector<16x1xf32>
    %83 = vector.broadcast %82 : vector<16x1xf32> to vector<16x256xf32>
    %84 = arith.addf %81, %83 : vector<16x256xf32>
    %c0_80 = arith.constant 0 : index
    %c128_81 = arith.constant 128 : index
    %85 = vector.load %arg12[%c0_80, %c128_81] : memref<64x512xf32, #tpu.memory_space<vmem>>, vector<16x256xf32>
    tpu.vector_store %arg12[%c0_80, %c128_81], %84 {strides = array<i32>} : memref<64x512xf32, #tpu.memory_space<vmem>>, vector<16x256xf32>,
    %c0_82 = arith.constant 0 : index
    %c111_83 = arith.constant 111 : index
    %86 = vector.load %arg12[%c0_82, %c111_83] : memref<64x512xf32, #tpu.memory_space<vmem>>, vector<16x256xf32>
    %87 = vector.broadcast %2 : vector<1x256xf32> to vector<16x256xf32>
    %88 = arith.mulf %86, %87 : vector<16x256xf32>
    %c0_84 = arith.constant 0 : index
    %c0_85 = arith.constant 0 : index
    %89 = vector.load %arg13[%c0_84, %c0_85] : memref<576x256xf32, #tpu.memory_space<vmem>>, vector<16x256xf32>
    tpu.vector_store %arg13[%c0_84, %c0_85], %88 {strides = array<i32>} : memref<576x256xf32, #tpu.memory_space<vmem>>, vector<16x256xf32>,
    %c0_86 = arith.constant 0 : index
    %c112_87 = arith.constant 112 : index
    %90 = vector.load %arg12[%c0_86, %c112_87] : memref<64x512xf32, #tpu.memory_space<vmem>>, vector<16x256xf32>
    %c16_88 = arith.constant 16 : index
    %c0_89 = arith.constant 0 : index
    %91 = vector.load %arg13[%c16_88, %c0_89] : memref<576x256xf32, #tpu.memory_space<vmem>>, vector<16x256xf32>
    tpu.vector_store %arg13[%c16_88, %c0_89], %90 {strides = array<i32>} : memref<576x256xf32, #tpu.memory_space<vmem>>, vector<16x256xf32>,
    %c0_90 = arith.constant 0 : index
    %c113_91 = arith.constant 113 : index
    %92 = vector.load %arg12[%c0_90, %c113_91] : memref<64x512xf32, #tpu.memory_space<vmem>>, vector<16x256xf32>
    %93 = vector.broadcast %3 : vector<1x256xf32> to vector<16x256xf32>
    %94 = arith.mulf %92, %93 : vector<16x256xf32>
    %c32_92 = arith.constant 32 : index
    %c0_93 = arith.constant 0 : index
    %95 = vector.load %arg13[%c32_92, %c0_93] : memref<576x256xf32, #tpu.memory_space<vmem>>, vector<16x256xf32>
    tpu.vector_store %arg13[%c32_92, %c0_93], %94 {strides = array<i32>} : memref<576x256xf32, #tpu.memory_space<vmem>>, vector<16x256xf32>,
    %c0_94 = arith.constant 0 : index
    %c127_95 = arith.constant 127 : index
    %96 = vector.load %arg12[%c0_94, %c127_95] : memref<64x512xf32, #tpu.memory_space<vmem>>, vector<16x256xf32>
    %97 = vector.broadcast %2 : vector<1x256xf32> to vector<16x256xf32>
    %98 = arith.mulf %96, %97 : vector<16x256xf32>
    %c48_96 = arith.constant 48 : index
    %c0_97 = arith.constant 0 : index
    %99 = vector.load %arg13[%c48_96, %c0_97] : memref<576x256xf32, #tpu.memory_space<vmem>>, vector<16x256xf32>
    tpu.vector_store %arg13[%c48_96, %c0_97], %98 {strides = array<i32>} : memref<576x256xf32, #tpu.memory_space<vmem>>, vector<16x256xf32>,
    %c0_98 = arith.constant 0 : index
    %c128_99 = arith.constant 128 : index
    %100 = vector.load %arg12[%c0_98, %c128_99] : memref<64x512xf32, #tpu.memory_space<vmem>>, vector<16x256xf32>
    %c64_100 = arith.constant 64 : index
    %c0_101 = arith.constant 0 : index
    %101 = vector.load %arg13[%c64_100, %c0_101] : memref<576x256xf32, #tpu.memory_space<vmem>>, vector<16x256xf32>
    tpu.vector_store %arg13[%c64_100, %c0_101], %100 {strides = array<i32>} : memref<576x256xf32, #tpu.memory_space<vmem>>, vector<16x256xf32>,
    %c0_102 = arith.constant 0 : index
    %c129_103 = arith.constant 129 : index
    %102 = vector.load %arg12[%c0_102, %c129_103] : memref<64x512xf32, #tpu.memory_space<vmem>>, vector<16x256xf32>
    %103 = vector.broadcast %3 : vector<1x256xf32> to vector<16x256xf32>
    %104 = arith.mulf %102, %103 : vector<16x256xf32>
    %c80_104 = arith.constant 80 : index
    %c0_105 = arith.constant 0 : index
    %105 = vector.load %arg13[%c80_104, %c0_105] : memref<576x256xf32, #tpu.memory_space<vmem>>, vector<16x256xf32>
    tpu.vector_store %arg13[%c80_104, %c0_105], %104 {strides = array<i32>} : memref<576x256xf32, #tpu.memory_space<vmem>>, vector<16x256xf32>,
    %c0_106 = arith.constant 0 : index
    %c143_107 = arith.constant 143 : index
    %106 = vector.load %arg12[%c0_106, %c143_107] : memref<64x512xf32, #tpu.memory_space<vmem>>, vector<16x256xf32>
    %107 = vector.broadcast %2 : vector<1x256xf32> to vector<16x256xf32>
    %108 = arith.mulf %106, %107 : vector<16x256xf32>
    %c96_108 = arith.constant 96 : index
    %c0_109 = arith.constant 0 : index
    %109 = vector.load %arg13[%c96_108, %c0_109] : memref<576x256xf32, #tpu.memory_space<vmem>>, vector<16x256xf32>
    tpu.vector_store %arg13[%c96_108, %c0_109], %108 {strides = array<i32>} : memref<576x256xf32, #tpu.memory_space<vmem>>, vector<16x256xf32>,
    %c0_110 = arith.constant 0 : index
    %c144_111 = arith.constant 144 : index
    %110 = vector.load %arg12[%c0_110, %c144_111] : memref<64x512xf32, #tpu.memory_space<vmem>>, vector<16x256xf32>
    %c112_112 = arith.constant 112 : index
    %c0_113 = arith.constant 0 : index
    %111 = vector.load %arg13[%c112_112, %c0_113] : memref<576x256xf32, #tpu.memory_space<vmem>>, vector<16x256xf32>
    tpu.vector_store %arg13[%c112_112, %c0_113], %110 {strides = array<i32>} : memref<576x256xf32, #tpu.memory_space<vmem>>, vector<16x256xf32>,
    %c0_114 = arith.constant 0 : index
    %c145_115 = arith.constant 145 : index
    %112 = vector.load %arg12[%c0_114, %c145_115] : memref<64x512xf32, #tpu.memory_space<vmem>>, vector<16x256xf32>
    %113 = vector.broadcast %3 : vector<1x256xf32> to vector<16x256xf32>
    %114 = arith.mulf %112, %113 : vector<16x256xf32>
    %c128_116 = arith.constant 128 : index
    %c0_117 = arith.constant 0 : index
    %115 = vector.load %arg13[%c128_116, %c0_117] : memref<576x256xf32, #tpu.memory_space<vmem>>, vector<16x256xf32>
    tpu.vector_store %arg13[%c128_116, %c0_117], %114 {strides = array<i32>} : memref<576x256xf32, #tpu.memory_space<vmem>>, vector<16x256xf32>,
    %c0_118 = arith.constant 0 : index
    %c0_119 = arith.constant 0 : index
    %116 = vector.load %arg7[%c0_118, %c0_119] : memref<64x144xf32, #tpu.memory_space<vmem>>, vector<64x144xf32>
    %c0_120 = arith.constant 0 : index
    %c0_121 = arith.constant 0 : index
    %117 = vector.load %arg13[%c0_120, %c0_121] : memref<576x256xf32, #tpu.memory_space<vmem>>, vector<144x256xf32>
    %cst_122 = arith.constant dense<0.000000e+00> : vector<64x256xf32>
    %118 = tpu.matmul %116, %117, %cst_122 {dimension_numbers = #tpu.dot_dimension_numbers<[1], [0], [0], [1], [0, 0, 1, 1], [], []>, precision = #tpu.contract_precision<fp32>} : vector<64x144xf32>, vector<144x256xf32>, vector<64x256xf32> -> vector<64x256xf32>
    %c0_123 = arith.constant 0 : index
    %c0_124 = arith.constant 0 : index
    %119 = vector.load %arg8[%c0_123, %c0_124] : memref<64x1xf32, #tpu.memory_space<vmem>>, vector<64x1xf32>
    %120 = vector.broadcast %119 : vector<64x1xf32> to vector<64x256xf32>
    %121 = arith.addf %118, %120 : vector<64x256xf32>
    %c0_125 = arith.constant 0 : index
    %c128_126 = arith.constant 128 : index
    %122 = vector.load %arg12[%c0_125, %c128_126] : memref<64x512xf32, #tpu.memory_space<vmem>>, vector<64x256xf32>
    tpu.vector_store %arg12[%c0_125, %c128_126], %121 {strides = array<i32>} : memref<64x512xf32, #tpu.memory_space<vmem>>, vector<64x256xf32>,
    %c0_127 = arith.constant 0 : index
    %c111_128 = arith.constant 111 : index
    %123 = vector.load %arg12[%c0_127, %c111_128] : memref<64x512xf32, #tpu.memory_space<vmem>>, vector<64x256xf32>
    %124 = vector.broadcast %2 : vector<1x256xf32> to vector<64x256xf32>
    %125 = arith.mulf %123, %124 : vector<64x256xf32>
    %c0_129 = arith.constant 0 : index
    %c0_130 = arith.constant 0 : index
    %126 = vector.load %arg13[%c0_129, %c0_130] : memref<576x256xf32, #tpu.memory_space<vmem>>, vector<64x256xf32>
    tpu.vector_store %arg13[%c0_129, %c0_130], %125 {strides = array<i32>} : memref<576x256xf32, #tpu.memory_space<vmem>>, vector<64x256xf32>,
    %c0_131 = arith.constant 0 : index
    %c112_132 = arith.constant 112 : index
    %127 = vector.load %arg12[%c0_131, %c112_132] : memref<64x512xf32, #tpu.memory_space<vmem>>, vector<64x256xf32>
    %c64_133 = arith.constant 64 : index
    %c0_134 = arith.constant 0 : index
    %128 = vector.load %arg13[%c64_133, %c0_134] : memref<576x256xf32, #tpu.memory_space<vmem>>, vector<64x256xf32>
    tpu.vector_store %arg13[%c64_133, %c0_134], %127 {strides = array<i32>} : memref<576x256xf32, #tpu.memory_space<vmem>>, vector<64x256xf32>,
    %c0_135 = arith.constant 0 : index
    %c113_136 = arith.constant 113 : index
    %129 = vector.load %arg12[%c0_135, %c113_136] : memref<64x512xf32, #tpu.memory_space<vmem>>, vector<64x256xf32>
    %130 = vector.broadcast %3 : vector<1x256xf32> to vector<64x256xf32>
    %131 = arith.mulf %129, %130 : vector<64x256xf32>
    %c128_137 = arith.constant 128 : index
    %c0_138 = arith.constant 0 : index
    %132 = vector.load %arg13[%c128_137, %c0_138] : memref<576x256xf32, #tpu.memory_space<vmem>>, vector<64x256xf32>
    tpu.vector_store %arg13[%c128_137, %c0_138], %131 {strides = array<i32>} : memref<576x256xf32, #tpu.memory_space<vmem>>, vector<64x256xf32>,
    %c0_139 = arith.constant 0 : index
    %c127_140 = arith.constant 127 : index
    %133 = vector.load %arg12[%c0_139, %c127_140] : memref<64x512xf32, #tpu.memory_space<vmem>>, vector<64x256xf32>
    %134 = vector.broadcast %2 : vector<1x256xf32> to vector<64x256xf32>
    %135 = arith.mulf %133, %134 : vector<64x256xf32>
    %c192 = arith.constant 192 : index
    %c0_141 = arith.constant 0 : index
    %136 = vector.load %arg13[%c192, %c0_141] : memref<576x256xf32, #tpu.memory_space<vmem>>, vector<64x256xf32>
    tpu.vector_store %arg13[%c192, %c0_141], %135 {strides = array<i32>} : memref<576x256xf32, #tpu.memory_space<vmem>>, vector<64x256xf32>,
    %c0_142 = arith.constant 0 : index
    %c128_143 = arith.constant 128 : index
    %137 = vector.load %arg12[%c0_142, %c128_143] : memref<64x512xf32, #tpu.memory_space<vmem>>, vector<64x256xf32>
    %c256 = arith.constant 256 : index
    %c0_144 = arith.constant 0 : index
    %138 = vector.load %arg13[%c256, %c0_144] : memref<576x256xf32, #tpu.memory_space<vmem>>, vector<64x256xf32>
    tpu.vector_store %arg13[%c256, %c0_144], %137 {strides = array<i32>} : memref<576x256xf32, #tpu.memory_space<vmem>>, vector<64x256xf32>,
    %c0_145 = arith.constant 0 : index
    %c129_146 = arith.constant 129 : index
    %139 = vector.load %arg12[%c0_145, %c129_146] : memref<64x512xf32, #tpu.memory_space<vmem>>, vector<64x256xf32>
    %140 = vector.broadcast %3 : vector<1x256xf32> to vector<64x256xf32>
    %141 = arith.mulf %139, %140 : vector<64x256xf32>
    %c320 = arith.constant 320 : index
    %c0_147 = arith.constant 0 : index
    %142 = vector.load %arg13[%c320, %c0_147] : memref<576x256xf32, #tpu.memory_space<vmem>>, vector<64x256xf32>
    tpu.vector_store %arg13[%c320, %c0_147], %141 {strides = array<i32>} : memref<576x256xf32, #tpu.memory_space<vmem>>, vector<64x256xf32>,
    %c0_148 = arith.constant 0 : index
    %c143_149 = arith.constant 143 : index
    %143 = vector.load %arg12[%c0_148, %c143_149] : memref<64x512xf32, #tpu.memory_space<vmem>>, vector<64x256xf32>
    %144 = vector.broadcast %2 : vector<1x256xf32> to vector<64x256xf32>
    %145 = arith.mulf %143, %144 : vector<64x256xf32>
    %c384 = arith.constant 384 : index
    %c0_150 = arith.constant 0 : index
    %146 = vector.load %arg13[%c384, %c0_150] : memref<576x256xf32, #tpu.memory_space<vmem>>, vector<64x256xf32>
    tpu.vector_store %arg13[%c384, %c0_150], %145 {strides = array<i32>} : memref<576x256xf32, #tpu.memory_space<vmem>>, vector<64x256xf32>,
    %c0_151 = arith.constant 0 : index
    %c144_152 = arith.constant 144 : index
    %147 = vector.load %arg12[%c0_151, %c144_152] : memref<64x512xf32, #tpu.memory_space<vmem>>, vector<64x256xf32>
    %c448 = arith.constant 448 : index
    %c0_153 = arith.constant 0 : index
    %148 = vector.load %arg13[%c448, %c0_153] : memref<576x256xf32, #tpu.memory_space<vmem>>, vector<64x256xf32>
    tpu.vector_store %arg13[%c448, %c0_153], %147 {strides = array<i32>} : memref<576x256xf32, #tpu.memory_space<vmem>>, vector<64x256xf32>,
    %c0_154 = arith.constant 0 : index
    %c145_155 = arith.constant 145 : index
    %149 = vector.load %arg12[%c0_154, %c145_155] : memref<64x512xf32, #tpu.memory_space<vmem>>, vector<64x256xf32>
    %150 = vector.broadcast %3 : vector<1x256xf32> to vector<64x256xf32>
    %151 = arith.mulf %149, %150 : vector<64x256xf32>
    %c512 = arith.constant 512 : index
    %c0_156 = arith.constant 0 : index
    %152 = vector.load %arg13[%c512, %c0_156] : memref<576x256xf32, #tpu.memory_space<vmem>>, vector<64x256xf32>
    tpu.vector_store %arg13[%c512, %c0_156], %151 {strides = array<i32>} : memref<576x256xf32, #tpu.memory_space<vmem>>, vector<64x256xf32>,
    %c0_157 = arith.constant 0 : index
    %c0_158 = arith.constant 0 : index
    %153 = vector.load %arg9[%c0_157, %c0_158] : memref<48x576xf32, #tpu.memory_space<vmem>>, vector<48x576xf32>
    %c0_159 = arith.constant 0 : index
    %c0_160 = arith.constant 0 : index
    %154 = vector.load %arg13[%c0_159, %c0_160] : memref<576x256xf32, #tpu.memory_space<vmem>>, vector<576x256xf32>
    %cst_161 = arith.constant dense<0.000000e+00> : vector<48x256xf32>
    %155 = tpu.matmul %153, %154, %cst_161 {dimension_numbers = #tpu.dot_dimension_numbers<[1], [0], [0], [1], [0, 0, 1, 1], [], []>, precision = #tpu.contract_precision<fp32>} : vector<48x576xf32>, vector<576x256xf32>, vector<48x256xf32> -> vector<48x256xf32>
    %c0_162 = arith.constant 0 : index
    %c0_163 = arith.constant 0 : index
    %156 = vector.load %arg10[%c0_162, %c0_163] : memref<48x1xf32, #tpu.memory_space<vmem>>, vector<48x1xf32>
    %157 = vector.broadcast %156 : vector<48x1xf32> to vector<48x256xf32>
    %158 = arith.addf %155, %157 : vector<48x256xf32>
    %c0_164 = arith.constant 0 : index
    %c0_165 = arith.constant 0 : index
    %c0_166 = arith.constant 0 : index
    %159 = vector.load %arg11[%c0_164, %c0_165, %c0_166] : memref<1x48x256xf32, #tpu.memory_space<vmem>>, vector<1x48x256xf32>
    %160 = vector.shape_cast %159 : vector<1x48x256xf32> to vector<48x256xf32>
    %161 = vector.shape_cast %158 : vector<48x256xf32> to vector<1x48x256xf32>
    tpu.vector_store %arg11[%c0_164, %c0_165, %c0_166], %161 {strides = array<i32>} : memref<1x48x256xf32, #tpu.memory_space<vmem>>, vector<1x48x256xf32>,
    return
  }
  func.func @transform_0(%arg0: i32) -> (i32, i32, i32) {
    %c0_i32 = arith.constant 0 : i32
    %c0_i32_0 = arith.constant 0 : i32
    %c0_i32_1 = arith.constant 0 : i32
    return %arg0, %c0_i32, %c0_i32_0 : i32, i32, i32
  }
  func.func @transform_1(%arg0: i32) -> (i32, i32) {
    %c0_i32 = arith.constant 0 : i32
    %c0_i32_0 = arith.constant 0 : i32
    %c0_i32_1 = arith.constant 0 : i32
    return %c0_i32, %c0_i32_0 : i32, i32
  }
  func.func @transform_2(%arg0: i32) -> (i32, i32) {
    %c0_i32 = arith.constant 0 : i32
    %c0_i32_0 = arith.constant 0 : i32
    %c0_i32_1 = arith.constant 0 : i32
    return %c0_i32, %c0_i32_0 : i32, i32
  }
  func.func @transform_3(%arg0: i32) -> (i32, i32) {
    %c0_i32 = arith.constant 0 : i32
    %c0_i32_0 = arith.constant 0 : i32
    %c0_i32_1 = arith.constant 0 : i32
    return %c0_i32, %c0_i32_0 : i32, i32
  }
  func.func @transform_4(%arg0: i32) -> (i32, i32) {
    %c0_i32 = arith.constant 0 : i32
    %c0_i32_0 = arith.constant 0 : i32
    %c0_i32_1 = arith.constant 0 : i32
    return %c0_i32, %c0_i32_0 : i32, i32
  }
  func.func @transform_5(%arg0: i32) -> (i32, i32) {
    %c0_i32 = arith.constant 0 : i32
    %c0_i32_0 = arith.constant 0 : i32
    %c0_i32_1 = arith.constant 0 : i32
    return %c0_i32, %c0_i32_0 : i32, i32
  }
  func.func @transform_6(%arg0: i32) -> (i32, i32) {
    %c0_i32 = arith.constant 0 : i32
    %c0_i32_0 = arith.constant 0 : i32
    %c0_i32_1 = arith.constant 0 : i32
    return %c0_i32, %c0_i32_0 : i32, i32
  }
  func.func @transform_7(%arg0: i32) -> (i32, i32) {
    %c0_i32 = arith.constant 0 : i32
    %c0_i32_0 = arith.constant 0 : i32
    %c0_i32_1 = arith.constant 0 : i32
    return %c0_i32, %c0_i32_0 : i32, i32
  }
  func.func @transform_8(%arg0: i32) -> (i32, i32) {
    %c0_i32 = arith.constant 0 : i32
    %c0_i32_0 = arith.constant 0 : i32
    %c0_i32_1 = arith.constant 0 : i32
    return %c0_i32, %c0_i32_0 : i32, i32
  }
  func.func @transform_9(%arg0: i32) -> (i32, i32) {
    %c0_i32 = arith.constant 0 : i32
    %c0_i32_0 = arith.constant 0 : i32
    %c0_i32_1 = arith.constant 0 : i32
    return %c0_i32, %c0_i32_0 : i32, i32
  }
  func.func @transform_10(%arg0: i32) -> (i32, i32, i32) {
    %c0_i32 = arith.constant 0 : i32
    %c0_i32_0 = arith.constant 0 : i32
    %c0_i32_1 = arith.constant 0 : i32
    return %arg0, %c0_i32, %c0_i32_0 : i32, i32, i32
  }
}

</mosaic_0001>

<llo_original>
// kernel: hq_img_recon.1
$region0: #{hq_img_recon.1}
  #allocation0 [shape = 'u32[]', space=smem, size = 0x4, offset = 0x4, fixed_abs, tag = 'smem constant byte address 0x4 - core index']
  #allocation1 [shape = 'u32[144,128]{1,0:T(1,128)}', space=vmem, size = 0x12000, scoped, tag = 'internal scratch']
  #allocation2 [shape = 'f32[64,512]{1,0:T(8,128)}', space=vmem, size = 0x20000, scoped, tag = 'scratch operand']
  #allocation3 [shape = 'f32[576,256]{1,0:T(8,128)}', space=vmem, size = 0x90000, scoped, tag = 'scratch operand']
  %s0 = inlined_call_operand.vmem [shape: f32[2,16,256], index: 0, kind: input, shape index: {}]
  %s1 = inlined_call_operand.hbm [shape: f32[2,256], index: 1, kind: input, shape index: {}]
  %s2 = inlined_call_operand.hbm [shape: f32[8,144], index: 2, kind: input, shape index: {}]
  %s3 = inlined_call_operand.vmem [shape: f32[8,1], index: 3, kind: input, shape index: {}]
  %s4 = inlined_call_operand.hbm [shape: f32[16,72], index: 4, kind: input, shape index: {}]
  %s5 = inlined_call_operand.vmem [shape: f32[16,1], index: 5, kind: input, shape index: {}]
  %s6 = inlined_call_operand.hbm [shape: f32[64,144], index: 6, kind: input, shape index: {}]
  %s7 = inlined_call_operand.vmem [shape: f32[64,1], index: 7, kind: input, shape index: {}]
  %s8 = inlined_call_operand.hbm [shape: f32[48,576], index: 8, kind: input, shape index: {}]
  %s9 = inlined_call_operand.vmem [shape: f32[48,1], index: 9, kind: input, shape index: {}]
  %s10 = inlined_call_operand.vmem [shape: f32[2,48,256], index: 10, kind: output, shape index: {}]
  %s11 = sld [smem:[#allocation0]]
  $region93: #{hq_img_recon.1} parent=0
    _
  %s13 = ssub.s32 1, %s11
  %s14 = scalar_select 0, %s13, %s11
  $region1: #{hq_img_recon.1} parent=0
    #allocation4 [shape = 'u8[2048]{0}', space=vmem, size = 0x800, scoped, tag = 'input window, operand 1, single buffered']
    #allocation5 [shape = 's32[2]{0}', space=sflag, size = 0x8, scoped, tag = 'scoped memory for hq_img_recon.1']
    #allocation6 [shape = 'u8[8192]{0}', space=vmem, size = 0x2000, scoped, tag = 'input window, operand 2, single buffered']
    #allocation7 [shape = 's32[1]{0}', space=sflag, size = 0x4, scoped, tag = 'scoped memory for hq_img_recon.1']
    #allocation8 [shape = 'u8[8192]{0}', space=vmem, size = 0x2000, scoped, tag = 'input window, operand 4, single buffered']
    #allocation9 [shape = 'u8[65536]{0}', space=vmem, size = 0x10000, scoped, tag = 'input window, operand 6, single buffered']
    #allocation10 [shape = 's32[1]{0}', space=sflag, size = 0x4, scoped, tag = 'scoped memory for hq_img_recon.1']
    #allocation11 [shape = 'u8[122880]{0}', space=vmem, size = 0x1e000, scoped, tag = 'input window, operand 8, single buffered']
    %15 = vsyncpa [#allocation5], 0
    %16 = vsyncpa [#allocation7], 0
    %17 = vsyncpa [#allocation10], 0
    loop: start=0, step=1, limit=4
    $region2: #{hq_img_recon.1} parent=1 // loop_pre_header
      _
    $region3: #{hq_img_recon.1} parent=1 // loop_header
      %s19 = sphi 0, %s23
      %p20 = scmp.ge.s32.totalorder %s19, 4
      %s29 = sphi 0, %s31
      %s32 = sphi 0, %s29
      %s33 = sphi 0, %s32
      %s49 = sphi 0, %s33
      %s53 = sphi 0, %s53
      %s55 = sphi 0, %s53
      %s56 = sphi 0, %s55
      %s70 = sphi 0, %s56
      %s74 = sphi 0, %s74
      %s76 = sphi 0, %s74
      %s77 = sphi 0, %s76
      %s91 = sphi 0, %s77
      %s95 = sphi 0, %s95
      %s97 = sphi 0, %s95
      %s98 = sphi 0, %s97
      %s112 = sphi 0, %s98
      %s116 = sphi 0, %s116
      %s118 = sphi 0, %s116
      %s119 = sphi 0, %s118
      %s133 = sphi 0, %s119
      %s137 = sphi 0, %s137
      %s139 = sphi 0, %s137
      %s140 = sphi 0, %s139
      %s154 = sphi 0, %s140
      %s158 = sphi 0, %s158
      %s160 = sphi 0, %s158
      %s161 = sphi 0, %s160
      %s175 = sphi 0, %s161
      %s179 = sphi 0, %s179
      %s181 = sphi 0, %s179
      %s182 = sphi 0, %s181
      %s196 = sphi 0, %s182
      %s200 = sphi 0, %s200
      %s202 = sphi 0, %s200
      %s203 = sphi 0, %s202
      %s217 = sphi 0, %s203
      %s221 = sphi 0, %s221
      %s223 = sphi 0, %s221
      %s224 = sphi 0, %s223
      %s238 = sphi 0, %s224
      %s244 = sphi 0, %s246
      %s247 = sphi 0, %s244
      %s248 = sphi 0, %s247
      %s264 = sphi 0, %s248
    $region4: #{hq_img_recon.1} parent=1 // loop_header_branch
      %22 = sbr.rel (%p20) target = $region8
    $region5: #{hq_img_recon.1} parent=1 // loop_body
      %s24 = ssub.s32 %s19, 1
      %s25 = ssub.s32 %s19, 2
      %s26 = sadd.s32 %s19, 1
      %s27 = ssub.s32 %s19, %s26
      %p28 = scmp.eq.s32.totalorder %s27, 0
      %s30 = sadd.s32 %s29, 1
      %s31 = scalar_select %p28, %s29, %s30
      %p34 = pneg %p28
      %p35 = scmp.eq.s32.totalorder %s19, 1
      %p36 = por %p34, %p35
      %p37 = scmp.ne.s32.totalorder %s29, %s32
      %p38 = scmp.eq.s32.totalorder %s19, 0
      %p39 = por %p37, %p38
      %p40 = scmp.ne.s32.totalorder %s29, %s32
      %p41 = scmp.eq.s32.totalorder %s24, 1
      %p42 = por %p40, %p41
      %p43 = scmp.ne.s32.totalorder %s32, %s33
      %p44 = scmp.eq.s32.totalorder %s24, 0
      %p45 = por %p43, %p44
      %p46 = scmp.ne.s32.totalorder %s32, %s33
      %p47 = scmp.eq.s32.totalorder %s25, 1
      %p48 = por %p46, %p47
      %p50 = scmp.ne.s32.totalorder %s33, %s49
      %p51 = scmp.eq.s32.totalorder %s25, 0
      %p52 = por %p50, %p51
      %s54 = sadd.s32 %s53, 1
      %p57 = scmp.eq.s32.totalorder %s19, 1
      %p58 = scmp.ne.s32.totalorder %s53, %s55
      %p59 = scmp.eq.s32.totalorder %s19, 0
      %p60 = por %p58, %p59
      %p61 = scmp.ne.s32.totalorder %s53, %s55
      %p62 = scmp.eq.s32.totalorder %s24, 1
      %p63 = por %p61, %p62
      %p64 = scmp.ne.s32.totalorder %s55, %s56
      %p65 = scmp.eq.s32.totalorder %s24, 0
      %p66 = por %p64, %p65
      %p67 = scmp.ne.s32.totalorder %s55, %s56
      %p68 = scmp.eq.s32.totalorder %s25, 1
      %p69 = por %p67, %p68
      %p71 = scmp.ne.s32.totalorder %s56, %s70
      %p72 = scmp.eq.s32.totalorder %s25, 0
      %p73 = por %p71, %p72
      %s75 = sadd.s32 %s74, 1
      %p78 = scmp.eq.s32.totalorder %s19, 1
      %p79 = scmp.ne.s32.totalorder %s74, %s76
      %p80 = scmp.eq.s32.totalorder %s19, 0
      %p81 = por %p79, %p80
      %p82 = scmp.ne.s32.totalorder %s74, %s76
      %p83 = scmp.eq.s32.totalorder %s24, 1
      %p84 = por %p82, %p83
      %p85 = scmp.ne.s32.totalorder %s76, %s77
      %p86 = scmp.eq.s32.totalorder %s24, 0
      %p87 = por %p85, %p86
      %p88 = scmp.ne.s32.totalorder %s76, %s77
      %p89 = scmp.eq.s32.totalorder %s25, 1
      %p90 = por %p88, %p89
      %p92 = scmp.ne.s32.totalorder %s77, %s91
      %p93 = scmp.eq.s32.totalorder %s25, 0
      %p94 = por %p92, %p93
      %s96 = sadd.s32 %s95, 1
      %p99 = scmp.eq.s32.totalorder %s19, 1
      %p100 = scmp.ne.s32.totalorder %s95, %s97
      %p101 = scmp.eq.s32.totalorder %s19, 0
      %p102 = por %p100, %p101
      %p103 = scmp.ne.s32.totalorder %s95, %s97
      %p104 = scmp.eq.s32.totalorder %s24, 1
      %p105 = por %p103, %p104
      %p106 = scmp.ne.s32.totalorder %s97, %s98
      %p107 = scmp.eq.s32.totalorder %s24, 0
      %p108 = por %p106, %p107
      %p109 = scmp.ne.s32.totalorder %s97, %s98
      %p110 = scmp.eq.s32.totalorder %s25, 1
      %p111 = por %p109, %p110
      %p113 = scmp.ne.s32.totalorder %s98, %s112
      %p114 = scmp.eq.s32.totalorder %s25, 0
      %p115 = por %p113, %p114
      %s117 = sadd.s32 %s116, 1
      %p120 = scmp.eq.s32.totalorder %s19, 1
      %p121 = scmp.ne.s32.totalorder %s116, %s118
      %p122 = scmp.eq.s32.totalorder %s19, 0
      %p123 = por %p121, %p122
      %p124 = scmp.ne.s32.totalorder %s116, %s118
      %p125 = scmp.eq.s32.totalorder %s24, 1
      %p126 = por %p124, %p125
      %p127 = scmp.ne.s32.totalorder %s118, %s119
      %p128 = scmp.eq.s32.totalorder %s24, 0
      %p129 = por %p127, %p128
      %p130 = scmp.ne.s32.totalorder %s118, %s119
      %p131 = scmp.eq.s32.totalorder %s25, 1
      %p132 = por %p130, %p131
      %p134 = scmp.ne.s32.totalorder %s119, %s133
      %p135 = scmp.eq.s32.totalorder %s25, 0
      %p136 = por %p134, %p135
      %s138 = sadd.s32 %s137, 1
      %p141 = scmp.eq.s32.totalorder %s19, 1
      %p142 = scmp.ne.s32.totalorder %s137, %s139
      %p143 = scmp.eq.s32.totalorder %s19, 0
      %p144 = por %p142, %p143
      %p145 = scmp.ne.s32.totalorder %s137, %s139
      %p146 = scmp.eq.s32.totalorder %s24, 1
      %p147 = por %p145, %p146
      %p148 = scmp.ne.s32.totalorder %s139, %s140
      %p149 = scmp.eq.s32.totalorder %s24, 0
      %p150 = por %p148, %p149
      %p151 = scmp.ne.s32.totalorder %s139, %s140
      %p152 = scmp.eq.s32.totalorder %s25, 1
      %p153 = por %p151, %p152
      %p155 = scmp.ne.s32.totalorder %s140, %s154
      %p156 = scmp.eq.s32.totalorder %s25, 0
      %p157 = por %p155, %p156
      %s159 = sadd.s32 %s158, 1
      %p162 = scmp.eq.s32.totalorder %s19, 1
      %p163 = scmp.ne.s32.totalorder %s158, %s160
      %p164 = scmp.eq.s32.totalorder %s19, 0
      %p165 = por %p163, %p164
      %p166 = scmp.ne.s32.totalorder %s158, %s160
      %p167 = scmp.eq.s32.totalorder %s24, 1
      %p168 = por %p166, %p167
      %p169 = scmp.ne.s32.totalorder %s160, %s161
      %p170 = scmp.eq.s32.totalorder %s24, 0
      %p171 = por %p169, %p170
      %p172 = scmp.ne.s32.totalorder %s160, %s161
      %p173 = scmp.eq.s32.totalorder %s25, 1
      %p174 = por %p172, %p173
      %p176 = scmp.ne.s32.totalorder %s161, %s175
      %p177 = scmp.eq.s32.totalorder %s25, 0
      %p178 = por %p176, %p177
      %s180 = sadd.s32 %s179, 1
      %p183 = scmp.eq.s32.totalorder %s19, 1
      %p184 = scmp.ne.s32.totalorder %s179, %s181
      %p185 = scmp.eq.s32.totalorder %s19, 0
      %p186 = por %p184, %p185
      %p187 = scmp.ne.s32.totalorder %s179, %s181
      %p188 = scmp.eq.s32.totalorder %s24, 1
      %p189 = por %p187, %p188
      %p190 = scmp.ne.s32.totalorder %s181, %s182
      %p191 = scmp.eq.s32.totalorder %s24, 0
      %p192 = por %p190, %p191
      %p193 = scmp.ne.s32.totalorder %s181, %s182
      %p194 = scmp.eq.s32.totalorder %s25, 1
      %p195 = por %p193, %p194
      %p197 = scmp.ne.s32.totalorder %s182, %s196
      %p198 = scmp.eq.s32.totalorder %s25, 0
      %p199 = por %p197, %p198
      %s201 = sadd.s32 %s200, 1
      %p204 = scmp.eq.s32.totalorder %s19, 1
      %p205 = scmp.ne.s32.totalorder %s200, %s202
      %p206 = scmp.eq.s32.totalorder %s19, 0
      %p207 = por %p205, %p206
      %p208 = scmp.ne.s32.totalorder %s200, %s202
      %p209 = scmp.eq.s32.totalorder %s24, 1
      %p210 = por %p208, %p209
      %p211 = scmp.ne.s32.totalorder %s202, %s203
      %p212 = scmp.eq.s32.totalorder %s24, 0
      %p213 = por %p211, %p212
      %p214 = scmp.ne.s32.totalorder %s202, %s203
      %p215 = scmp.eq.s32.totalorder %s25, 1
      %p216 = por %p214, %p215
      %p218 = scmp.ne.s32.totalorder %s203, %s217
      %p219 = scmp.eq.s32.totalorder %s25, 0
      %p220 = por %p218, %p219
      %s222 = sadd.s32 %s221, 1
      %p225 = scmp.eq.s32.totalorder %s19, 1
      %p226 = scmp.ne.s32.totalorder %s221, %s223
      %p227 = scmp.eq.s32.totalorder %s19, 0
      %p228 = por %p226, %p227
      %p229 = scmp.ne.s32.totalorder %s221, %s223
      %p230 = scmp.eq.s32.totalorder %s24, 1
      %p231 = por %p229, %p230
      %p232 = scmp.ne.s32.totalorder %s223, %s224
      %p233 = scmp.eq.s32.totalorder %s24, 0
      %p234 = por %p232, %p233
      %p235 = scmp.ne.s32.totalorder %s223, %s224
      %p236 = scmp.eq.s32.totalorder %s25, 1
      %p237 = por %p235, %p236
      %p239 = scmp.ne.s32.totalorder %s224, %s238
      %p240 = scmp.eq.s32.totalorder %s25, 0
      %p241 = por %p239, %p240
      %s242 = ssub.s32 %s19, %s26
      %p243 = scmp.eq.s32.totalorder %s242, 0
      %s245 = sadd.s32 %s244, 1
      %s246 = scalar_select %p243, %s244, %s245
      %p249 = pneg %p243
      %p250 = scmp.eq.s32.totalorder %s19, 1
      %p251 = por %p249, %p250
      %p252 = scmp.ne.s32.totalorder %s244, %s247
      %p253 = scmp.eq.s32.totalorder %s19, 0
      %p254 = por %p252, %p253
      %p255 = scmp.ne.s32.totalorder %s244, %s247
      %p256 = scmp.eq.s32.totalorder %s24, 1
      %p257 = por %p255, %p256
      %p258 = scmp.ne.s32.totalorder %s247, %s248
      %p259 = scmp.eq.s32.totalorder %s24, 0
      %p260 = por %p258, %p259
      %p261 = scmp.ne.s32.totalorder %s247, %s248
      %p262 = scmp.eq.s32.totalorder %s25, 1
      %p263 = por %p261, %p262
      %p265 = scmp.ne.s32.totalorder %s248, %s264
      %p266 = scmp.eq.s32.totalorder %s25, 0
      %p267 = por %p265, %p266
      %p268 = scmp.le.s32.totalorder 1, %s19
      %p269 = scmp.lt.s32.totalorder %s19, 3
      %p270 = pnand %p268, %p269
      %p271 = pneg %p270
      // Predicated region
      $region9: #{hq_img_recon.1} parent=5 // pred_check
        _
      $region10: #{hq_img_recon.1} parent=5 // pred_check_branch
        %273 = sbr.rel (%p270) target = $region12
      $region11: #{hq_img_recon.1} parent=5 // pred_region
        %s274 = ssub.s32 %s19, 1
        // Predicated region
        $region13: #{hq_img_recon.1} parent=11 // pred_check
          %p275 = pneg %p66
        $region14: #{hq_img_recon.1} parent=11 // pred_check_branch
          %277 = sbr.rel (%p275) target = $region16
        $region15: #{hq_img_recon.1} parent=11 // pred_region
          %s279 = ssub.s32 64, 64
          %280 = vsyncadd [#allocation5], %s279
          %s282 = sshll.u32 [#allocation4], 4
          %s283 = int_to_ptr.vmem [resolvable:$true] %s282
          %285 = dma.hbm_to_vmem [thread:$0]  %s1, 64, %s283, [#allocation5]
        $region16: #{hq_img_recon.1} parent=11 // pred_fallthru
          _
        // Predicated region
        $region17: #{hq_img_recon.1} parent=11 // pred_check
          %p286 = pneg %p87
        $region18: #{hq_img_recon.1} parent=11 // pred_check_branch
          %288 = sbr.rel (%p286) target = $region20
        $region19: #{hq_img_recon.1} parent=11 // pred_region
          %s290 = ssub.s32 256, 256
          %291 = vsyncadd [#allocation7], %s290
          %s293 = sshll.u32 [#allocation6], 4
          %s294 = int_to_ptr.vmem [resolvable:$true] %s293
          %296 = dma.hbm_to_vmem [thread:$0]  %s2, 256, %s294, [#allocation7]
        $region20: #{hq_img_recon.1} parent=11 // pred_fallthru
          _
        // Predicated region
        $region21: #{hq_img_recon.1} parent=11 // pred_check
          %p297 = pneg %p108
        $region22: #{hq_img_recon.1} parent=11 // pred_check_branch
          %299 = sbr.rel (%p297) target = $region24
        $region23: #{hq_img_recon.1} parent=11 // pred_region
          _
        $region24: #{hq_img_recon.1} parent=11 // pred_fallthru
          _
        // Predicated region
        $region25: #{hq_img_recon.1} parent=11 // pred_check
          %p300 = pneg %p129
        $region26: #{hq_img_recon.1} parent=11 // pred_check_branch
          %302 = sbr.rel (%p300) target = $region28
        $region27: #{hq_img_recon.1} parent=11 // pred_region
          %s304 = ssub.s32 256, 256
          %305 = vsyncadd [#allocation7], %s304
          %s306 = sshll.u32 [#allocation8], 4
          %s307 = int_to_ptr.vmem [resolvable:$true] %s306
          %312 = dma.hbm_to_vmem [thread:$0]  %s4, 256, %s307, [#allocation7], 128, 128, 8
        $region28: #{hq_img_recon.1} parent=11 // pred_fallthru
          _
        // Predicated region
        $region29: #{hq_img_recon.1} parent=11 // pred_check
          %p313 = pneg %p150
        $region30: #{hq_img_recon.1} parent=11 // pred_check_branch
          %315 = sbr.rel (%p313) target = $region32
        $region31: #{hq_img_recon.1} parent=11 // pred_region
          _
        $region32: #{hq_img_recon.1} parent=11 // pred_fallthru
          _
        // Predicated region
        $region33: #{hq_img_recon.1} parent=11 // pred_check
          %p316 = pneg %p171
        $region34: #{hq_img_recon.1} parent=11 // pred_check_branch
          %318 = sbr.rel (%p316) target = $region36
        $region35: #{hq_img_recon.1} parent=11 // pred_region
          %s320 = ssub.s32 2048, 2048
          %321 = vsyncadd [#allocation10], %s320
          %s322 = sshll.u32 [#allocation9], 4
          %s323 = int_to_ptr.vmem [resolvable:$true] %s322
          %328 = dma.hbm_to_vmem [thread:$0]  %s6, 2048, %s323, [#allocation10], 256, 256, 16
        $region36: #{hq_img_recon.1} parent=11 // pred_fallthru
          _
        // Predicated region
        $region37: #{hq_img_recon.1} parent=11 // pred_check
          %p329 = pneg %p192
        $region38: #{hq_img_recon.1} parent=11 // pred_check_branch
          %331 = sbr.rel (%p329) target = $region40
        $region39: #{hq_img_recon.1} parent=11 // pred_region
          _
        $region40: #{hq_img_recon.1} parent=11 // pred_fallthru
          _
        // Predicated region
        $region41: #{hq_img_recon.1} parent=11 // pred_check
          %p332 = pneg %p213
        $region42: #{hq_img_recon.1} parent=11 // pred_check_branch
          %334 = sbr.rel (%p332) target = $region44
        $region43: #{hq_img_recon.1} parent=11 // pred_region
          %s336 = ssub.s32 3840, 3840
          %337 = vsyncadd [#allocation10], %s336
          %s338 = sshll.u32 [#allocation11], 4
          %s339 = int_to_ptr.vmem [resolvable:$true] %s338
          %344 = dma.hbm_to_vmem [thread:$0]  %s8, 3840, %s339, [#allocation10], 640, 640, 40
        $region44: #{hq_img_recon.1} parent=11 // pred_fallthru
          _
        // Predicated region
        $region45: #{hq_img_recon.1} parent=11 // pred_check
          %p345 = pneg %p234
        $region46: #{hq_img_recon.1} parent=11 // pred_check_branch
          %347 = sbr.rel (%p345) target = $region48
        $region47: #{hq_img_recon.1} parent=11 // pred_region
          _
        $region48: #{hq_img_recon.1} parent=11 // pred_fallthru
          _
      $region12: #{hq_img_recon.1} parent=5 // pred_fallthru
        _
      %p348 = scmp.lt.s32.totalorder %s19, 2
      // Predicated region
      $region49: #{hq_img_recon.1} parent=5 // pred_check
        %p349 = pneg %p348
      $region50: #{hq_img_recon.1} parent=5 // pred_check_branch
        %351 = sbr.rel (%p349) target = $region52
      $region51: #{hq_img_recon.1} parent=5 // pred_region
        // Predicated region
        $region53: #{hq_img_recon.1} parent=51 // pred_check
          %p352 = pneg %p39
        $region54: #{hq_img_recon.1} parent=51 // pred_check_branch
          %354 = sbr.rel (%p352) target = $region56
        $region55: #{hq_img_recon.1} parent=51 // pred_region
          %p355 = scmp.lt.s32.totalorder %s19, 1
          %s356 = scalar_select %p355, %s19, 1
          %s357 = smul.addr %s356, 4
          %s358 = smul.addr %s357, 8
          %s359 = scalar_lea.vmem %s0, %s358
        $region56: #{hq_img_recon.1} parent=51 // pred_fallthru
          _
      $region52: #{hq_img_recon.1} parent=5 // pred_fallthru
        _
      %p360 = scmp.le.s32.totalorder 1, %s19
      %p361 = scmp.lt.s32.totalorder %s19, 3
      %p362 = pnand %p360, %p361
      %p363 = pneg %p362
      // Predicated region
      $region57: #{hq_img_recon.1} parent=5 // pred_check
        _
      $region58: #{hq_img_recon.1} parent=5 // pred_check_branch
        %365 = sbr.rel (%p362) target = $region60
      $region59: #{hq_img_recon.1} parent=5 // pred_region
        %s366 = ssub.s32 %s19, 1
        // Predicated region
        $region61: #{hq_img_recon.1} parent=59 // pred_check
          %p367 = pneg %p66
        $region62: #{hq_img_recon.1} parent=59 // pred_check_branch
          %369 = sbr.rel (%p367) target = $region64
        $region63: #{hq_img_recon.1} parent=59 // pred_region
          %370 = dma.done [#allocation5], 64
        $region64: #{hq_img_recon.1} parent=59 // pred_fallthru
          _
        // Predicated region
        $region65: #{hq_img_recon.1} parent=59 // pred_check
          %p371 = pneg %p87
        $region66: #{hq_img_recon.1} parent=59 // pred_check_branch
          %373 = sbr.rel (%p371) target = $region68
        $region67: #{hq_img_recon.1} parent=59 // pred_region
          %374 = dma.done [#allocation7], 256
        $region68: #{hq_img_recon.1} parent=59 // pred_fallthru
          _
        // Predicated region
        $region69: #{hq_img_recon.1} parent=59 // pred_check
          %p375 = pneg %p129
        $region70: #{hq_img_recon.1} parent=59 // pred_check_branch
          %377 = sbr.rel (%p375) target = $region72
        $region71: #{hq_img_recon.1} parent=59 // pred_region
          %378 = dma.done [#allocation7], 256
        $region72: #{hq_img_recon.1} parent=59 // pred_fallthru
          _
        // Predicated region
        $region73: #{hq_img_recon.1} parent=59 // pred_check
          %p379 = pneg %p171
        $region74: #{hq_img_recon.1} parent=59 // pred_check_branch
          %381 = sbr.rel (%p379) target = $region76
        $region75: #{hq_img_recon.1} parent=59 // pred_region
          %382 = dma.done [#allocation10], 2048
        $region76: #{hq_img_recon.1} parent=59 // pred_fallthru
          _
        // Predicated region
        $region77: #{hq_img_recon.1} parent=59 // pred_check
          %p383 = pneg %p213
        $region78: #{hq_img_recon.1} parent=59 // pred_check_branch
          %385 = sbr.rel (%p383) target = $region80
        $region79: #{hq_img_recon.1} parent=59 // pred_region
          %386 = dma.done [#allocation10], 3840
        $region80: #{hq_img_recon.1} parent=59 // pred_fallthru
          _
        %p387 = scmp.lt.s32.totalorder %s24, 1
        %s388 = scalar_select %p387, %s24, 1
        %s389 = smul.addr %s388, 4
        %s390 = smul.addr %s389, 8
        %s391 = scalar_lea.vmem %s0, %s390
        %p392 = pneg %p45
        %p393 = pneg %p42
        %p394 = pneg %p66
        %p395 = pneg %p63
        %p396 = pneg %p87
        %p397 = pneg %p84
        %p398 = pneg %p108
        %p399 = pneg %p105
        %p400 = pneg %p129
        %p401 = pneg %p126
        %p402 = pneg %p150
        %p403 = pneg %p147
        %p404 = pneg %p171
        %p405 = pneg %p168
        %p406 = pneg %p192
        %p407 = pneg %p189
        %p408 = pneg %p213
        %p409 = pneg %p210
        %p410 = pneg %p234
        %p411 = pneg %p231
        %p412 = pneg %p260
        %p413 = pneg %p257
        %p414 = scmp.lt.s32.totalorder %s24, 1
        %s415 = scalar_select %p414, %s24, 1
        %s416 = smul.addr %s415, 12
        %s417 = smul.addr %s416, 8
        %s418 = scalar_lea.vmem %s10, %s417
        %p419 = scmp.lt.s32.totalorder %s24, 1
        %s420 = scalar_select %p419, %s24, 1
        %s421 = smul.addr %s420, 4
        %s422 = smul.addr %s421, 8
        %s423 = scalar_lea.vmem %s0, %s422
        %p424 = scmp.lt.s32.totalorder %s24, 1
        %s425 = scalar_select %p424, %s24, 1
        %s426 = smul.addr %s425, 12
        %s427 = smul.addr %s426, 8
        %s428 = scalar_lea.vmem %s10, %s427
        %429 = vst [vmem:[#allocation2] sm:$0xff] 0.0
        %430 = vst [vmem:[#allocation2 + $0x8] sm:$0xff] 0.0
        %431 = vst [vmem:[#allocation2 + $0x10] sm:$0xff] 0.0
        %432 = vst [vmem:[#allocation2 + $0x18] sm:$0xff] 0.0
        %433 = vst [vmem:[#allocation2 + $0x20] sm:$0xff] 0.0
        %434 = vst [vmem:[#allocation2 + $0x28] sm:$0xff] 0.0
        %435 = vst [vmem:[#allocation2 + $0x30] sm:$0xff] 0.0
        %436 = vst [vmem:[#allocation2 + $0x38] sm:$0xff] 0.0
        %437 = vst [vmem:[#allocation2 + $0x40] sm:$0xff] 0.0
        %438 = vst [vmem:[#allocation2 + $0x48] sm:$0xff] 0.0
        %439 = vst [vmem:[#allocation2 + $0x50] sm:$0xff] 0.0
        %440 = vst [vmem:[#allocation2 + $0x58] sm:$0xff] 0.0
        %441 = vst [vmem:[#allocation2 + $0x60] sm:$0xff] 0.0
        %442 = vst [vmem:[#allocation2 + $0x68] sm:$0xff] 0.0
        %443 = vst [vmem:[#allocation2 + $0x70] sm:$0xff] 0.0
        %444 = vst [vmem:[#allocation2 + $0x78] sm:$0xff] 0.0
        %445 = vst [vmem:[#allocation2 + $0x80] sm:$0xff] 0.0
        %446 = vst [vmem:[#allocation2 + $0x88] sm:$0xff] 0.0
        %447 = vst [vmem:[#allocation2 + $0x90] sm:$0xff] 0.0
        %448 = vst [vmem:[#allocation2 + $0x98] sm:$0xff] 0.0
        %449 = vst [vmem:[#allocation2 + $0xa0] sm:$0xff] 0.0
        %450 = vst [vmem:[#allocation2 + $0xa8] sm:$0xff] 0.0
        %451 = vst [vmem:[#allocation2 + $0xb0] sm:$0xff] 0.0
        %452 = vst [vmem:[#allocation2 + $0xb8] sm:$0xff] 0.0
        %453 = vst [vmem:[#allocation2 + $0xc0] sm:$0xff] 0.0
        %454 = vst [vmem:[#allocation2 + $0xc8] sm:$0xff] 0.0
        %455 = vst [vmem:[#allocation2 + $0xd0] sm:$0xff] 0.0
        %456 = vst [vmem:[#allocation2 + $0xd8] sm:$0xff] 0.0
        %457 = vst [vmem:[#allocation2 + $0xe0] sm:$0xff] 0.0
        %458 = vst [vmem:[#allocation2 + $0xe8] sm:$0xff] 0.0
        %459 = vst [vmem:[#allocation2 + $0xf0] sm:$0xff] 0.0
        %460 = vst [vmem:[#allocation2 + $0xf8] sm:$0xff] 0.0
        %v461 = vld [vmem:[#allocation4] ss:$2 sm:$0x3]
        %s462 = scalar_lea.vmem [#allocation4], 1
        %v463 = vld [vmem:[%s462] ss:$2 sm:$0x3]
        %v464 = vld [vmem:[%s423] sm:$0xff]
        %v465 = vld [vmem:[%s423 + $0x8] sm:$0xff]
        %v466 = vld [vmem:[%s423 + $0x10] sm:$0xff]
        %v467 = vld [vmem:[%s423 + $0x18] sm:$0xff]
        %468 = vst [vmem:[#allocation2 + $0x8] sm:$0xff] %v464
        %469 = vst [vmem:[#allocation2 + $0x10] sm:$0xff] %v465
        %470 = vst [vmem:[#allocation2 + $0x28] sm:$0xff] %v466
        %471 = vst [vmem:[#allocation2 + $0x30] sm:$0xff] %v467
        %v472 = vld [vmem:[#allocation2] sm:$0xff]
        %v473 = vld [vmem:[#allocation2 + $0x8] sm:$0xff]
        %v474 = vld [vmem:[#allocation2 + $0x10] sm:$0xff]
        %v475 = vld [vmem:[#allocation2 + $0x20] sm:$0xff]
        %v476 = vld [vmem:[#allocation2 + $0x28] sm:$0xff]
        %v477 = vld [vmem:[#allocation2 + $0x30] sm:$0xff]
        %v479 = vlaneseq
        %v480 = vshrl.u32 %v479, 7
        %v481 = vsub.s32 0, %v480
        %v482 = vrot.slane %v461, %v481
        %v483 = vlaneseq
        %v484 = vshrl.u32 %v483, 7
        %v485 = vsub.s32 1, %v484
        %v486 = vrot.slane %v461, %v485
        %487 = vrot.lane.b32.xlu0 %v482, 111
        %v488 = vpop.permute.xlu0 %487
        %489 = vrot.lane.b32.xlu0 %v486, 111
        %v490 = vpop.permute.xlu0 %489
        %vm491 = vcmask 908288
        %v492 = vsel %vm491, %v488, %v490
        %v496 = vmul.f32 %v472, %v488
        %v497 = vmul.f32 %v473, %v492
        %v498 = vmul.f32 %v474, %v490
        %v499 = vmul.f32 %v475, %v488
        %v500 = vmul.f32 %v476, %v492
        %v501 = vmul.f32 %v477, %v490
        %508 = vrot.lane.b32.xlu0 %v496, 17
        %v509 = vpop.permute.xlu0 %508
        %510 = vrot.lane.b32.xlu0 %v497, 17
        %v511 = vpop.permute.xlu0 %510
        %512 = vrot.lane.b32.xlu0 %v498, 17
        %v513 = vpop.permute.xlu0 %512
        %514 = vrot.lane.b32.xlu0 %v499, 17
        %v515 = vpop.permute.xlu0 %514
        %516 = vrot.lane.b32.xlu0 %v500, 17
        %v517 = vpop.permute.xlu0 %516
        %518 = vrot.lane.b32.xlu0 %v501, 17
        %v519 = vpop.permute.xlu0 %518
        %vm520 = vcmask 138240
        %v521 = vsel %vm520, %v509, %v511
        %v522 = vsel %vm520, %v511, %v513
        %v523 = vsel %vm520, %v515, %v517
        %v524 = vsel %vm520, %v517, %v519
        %529 = vst [vmem:[#allocation3] sm:$0xff] %v521
        %530 = vst [vmem:[#allocation3 + $0x8] sm:$0xff] %v522
        %531 = vst [vmem:[#allocation3 + $0x10] sm:$0xff] %v523
        %532 = vst [vmem:[#allocation3 + $0x18] sm:$0xff] %v524
        %v533 = vld [vmem:[#allocation2] sm:$0xff]
        %v534 = vld [vmem:[#allocation2 + $0x8] sm:$0xff]
        %v535 = vld [vmem:[#allocation2 + $0x10] sm:$0xff]
        %v536 = vld [vmem:[#allocation2 + $0x20] sm:$0xff]
        %v537 = vld [vmem:[#allocation2 + $0x28] sm:$0xff]
        %v538 = vld [vmem:[#allocation2 + $0x30] sm:$0xff]
        %545 = vrot.lane.b32.xlu0 %v533, 16
        %v546 = vpop.permute.xlu0 %545
        %547 = vrot.lane.b32.xlu0 %v534, 16
        %v548 = vpop.permute.xlu0 %547
        %549 = vrot.lane.b32.xlu0 %v535, 16
        %v550 = vpop.permute.xlu0 %549
        %551 = vrot.lane.b32.xlu0 %v536, 16
        %v552 = vpop.permute.xlu0 %551
        %553 = vrot.lane.b32.xlu0 %v537, 16
        %v554 = vpop.permute.xlu0 %553
        %555 = vrot.lane.b32.xlu0 %v538, 16
        %v556 = vpop.permute.xlu0 %555
        %vm557 = vcmask 130048
        %v558 = vsel %vm557, %v546, %v548
        %v559 = vsel %vm557, %v548, %v550
        %v560 = vsel %vm557, %v552, %v554
        %v561 = vsel %vm557, %v554, %v556
        %566 = vst [vmem:[#allocation3 + $0x20] sm:$0xff] %v558
        %567 = vst [vmem:[#allocation3 + $0x28] sm:$0xff] %v559
        %568 = vst [vmem:[#allocation3 + $0x30] sm:$0xff] %v560
        %569 = vst [vmem:[#allocation3 + $0x38] sm:$0xff] %v561
        %v570 = vld [vmem:[#allocation2] sm:$0xff]
        %v571 = vld [vmem:[#allocation2 + $0x8] sm:$0xff]
        %v572 = vld [vmem:[#allocation2 + $0x10] sm:$0xff]
        %v573 = vld [vmem:[#allocation2 + $0x20] sm:$0xff]
        %v574 = vld [vmem:[#allocation2 + $0x28] sm:$0xff]
        %v575 = vld [vmem:[#allocation2 + $0x30] sm:$0xff]
        %v577 = vlaneseq
        %v578 = vshrl.u32 %v577, 7
        %v579 = vsub.s32 0, %v578
        %v580 = vrot.slane %v463, %v579
        %v581 = vlaneseq
        %v582 = vshrl.u32 %v581, 7
        %v583 = vsub.s32 1, %v582
        %v584 = vrot.slane %v463, %v583
        %585 = vrot.lane.b32.xlu0 %v580, 113
        %v586 = vpop.permute.xlu0 %585
        %587 = vrot.lane.b32.xlu0 %v584, 113
        %v588 = vpop.permute.xlu0 %587
        %vm589 = vcmask 924672
        %v590 = vsel %vm589, %v586, %v588
        %v594 = vmul.f32 %v570, %v586
        %v595 = vmul.f32 %v571, %v590
        %v596 = vmul.f32 %v572, %v588
        %v597 = vmul.f32 %v573, %v586
        %v598 = vmul.f32 %v574, %v590
        %v599 = vmul.f32 %v575, %v588
        %606 = vrot.lane.b32.xlu0 %v594, 15
        %v607 = vpop.permute.xlu0 %606
        %608 = vrot.lane.b32.xlu0 %v595, 15
        %v609 = vpop.permute.xlu0 %608
        %610 = vrot.lane.b32.xlu0 %v596, 15
        %v611 = vpop.permute.xlu0 %610
        %612 = vrot.lane.b32.xlu0 %v597, 15
        %v613 = vpop.permute.xlu0 %612
        %614 = vrot.lane.b32.xlu0 %v598, 15
        %v615 = vpop.permute.xlu0 %614
        %616 = vrot.lane.b32.xlu0 %v599, 15
        %v617 = vpop.permute.xlu0 %616
        %vm618 = vcmask 121856
        %v619 = vsel %vm618, %v607, %v609
        %v620 = vsel %vm618, %v609, %v611
        %v621 = vsel %vm618, %v613, %v615
        %v622 = vsel %vm618, %v615, %v617
        %627 = vst [vmem:[#allocation3 + $0x40] sm:$0xff] %v619
        %628 = vst [vmem:[#allocation3 + $0x48] sm:$0xff] %v620
        %629 = vst [vmem:[#allocation3 + $0x50] sm:$0xff] %v621
        %630 = vst [vmem:[#allocation3 + $0x58] sm:$0xff] %v622
        %v631 = vld [vmem:[#allocation2] sm:$0xff]
        %v632 = vld [vmem:[#allocation2 + $0x8] sm:$0xff]
        %v633 = vld [vmem:[#allocation2 + $0x10] sm:$0xff]
        %v634 = vld [vmem:[#allocation2 + $0x20] sm:$0xff]
        %v635 = vld [vmem:[#allocation2 + $0x28] sm:$0xff]
        %v636 = vld [vmem:[#allocation2 + $0x30] sm:$0xff]
        %637 = vrot.lane.b32.xlu0 %v482, 127
        %v638 = vpop.permute.xlu0 %637
        %639 = vrot.lane.b32.xlu0 %v486, 127
        %v640 = vpop.permute.xlu0 %639
        %vm641 = vcmask 1039360
        %v642 = vsel %vm641, %v638, %v640
        %v646 = vmul.f32 %v631, %v638
        %v647 = vmul.f32 %v632, %v642
        %v648 = vmul.f32 %v633, %v640
        %v649 = vmul.f32 %v634, %v638
        %v650 = vmul.f32 %v635, %v642
        %v651 = vmul.f32 %v636, %v640
        %658 = vrot.lane.b32.xlu0 %v646, 1
        %v659 = vpop.permute.xlu0 %658
        %660 = vrot.lane.b32.xlu0 %v647, 1
        %v661 = vpop.permute.xlu0 %660
        %662 = vrot.lane.b32.xlu0 %v648, 1
        %v663 = vpop.permute.xlu0 %662
        %664 = vrot.lane.b32.xlu0 %v649, 1
        %v665 = vpop.permute.xlu0 %664
        %666 = vrot.lane.b32.xlu0 %v650, 1
        %v667 = vpop.permute.xlu0 %666
        %668 = vrot.lane.b32.xlu0 %v651, 1
        %v669 = vpop.permute.xlu0 %668
        %vm670 = vcmask 7168
        %v671 = vsel %vm670, %v659, %v661
        %v672 = vsel %vm670, %v661, %v663
        %v673 = vsel %vm670, %v665, %v667
        %v674 = vsel %vm670, %v667, %v669
        %679 = vst [vmem:[#allocation3 + $0x60] sm:$0xff] %v671
        %680 = vst [vmem:[#allocation3 + $0x68] sm:$0xff] %v672
        %681 = vst [vmem:[#allocation3 + $0x70] sm:$0xff] %v673
        %682 = vst [vmem:[#allocation3 + $0x78] sm:$0xff] %v674
        %v683 = vld [vmem:[#allocation2 + $0x8] sm:$0xff]
        %v684 = vld [vmem:[#allocation2 + $0x10] sm:$0xff]
        %v685 = vld [vmem:[#allocation2 + $0x28] sm:$0xff]
        %v686 = vld [vmem:[#allocation2 + $0x30] sm:$0xff]
        %687 = vst [vmem:[#allocation3 + $0x80] sm:$0xff] %v683
        %688 = vst [vmem:[#allocation3 + $0x88] sm:$0xff] %v684
        %689 = vst [vmem:[#allocation3 + $0x90] sm:$0xff] %v685
        %690 = vst [vmem:[#allocation3 + $0x98] sm:$0xff] %v686
        %v691 = vld [vmem:[#allocation2 + $0x8] sm:$0xff]
        %v692 = vld [vmem:[#allocation2 + $0x10] sm:$0xff]
        %v693 = vld [vmem:[#allocation2 + $0x18] sm:$0xff]
        %v694 = vld [vmem:[#allocation2 + $0x28] sm:$0xff]
        %v695 = vld [vmem:[#allocation2 + $0x30] sm:$0xff]
        %v696 = vld [vmem:[#allocation2 + $0x38] sm:$0xff]
        %697 = vrot.lane.b32.xlu0 %v580, 1
        %v698 = vpop.permute.xlu0 %697
        %699 = vrot.lane.b32.xlu0 %v584, 1
        %v700 = vpop.permute.xlu0 %699
        %v701 = vsel %vm670, %v698, %v700
        %v705 = vmul.f32 %v691, %v698
        %v706 = vmul.f32 %v692, %v701
        %v707 = vmul.f32 %v693, %v700
        %v708 = vmul.f32 %v694, %v698
        %v709 = vmul.f32 %v695, %v701
        %v710 = vmul.f32 %v696, %v700
        %717 = vrot.lane.b32.xlu0 %v705, 127
        %v718 = vpop.permute.xlu0 %717
        %719 = vrot.lane.b32.xlu0 %v706, 127
        %v720 = vpop.permute.xlu0 %719
        %721 = vrot.lane.b32.xlu0 %v707, 127
        %v722 = vpop.permute.xlu0 %721
        %723 = vrot.lane.b32.xlu0 %v708, 127
        %v724 = vpop.permute.xlu0 %723
        %725 = vrot.lane.b32.xlu0 %v709, 127
        %v726 = vpop.permute.xlu0 %725
        %727 = vrot.lane.b32.xlu0 %v710, 127
        %v728 = vpop.permute.xlu0 %727
        %v729 = vsel %vm641, %v718, %v720
        %v730 = vsel %vm641, %v720, %v722
        %v731 = vsel %vm641, %v724, %v726
        %v732 = vsel %vm641, %v726, %v728
        %737 = vst [vmem:[#allocation3 + $0xa0] sm:$0xff] %v729
        %738 = vst [vmem:[#allocation3 + $0xa8] sm:$0xff] %v730
        %739 = vst [vmem:[#allocation3 + $0xb0] sm:$0xff] %v731
        %740 = vst [vmem:[#allocation3 + $0xb8] sm:$0xff] %v732
        %v741 = vld [vmem:[#allocation2 + $0x8] sm:$0xff]
        %v742 = vld [vmem:[#allocation2 + $0x10] sm:$0xff]
        %v743 = vld [vmem:[#allocation2 + $0x18] sm:$0xff]
        %v744 = vld [vmem:[#allocation2 + $0x28] sm:$0xff]
        %v745 = vld [vmem:[#allocation2 + $0x30] sm:$0xff]
        %v746 = vld [vmem:[#allocation2 + $0x38] sm:$0xff]
        %747 = vrot.lane.b32.xlu0 %v482, 15
        %v748 = vpop.permute.xlu0 %747
        %749 = vrot.lane.b32.xlu0 %v486, 15
        %v750 = vpop.permute.xlu0 %749
        %v751 = vsel %vm618, %v748, %v750
        %v755 = vmul.f32 %v741, %v748
        %v756 = vmul.f32 %v742, %v751
        %v757 = vmul.f32 %v743, %v750
        %v758 = vmul.f32 %v744, %v748
        %v759 = vmul.f32 %v745, %v751
        %v760 = vmul.f32 %v746, %v750
        %767 = vrot.lane.b32.xlu0 %v755, 113
        %v768 = vpop.permute.xlu0 %767
        %769 = vrot.lane.b32.xlu0 %v756, 113
        %v770 = vpop.permute.xlu0 %769
        %771 = vrot.lane.b32.xlu0 %v757, 113
        %v772 = vpop.permute.xlu0 %771
        %773 = vrot.lane.b32.xlu0 %v758, 113
        %v774 = vpop.permute.xlu0 %773
        %775 = vrot.lane.b32.xlu0 %v759, 113
        %v776 = vpop.permute.xlu0 %775
        %777 = vrot.lane.b32.xlu0 %v760, 113
        %v778 = vpop.permute.xlu0 %777
        %v779 = vsel %vm589, %v768, %v770
        %v780 = vsel %vm589, %v770, %v772
        %v781 = vsel %vm589, %v774, %v776
        %v782 = vsel %vm589, %v776, %v778
        %787 = vst [vmem:[#allocation3 + $0xc0] sm:$0xff] %v779
        %788 = vst [vmem:[#allocation3 + $0xc8] sm:$0xff] %v780
        %789 = vst [vmem:[#allocation3 + $0xd0] sm:$0xff] %v781
        %790 = vst [vmem:[#allocation3 + $0xd8] sm:$0xff] %v782
        %v791 = vld [vmem:[#allocation2 + $0x8] sm:$0xff]
        %v792 = vld [vmem:[#allocation2 + $0x10] sm:$0xff]
        %v793 = vld [vmem:[#allocation2 + $0x18] sm:$0xff]
        %v794 = vld [vmem:[#allocation2 + $0x28] sm:$0xff]
        %v795 = vld [vmem:[#allocation2 + $0x30] sm:$0xff]
        %v796 = vld [vmem:[#allocation2 + $0x38] sm:$0xff]
        %803 = vrot.lane.b32.xlu0 %v791, 112
        %v804 = vpop.permute.xlu0 %803
        %805 = vrot.lane.b32.xlu0 %v792, 112
        %v806 = vpop.permute.xlu0 %805
        %807 = vrot.lane.b32.xlu0 %v793, 112
        %v808 = vpop.permute.xlu0 %807
        %809 = vrot.lane.b32.xlu0 %v794, 112
        %v810 = vpop.permute.xlu0 %809
        %811 = vrot.lane.b32.xlu0 %v795, 112
        %v812 = vpop.permute.xlu0 %811
        %813 = vrot.lane.b32.xlu0 %v796, 112
        %v814 = vpop.permute.xlu0 %813
        %vm815 = vcmask 916480
        %v816 = vsel %vm815, %v804, %v806
        %v817 = vsel %vm815, %v806, %v808
        %v818 = vsel %vm815, %v810, %v812
        %v819 = vsel %vm815, %v812, %v814
        %824 = vst [vmem:[#allocation3 + $0xe0] sm:$0xff] %v816
        %825 = vst [vmem:[#allocation3 + $0xe8] sm:$0xff] %v817
        %826 = vst [vmem:[#allocation3 + $0xf0] sm:$0xff] %v818
        %827 = vst [vmem:[#allocation3 + $0xf8] sm:$0xff] %v819
        %v828 = vld [vmem:[#allocation2 + $0x8] sm:$0xff]
        %v829 = vld [vmem:[#allocation2 + $0x10] sm:$0xff]
        %v830 = vld [vmem:[#allocation2 + $0x18] sm:$0xff]
        %v831 = vld [vmem:[#allocation2 + $0x28] sm:$0xff]
        %v832 = vld [vmem:[#allocation2 + $0x30] sm:$0xff]
        %v833 = vld [vmem:[#allocation2 + $0x38] sm:$0xff]
        %834 = vrot.lane.b32.xlu0 %v580, 17
        %v835 = vpop.permute.xlu0 %834
        %836 = vrot.lane.b32.xlu0 %v584, 17
        %v837 = vpop.permute.xlu0 %836
        %v838 = vsel %vm520, %v835, %v837
        %v842 = vmul.f32 %v828, %v835
        %v843 = vmul.f32 %v829, %v838
        %v844 = vmul.f32 %v830, %v837
        %v845 = vmul.f32 %v831, %v835
        %v846 = vmul.f32 %v832, %v838
        %v847 = vmul.f32 %v833, %v837
        %854 = vrot.lane.b32.xlu0 %v842, 111
        %v855 = vpop.permute.xlu0 %854
        %856 = vrot.lane.b32.xlu0 %v843, 111
        %v857 = vpop.permute.xlu0 %856
        %858 = vrot.lane.b32.xlu0 %v844, 111
        %v859 = vpop.permute.xlu0 %858
        %860 = vrot.lane.b32.xlu0 %v845, 111
        %v861 = vpop.permute.xlu0 %860
        %862 = vrot.lane.b32.xlu0 %v846, 111
        %v863 = vpop.permute.xlu0 %862
        %864 = vrot.lane.b32.xlu0 %v847, 111
        %v865 = vpop.permute.xlu0 %864
        %v866 = vsel %vm491, %v855, %v857
        %v867 = vsel %vm491, %v857, %v859
        %v868 = vsel %vm491, %v861, %v863
        %v869 = vsel %vm491, %v863, %v865
        %874 = vst [vmem:[#allocation3 + $0x100] sm:$0xff] %v866
        %875 = vst [vmem:[#allocation3 + $0x108] sm:$0xff] %v867
        %876 = vst [vmem:[#allocation3 + $0x110] sm:$0xff] %v868
        %877 = vst [vmem:[#allocation3 + $0x118] sm:$0xff] %v869
        %v878 = vld [vmem:[#allocation6] sm:$0xff]
        %v879 = vld [vmem:[#allocation6 + $0x8] sm:$0xff]
        %v880 = vld [vmem:[#allocation3] sm:$0xff]
        %v881 = vld [vmem:[#allocation3 + $0x8] sm:$0xff]
        %v882 = vld [vmem:[#allocation3 + $0x10] sm:$0xff]
        %v883 = vld [vmem:[#allocation3 + $0x18] sm:$0xff]
        %v884 = vld [vmem:[#allocation3 + $0x20] sm:$0xff]
        %v885 = vld [vmem:[#allocation3 + $0x28] sm:$0xff]
        %v886 = vld [vmem:[#allocation3 + $0x30] sm:$0xff]
        %v887 = vld [vmem:[#allocation3 + $0x38] sm:$0xff]
        %v888 = vld [vmem:[#allocation3 + $0x40] sm:$0xff]
        %v889 = vld [vmem:[#allocation3 + $0x48] sm:$0xff]
        %v890 = vld [vmem:[#allocation3 + $0x50] sm:$0xff]
        %v891 = vld [vmem:[#allocation3 + $0x58] sm:$0xff]
        %v892 = vld [vmem:[#allocation3 + $0x60] sm:$0xff]
        %v893 = vld [vmem:[#allocation3 + $0x68] sm:$0xff]
        %v894 = vld [vmem:[#allocation3 + $0x70] sm:$0xff]
        %v895 = vld [vmem:[#allocation3 + $0x78] sm:$0xff]
        %v896 = vld [vmem:[#allocation3 + $0x80] sm:$0xff]
        %v897 = vld [vmem:[#allocation3 + $0x88] sm:$0xff]
        %v898 = vld [vmem:[#allocation3 + $0x90] sm:$0xff]
        %v899 = vld [vmem:[#allocation3 + $0x98] sm:$0xff]
        %v900 = vld [vmem:[#allocation3 + $0xa0] sm:$0xff]
        %v901 = vld [vmem:[#allocation3 + $0xa8] sm:$0xff]
        %v902 = vld [vmem:[#allocation3 + $0xb0] sm:$0xff]
        %v903 = vld [vmem:[#allocation3 + $0xb8] sm:$0xff]
        %v904 = vld [vmem:[#allocation3 + $0xc0] sm:$0xff]
        %v905 = vld [vmem:[#allocation3 + $0xc8] sm:$0xff]
        %v906 = vld [vmem:[#allocation3 + $0xd0] sm:$0xff]
        %v907 = vld [vmem:[#allocation3 + $0xd8] sm:$0xff]
        %v908 = vld [vmem:[#allocation3 + $0xe0] sm:$0xff]
        %v909 = vld [vmem:[#allocation3 + $0xe8] sm:$0xff]
        %v910 = vld [vmem:[#allocation3 + $0xf0] sm:$0xff]
        %v911 = vld [vmem:[#allocation3 + $0xf8] sm:$0xff]
        %v912 = vld [vmem:[#allocation3 + $0x100] sm:$0xff]
        %v913 = vld [vmem:[#allocation3 + $0x108] sm:$0xff]
        %v914 = vld [vmem:[#allocation3 + $0x110] sm:$0xff]
        %v915 = vld [vmem:[#allocation3 + $0x118] sm:$0xff]
        %v916 = vld [vmem:[%s3] sm:$0xff]
        %918 = vset.pattern.permute.xlu0 0
        %919 = vperm.xlu0 %918, %v916
        %v920 = vpop.permute.xlu0 %919
        %v923 = vsel %vm557, %v879, 0
        %v925 = vand.u32 %v881, 4294901760
        %926 = vmatprep.subr.mxu0 %v925
        %v927 = vand.u32 %v880, 4294901760
        %928 = vmatpush1.msra.mxu0 %v927
        %v929 = vand.u32 %v883, 4294901760
        %930 = vmatprep.subr.mxu0 %v929
        %v931 = vand.u32 %v882, 4294901760
        %932 = vmatpush1.msra.mxu0 %v931
        %v933 = vand.u32 %v885, 4294901760
        %934 = vmatprep.subr.mxu0 %v933
        %v935 = vand.u32 %v884, 4294901760
        %936 = vmatpush1.msra.mxu0 %v935
        %v937 = vand.u32 %v887, 4294901760
        %938 = vmatprep.subr.mxu0 %v937
        %v939 = vand.u32 %v886, 4294901760
        %940 = vmatpush1.msra.mxu0 %v939
        %v941 = vand.u32 %v889, 4294901760
        %942 = vmatprep.subr.mxu0 %v941
        %v943 = vand.u32 %v888, 4294901760
        %944 = vmatpush1.msra.mxu0 %v943
        %v945 = vand.u32 %v891, 4294901760
        %946 = vmatprep.subr.mxu0 %v945
        %v947 = vand.u32 %v890, 4294901760
        %948 = vmatpush1.msra.mxu0 %v947
        %v949 = vand.u32 %v893, 4294901760
        %950 = vmatprep.subr.mxu0 %v949
        %v951 = vand.u32 %v892, 4294901760
        %952 = vmatpush1.msra.mxu0 %v951
        %v953 = vand.u32 %v895, 4294901760
        %954 = vmatprep.subr.mxu0 %v953
        %v955 = vand.u32 %v894, 4294901760
        %956 = vmatpush1.msra.mxu0 %v955
        %v957 = vand.u32 %v897, 4294901760
        %958 = vmatprep.subr.mxu0 %v957
        %v959 = vand.u32 %v896, 4294901760
        %960 = vmatpush1.msra.mxu0 %v959
        %v961 = vand.u32 %v899, 4294901760
        %962 = vmatprep.subr.mxu0 %v961
        %v963 = vand.u32 %v898, 4294901760
        %964 = vmatpush1.msra.mxu0 %v963
        %v965 = vand.u32 %v901, 4294901760
        %966 = vmatprep.subr.mxu0 %v965
        %v967 = vand.u32 %v900, 4294901760
        %968 = vmatpush1.msra.mxu0 %v967
        %v969 = vand.u32 %v903, 4294901760
        %970 = vmatprep.subr.mxu0 %v969
        %v971 = vand.u32 %v902, 4294901760
        %972 = vmatpush1.msra.mxu0 %v971
        %v973 = vand.u32 %v905, 4294901760
        %974 = vmatprep.subr.mxu0 %v973
        %v975 = vand.u32 %v904, 4294901760
        %976 = vmatpush1.msra.mxu0 %v975
        %v977 = vand.u32 %v907, 4294901760
        %978 = vmatprep.subr.mxu0 %v977
        %v979 = vand.u32 %v906, 4294901760
        %980 = vmatpush1.msra.mxu0 %v979
        %v981 = vand.u32 %v909, 4294901760
        %982 = vmatprep.subr.mxu0 %v981
        %v983 = vand.u32 %v908, 4294901760
        %984 = vmatpush1.msra.mxu0 %v983
        %v985 = vand.u32 %v911, 4294901760
        %986 = vmatprep.subr.mxu0 %v985
        %v987 = vand.u32 %v910, 4294901760
        %988 = vmatpush1.msra.mxu0 %v987
        %v989 = vand.u32 %v913, 4294901760
        %990 = vmatprep.subr.mxu0 %v989
        %v991 = vand.u32 %v912, 4294901760
        %992 = vmatpush1.msra.mxu0 %v991
        %v993 = vand.u32 %v915, 4294901760
        %994 = vmatprep.subr.mxu0 %v993
        %v995 = vand.u32 %v914, 4294901760
        %996 = vmatpush1.msra.mxu0 %v995
        %997 = vmatprep.subr.mxu0 0.0
        %998 = vmatpush1.msra.mxu0 0.0
        %999 = vmatprep.subr.mxu0 0.0
        %1000 = vmatpush1.msra.mxu0 0.0
        %1001 = vmatprep.subr.mxu0 0.0
        %1002 = vmatpush1.msra.mxu0 0.0
        %1003 = vmatprep.subr.mxu0 0.0
        %1004 = vmatpush1.msra.mxu0 0.0
        %1005 = vmatprep.subr.mxu0 0.0
        %1006 = vmatpush1.msra.mxu0 0.0
        %1007 = vmatprep.subr.mxu0 0.0
        %1008 = vmatpush1.msra.mxu0 0.0
        %1009 = vmatprep.subr.mxu0 0.0
        %1010 = vmatpush1.msra.mxu0 0.0
        %1011 = vmatprep.subr.mxu0 0.0
        %1012 = vmatpush1.msra.mxu0 0.0
        %1013 = vmatprep.subr.mxu0 0.0
        %1014 = vmatpush1.msra.mxu0 0.0
        %1015 = vmatprep.subr.mxu0 0.0
        %1016 = vmatpush1.msra.mxu0 0.0
        %1017 = vmatprep.subr.mxu0 0.0
        %1018 = vmatpush1.msra.mxu0 0.0
        %1019 = vmatprep.subr.mxu0 0.0
        %1020 = vmatpush1.msra.mxu0 0.0
        %1021 = vmatprep.subr.mxu0 0.0
        %1022 = vmatpush1.msra.mxu0 0.0
        %1023 = vmatprep.subr.mxu0 0.0
        %1024 = vmatpush1.msra.mxu0 0.0
        %v1025 = vand.u32 %v923, 4294901760
        %v1026 = vsub.f32 %v923, %v1025
        %v1027 = vand.u32 %v1026, 4294901760
        %v1028 = vsub.f32 %v1026, %v1027
        %v1029 = vand.u32 %v1028, 4294901760
        %1030 = vmatprep.mubr.f32.mxu0 %v1029
        %v1031 = vand.u32 %v878, 4294901760
        %v1032 = vsub.f32 %v878, %v1031
        %v1033 = vand.u32 %v1032, 4294901760
        %v1034 = vsub.f32 %v1032, %v1033
        %v1035 = vand.u32 %v1034, 4294901760
        %1036 = vmatmul.mubr.f32.gmra.mrb[0].mxu0 %v1035
        %v1037 = vpop.f32.mrb[0].mxu0
        %v1038 = vadd.f32 %v920, %v1037
        %v1039 = vpop.f32.mrb[0].mxu0
        %v1040 = vadd.f32 %v920, %v1039
        %1041 = vdwg.mxu0
        %v1042 = vand.u32 %v881, 4294901760
        %v1043 = vsub.f32 %v881, %v1042
        %v1044 = vand.u32 %v1043, 4294901760
        %v1045 = vsub.f32 %v1043, %v1044
        %v1046 = vand.u32 %v1045, 4294901760
        %1047 = vmatprep.subr.mxu0 %v1046
        %v1048 = vand.u32 %v880, 4294901760
        %v1049 = vsub.f32 %v880, %v1048
        %v1050 = vand.u32 %v1049, 4294901760
        %v1051 = vsub.f32 %v1049, %v1050
        %v1052 = vand.u32 %v1051, 4294901760
        %1053 = vmatpush1.msra.mxu0 %v1052
        %v1054 = vand.u32 %v883, 4294901760
        %v1055 = vsub.f32 %v883, %v1054
        %v1056 = vand.u32 %v1055, 4294901760
        %v1057 = vsub.f32 %v1055, %v1056
        %v1058 = vand.u32 %v1057, 4294901760
        %1059 = vmatprep.subr.mxu0 %v1058
        %v1060 = vand.u32 %v882, 4294901760
        %v1061 = vsub.f32 %v882, %v1060
        %v1062 = vand.u32 %v1061, 4294901760
        %v1063 = vsub.f32 %v1061, %v1062
        %v1064 = vand.u32 %v1063, 4294901760
        %1065 = vmatpush1.msra.mxu0 %v1064
        %v1066 = vand.u32 %v885, 4294901760
        %v1067 = vsub.f32 %v885, %v1066
        %v1068 = vand.u32 %v1067, 4294901760
        %v1069 = vsub.f32 %v1067, %v1068
        %v1070 = vand.u32 %v1069, 4294901760
        %1071 = vmatprep.subr.mxu0 %v1070
        %v1072 = vand.u32 %v884, 4294901760
        %v1073 = vsub.f32 %v884, %v1072
        %v1074 = vand.u32 %v1073, 4294901760
        %v1075 = vsub.f32 %v1073, %v1074
        %v1076 = vand.u32 %v1075, 4294901760
        %1077 = vmatpush1.msra.mxu0 %v1076
        %v1078 = vand.u32 %v887, 4294901760
        %v1079 = vsub.f32 %v887, %v1078
        %v1080 = vand.u32 %v1079, 4294901760
        %v1081 = vsub.f32 %v1079, %v1080
        %v1082 = vand.u32 %v1081, 4294901760
        %1083 = vmatprep.subr.mxu0 %v1082
        %v1084 = vand.u32 %v886, 4294901760
        %v1085 = vsub.f32 %v886, %v1084
        %v1086 = vand.u32 %v1085, 4294901760
        %v1087 = vsub.f32 %v1085, %v1086
        %v1088 = vand.u32 %v1087, 4294901760
        %1089 = vmatpush1.msra.mxu0 %v1088
        %v1090 = vand.u32 %v889, 4294901760
        %v1091 = vsub.f32 %v889, %v1090
        %v1092 = vand.u32 %v1091, 4294901760
        %v1093 = vsub.f32 %v1091, %v1092
        %v1094 = vand.u32 %v1093, 4294901760
        %1095 = vmatprep.subr.mxu0 %v1094
        %v1096 = vand.u32 %v888, 4294901760
        %v1097 = vsub.f32 %v888, %v1096
        %v1098 = vand.u32 %v1097, 4294901760
        %v1099 = vsub.f32 %v1097, %v1098
        %v1100 = vand.u32 %v1099, 4294901760
        %1101 = vmatpush1.msra.mxu0 %v1100
        %v1102 = vand.u32 %v891, 4294901760
        %v1103 = vsub.f32 %v891, %v1102
        %v1104 = vand.u32 %v1103, 4294901760
        %v1105 = vsub.f32 %v1103, %v1104
        %v1106 = vand.u32 %v1105, 4294901760
        %1107 = vmatprep.subr.mxu0 %v1106
        %v1108 = vand.u32 %v890, 4294901760
        %v1109 = vsub.f32 %v890, %v1108
        %v1110 = vand.u32 %v1109, 4294901760
        %v1111 = vsub.f32 %v1109, %v1110
        %v1112 = vand.u32 %v1111, 4294901760
        %1113 = vmatpush1.msra.mxu0 %v1112
        %v1114 = vand.u32 %v893, 4294901760
        %v1115 = vsub.f32 %v893, %v1114
        %v1116 = vand.u32 %v1115, 4294901760
        %v1117 = vsub.f32 %v1115, %v1116
        %v1118 = vand.u32 %v1117, 4294901760
        %1119 = vmatprep.subr.mxu0 %v1118
        %v1120 = vand.u32 %v892, 4294901760
        %v1121 = vsub.f32 %v892, %v1120
        %v1122 = vand.u32 %v1121, 4294901760
        %v1123 = vsub.f32 %v1121, %v1122
        %v1124 = vand.u32 %v1123, 4294901760
        %1125 = vmatpush1.msra.mxu0 %v1124
        %v1126 = vand.u32 %v895, 4294901760
        %v1127 = vsub.f32 %v895, %v1126
        %v1128 = vand.u32 %v1127, 4294901760
        %v1129 = vsub.f32 %v1127, %v1128
        %v1130 = vand.u32 %v1129, 4294901760
        %1131 = vmatprep.subr.mxu0 %v1130
        %v1132 = vand.u32 %v894, 4294901760
        %v1133 = vsub.f32 %v894, %v1132
        %v1134 = vand.u32 %v1133, 4294901760
        %v1135 = vsub.f32 %v1133, %v1134
        %v1136 = vand.u32 %v1135, 4294901760
        %1137 = vmatpush1.msra.mxu0 %v1136
        %v1138 = vand.u32 %v897, 4294901760
        %v1139 = vsub.f32 %v897, %v1138
        %v1140 = vand.u32 %v1139, 4294901760
        %v1141 = vsub.f32 %v1139, %v1140
        %v1142 = vand.u32 %v1141, 4294901760
        %1143 = vmatprep.subr.mxu0 %v1142
        %v1144 = vand.u32 %v896, 4294901760
        %v1145 = vsub.f32 %v896, %v1144
        %v1146 = vand.u32 %v1145, 4294901760
        %v1147 = vsub.f32 %v1145, %v1146
        %v1148 = vand.u32 %v1147, 4294901760
        %1149 = vmatpush1.msra.mxu0 %v1148
        %v1150 = vand.u32 %v899, 4294901760
        %v1151 = vsub.f32 %v899, %v1150
        %v1152 = vand.u32 %v1151, 4294901760
        %v1153 = vsub.f32 %v1151, %v1152
        %v1154 = vand.u32 %v1153, 4294901760
        %1155 = vmatprep.subr.mxu0 %v1154
        %v1156 = vand.u32 %v898, 4294901760
        %v1157 = vsub.f32 %v898, %v1156
        %v1158 = vand.u32 %v1157, 4294901760
        %v1159 = vsub.f32 %v1157, %v1158
        %v1160 = vand.u32 %v1159, 4294901760
        %1161 = vmatpush1.msra.mxu0 %v1160
        %v1162 = vand.u32 %v901, 4294901760
        %v1163 = vsub.f32 %v901, %v1162
        %v1164 = vand.u32 %v1163, 4294901760
        %v1165 = vsub.f32 %v1163, %v1164
        %v1166 = vand.u32 %v1165, 4294901760
        %1167 = vmatprep.subr.mxu0 %v1166
        %v1168 = vand.u32 %v900, 4294901760
        %v1169 = vsub.f32 %v900, %v1168
        %v1170 = vand.u32 %v1169, 4294901760
        %v1171 = vsub.f32 %v1169, %v1170
        %v1172 = vand.u32 %v1171, 4294901760
        %1173 = vmatpush1.msra.mxu0 %v1172
        %v1174 = vand.u32 %v903, 4294901760
        %v1175 = vsub.f32 %v903, %v1174
        %v1176 = vand.u32 %v1175, 4294901760
        %v1177 = vsub.f32 %v1175, %v1176
        %v1178 = vand.u32 %v1177, 4294901760
        %1179 = vmatprep.subr.mxu0 %v1178
        %v1180 = vand.u32 %v902, 4294901760
        %v1181 = vsub.f32 %v902, %v1180
        %v1182 = vand.u32 %v1181, 4294901760
        %v1183 = vsub.f32 %v1181, %v1182
        %v1184 = vand.u32 %v1183, 4294901760
        %1185 = vmatpush1.msra.mxu0 %v1184
        %v1186 = vand.u32 %v905, 4294901760
        %v1187 = vsub.f32 %v905, %v1186
        %v1188 = vand.u32 %v1187, 4294901760
        %v1189 = vsub.f32 %v1187, %v1188
        %v1190 = vand.u32 %v1189, 4294901760
        %1191 = vmatprep.subr.mxu0 %v1190
        %v1192 = vand.u32 %v904, 4294901760
        %v1193 = vsub.f32 %v904, %v1192
        %v1194 = vand.u32 %v1193, 4294901760
        %v1195 = vsub.f32 %v1193, %v1194
        %v1196 = vand.u32 %v1195, 4294901760
        %1197 = vmatpush1.msra.mxu0 %v1196
        %v1198 = vand.u32 %v907, 4294901760
        %v1199 = vsub.f32 %v907, %v1198
        %v1200 = vand.u32 %v1199, 4294901760
        %v1201 = vsub.f32 %v1199, %v1200
        %v1202 = vand.u32 %v1201, 4294901760
        %1203 = vmatprep.subr.mxu0 %v1202
        %v1204 = vand.u32 %v906, 4294901760
        %v1205 = vsub.f32 %v906, %v1204
        %v1206 = vand.u32 %v1205, 4294901760
        %v1207 = vsub.f32 %v1205, %v1206
        %v1208 = vand.u32 %v1207, 4294901760
        %1209 = vmatpush1.msra.mxu0 %v1208
        %v1210 = vand.u32 %v909, 4294901760
        %v1211 = vsub.f32 %v909, %v1210
        %v1212 = vand.u32 %v1211, 4294901760
        %v1213 = vsub.f32 %v1211, %v1212
        %v1214 = vand.u32 %v1213, 4294901760
        %1215 = vmatprep.subr.mxu0 %v1214
        %v1216 = vand.u32 %v908, 4294901760
        %v1217 = vsub.f32 %v908, %v1216
        %v1218 = vand.u32 %v1217, 4294901760
        %v1219 = vsub.f32 %v1217, %v1218
        %v1220 = vand.u32 %v1219, 4294901760
        %1221 = vmatpush1.msra.mxu0 %v1220
        %v1222 = vand.u32 %v911, 4294901760
        %v1223 = vsub.f32 %v911, %v1222
        %v1224 = vand.u32 %v1223, 4294901760
        %v1225 = vsub.f32 %v1223, %v1224
        %v1226 = vand.u32 %v1225, 4294901760
        %1227 = vmatprep.subr.mxu0 %v1226
        %v1228 = vand.u32 %v910, 4294901760
        %v1229 = vsub.f32 %v910, %v1228
        %v1230 = vand.u32 %v1229, 4294901760
        %v1231 = vsub.f32 %v1229, %v1230
        %v1232 = vand.u32 %v1231, 4294901760
        %1233 = vmatpush1.msra.mxu0 %v1232
        %v1234 = vand.u32 %v913, 4294901760
        %v1235 = vsub.f32 %v913, %v1234
        %v1236 = vand.u32 %v1235, 4294901760
        %v1237 = vsub.f32 %v1235, %v1236
        %v1238 = vand.u32 %v1237, 4294901760
        %1239 = vmatprep.subr.mxu0 %v1238
        %v1240 = vand.u32 %v912, 4294901760
        %v1241 = vsub.f32 %v912, %v1240
        %v1242 = vand.u32 %v1241, 4294901760
        %v1243 = vsub.f32 %v1241, %v1242
        %v1244 = vand.u32 %v1243, 4294901760
        %1245 = vmatpush1.msra.mxu0 %v1244
        %v1246 = vand.u32 %v915, 4294901760
        %v1247 = vsub.f32 %v915, %v1246
        %v1248 = vand.u32 %v1247, 4294901760
        %v1249 = vsub.f32 %v1247, %v1248
        %v1250 = vand.u32 %v1249, 4294901760
        %1251 = vmatprep.subr.mxu0 %v1250
        %v1252 = vand.u32 %v914, 4294901760
        %v1253 = vsub.f32 %v914, %v1252
        %v1254 = vand.u32 %v1253, 4294901760
        %v1255 = vsub.f32 %v1253, %v1254
        %v1256 = vand.u32 %v1255, 4294901760
        %1257 = vmatpush1.msra.mxu0 %v1256
        %1258 = vmatprep.subr.mxu0 0.0
        %1259 = vmatpush1.msra.mxu0 0.0
        %1260 = vmatprep.subr.mxu0 0.0
        %1261 = vmatpush1.msra.mxu0 0.0
        %1262 = vmatprep.subr.mxu0 0.0
        %1263 = vmatpush1.msra.mxu0 0.0
        %1264 = vmatprep.subr.mxu0 0.0
        %1265 = vmatpush1.msra.mxu0 0.0
        %1266 = vmatprep.subr.mxu0 0.0
        %1267 = vmatpush1.msra.mxu0 0.0
        %1268 = vmatprep.subr.mxu0 0.0
        %1269 = vmatpush1.msra.mxu0 0.0
        %1270 = vmatprep.subr.mxu0 0.0
        %1271 = vmatpush1.msra.mxu0 0.0
        %1272 = vmatprep.subr.mxu0 0.0
        %1273 = vmatpush1.msra.mxu0 0.0
        %1274 = vmatprep.subr.mxu0 0.0
        %1275 = vmatpush1.msra.mxu0 0.0
        %1276 = vmatprep.subr.mxu0 0.0
        %1277 = vmatpush1.msra.mxu0 0.0
        %1278 = vmatprep.subr.mxu0 0.0
        %1279 = vmatpush1.msra.mxu0 0.0
        %1280 = vmatprep.subr.mxu0 0.0
        %1281 = vmatpush1.msra.mxu0 0.0
        %1282 = vmatprep.subr.mxu0 0.0
        %1283 = vmatpush1.msra.mxu0 0.0
        %1284 = vmatprep.subr.mxu0 0.0
        %1285 = vmatpush1.msra.mxu0 0.0
        %v1286 = vand.u32 %v923, 4294901760
        %1287 = vmatprep.mubr.f32.mxu0 %v1286
        %v1288 = vand.u32 %v878, 4294901760
        %1289 = vmatmul.mubr.f32.gmra.mrb[0].mxu0 %v1288
        %v1290 = vpop.f32.mrb[0].mxu0
        %v1291 = vadd.f32 %v1038, %v1290
        %v1292 = vpop.f32.mrb[0].mxu0
        %v1293 = vadd.f32 %v1040, %v1292
        %1294 = vdwg.mxu0
        %v1295 = vand.u32 %v881, 4294901760
        %v1296 = vsub.f32 %v881, %v1295
        %1297 = vmatprep.subr.mxu0 %v1296
        %v1298 = vand.u32 %v880, 4294901760
        %v1299 = vsub.f32 %v880, %v1298
        %1300 = vmatpush1.msra.mxu0 %v1299
        %v1301 = vand.u32 %v883, 4294901760
        %v1302 = vsub.f32 %v883, %v1301
        %1303 = vmatprep.subr.mxu0 %v1302
        %v1304 = vand.u32 %v882, 4294901760
        %v1305 = vsub.f32 %v882, %v1304
        %1306 = vmatpush1.msra.mxu0 %v1305
        %v1307 = vand.u32 %v885, 4294901760
        %v1308 = vsub.f32 %v885, %v1307
        %1309 = vmatprep.subr.mxu0 %v1308
        %v1310 = vand.u32 %v884, 4294901760
        %v1311 = vsub.f32 %v884, %v1310
        %1312 = vmatpush1.msra.mxu0 %v1311
        %v1313 = vand.u32 %v887, 4294901760
        %v1314 = vsub.f32 %v887, %v1313
        %1315 = vmatprep.subr.mxu0 %v1314
        %v1316 = vand.u32 %v886, 4294901760
        %v1317 = vsub.f32 %v886, %v1316
        %1318 = vmatpush1.msra.mxu0 %v1317
        %v1319 = vand.u32 %v889, 4294901760
        %v1320 = vsub.f32 %v889, %v1319
        %1321 = vmatprep.subr.mxu0 %v1320
        %v1322 = vand.u32 %v888, 4294901760
        %v1323 = vsub.f32 %v888, %v1322
        %1324 = vmatpush1.msra.mxu0 %v1323
        %v1325 = vand.u32 %v891, 4294901760
        %v1326 = vsub.f32 %v891, %v1325
        %1327 = vmatprep.subr.mxu0 %v1326
        %v1328 = vand.u32 %v890, 4294901760
        %v1329 = vsub.f32 %v890, %v1328
        %1330 = vmatpush1.msra.mxu0 %v1329
        %v1331 = vand.u32 %v893, 4294901760
        %v1332 = vsub.f32 %v893, %v1331
        %1333 = vmatprep.subr.mxu0 %v1332
        %v1334 = vand.u32 %v892, 4294901760
        %v1335 = vsub.f32 %v892, %v1334
        %1336 = vmatpush1.msra.mxu0 %v1335
        %v1337 = vand.u32 %v895, 4294901760
        %v1338 = vsub.f32 %v895, %v1337
        %1339 = vmatprep.subr.mxu0 %v1338
        %v1340 = vand.u32 %v894, 4294901760
        %v1341 = vsub.f32 %v894, %v1340
        %1342 = vmatpush1.msra.mxu0 %v1341
        %v1343 = vand.u32 %v897, 4294901760
        %v1344 = vsub.f32 %v897, %v1343
        %1345 = vmatprep.subr.mxu0 %v1344
        %v1346 = vand.u32 %v896, 4294901760
        %v1347 = vsub.f32 %v896, %v1346
        %1348 = vmatpush1.msra.mxu0 %v1347
        %v1349 = vand.u32 %v899, 4294901760
        %v1350 = vsub.f32 %v899, %v1349
        %1351 = vmatprep.subr.mxu0 %v1350
        %v1352 = vand.u32 %v898, 4294901760
        %v1353 = vsub.f32 %v898, %v1352
        %1354 = vmatpush1.msra.mxu0 %v1353
        %v1355 = vand.u32 %v901, 4294901760
        %v1356 = vsub.f32 %v901, %v1355
        %1357 = vmatprep.subr.mxu0 %v1356
        %v1358 = vand.u32 %v900, 4294901760
        %v1359 = vsub.f32 %v900, %v1358
        %1360 = vmatpush1.msra.mxu0 %v1359
        %v1361 = vand.u32 %v903, 4294901760
        %v1362 = vsub.f32 %v903, %v1361
        %1363 = vmatprep.subr.mxu0 %v1362
        %v1364 = vand.u32 %v902, 4294901760
        %v1365 = vsub.f32 %v902, %v1364
        %1366 = vmatpush1.msra.mxu0 %v1365
        %v1367 = vand.u32 %v905, 4294901760
        %v1368 = vsub.f32 %v905, %v1367
        %1369 = vmatprep.subr.mxu0 %v1368
        %v1370 = vand.u32 %v904, 4294901760
        %v1371 = vsub.f32 %v904, %v1370
        %1372 = vmatpush1.msra.mxu0 %v1371
        %v1373 = vand.u32 %v907, 4294901760
        %v1374 = vsub.f32 %v907, %v1373
        %1375 = vmatprep.subr.mxu0 %v1374
        %v1376 = vand.u32 %v906, 4294901760
        %v1377 = vsub.f32 %v906, %v1376
        %1378 = vmatpush1.msra.mxu0 %v1377
        %v1379 = vand.u32 %v909, 4294901760
        %v1380 = vsub.f32 %v909, %v1379
        %1381 = vmatprep.subr.mxu0 %v1380
        %v1382 = vand.u32 %v908, 4294901760
        %v1383 = vsub.f32 %v908, %v1382
        %1384 = vmatpush1.msra.mxu0 %v1383
        %v1385 = vand.u32 %v911, 4294901760
        %v1386 = vsub.f32 %v911, %v1385
        %1387 = vmatprep.subr.mxu0 %v1386
        %v1388 = vand.u32 %v910, 4294901760
        %v1389 = vsub.f32 %v910, %v1388
        %1390 = vmatpush1.msra.mxu0 %v1389
        %v1391 = vand.u32 %v913, 4294901760
        %v1392 = vsub.f32 %v913, %v1391
        %1393 = vmatprep.subr.mxu0 %v1392
        %v1394 = vand.u32 %v912, 4294901760
        %v1395 = vsub.f32 %v912, %v1394
        %1396 = vmatpush1.msra.mxu0 %v1395
        %v1397 = vand.u32 %v915, 4294901760
        %v1398 = vsub.f32 %v915, %v1397
        %1399 = vmatprep.subr.mxu0 %v1398
        %v1400 = vand.u32 %v914, 4294901760
        %v1401 = vsub.f32 %v914, %v1400
        %1402 = vmatpush1.msra.mxu0 %v1401
        %1403 = vmatprep.subr.mxu0 0.0
        %1404 = vmatpush1.msra.mxu0 0.0
        %1405 = vmatprep.subr.mxu0 0.0
        %1406 = vmatpush1.msra.mxu0 0.0
        %1407 = vmatprep.subr.mxu0 0.0
        %1408 = vmatpush1.msra.mxu0 0.0
        %1409 = vmatprep.subr.mxu0 0.0
        %1410 = vmatpush1.msra.mxu0 0.0
        %1411 = vmatprep.subr.mxu0 0.0
        %1412 = vmatpush1.msra.mxu0 0.0
        %1413 = vmatprep.subr.mxu0 0.0
        %1414 = vmatpush1.msra.mxu0 0.0
        %1415 = vmatprep.subr.mxu0 0.0
        %1416 = vmatpush1.msra.mxu0 0.0
        %1417 = vmatprep.subr.mxu0 0.0
        %1418 = vmatpush1.msra.mxu0 0.0
        %1419 = vmatprep.subr.mxu0 0.0
        %1420 = vmatpush1.msra.mxu0 0.0
        %1421 = vmatprep.subr.mxu0 0.0
        %1422 = vmatpush1.msra.mxu0 0.0
        %1423 = vmatprep.subr.mxu0 0.0
        %1424 = vmatpush1.msra.mxu0 0.0
        %1425 = vmatprep.subr.mxu0 0.0
        %1426 = vmatpush1.msra.mxu0 0.0
        %1427 = vmatprep.subr.mxu0 0.0
        %1428 = vmatpush1.msra.mxu0 0.0
        %1429 = vmatprep.subr.mxu0 0.0
        %1430 = vmatpush1.msra.mxu0 0.0
        %v1431 = vand.u32 %v923, 4294901760
        %v1432 = vsub.f32 %v923, %v1431
        %1433 = vmatprep.mubr.f32.mxu0 %v1432
        %v1434 = vand.u32 %v878, 4294901760
        %v1435 = vsub.f32 %v878, %v1434
        %1436 = vmatmul.mubr.f32.gmra.mrb[0].mxu0 %v1435
        %v1437 = vpop.f32.mrb[0].mxu0
        %v1438 = vadd.f32 %v1291, %v1437
        %v1439 = vpop.f32.mrb[0].mxu0
        %v1440 = vadd.f32 %v1293, %v1439
        %1441 = vdwg.mxu0
        %v1442 = vand.u32 %v881, 4294901760
        %1443 = vmatprep.subr.mxu0 %v1442
        %v1444 = vand.u32 %v880, 4294901760
        %1445 = vmatpush1.msra.mxu0 %v1444
        %v1446 = vand.u32 %v883, 4294901760
        %1447 = vmatprep.subr.mxu0 %v1446
        %v1448 = vand.u32 %v882, 4294901760
        %1449 = vmatpush1.msra.mxu0 %v1448
        %v1450 = vand.u32 %v885, 4294901760
        %1451 = vmatprep.subr.mxu0 %v1450
        %v1452 = vand.u32 %v884, 4294901760
        %1453 = vmatpush1.msra.mxu0 %v1452
        %v1454 = vand.u32 %v887, 4294901760
        %1455 = vmatprep.subr.mxu0 %v1454
        %v1456 = vand.u32 %v886, 4294901760
        %1457 = vmatpush1.msra.mxu0 %v1456
        %v1458 = vand.u32 %v889, 4294901760
        %1459 = vmatprep.subr.mxu0 %v1458
        %v1460 = vand.u32 %v888, 4294901760
        %1461 = vmatpush1.msra.mxu0 %v1460
        %v1462 = vand.u32 %v891, 4294901760
        %1463 = vmatprep.subr.mxu0 %v1462
        %v1464 = vand.u32 %v890, 4294901760
        %1465 = vmatpush1.msra.mxu0 %v1464
        %v1466 = vand.u32 %v893, 4294901760
        %1467 = vmatprep.subr.mxu0 %v1466
        %v1468 = vand.u32 %v892, 4294901760
        %1469 = vmatpush1.msra.mxu0 %v1468
        %v1470 = vand.u32 %v895, 4294901760
        %1471 = vmatprep.subr.mxu0 %v1470
        %v1472 = vand.u32 %v894, 4294901760
        %1473 = vmatpush1.msra.mxu0 %v1472
        %v1474 = vand.u32 %v897, 4294901760
        %1475 = vmatprep.subr.mxu0 %v1474
        %v1476 = vand.u32 %v896, 4294901760
        %1477 = vmatpush1.msra.mxu0 %v1476
        %v1478 = vand.u32 %v899, 4294901760
        %1479 = vmatprep.subr.mxu0 %v1478
        %v1480 = vand.u32 %v898, 4294901760
        %1481 = vmatpush1.msra.mxu0 %v1480
        %v1482 = vand.u32 %v901, 4294901760
        %1483 = vmatprep.subr.mxu0 %v1482
        %v1484 = vand.u32 %v900, 4294901760
        %1485 = vmatpush1.msra.mxu0 %v1484
        %v1486 = vand.u32 %v903, 4294901760
        %1487 = vmatprep.subr.mxu0 %v1486
        %v1488 = vand.u32 %v902, 4294901760
        %1489 = vmatpush1.msra.mxu0 %v1488
        %v1490 = vand.u32 %v905, 4294901760
        %1491 = vmatprep.subr.mxu0 %v1490
        %v1492 = vand.u32 %v904, 4294901760
        %1493 = vmatpush1.msra.mxu0 %v1492
        %v1494 = vand.u32 %v907, 4294901760
        %1495 = vmatprep.subr.mxu0 %v1494
        %v1496 = vand.u32 %v906, 4294901760
        %1497 = vmatpush1.msra.mxu0 %v1496
        %v1498 = vand.u32 %v909, 4294901760
        %1499 = vmatprep.subr.mxu0 %v1498
        %v1500 = vand.u32 %v908, 4294901760
        %1501 = vmatpush1.msra.mxu0 %v1500
        %v1502 = vand.u32 %v911, 4294901760
        %1503 = vmatprep.subr.mxu0 %v1502
        %v1504 = vand.u32 %v910, 4294901760
        %1505 = vmatpush1.msra.mxu0 %v1504
        %v1506 = vand.u32 %v913, 4294901760
        %1507 = vmatprep.subr.mxu0 %v1506
        %v1508 = vand.u32 %v912, 4294901760
        %1509 = vmatpush1.msra.mxu0 %v1508
        %v1510 = vand.u32 %v915, 4294901760
        %1511 = vmatprep.subr.mxu0 %v1510
        %v1512 = vand.u32 %v914, 4294901760
        %1513 = vmatpush1.msra.mxu0 %v1512
        %1514 = vmatprep.subr.mxu0 0.0
        %1515 = vmatpush1.msra.mxu0 0.0
        %1516 = vmatprep.subr.mxu0 0.0
        %1517 = vmatpush1.msra.mxu0 0.0
        %1518 = vmatprep.subr.mxu0 0.0
        %1519 = vmatpush1.msra.mxu0 0.0
        %1520 = vmatprep.subr.mxu0 0.0
        %1521 = vmatpush1.msra.mxu0 0.0
        %1522 = vmatprep.subr.mxu0 0.0
        %1523 = vmatpush1.msra.mxu0 0.0
        %1524 = vmatprep.subr.mxu0 0.0
        %1525 = vmatpush1.msra.mxu0 0.0
        %1526 = vmatprep.subr.mxu0 0.0
        %1527 = vmatpush1.msra.mxu0 0.0
        %1528 = vmatprep.subr.mxu0 0.0
        %1529 = vmatpush1.msra.mxu0 0.0
        %1530 = vmatprep.subr.mxu0 0.0
        %1531 = vmatpush1.msra.mxu0 0.0
        %1532 = vmatprep.subr.mxu0 0.0
        %1533 = vmatpush1.msra.mxu0 0.0
        %1534 = vmatprep.subr.mxu0 0.0
        %1535 = vmatpush1.msra.mxu0 0.0
        %1536 = vmatprep.subr.mxu0 0.0
        %1537 = vmatpush1.msra.mxu0 0.0
        %1538 = vmatprep.subr.mxu0 0.0
        %1539 = vmatpush1.msra.mxu0 0.0
        %1540 = vmatprep.subr.mxu0 0.0
        %1541 = vmatpush1.msra.mxu0 0.0
        %v1542 = vand.u32 %v923, 4294901760
        %v1543 = vsub.f32 %v923, %v1542
        %v1544 = vand.u32 %v1543, 4294901760
        %1545 = vmatprep.mubr.f32.mxu0 %v1544
        %v1546 = vand.u32 %v878, 4294901760
        %v1547 = vsub.f32 %v878, %v1546
        %v1548 = vand.u32 %v1547, 4294901760
        %1549 = vmatmul.mubr.f32.gmra.mrb[0].mxu0 %v1548
        %v1550 = vpop.f32.mrb[0].mxu0
        %v1551 = vadd.f32 %v1438, %v1550
        %v1552 = vpop.f32.mrb[0].mxu0
        %v1553 = vadd.f32 %v1440, %v1552
        %1554 = vdwg.mxu0
        %v1555 = vand.u32 %v881, 4294901760
        %v1556 = vsub.f32 %v881, %v1555
        %v1557 = vand.u32 %v1556, 4294901760
        %1558 = vmatprep.subr.mxu0 %v1557
        %v1559 = vand.u32 %v880, 4294901760
        %v1560 = vsub.f32 %v880, %v1559
        %v1561 = vand.u32 %v1560, 4294901760
        %1562 = vmatpush1.msra.mxu0 %v1561
        %v1563 = vand.u32 %v883, 4294901760
        %v1564 = vsub.f32 %v883, %v1563
        %v1565 = vand.u32 %v1564, 4294901760
        %1566 = vmatprep.subr.mxu0 %v1565
        %v1567 = vand.u32 %v882, 4294901760
        %v1568 = vsub.f32 %v882, %v1567
        %v1569 = vand.u32 %v1568, 4294901760
        %1570 = vmatpush1.msra.mxu0 %v1569
        %v1571 = vand.u32 %v885, 4294901760
        %v1572 = vsub.f32 %v885, %v1571
        %v1573 = vand.u32 %v1572, 4294901760
        %1574 = vmatprep.subr.mxu0 %v1573
        %v1575 = vand.u32 %v884, 4294901760
        %v1576 = vsub.f32 %v884, %v1575
        %v1577 = vand.u32 %v1576, 4294901760
        %1578 = vmatpush1.msra.mxu0 %v1577
        %v1579 = vand.u32 %v887, 4294901760
        %v1580 = vsub.f32 %v887, %v1579
        %v1581 = vand.u32 %v1580, 4294901760
        %1582 = vmatprep.subr.mxu0 %v1581
        %v1583 = vand.u32 %v886, 4294901760
        %v1584 = vsub.f32 %v886, %v1583
        %v1585 = vand.u32 %v1584, 4294901760
        %1586 = vmatpush1.msra.mxu0 %v1585
        %v1587 = vand.u32 %v889, 4294901760
        %v1588 = vsub.f32 %v889, %v1587
        %v1589 = vand.u32 %v1588, 4294901760
        %1590 = vmatprep.subr.mxu0 %v1589
        %v1591 = vand.u32 %v888, 4294901760
        %v1592 = vsub.f32 %v888, %v1591
        %v1593 = vand.u32 %v1592, 4294901760
        %1594 = vmatpush1.msra.mxu0 %v1593
        %v1595 = vand.u32 %v891, 4294901760
        %v1596 = vsub.f32 %v891, %v1595
        %v1597 = vand.u32 %v1596, 4294901760
        %1598 = vmatprep.subr.mxu0 %v1597
        %v1599 = vand.u32 %v890, 4294901760
        %v1600 = vsub.f32 %v890, %v1599
        %v1601 = vand.u32 %v1600, 4294901760
        %1602 = vmatpush1.msra.mxu0 %v1601
        %v1603 = vand.u32 %v893, 4294901760
        %v1604 = vsub.f32 %v893, %v1603
        %v1605 = vand.u32 %v1604, 4294901760
        %1606 = vmatprep.subr.mxu0 %v1605
        %v1607 = vand.u32 %v892, 4294901760
        %v1608 = vsub.f32 %v892, %v1607
        %v1609 = vand.u32 %v1608, 4294901760
        %1610 = vmatpush1.msra.mxu0 %v1609
        %v1611 = vand.u32 %v895, 4294901760
        %v1612 = vsub.f32 %v895, %v1611
        %v1613 = vand.u32 %v1612, 4294901760
        %1614 = vmatprep.subr.mxu0 %v1613
        %v1615 = vand.u32 %v894, 4294901760
        %v1616 = vsub.f32 %v894, %v1615
        %v1617 = vand.u32 %v1616, 4294901760
        %1618 = vmatpush1.msra.mxu0 %v1617
        %v1619 = vand.u32 %v897, 4294901760
        %v1620 = vsub.f32 %v897, %v1619
        %v1621 = vand.u32 %v1620, 4294901760
        %1622 = vmatprep.subr.mxu0 %v1621
        %v1623 = vand.u32 %v896, 4294901760
        %v1624 = vsub.f32 %v896, %v1623
        %v1625 = vand.u32 %v1624, 4294901760
        %1626 = vmatpush1.msra.mxu0 %v1625
        %v1627 = vand.u32 %v899, 4294901760
        %v1628 = vsub.f32 %v899, %v1627
        %v1629 = vand.u32 %v1628, 4294901760
        %1630 = vmatprep.subr.mxu0 %v1629
        %v1631 = vand.u32 %v898, 4294901760
        %v1632 = vsub.f32 %v898, %v1631
        %v1633 = vand.u32 %v1632, 4294901760
        %1634 = vmatpush1.msra.mxu0 %v1633
        %v1635 = vand.u32 %v901, 4294901760
        %v1636 = vsub.f32 %v901, %v1635
        %v1637 = vand.u32 %v1636, 4294901760
        %1638 = vmatprep.subr.mxu0 %v1637
        %v1639 = vand.u32 %v900, 4294901760
        %v1640 = vsub.f32 %v900, %v1639
        %v1641 = vand.u32 %v1640, 4294901760
        %1642 = vmatpush1.msra.mxu0 %v1641
        %v1643 = vand.u32 %v903, 4294901760
        %v1644 = vsub.f32 %v903, %v1643
        %v1645 = vand.u32 %v1644, 4294901760
        %1646 = vmatprep.subr.mxu0 %v1645
        %v1647 = vand.u32 %v902, 4294901760
        %v1648 = vsub.f32 %v902, %v1647
        %v1649 = vand.u32 %v1648, 4294901760
        %1650 = vmatpush1.msra.mxu0 %v1649
        %v1651 = vand.u32 %v905, 4294901760
        %v1652 = vsub.f32 %v905, %v1651
        %v1653 = vand.u32 %v1652, 4294901760
        %1654 = vmatprep.subr.mxu0 %v1653
        %v1655 = vand.u32 %v904, 4294901760
        %v1656 = vsub.f32 %v904, %v1655
        %v1657 = vand.u32 %v1656, 4294901760
        %1658 = vmatpush1.msra.mxu0 %v1657
        %v1659 = vand.u32 %v907, 4294901760
        %v1660 = vsub.f32 %v907, %v1659
        %v1661 = vand.u32 %v1660, 4294901760
        %1662 = vmatprep.subr.mxu0 %v1661
        %v1663 = vand.u32 %v906, 4294901760
        %v1664 = vsub.f32 %v906, %v1663
        %v1665 = vand.u32 %v1664, 4294901760
        %1666 = vmatpush1.msra.mxu0 %v1665
        %v1667 = vand.u32 %v909, 4294901760
        %v1668 = vsub.f32 %v909, %v1667
        %v1669 = vand.u32 %v1668, 4294901760
        %1670 = vmatprep.subr.mxu0 %v1669
        %v1671 = vand.u32 %v908, 4294901760
        %v1672 = vsub.f32 %v908, %v1671
        %v1673 = vand.u32 %v1672, 4294901760
        %1674 = vmatpush1.msra.mxu0 %v1673
        %v1675 = vand.u32 %v911, 4294901760
        %v1676 = vsub.f32 %v911, %v1675
        %v1677 = vand.u32 %v1676, 4294901760
        %1678 = vmatprep.subr.mxu0 %v1677
        %v1679 = vand.u32 %v910, 4294901760
        %v1680 = vsub.f32 %v910, %v1679
        %v1681 = vand.u32 %v1680, 4294901760
        %1682 = vmatpush1.msra.mxu0 %v1681
        %v1683 = vand.u32 %v913, 4294901760
        %v1684 = vsub.f32 %v913, %v1683
        %v1685 = vand.u32 %v1684, 4294901760
        %1686 = vmatprep.subr.mxu0 %v1685
        %v1687 = vand.u32 %v912, 4294901760
        %v1688 = vsub.f32 %v912, %v1687
        %v1689 = vand.u32 %v1688, 4294901760
        %1690 = vmatpush1.msra.mxu0 %v1689
        %v1691 = vand.u32 %v915, 4294901760
        %v1692 = vsub.f32 %v915, %v1691
        %v1693 = vand.u32 %v1692, 4294901760
        %1694 = vmatprep.subr.mxu0 %v1693
        %v1695 = vand.u32 %v914, 4294901760
        %v1696 = vsub.f32 %v914, %v1695
        %v1697 = vand.u32 %v1696, 4294901760
        %1698 = vmatpush1.msra.mxu0 %v1697
        %1699 = vmatprep.subr.mxu0 0.0
        %1700 = vmatpush1.msra.mxu0 0.0
        %1701 = vmatprep.subr.mxu0 0.0
        %1702 = vmatpush1.msra.mxu0 0.0
        %1703 = vmatprep.subr.mxu0 0.0
        %1704 = vmatpush1.msra.mxu0 0.0
        %1705 = vmatprep.subr.mxu0 0.0
        %1706 = vmatpush1.msra.mxu0 0.0
        %1707 = vmatprep.subr.mxu0 0.0
        %1708 = vmatpush1.msra.mxu0 0.0
        %1709 = vmatprep.subr.mxu0 0.0
        %1710 = vmatpush1.msra.mxu0 0.0
        %1711 = vmatprep.subr.mxu0 0.0
        %1712 = vmatpush1.msra.mxu0 0.0
        %1713 = vmatprep.subr.mxu0 0.0
        %1714 = vmatpush1.msra.mxu0 0.0
        %1715 = vmatprep.subr.mxu0 0.0
        %1716 = vmatpush1.msra.mxu0 0.0
        %1717 = vmatprep.subr.mxu0 0.0
        %1718 = vmatpush1.msra.mxu0 0.0
        %1719 = vmatprep.subr.mxu0 0.0
        %1720 = vmatpush1.msra.mxu0 0.0
        %1721 = vmatprep.subr.mxu0 0.0
        %1722 = vmatpush1.msra.mxu0 0.0
        %1723 = vmatprep.subr.mxu0 0.0
        %1724 = vmatpush1.msra.mxu0 0.0
        %1725 = vmatprep.subr.mxu0 0.0
        %1726 = vmatpush1.msra.mxu0 0.0
        %v1727 = vand.u32 %v923, 4294901760
        %1728 = vmatprep.mubr.f32.mxu0 %v1727
        %v1729 = vand.u32 %v878, 4294901760
        %1730 = vmatmul.mubr.f32.gmra.mrb[0].mxu0 %v1729
        %v1731 = vpop.f32.mrb[0].mxu0
        %v1732 = vadd.f32 %v1551, %v1731
        %v1733 = vpop.f32.mrb[0].mxu0
        %v1734 = vadd.f32 %v1553, %v1733
        %1735 = vdwg.mxu0
        %v1736 = vand.u32 %v881, 4294901760
        %1737 = vmatprep.subr.mxu0 %v1736
        %v1738 = vand.u32 %v880, 4294901760
        %1739 = vmatpush1.msra.mxu0 %v1738
        %v1740 = vand.u32 %v883, 4294901760
        %1741 = vmatprep.subr.mxu0 %v1740
        %v1742 = vand.u32 %v882, 4294901760
        %1743 = vmatpush1.msra.mxu0 %v1742
        %v1744 = vand.u32 %v885, 4294901760
        %1745 = vmatprep.subr.mxu0 %v1744
        %v1746 = vand.u32 %v884, 4294901760
        %1747 = vmatpush1.msra.mxu0 %v1746
        %v1748 = vand.u32 %v887, 4294901760
        %1749 = vmatprep.subr.mxu0 %v1748
        %v1750 = vand.u32 %v886, 4294901760
        %1751 = vmatpush1.msra.mxu0 %v1750
        %v1752 = vand.u32 %v889, 4294901760
        %1753 = vmatprep.subr.mxu0 %v1752
        %v1754 = vand.u32 %v888, 4294901760
        %1755 = vmatpush1.msra.mxu0 %v1754
        %v1756 = vand.u32 %v891, 4294901760
        %1757 = vmatprep.subr.mxu0 %v1756
        %v1758 = vand.u32 %v890, 4294901760
        %1759 = vmatpush1.msra.mxu0 %v1758
        %v1760 = vand.u32 %v893, 4294901760
        %1761 = vmatprep.subr.mxu0 %v1760
        %v1762 = vand.u32 %v892, 4294901760
        %1763 = vmatpush1.msra.mxu0 %v1762
        %v1764 = vand.u32 %v895, 4294901760
        %1765 = vmatprep.subr.mxu0 %v1764
        %v1766 = vand.u32 %v894, 4294901760
        %1767 = vmatpush1.msra.mxu0 %v1766
        %v1768 = vand.u32 %v897, 4294901760
        %1769 = vmatprep.subr.mxu0 %v1768
        %v1770 = vand.u32 %v896, 4294901760
        %1771 = vmatpush1.msra.mxu0 %v1770
        %v1772 = vand.u32 %v899, 4294901760
        %1773 = vmatprep.subr.mxu0 %v1772
        %v1774 = vand.u32 %v898, 4294901760
        %1775 = vmatpush1.msra.mxu0 %v1774
        %v1776 = vand.u32 %v901, 4294901760
        %1777 = vmatprep.subr.mxu0 %v1776
        %v1778 = vand.u32 %v900, 4294901760
        %1779 = vmatpush1.msra.mxu0 %v1778
        %v1780 = vand.u32 %v903, 4294901760
        %1781 = vmatprep.subr.mxu0 %v1780
        %v1782 = vand.u32 %v902, 4294901760
        %1783 = vmatpush1.msra.mxu0 %v1782
        %v1784 = vand.u32 %v905, 4294901760
        %1785 = vmatprep.subr.mxu0 %v1784
        %v1786 = vand.u32 %v904, 4294901760
        %1787 = vmatpush1.msra.mxu0 %v1786
        %v1788 = vand.u32 %v907, 4294901760
        %1789 = vmatprep.subr.mxu0 %v1788
        %v1790 = vand.u32 %v906, 4294901760
        %1791 = vmatpush1.msra.mxu0 %v1790
        %v1792 = vand.u32 %v909, 4294901760
        %1793 = vmatprep.subr.mxu0 %v1792
        %v1794 = vand.u32 %v908, 4294901760
        %1795 = vmatpush1.msra.mxu0 %v1794
        %v1796 = vand.u32 %v911, 4294901760
        %1797 = vmatprep.subr.mxu0 %v1796
        %v1798 = vand.u32 %v910, 4294901760
        %1799 = vmatpush1.msra.mxu0 %v1798
        %v1800 = vand.u32 %v913, 4294901760
        %1801 = vmatprep.subr.mxu0 %v1800
        %v1802 = vand.u32 %v912, 4294901760
        %1803 = vmatpush1.msra.mxu0 %v1802
        %v1804 = vand.u32 %v915, 4294901760
        %1805 = vmatprep.subr.mxu0 %v1804
        %v1806 = vand.u32 %v914, 4294901760
        %1807 = vmatpush1.msra.mxu0 %v1806
        %1808 = vmatprep.subr.mxu0 0.0
        %1809 = vmatpush1.msra.mxu0 0.0
        %1810 = vmatprep.subr.mxu0 0.0
        %1811 = vmatpush1.msra.mxu0 0.0
        %1812 = vmatprep.subr.mxu0 0.0
        %1813 = vmatpush1.msra.mxu0 0.0
        %1814 = vmatprep.subr.mxu0 0.0
        %1815 = vmatpush1.msra.mxu0 0.0
        %1816 = vmatprep.subr.mxu0 0.0
        %1817 = vmatpush1.msra.mxu0 0.0
        %1818 = vmatprep.subr.mxu0 0.0
        %1819 = vmatpush1.msra.mxu0 0.0
        %1820 = vmatprep.subr.mxu0 0.0
        %1821 = vmatpush1.msra.mxu0 0.0
        %1822 = vmatprep.subr.mxu0 0.0
        %1823 = vmatpush1.msra.mxu0 0.0
        %1824 = vmatprep.subr.mxu0 0.0
        %1825 = vmatpush1.msra.mxu0 0.0
        %1826 = vmatprep.subr.mxu0 0.0
        %1827 = vmatpush1.msra.mxu0 0.0
        %1828 = vmatprep.subr.mxu0 0.0
        %1829 = vmatpush1.msra.mxu0 0.0
        %1830 = vmatprep.subr.mxu0 0.0
        %1831 = vmatpush1.msra.mxu0 0.0
        %1832 = vmatprep.subr.mxu0 0.0
        %1833 = vmatpush1.msra.mxu0 0.0
        %1834 = vmatprep.subr.mxu0 0.0
        %1835 = vmatpush1.msra.mxu0 0.0
        %v1836 = vand.u32 %v923, 4294901760
        %1837 = vmatprep.mubr.f32.mxu0 %v1836
        %v1838 = vand.u32 %v878, 4294901760
        %1839 = vmatmul.mubr.f32.gmra.mrb[0].mxu0 %v1838
        %v1840 = vpop.f32.mrb[0].mxu0
        %v1841 = vadd.f32 %v1732, %v1840
        %v1842 = vpop.f32.mrb[0].mxu0
        %v1843 = vadd.f32 %v1734, %v1842
        %1844 = vdwg.mxu0
        %vm1845 = vcmp.ge.f32.partialorder %v1841, 0.0
        %vm1846 = vcmp.ge.f32.partialorder %v1843, 0.0
        %v1847 = vmul.f32 %v1841, 0.01
        %v1848 = vmul.f32 %v1843, 0.01
        %v1849 = vsel %vm1845, %v1841, %v1847
        %v1850 = vsel %vm1846, %v1843, %v1848
        %1851 = vst [vmem:[#allocation2 + $0x8] sm:$0xff] %v1849
        %1852 = vst [vmem:[#allocation2 + $0x10] sm:$0xff] %v1850
        %v1853 = vld [vmem:[#allocation2] sm:$0xff]
        %v1854 = vld [vmem:[#allocation2 + $0x8] sm:$0xff]
        %v1855 = vld [vmem:[#allocation2 + $0x10] sm:$0xff]
        %v1856 = vmul.f32 %v1853, %v488
        %v1857 = vmul.f32 %v1854, %v492
        %v1858 = vmul.f32 %v1855, %v490
        %1862 = vrot.lane.b32.xlu0 %v1856, 17
        %v1863 = vpop.permute.xlu0 %1862
        %1864 = vrot.lane.b32.xlu0 %v1857, 17
        %v1865 = vpop.permute.xlu0 %1864
        %1866 = vrot.lane.b32.xlu0 %v1858, 17
        %v1867 = vpop.permute.xlu0 %1866
        %v1868 = vsel %vm520, %v1863, %v1865
        %v1869 = vsel %vm520, %v1865, %v1867
        %1872 = vst [vmem:[#allocation3] sm:$0xff] %v1868
        %1873 = vst [vmem:[#allocation3 + $0x8] sm:$0xff] %v1869
        %v1874 = vld [vmem:[#allocation2] sm:$0xff]
        %v1875 = vld [vmem:[#allocation2 + $0x8] sm:$0xff]
        %v1876 = vld [vmem:[#allocation2 + $0x10] sm:$0xff]
        %1880 = vrot.lane.b32.xlu0 %v1874, 16
        %v1881 = vpop.permute.xlu0 %1880
        %1882 = vrot.lane.b32.xlu0 %v1875, 16
        %v1883 = vpop.permute.xlu0 %1882
        %1884 = vrot.lane.b32.xlu0 %v1876, 16
        %v1885 = vpop.permute.xlu0 %1884
        %v1886 = vsel %vm557, %v1881, %v1883
        %v1887 = vsel %vm557, %v1883, %v1885
        %1890 = vst [vmem:[#allocation3 + $0x10] sm:$0xff] %v1886
        %1891 = vst [vmem:[#allocation3 + $0x18] sm:$0xff] %v1887
        %v1892 = vld [vmem:[#allocation2] sm:$0xff]
        %v1893 = vld [vmem:[#allocation2 + $0x8] sm:$0xff]
        %v1894 = vld [vmem:[#allocation2 + $0x10] sm:$0xff]
        %v1895 = vmul.f32 %v1892, %v586
        %v1896 = vmul.f32 %v1893, %v590
        %v1897 = vmul.f32 %v1894, %v588
        %1901 = vrot.lane.b32.xlu0 %v1895, 15
        %v1902 = vpop.permute.xlu0 %1901
        %1903 = vrot.lane.b32.xlu0 %v1896, 15
        %v1904 = vpop.permute.xlu0 %1903
        %1905 = vrot.lane.b32.xlu0 %v1897, 15
        %v1906 = vpop.permute.xlu0 %1905
        %v1907 = vsel %vm618, %v1902, %v1904
        %v1908 = vsel %vm618, %v1904, %v1906
        %1911 = vst [vmem:[#allocation3 + $0x20] sm:$0xff] %v1907
        %1912 = vst [vmem:[#allocation3 + $0x28] sm:$0xff] %v1908
        %v1913 = vld [vmem:[#allocation2] sm:$0xff]
        %v1914 = vld [vmem:[#allocation2 + $0x8] sm:$0xff]
        %v1915 = vld [vmem:[#allocation2 + $0x10] sm:$0xff]
        %v1916 = vmul.f32 %v1913, %v638
        %v1917 = vmul.f32 %v1914, %v642
        %v1918 = vmul.f32 %v1915, %v640
        %1922 = vrot.lane.b32.xlu0 %v1916, 1
        %v1923 = vpop.permute.xlu0 %1922
        %1924 = vrot.lane.b32.xlu0 %v1917, 1
        %v1925 = vpop.permute.xlu0 %1924
        %1926 = vrot.lane.b32.xlu0 %v1918, 1
        %v1927 = vpop.permute.xlu0 %1926
        %v1928 = vsel %vm670, %v1923, %v1925
        %v1929 = vsel %vm670, %v1925, %v1927
        %1932 = vst [vmem:[#allocation3 + $0x30] sm:$0xff] %v1928
        %1933 = vst [vmem:[#allocation3 + $0x38] sm:$0xff] %v1929
        %v1934 = vld [vmem:[#allocation2 + $0x8] sm:$0xff]
        %v1935 = vld [vmem:[#allocation2 + $0x10] sm:$0xff]
        %1936 = vst [vmem:[#allocation3 + $0x40] sm:$0xff] %v1934
        %1937 = vst [vmem:[#allocation3 + $0x48] sm:$0xff] %v1935
        %v1938 = vld [vmem:[#allocation2 + $0x8] sm:$0xff]
        %v1939 = vld [vmem:[#allocation2 + $0x10] sm:$0xff]
        %v1940 = vld [vmem:[#allocation2 + $0x18] sm:$0xff]
        %v1941 = vmul.f32 %v1938, %v698
        %v1942 = vmul.f32 %v1939, %v701
        %v1943 = vmul.f32 %v1940, %v700
        %1947 = vrot.lane.b32.xlu0 %v1941, 127
        %v1948 = vpop.permute.xlu0 %1947
        %1949 = vrot.lane.b32.xlu0 %v1942, 127
        %v1950 = vpop.permute.xlu0 %1949
        %1951 = vrot.lane.b32.xlu0 %v1943, 127
        %v1952 = vpop.permute.xlu0 %1951
        %v1953 = vsel %vm641, %v1948, %v1950
        %v1954 = vsel %vm641, %v1950, %v1952
        %1957 = vst [vmem:[#allocation3 + $0x50] sm:$0xff] %v1953
        %1958 = vst [vmem:[#allocation3 + $0x58] sm:$0xff] %v1954
        %v1959 = vld [vmem:[#allocation2 + $0x8] sm:$0xff]
        %v1960 = vld [vmem:[#allocation2 + $0x10] sm:$0xff]
        %v1961 = vld [vmem:[#allocation2 + $0x18] sm:$0xff]
        %v1962 = vmul.f32 %v1959, %v748
        %v1963 = vmul.f32 %v1960, %v751
        %v1964 = vmul.f32 %v1961, %v750
        %1968 = vrot.lane.b32.xlu0 %v1962, 113
        %v1969 = vpop.permute.xlu0 %1968
        %1970 = vrot.lane.b32.xlu0 %v1963, 113
        %v1971 = vpop.permute.xlu0 %1970
        %1972 = vrot.lane.b32.xlu0 %v1964, 113
        %v1973 = vpop.permute.xlu0 %1972
        %v1974 = vsel %vm589, %v1969, %v1971
        %v1975 = vsel %vm589, %v1971, %v1973
        %1978 = vst [vmem:[#allocation3 + $0x60] sm:$0xff] %v1974
        %1979 = vst [vmem:[#allocation3 + $0x68] sm:$0xff] %v1975
        %v1980 = vld [vmem:[#allocation2 + $0x8] sm:$0xff]
        %v1981 = vld [vmem:[#allocation2 + $0x10] sm:$0xff]
        %v1982 = vld [vmem:[#allocation2 + $0x18] sm:$0xff]
        %1986 = vrot.lane.b32.xlu0 %v1980, 112
        %v1987 = vpop.permute.xlu0 %1986
        %1988 = vrot.lane.b32.xlu0 %v1981, 112
        %v1989 = vpop.permute.xlu0 %1988
        %1990 = vrot.lane.b32.xlu0 %v1982, 112
        %v1991 = vpop.permute.xlu0 %1990
        %v1992 = vsel %vm815, %v1987, %v1989
        %v1993 = vsel %vm815, %v1989, %v1991
        %1996 = vst [vmem:[#allocation3 + $0x70] sm:$0xff] %v1992
        %1997 = vst [vmem:[#allocation3 + $0x78] sm:$0xff] %v1993
        %v1998 = vld [vmem:[#allocation2 + $0x8] sm:$0xff]
        %v1999 = vld [vmem:[#allocation2 + $0x10] sm:$0xff]
        %v2000 = vld [vmem:[#allocation2 + $0x18] sm:$0xff]
        %v2001 = vmul.f32 %v1998, %v835
        %v2002 = vmul.f32 %v1999, %v838
        %v2003 = vmul.f32 %v2000, %v837
        %2007 = vrot.lane.b32.xlu0 %v2001, 111
        %v2008 = vpop.permute.xlu0 %2007
        %2009 = vrot.lane.b32.xlu0 %v2002, 111
        %v2010 = vpop.permute.xlu0 %2009
        %2011 = vrot.lane.b32.xlu0 %v2003, 111
        %v2012 = vpop.permute.xlu0 %2011
        %v2013 = vsel %vm491, %v2008, %v2010
        %v2014 = vsel %vm491, %v2010, %v2012
        %2017 = vst [vmem:[#allocation3 + $0x80] sm:$0xff] %v2013
        %2018 = vst [vmem:[#allocation3 + $0x88] sm:$0xff] %v2014
        %v2019 = vld [vmem:[#allocation8] sm:$0xff]
        %v2020 = vld [vmem:[#allocation8 + $0x8] sm:$0xff]
        %v2021 = vld [vmem:[#allocation3] sm:$0xff]
        %v2022 = vld [vmem:[#allocation3 + $0x8] sm:$0xff]
        %v2023 = vld [vmem:[#allocation3 + $0x10] sm:$0xff]
        %v2024 = vld [vmem:[#allocation3 + $0x18] sm:$0xff]
        %v2025 = vld [vmem:[#allocation3 + $0x20] sm:$0xff]
        %v2026 = vld [vmem:[#allocation3 + $0x28] sm:$0xff]
        %v2027 = vld [vmem:[#allocation3 + $0x30] sm:$0xff]
        %v2028 = vld [vmem:[#allocation3 + $0x38] sm:$0xff]
        %v2029 = vld [vmem:[#allocation3 + $0x40] sm:$0xff]
        %v2030 = vld [vmem:[#allocation3 + $0x48] sm:$0xff]
        %v2031 = vld [vmem:[#allocation3 + $0x50] sm:$0xff]
        %v2032 = vld [vmem:[#allocation3 + $0x58] sm:$0xff]
        %v2033 = vld [vmem:[#allocation3 + $0x60] sm:$0xff]
        %v2034 = vld [vmem:[#allocation3 + $0x68] sm:$0xff]
        %v2035 = vld [vmem:[#allocation3 + $0x70] sm:$0xff]
        %v2036 = vld [vmem:[#allocation3 + $0x78] sm:$0xff]
        %v2037 = vld [vmem:[#allocation3 + $0x80] sm:$0xff]
        %v2038 = vld [vmem:[#allocation3 + $0x88] sm:$0xff]
        %v2039 = vld [vmem:[%s5] sm:$0xff]
        %v2040 = vld [vmem:[%s5 + $0x8] sm:$0xff]
        %2042 = vset.pattern.permute.xlu0 0
        %2043 = vperm.xlu0 %2042, %v2039
        %v2044 = vpop.permute.xlu0 %2043
        %2047 = vset.pattern.permute.xlu0 0
        %2048 = vperm.xlu0 %2047, %v2040
        %v2049 = vpop.permute.xlu0 %2048
        %vm2051 = vcmask 588800
        %v2053 = vsel %vm2051, %v2019, 0
        %v2056 = vsel %vm2051, %v2020, 0
        %v2058 = vand.u32 %v2022, 4294901760
        %2059 = vmatprep.subr.mxu0 %v2058
        %v2060 = vand.u32 %v2021, 4294901760
        %2061 = vmatpush1.msra.mxu0 %v2060
        %v2062 = vand.u32 %v2024, 4294901760
        %2063 = vmatprep.subr.mxu0 %v2062
        %v2064 = vand.u32 %v2023, 4294901760
        %2065 = vmatpush1.msra.mxu0 %v2064
        %v2066 = vand.u32 %v2026, 4294901760
        %2067 = vmatprep.subr.mxu0 %v2066
        %v2068 = vand.u32 %v2025, 4294901760
        %2069 = vmatpush1.msra.mxu0 %v2068
        %v2070 = vand.u32 %v2028, 4294901760
        %2071 = vmatprep.subr.mxu0 %v2070
        %v2072 = vand.u32 %v2027, 4294901760
        %2073 = vmatpush1.msra.mxu0 %v2072
        %v2074 = vand.u32 %v2030, 4294901760
        %2075 = vmatprep.subr.mxu0 %v2074
        %v2076 = vand.u32 %v2029, 4294901760
        %2077 = vmatpush1.msra.mxu0 %v2076
        %v2078 = vand.u32 %v2032, 4294901760
        %2079 = vmatprep.subr.mxu0 %v2078
        %v2080 = vand.u32 %v2031, 4294901760
        %2081 = vmatpush1.msra.mxu0 %v2080
        %v2082 = vand.u32 %v2034, 4294901760
        %2083 = vmatprep.subr.mxu0 %v2082
        %v2084 = vand.u32 %v2033, 4294901760
        %2085 = vmatpush1.msra.mxu0 %v2084
        %v2086 = vand.u32 %v2036, 4294901760
        %2087 = vmatprep.subr.mxu0 %v2086
        %v2088 = vand.u32 %v2035, 4294901760
        %2089 = vmatpush1.msra.mxu0 %v2088
        %v2090 = vand.u32 %v2038, 4294901760
        %2091 = vmatprep.subr.mxu0 %v2090
        %v2092 = vand.u32 %v2037, 4294901760
        %2093 = vmatpush1.msra.mxu0 %v2092
        %2094 = vmatprep.subr.mxu0 0.0
        %2095 = vmatpush1.msra.mxu0 0.0
        %2096 = vmatprep.subr.mxu0 0.0
        %2097 = vmatpush1.msra.mxu0 0.0
        %2098 = vmatprep.subr.mxu0 0.0
        %2099 = vmatpush1.msra.mxu0 0.0
        %2100 = vmatprep.subr.mxu0 0.0
        %2101 = vmatpush1.msra.mxu0 0.0
        %2102 = vmatprep.subr.mxu0 0.0
        %2103 = vmatpush1.msra.mxu0 0.0
        %2104 = vmatprep.subr.mxu0 0.0
        %2105 = vmatpush1.msra.mxu0 0.0
        %2106 = vmatprep.subr.mxu0 0.0
        %2107 = vmatpush1.msra.mxu0 0.0
        %2108 = vmatprep.subr.mxu0 0.0
        %2109 = vmatpush1.msra.mxu0 0.0
        %2110 = vmatprep.subr.mxu0 0.0
        %2111 = vmatpush1.msra.mxu0 0.0
        %2112 = vmatprep.subr.mxu0 0.0
        %2113 = vmatpush1.msra.mxu0 0.0
        %2114 = vmatprep.subr.mxu0 0.0
        %2115 = vmatpush1.msra.mxu0 0.0
        %2116 = vmatprep.subr.mxu0 0.0
        %2117 = vmatpush1.msra.mxu0 0.0
        %2118 = vmatprep.subr.mxu0 0.0
        %2119 = vmatpush1.msra.mxu0 0.0
        %2120 = vmatprep.subr.mxu0 0.0
        %2121 = vmatpush1.msra.mxu0 0.0
        %2122 = vmatprep.subr.mxu0 0.0
        %2123 = vmatpush1.msra.mxu0 0.0
        %2124 = vmatprep.subr.mxu0 0.0
        %2125 = vmatpush1.msra.mxu0 0.0
        %2126 = vmatprep.subr.mxu0 0.0
        %2127 = vmatpush1.msra.mxu0 0.0
        %2128 = vmatprep.subr.mxu0 0.0
        %2129 = vmatpush1.msra.mxu0 0.0
        %2130 = vmatprep.subr.mxu0 0.0
        %2131 = vmatpush1.msra.mxu0 0.0
        %2132 = vmatprep.subr.mxu0 0.0
        %2133 = vmatpush1.msra.mxu0 0.0
        %2134 = vmatprep.subr.mxu0 0.0
        %2135 = vmatpush1.msra.mxu0 0.0
        %2136 = vmatprep.subr.mxu0 0.0
        %2137 = vmatpush1.msra.mxu0 0.0
        %2138 = vmatprep.subr.mxu0 0.0
        %2139 = vmatpush1.msra.mxu0 0.0
        %2140 = vmatprep.mubr.f32.mxu0 0.0
        %v2141 = vand.u32 %v2053, 4294901760
        %v2142 = vsub.f32 %v2053, %v2141
        %v2143 = vand.u32 %v2142, 4294901760
        %v2144 = vsub.f32 %v2142, %v2143
        %v2145 = vand.u32 %v2144, 4294901760
        %2146 = vmatmul.mubr.f32.gmra.mrb[0].mxu0 %v2145
        %v2147 = vpop.f32.mrb[0].mxu0
        %v2148 = vadd.f32 %v2044, %v2147
        %v2149 = vpop.f32.mrb[0].mxu0
        %v2150 = vadd.f32 %v2044, %v2149
        %2151 = vmatprep.mubr.f32.mxu0 0.0
        %v2152 = vand.u32 %v2056, 4294901760
        %v2153 = vsub.f32 %v2056, %v2152
        %v2154 = vand.u32 %v2153, 4294901760
        %v2155 = vsub.f32 %v2153, %v2154
        %v2156 = vand.u32 %v2155, 4294901760
        %2157 = vmatmul.mubr.f32.gmra.mrb[0].mxu0 %v2156
        %v2158 = vpop.f32.mrb[0].mxu0
        %v2159 = vadd.f32 %v2049, %v2158
        %v2160 = vpop.f32.mrb[0].mxu0
        %v2161 = vadd.f32 %v2049, %v2160
        %2162 = vdwg.mxu0
        %v2163 = vand.u32 %v2022, 4294901760
        %v2164 = vsub.f32 %v2022, %v2163
        %v2165 = vand.u32 %v2164, 4294901760
        %v2166 = vsub.f32 %v2164, %v2165
        %v2167 = vand.u32 %v2166, 4294901760
        %2168 = vmatprep.subr.mxu0 %v2167
        %v2169 = vand.u32 %v2021, 4294901760
        %v2170 = vsub.f32 %v2021, %v2169
        %v2171 = vand.u32 %v2170, 4294901760
        %v2172 = vsub.f32 %v2170, %v2171
        %v2173 = vand.u32 %v2172, 4294901760
        %2174 = vmatpush1.msra.mxu0 %v2173
        %v2175 = vand.u32 %v2024, 4294901760
        %v2176 = vsub.f32 %v2024, %v2175
        %v2177 = vand.u32 %v2176, 4294901760
        %v2178 = vsub.f32 %v2176, %v2177
        %v2179 = vand.u32 %v2178, 4294901760
        %2180 = vmatprep.subr.mxu0 %v2179
        %v2181 = vand.u32 %v2023, 4294901760
        %v2182 = vsub.f32 %v2023, %v2181
        %v2183 = vand.u32 %v2182, 4294901760
        %v2184 = vsub.f32 %v2182, %v2183
        %v2185 = vand.u32 %v2184, 4294901760
        %2186 = vmatpush1.msra.mxu0 %v2185
        %v2187 = vand.u32 %v2026, 4294901760
        %v2188 = vsub.f32 %v2026, %v2187
        %v2189 = vand.u32 %v2188, 4294901760
        %v2190 = vsub.f32 %v2188, %v2189
        %v2191 = vand.u32 %v2190, 4294901760
        %2192 = vmatprep.subr.mxu0 %v2191
        %v2193 = vand.u32 %v2025, 4294901760
        %v2194 = vsub.f32 %v2025, %v2193
        %v2195 = vand.u32 %v2194, 4294901760
        %v2196 = vsub.f32 %v2194, %v2195
        %v2197 = vand.u32 %v2196, 4294901760
        %2198 = vmatpush1.msra.mxu0 %v2197
        %v2199 = vand.u32 %v2028, 4294901760
        %v2200 = vsub.f32 %v2028, %v2199
        %v2201 = vand.u32 %v2200, 4294901760
        %v2202 = vsub.f32 %v2200, %v2201
        %v2203 = vand.u32 %v2202, 4294901760
        %2204 = vmatprep.subr.mxu0 %v2203
        %v2205 = vand.u32 %v2027, 4294901760
        %v2206 = vsub.f32 %v2027, %v2205
        %v2207 = vand.u32 %v2206, 4294901760
        %v2208 = vsub.f32 %v2206, %v2207
        %v2209 = vand.u32 %v2208, 4294901760
        %2210 = vmatpush1.msra.mxu0 %v2209
        %v2211 = vand.u32 %v2030, 4294901760
        %v2212 = vsub.f32 %v2030, %v2211
        %v2213 = vand.u32 %v2212, 4294901760
        %v2214 = vsub.f32 %v2212, %v2213
        %v2215 = vand.u32 %v2214, 4294901760
        %2216 = vmatprep.subr.mxu0 %v2215
        %v2217 = vand.u32 %v2029, 4294901760
        %v2218 = vsub.f32 %v2029, %v2217
        %v2219 = vand.u32 %v2218, 4294901760
        %v2220 = vsub.f32 %v2218, %v2219
        %v2221 = vand.u32 %v2220, 4294901760
        %2222 = vmatpush1.msra.mxu0 %v2221
        %v2223 = vand.u32 %v2032, 4294901760
        %v2224 = vsub.f32 %v2032, %v2223
        %v2225 = vand.u32 %v2224, 4294901760
        %v2226 = vsub.f32 %v2224, %v2225
        %v2227 = vand.u32 %v2226, 4294901760
        %2228 = vmatprep.subr.mxu0 %v2227
        %v2229 = vand.u32 %v2031, 4294901760
        %v2230 = vsub.f32 %v2031, %v2229
        %v2231 = vand.u32 %v2230, 4294901760
        %v2232 = vsub.f32 %v2230, %v2231
        %v2233 = vand.u32 %v2232, 4294901760
        %2234 = vmatpush1.msra.mxu0 %v2233
        %v2235 = vand.u32 %v2034, 4294901760
        %v2236 = vsub.f32 %v2034, %v2235
        %v2237 = vand.u32 %v2236, 4294901760
        %v2238 = vsub.f32 %v2236, %v2237
        %v2239 = vand.u32 %v2238, 4294901760
        %2240 = vmatprep.subr.mxu0 %v2239
        %v2241 = vand.u32 %v2033, 4294901760
        %v2242 = vsub.f32 %v2033, %v2241
        %v2243 = vand.u32 %v2242, 4294901760
        %v2244 = vsub.f32 %v2242, %v2243
        %v2245 = vand.u32 %v2244, 4294901760
        %2246 = vmatpush1.msra.mxu0 %v2245
        %v2247 = vand.u32 %v2036, 4294901760
        %v2248 = vsub.f32 %v2036, %v2247
        %v2249 = vand.u32 %v2248, 4294901760
        %v2250 = vsub.f32 %v2248, %v2249
        %v2251 = vand.u32 %v2250, 4294901760
        %2252 = vmatprep.subr.mxu0 %v2251
        %v2253 = vand.u32 %v2035, 4294901760
        %v2254 = vsub.f32 %v2035, %v2253
        %v2255 = vand.u32 %v2254, 4294901760
        %v2256 = vsub.f32 %v2254, %v2255
        %v2257 = vand.u32 %v2256, 4294901760
        %2258 = vmatpush1.msra.mxu0 %v2257
        %v2259 = vand.u32 %v2038, 4294901760
        %v2260 = vsub.f32 %v2038, %v2259
        %v2261 = vand.u32 %v2260, 4294901760
        %v2262 = vsub.f32 %v2260, %v2261
        %v2263 = vand.u32 %v2262, 4294901760
        %2264 = vmatprep.subr.mxu0 %v2263
        %v2265 = vand.u32 %v2037, 4294901760
        %v2266 = vsub.f32 %v2037, %v2265
        %v2267 = vand.u32 %v2266, 4294901760
        %v2268 = vsub.f32 %v2266, %v2267
        %v2269 = vand.u32 %v2268, 4294901760
        %2270 = vmatpush1.msra.mxu0 %v2269
        %2271 = vmatprep.subr.mxu0 0.0
        %2272 = vmatpush1.msra.mxu0 0.0
        %2273 = vmatprep.subr.mxu0 0.0
        %2274 = vmatpush1.msra.mxu0 0.0
        %2275 = vmatprep.subr.mxu0 0.0
        %2276 = vmatpush1.msra.mxu0 0.0
        %2277 = vmatprep.subr.mxu0 0.0
        %2278 = vmatpush1.msra.mxu0 0.0
        %2279 = vmatprep.subr.mxu0 0.0
        %2280 = vmatpush1.msra.mxu0 0.0
        %2281 = vmatprep.subr.mxu0 0.0
        %2282 = vmatpush1.msra.mxu0 0.0
        %2283 = vmatprep.subr.mxu0 0.0
        %2284 = vmatpush1.msra.mxu0 0.0
        %2285 = vmatprep.subr.mxu0 0.0
        %2286 = vmatpush1.msra.mxu0 0.0
        %2287 = vmatprep.subr.mxu0 0.0
        %2288 = vmatpush1.msra.mxu0 0.0
        %2289 = vmatprep.subr.mxu0 0.0
        %2290 = vmatpush1.msra.mxu0 0.0
        %2291 = vmatprep.subr.mxu0 0.0
        %2292 = vmatpush1.msra.mxu0 0.0
        %2293 = vmatprep.subr.mxu0 0.0
        %2294 = vmatpush1.msra.mxu0 0.0
        %2295 = vmatprep.subr.mxu0 0.0
        %2296 = vmatpush1.msra.mxu0 0.0
        %2297 = vmatprep.subr.mxu0 0.0
        %2298 = vmatpush1.msra.mxu0 0.0
        %2299 = vmatprep.subr.mxu0 0.0
        %2300 = vmatpush1.msra.mxu0 0.0
        %2301 = vmatprep.subr.mxu0 0.0
        %2302 = vmatpush1.msra.mxu0 0.0
        %2303 = vmatprep.subr.mxu0 0.0
        %2304 = vmatpush1.msra.mxu0 0.0
        %2305 = vmatprep.subr.mxu0 0.0
        %2306 = vmatpush1.msra.mxu0 0.0
        %2307 = vmatprep.subr.mxu0 0.0
        %2308 = vmatpush1.msra.mxu0 0.0
        %2309 = vmatprep.subr.mxu0 0.0
        %2310 = vmatpush1.msra.mxu0 0.0
        %2311 = vmatprep.subr.mxu0 0.0
        %2312 = vmatpush1.msra.mxu0 0.0
        %2313 = vmatprep.subr.mxu0 0.0
        %2314 = vmatpush1.msra.mxu0 0.0
        %2315 = vmatprep.subr.mxu0 0.0
        %2316 = vmatpush1.msra.mxu0 0.0
        %2317 = vmatprep.mubr.f32.mxu0 0.0
        %v2318 = vand.u32 %v2053, 4294901760
        %2319 = vmatmul.mubr.f32.gmra.mrb[0].mxu0 %v2318
        %v2320 = vpop.f32.mrb[0].mxu0
        %v2321 = vadd.f32 %v2148, %v2320
        %v2322 = vpop.f32.mrb[0].mxu0
        %v2323 = vadd.f32 %v2150, %v2322
        %2324 = vmatprep.mubr.f32.mxu0 0.0
        %v2325 = vand.u32 %v2056, 4294901760
        %2326 = vmatmul.mubr.f32.gmra.mrb[0].mxu0 %v2325
        %v2327 = vpop.f32.mrb[0].mxu0
        %v2328 = vadd.f32 %v2159, %v2327
        %v2329 = vpop.f32.mrb[0].mxu0
        %v2330 = vadd.f32 %v2161, %v2329
        %2331 = vdwg.mxu0
        %v2332 = vand.u32 %v2022, 4294901760
        %v2333 = vsub.f32 %v2022, %v2332
        %2334 = vmatprep.subr.mxu0 %v2333
        %v2335 = vand.u32 %v2021, 4294901760
        %v2336 = vsub.f32 %v2021, %v2335
        %2337 = vmatpush1.msra.mxu0 %v2336
        %v2338 = vand.u32 %v2024, 4294901760
        %v2339 = vsub.f32 %v2024, %v2338
        %2340 = vmatprep.subr.mxu0 %v2339
        %v2341 = vand.u32 %v2023, 4294901760
        %v2342 = vsub.f32 %v2023, %v2341
        %2343 = vmatpush1.msra.mxu0 %v2342
        %v2344 = vand.u32 %v2026, 4294901760
        %v2345 = vsub.f32 %v2026, %v2344
        %2346 = vmatprep.subr.mxu0 %v2345
        %v2347 = vand.u32 %v2025, 4294901760
        %v2348 = vsub.f32 %v2025, %v2347
        %2349 = vmatpush1.msra.mxu0 %v2348
        %v2350 = vand.u32 %v2028, 4294901760
        %v2351 = vsub.f32 %v2028, %v2350
        %2352 = vmatprep.subr.mxu0 %v2351
        %v2353 = vand.u32 %v2027, 4294901760
        %v2354 = vsub.f32 %v2027, %v2353
        %2355 = vmatpush1.msra.mxu0 %v2354
        %v2356 = vand.u32 %v2030, 4294901760
        %v2357 = vsub.f32 %v2030, %v2356
        %2358 = vmatprep.subr.mxu0 %v2357
        %v2359 = vand.u32 %v2029, 4294901760
        %v2360 = vsub.f32 %v2029, %v2359
        %2361 = vmatpush1.msra.mxu0 %v2360
        %v2362 = vand.u32 %v2032, 4294901760
        %v2363 = vsub.f32 %v2032, %v2362
        %2364 = vmatprep.subr.mxu0 %v2363
        %v2365 = vand.u32 %v2031, 4294901760
        %v2366 = vsub.f32 %v2031, %v2365
        %2367 = vmatpush1.msra.mxu0 %v2366
        %v2368 = vand.u32 %v2034, 4294901760
        %v2369 = vsub.f32 %v2034, %v2368
        %2370 = vmatprep.subr.mxu0 %v2369
        %v2371 = vand.u32 %v2033, 4294901760
        %v2372 = vsub.f32 %v2033, %v2371
        %2373 = vmatpush1.msra.mxu0 %v2372
        %v2374 = vand.u32 %v2036, 4294901760
        %v2375 = vsub.f32 %v2036, %v2374
        %2376 = vmatprep.subr.mxu0 %v2375
        %v2377 = vand.u32 %v2035, 4294901760
        %v2378 = vsub.f32 %v2035, %v2377
        %2379 = vmatpush1.msra.mxu0 %v2378
        %v2380 = vand.u32 %v2038, 4294901760
        %v2381 = vsub.f32 %v2038, %v2380
        %2382 = vmatprep.subr.mxu0 %v2381
        %v2383 = vand.u32 %v2037, 4294901760
        %v2384 = vsub.f32 %v2037, %v2383
        %2385 = vmatpush1.msra.mxu0 %v2384
        %2386 = vmatprep.subr.mxu0 0.0
        %2387 = vmatpush1.msra.mxu0 0.0
        %2388 = vmatprep.subr.mxu0 0.0
        %2389 = vmatpush1.msra.mxu0 0.0
        %2390 = vmatprep.subr.mxu0 0.0
        %2391 = vmatpush1.msra.mxu0 0.0
        %2392 = vmatprep.subr.mxu0 0.0
        %2393 = vmatpush1.msra.mxu0 0.0
        %2394 = vmatprep.subr.mxu0 0.0
        %2395 = vmatpush1.msra.mxu0 0.0
        %2396 = vmatprep.subr.mxu0 0.0
        %2397 = vmatpush1.msra.mxu0 0.0
        %2398 = vmatprep.subr.mxu0 0.0
        %2399 = vmatpush1.msra.mxu0 0.0
        %2400 = vmatprep.subr.mxu0 0.0
        %2401 = vmatpush1.msra.mxu0 0.0
        %2402 = vmatprep.subr.mxu0 0.0
        %2403 = vmatpush1.msra.mxu0 0.0
        %2404 = vmatprep.subr.mxu0 0.0
        %2405 = vmatpush1.msra.mxu0 0.0
        %2406 = vmatprep.subr.mxu0 0.0
        %2407 = vmatpush1.msra.mxu0 0.0
        %2408 = vmatprep.subr.mxu0 0.0
        %2409 = vmatpush1.msra.mxu0 0.0
        %2410 = vmatprep.subr.mxu0 0.0
        %2411 = vmatpush1.msra.mxu0 0.0
        %2412 = vmatprep.subr.mxu0 0.0
        %2413 = vmatpush1.msra.mxu0 0.0
        %2414 = vmatprep.subr.mxu0 0.0
        %2415 = vmatpush1.msra.mxu0 0.0
        %2416 = vmatprep.subr.mxu0 0.0
        %2417 = vmatpush1.msra.mxu0 0.0
        %2418 = vmatprep.subr.mxu0 0.0
        %2419 = vmatpush1.msra.mxu0 0.0
        %2420 = vmatprep.subr.mxu0 0.0
        %2421 = vmatpush1.msra.mxu0 0.0
        %2422 = vmatprep.subr.mxu0 0.0
        %2423 = vmatpush1.msra.mxu0 0.0
        %2424 = vmatprep.subr.mxu0 0.0
        %2425 = vmatpush1.msra.mxu0 0.0
        %2426 = vmatprep.subr.mxu0 0.0
        %2427 = vmatpush1.msra.mxu0 0.0
        %2428 = vmatprep.subr.mxu0 0.0
        %2429 = vmatpush1.msra.mxu0 0.0
        %2430 = vmatprep.subr.mxu0 0.0
        %2431 = vmatpush1.msra.mxu0 0.0
        %2432 = vmatprep.mubr.f32.mxu0 0.0
        %v2433 = vand.u32 %v2053, 4294901760
        %v2434 = vsub.f32 %v2053, %v2433
        %2435 = vmatmul.mubr.f32.gmra.mrb[0].mxu0 %v2434
        %v2436 = vpop.f32.mrb[0].mxu0
        %v2437 = vadd.f32 %v2321, %v2436
        %v2438 = vpop.f32.mrb[0].mxu0
        %v2439 = vadd.f32 %v2323, %v2438
        %2440 = vmatprep.mubr.f32.mxu0 0.0
        %v2441 = vand.u32 %v2056, 4294901760
        %v2442 = vsub.f32 %v2056, %v2441
        %2443 = vmatmul.mubr.f32.gmra.mrb[0].mxu0 %v2442
        %v2444 = vpop.f32.mrb[0].mxu0
        %v2445 = vadd.f32 %v2328, %v2444
        %v2446 = vpop.f32.mrb[0].mxu0
        %v2447 = vadd.f32 %v2330, %v2446
        %2448 = vdwg.mxu0
        %v2449 = vand.u32 %v2022, 4294901760
        %2450 = vmatprep.subr.mxu0 %v2449
        %v2451 = vand.u32 %v2021, 4294901760
        %2452 = vmatpush1.msra.mxu0 %v2451
        %v2453 = vand.u32 %v2024, 4294901760
        %2454 = vmatprep.subr.mxu0 %v2453
        %v2455 = vand.u32 %v2023, 4294901760
        %2456 = vmatpush1.msra.mxu0 %v2455
        %v2457 = vand.u32 %v2026, 4294901760
        %2458 = vmatprep.subr.mxu0 %v2457
        %v2459 = vand.u32 %v2025, 4294901760
        %2460 = vmatpush1.msra.mxu0 %v2459
        %v2461 = vand.u32 %v2028, 4294901760
        %2462 = vmatprep.subr.mxu0 %v2461
        %v2463 = vand.u32 %v2027, 4294901760
        %2464 = vmatpush1.msra.mxu0 %v2463
        %v2465 = vand.u32 %v2030, 4294901760
        %2466 = vmatprep.subr.mxu0 %v2465
        %v2467 = vand.u32 %v2029, 4294901760
        %2468 = vmatpush1.msra.mxu0 %v2467
        %v2469 = vand.u32 %v2032, 4294901760
        %2470 = vmatprep.subr.mxu0 %v2469
        %v2471 = vand.u32 %v2031, 4294901760
        %2472 = vmatpush1.msra.mxu0 %v2471
        %v2473 = vand.u32 %v2034, 4294901760
        %2474 = vmatprep.subr.mxu0 %v2473
        %v2475 = vand.u32 %v2033, 4294901760
        %2476 = vmatpush1.msra.mxu0 %v2475
        %v2477 = vand.u32 %v2036, 4294901760
        %2478 = vmatprep.subr.mxu0 %v2477
        %v2479 = vand.u32 %v2035, 4294901760
        %2480 = vmatpush1.msra.mxu0 %v2479
        %v2481 = vand.u32 %v2038, 4294901760
        %2482 = vmatprep.subr.mxu0 %v2481
        %v2483 = vand.u32 %v2037, 4294901760
        %2484 = vmatpush1.msra.mxu0 %v2483
        %2485 = vmatprep.subr.mxu0 0.0
        %2486 = vmatpush1.msra.mxu0 0.0
        %2487 = vmatprep.subr.mxu0 0.0
        %2488 = vmatpush1.msra.mxu0 0.0
        %2489 = vmatprep.subr.mxu0 0.0
        %2490 = vmatpush1.msra.mxu0 0.0
        %2491 = vmatprep.subr.mxu0 0.0
        %2492 = vmatpush1.msra.mxu0 0.0
        %2493 = vmatprep.subr.mxu0 0.0
        %2494 = vmatpush1.msra.mxu0 0.0
        %2495 = vmatprep.subr.mxu0 0.0
        %2496 = vmatpush1.msra.mxu0 0.0
        %2497 = vmatprep.subr.mxu0 0.0
        %2498 = vmatpush1.msra.mxu0 0.0
        %2499 = vmatprep.subr.mxu0 0.0
        %2500 = vmatpush1.msra.mxu0 0.0
        %2501 = vmatprep.subr.mxu0 0.0
        %2502 = vmatpush1.msra.mxu0 0.0
        %2503 = vmatprep.subr.mxu0 0.0
        %2504 = vmatpush1.msra.mxu0 0.0
        %2505 = vmatprep.subr.mxu0 0.0
        %2506 = vmatpush1.msra.mxu0 0.0
        %2507 = vmatprep.subr.mxu0 0.0
        %2508 = vmatpush1.msra.mxu0 0.0
        %2509 = vmatprep.subr.mxu0 0.0
        %2510 = vmatpush1.msra.mxu0 0.0
        %2511 = vmatprep.subr.mxu0 0.0
        %2512 = vmatpush1.msra.mxu0 0.0
        %2513 = vmatprep.subr.mxu0 0.0
        %2514 = vmatpush1.msra.mxu0 0.0
        %2515 = vmatprep.subr.mxu0 0.0
        %2516 = vmatpush1.msra.mxu0 0.0
        %2517 = vmatprep.subr.mxu0 0.0
        %2518 = vmatpush1.msra.mxu0 0.0
        %2519 = vmatprep.subr.mxu0 0.0
        %2520 = vmatpush1.msra.mxu0 0.0
        %2521 = vmatprep.subr.mxu0 0.0
        %2522 = vmatpush1.msra.mxu0 0.0
        %2523 = vmatprep.subr.mxu0 0.0
        %2524 = vmatpush1.msra.mxu0 0.0
        %2525 = vmatprep.subr.mxu0 0.0
        %2526 = vmatpush1.msra.mxu0 0.0
        %2527 = vmatprep.subr.mxu0 0.0
        %2528 = vmatpush1.msra.mxu0 0.0
        %2529 = vmatprep.subr.mxu0 0.0
        %2530 = vmatpush1.msra.mxu0 0.0
        %2531 = vmatprep.mubr.f32.mxu0 0.0
        %v2532 = vand.u32 %v2053, 4294901760
        %v2533 = vsub.f32 %v2053, %v2532
        %v2534 = vand.u32 %v2533, 4294901760
        %2535 = vmatmul.mubr.f32.gmra.mrb[0].mxu0 %v2534
        %v2536 = vpop.f32.mrb[0].mxu0
        %v2537 = vadd.f32 %v2437, %v2536
        %v2538 = vpop.f32.mrb[0].mxu0
        %v2539 = vadd.f32 %v2439, %v2538
        %2540 = vmatprep.mubr.f32.mxu0 0.0
        %v2541 = vand.u32 %v2056, 4294901760
        %v2542 = vsub.f32 %v2056, %v2541
        %v2543 = vand.u32 %v2542, 4294901760
        %2544 = vmatmul.mubr.f32.gmra.mrb[0].mxu0 %v2543
        %v2545 = vpop.f32.mrb[0].mxu0
        %v2546 = vadd.f32 %v2445, %v2545
        %v2547 = vpop.f32.mrb[0].mxu0
        %v2548 = vadd.f32 %v2447, %v2547
        %2549 = vdwg.mxu0
        %v2550 = vand.u32 %v2022, 4294901760
        %v2551 = vsub.f32 %v2022, %v2550
        %v2552 = vand.u32 %v2551, 4294901760
        %2553 = vmatprep.subr.mxu0 %v2552
        %v2554 = vand.u32 %v2021, 4294901760
        %v2555 = vsub.f32 %v2021, %v2554
        %v2556 = vand.u32 %v2555, 4294901760
        %2557 = vmatpush1.msra.mxu0 %v2556
        %v2558 = vand.u32 %v2024, 4294901760
        %v2559 = vsub.f32 %v2024, %v2558
        %v2560 = vand.u32 %v2559, 4294901760
        %2561 = vmatprep.subr.mxu0 %v2560
        %v2562 = vand.u32 %v2023, 4294901760
        %v2563 = vsub.f32 %v2023, %v2562
        %v2564 = vand.u32 %v2563, 4294901760
        %2565 = vmatpush1.msra.mxu0 %v2564
        %v2566 = vand.u32 %v2026, 4294901760
        %v2567 = vsub.f32 %v2026, %v2566
        %v2568 = vand.u32 %v2567, 4294901760
        %2569 = vmatprep.subr.mxu0 %v2568
        %v2570 = vand.u32 %v2025, 4294901760
        %v2571 = vsub.f32 %v2025, %v2570
        %v2572 = vand.u32 %v2571, 4294901760
        %2573 = vmatpush1.msra.mxu0 %v2572
        %v2574 = vand.u32 %v2028, 4294901760
        %v2575 = vsub.f32 %v2028, %v2574
        %v2576 = vand.u32 %v2575, 4294901760
        %2577 = vmatprep.subr.mxu0 %v2576
        %v2578 = vand.u32 %v2027, 4294901760
        %v2579 = vsub.f32 %v2027, %v2578
        %v2580 = vand.u32 %v2579, 4294901760
        %2581 = vmatpush1.msra.mxu0 %v2580
        %v2582 = vand.u32 %v2030, 4294901760
        %v2583 = vsub.f32 %v2030, %v2582
        %v2584 = vand.u32 %v2583, 4294901760
        %2585 = vmatprep.subr.mxu0 %v2584
        %v2586 = vand.u32 %v2029, 4294901760
        %v2587 = vsub.f32 %v2029, %v2586
        %v2588 = vand.u32 %v2587, 4294901760
        %2589 = vmatpush1.msra.mxu0 %v2588
        %v2590 = vand.u32 %v2032, 4294901760
        %v2591 = vsub.f32 %v2032, %v2590
        %v2592 = vand.u32 %v2591, 4294901760
        %2593 = vmatprep.subr.mxu0 %v2592
        %v2594 = vand.u32 %v2031, 4294901760
        %v2595 = vsub.f32 %v2031, %v2594
        %v2596 = vand.u32 %v2595, 4294901760
        %2597 = vmatpush1.msra.mxu0 %v2596
        %v2598 = vand.u32 %v2034, 4294901760
        %v2599 = vsub.f32 %v2034, %v2598
        %v2600 = vand.u32 %v2599, 4294901760
        %2601 = vmatprep.subr.mxu0 %v2600
        %v2602 = vand.u32 %v2033, 4294901760
        %v2603 = vsub.f32 %v2033, %v2602
        %v2604 = vand.u32 %v2603, 4294901760
        %2605 = vmatpush1.msra.mxu0 %v2604
        %v2606 = vand.u32 %v2036, 4294901760
        %v2607 = vsub.f32 %v2036, %v2606
        %v2608 = vand.u32 %v2607, 4294901760
        %2609 = vmatprep.subr.mxu0 %v2608
        %v2610 = vand.u32 %v2035, 4294901760
        %v2611 = vsub.f32 %v2035, %v2610
        %v2612 = vand.u32 %v2611, 4294901760
        %2613 = vmatpush1.msra.mxu0 %v2612
        %v2614 = vand.u32 %v2038, 4294901760
        %v2615 = vsub.f32 %v2038, %v2614
        %v2616 = vand.u32 %v2615, 4294901760
        %2617 = vmatprep.subr.mxu0 %v2616
        %v2618 = vand.u32 %v2037, 4294901760
        %v2619 = vsub.f32 %v2037, %v2618
        %v2620 = vand.u32 %v2619, 4294901760
        %2621 = vmatpush1.msra.mxu0 %v2620
        %2622 = vmatprep.subr.mxu0 0.0
        %2623 = vmatpush1.msra.mxu0 0.0
        %2624 = vmatprep.subr.mxu0 0.0
        %2625 = vmatpush1.msra.mxu0 0.0
        %2626 = vmatprep.subr.mxu0 0.0
        %2627 = vmatpush1.msra.mxu0 0.0
        %2628 = vmatprep.subr.mxu0 0.0
        %2629 = vmatpush1.msra.mxu0 0.0
        %2630 = vmatprep.subr.mxu0 0.0
        %2631 = vmatpush1.msra.mxu0 0.0
        %2632 = vmatprep.subr.mxu0 0.0
        %2633 = vmatpush1.msra.mxu0 0.0
        %2634 = vmatprep.subr.mxu0 0.0
        %2635 = vmatpush1.msra.mxu0 0.0
        %2636 = vmatprep.subr.mxu0 0.0
        %2637 = vmatpush1.msra.mxu0 0.0
        %2638 = vmatprep.subr.mxu0 0.0
        %2639 = vmatpush1.msra.mxu0 0.0
        %2640 = vmatprep.subr.mxu0 0.0
        %2641 = vmatpush1.msra.mxu0 0.0
        %2642 = vmatprep.subr.mxu0 0.0
        %2643 = vmatpush1.msra.mxu0 0.0
        %2644 = vmatprep.subr.mxu0 0.0
        %2645 = vmatpush1.msra.mxu0 0.0
        %2646 = vmatprep.subr.mxu0 0.0
        %2647 = vmatpush1.msra.mxu0 0.0
        %2648 = vmatprep.subr.mxu0 0.0
        %2649 = vmatpush1.msra.mxu0 0.0
        %2650 = vmatprep.subr.mxu0 0.0
        %2651 = vmatpush1.msra.mxu0 0.0
        %2652 = vmatprep.subr.mxu0 0.0
        %2653 = vmatpush1.msra.mxu0 0.0
        %2654 = vmatprep.subr.mxu0 0.0
        %2655 = vmatpush1.msra.mxu0 0.0
        %2656 = vmatprep.subr.mxu0 0.0
        %2657 = vmatpush1.msra.mxu0 0.0
        %2658 = vmatprep.subr.mxu0 0.0
        %2659 = vmatpush1.msra.mxu0 0.0
        %2660 = vmatprep.subr.mxu0 0.0
        %2661 = vmatpush1.msra.mxu0 0.0
        %2662 = vmatprep.subr.mxu0 0.0
        %2663 = vmatpush1.msra.mxu0 0.0
        %2664 = vmatprep.subr.mxu0 0.0
        %2665 = vmatpush1.msra.mxu0 0.0
        %2666 = vmatprep.subr.mxu0 0.0
        %2667 = vmatpush1.msra.mxu0 0.0
        %2668 = vmatprep.mubr.f32.mxu0 0.0
        %v2669 = vand.u32 %v2053, 4294901760
        %2670 = vmatmul.mubr.f32.gmra.mrb[0].mxu0 %v2669
        %v2671 = vpop.f32.mrb[0].mxu0
        %v2672 = vadd.f32 %v2537, %v2671
        %v2673 = vpop.f32.mrb[0].mxu0
        %v2674 = vadd.f32 %v2539, %v2673
        %2675 = vmatprep.mubr.f32.mxu0 0.0
        %v2676 = vand.u32 %v2056, 4294901760
        %2677 = vmatmul.mubr.f32.gmra.mrb[0].mxu0 %v2676
        %v2678 = vpop.f32.mrb[0].mxu0
        %v2679 = vadd.f32 %v2546, %v2678
        %v2680 = vpop.f32.mrb[0].mxu0
        %v2681 = vadd.f32 %v2548, %v2680
        %2682 = vdwg.mxu0
        %v2683 = vand.u32 %v2022, 4294901760
        %2684 = vmatprep.subr.mxu0 %v2683
        %v2685 = vand.u32 %v2021, 4294901760
        %2686 = vmatpush1.msra.mxu0 %v2685
        %v2687 = vand.u32 %v2024, 4294901760
        %2688 = vmatprep.subr.mxu0 %v2687
        %v2689 = vand.u32 %v2023, 4294901760
        %2690 = vmatpush1.msra.mxu0 %v2689
        %v2691 = vand.u32 %v2026, 4294901760
        %2692 = vmatprep.subr.mxu0 %v2691
        %v2693 = vand.u32 %v2025, 4294901760
        %2694 = vmatpush1.msra.mxu0 %v2693
        %v2695 = vand.u32 %v2028, 4294901760
        %2696 = vmatprep.subr.mxu0 %v2695
        %v2697 = vand.u32 %v2027, 4294901760
        %2698 = vmatpush1.msra.mxu0 %v2697
        %v2699 = vand.u32 %v2030, 4294901760
        %2700 = vmatprep.subr.mxu0 %v2699
        %v2701 = vand.u32 %v2029, 4294901760
        %2702 = vmatpush1.msra.mxu0 %v2701
        %v2703 = vand.u32 %v2032, 4294901760
        %2704 = vmatprep.subr.mxu0 %v2703
        %v2705 = vand.u32 %v2031, 4294901760
        %2706 = vmatpush1.msra.mxu0 %v2705
        %v2707 = vand.u32 %v2034, 4294901760
        %2708 = vmatprep.subr.mxu0 %v2707
        %v2709 = vand.u32 %v2033, 4294901760
        %2710 = vmatpush1.msra.mxu0 %v2709
        %v2711 = vand.u32 %v2036, 4294901760
        %2712 = vmatprep.subr.mxu0 %v2711
        %v2713 = vand.u32 %v2035, 4294901760
        %2714 = vmatpush1.msra.mxu0 %v2713
        %v2715 = vand.u32 %v2038, 4294901760
        %2716 = vmatprep.subr.mxu0 %v2715
        %v2717 = vand.u32 %v2037, 4294901760
        %2718 = vmatpush1.msra.mxu0 %v2717
        %2719 = vmatprep.subr.mxu0 0.0
        %2720 = vmatpush1.msra.mxu0 0.0
        %2721 = vmatprep.subr.mxu0 0.0
        %2722 = vmatpush1.msra.mxu0 0.0
        %2723 = vmatprep.subr.mxu0 0.0
        %2724 = vmatpush1.msra.mxu0 0.0
        %2725 = vmatprep.subr.mxu0 0.0
        %2726 = vmatpush1.msra.mxu0 0.0
        %2727 = vmatprep.subr.mxu0 0.0
        %2728 = vmatpush1.msra.mxu0 0.0
        %2729 = vmatprep.subr.mxu0 0.0
        %2730 = vmatpush1.msra.mxu0 0.0
        %2731 = vmatprep.subr.mxu0 0.0
        %2732 = vmatpush1.msra.mxu0 0.0
        %2733 = vmatprep.subr.mxu0 0.0
        %2734 = vmatpush1.msra.mxu0 0.0
        %2735 = vmatprep.subr.mxu0 0.0
        %2736 = vmatpush1.msra.mxu0 0.0
        %2737 = vmatprep.subr.mxu0 0.0
        %2738 = vmatpush1.msra.mxu0 0.0
        %2739 = vmatprep.subr.mxu0 0.0
        %2740 = vmatpush1.msra.mxu0 0.0
        %2741 = vmatprep.subr.mxu0 0.0
        %2742 = vmatpush1.msra.mxu0 0.0
        %2743 = vmatprep.subr.mxu0 0.0
        %2744 = vmatpush1.msra.mxu0 0.0
        %2745 = vmatprep.subr.mxu0 0.0
        %2746 = vmatpush1.msra.mxu0 0.0
        %2747 = vmatprep.subr.mxu0 0.0
        %2748 = vmatpush1.msra.mxu0 0.0
        %2749 = vmatprep.subr.mxu0 0.0
        %2750 = vmatpush1.msra.mxu0 0.0
        %2751 = vmatprep.subr.mxu0 0.0
        %2752 = vmatpush1.msra.mxu0 0.0
        %2753 = vmatprep.subr.mxu0 0.0
        %2754 = vmatpush1.msra.mxu0 0.0
        %2755 = vmatprep.subr.mxu0 0.0
        %2756 = vmatpush1.msra.mxu0 0.0
        %2757 = vmatprep.subr.mxu0 0.0
        %2758 = vmatpush1.msra.mxu0 0.0
        %2759 = vmatprep.subr.mxu0 0.0
        %2760 = vmatpush1.msra.mxu0 0.0
        %2761 = vmatprep.subr.mxu0 0.0
        %2762 = vmatpush1.msra.mxu0 0.0
        %2763 = vmatprep.subr.mxu0 0.0
        %2764 = vmatpush1.msra.mxu0 0.0
        %2765 = vmatprep.mubr.f32.mxu0 0.0
        %v2766 = vand.u32 %v2053, 4294901760
        %2767 = vmatmul.mubr.f32.gmra.mrb[0].mxu0 %v2766
        %v2768 = vpop.f32.mrb[0].mxu0
        %v2769 = vadd.f32 %v2672, %v2768
        %v2770 = vpop.f32.mrb[0].mxu0
        %v2771 = vadd.f32 %v2674, %v2770
        %2772 = vmatprep.mubr.f32.mxu0 0.0
        %v2773 = vand.u32 %v2056, 4294901760
        %2774 = vmatmul.mubr.f32.gmra.mrb[0].mxu0 %v2773
        %v2775 = vpop.f32.mrb[0].mxu0
        %v2776 = vadd.f32 %v2679, %v2775
        %v2777 = vpop.f32.mrb[0].mxu0
        %v2778 = vadd.f32 %v2681, %v2777
        %2779 = vdwg.mxu0
        %2780 = vst [vmem:[#allocation2 + $0x8] sm:$0xff] %v2769
        %2781 = vst [vmem:[#allocation2 + $0x10] sm:$0xff] %v2771
        %2782 = vst [vmem:[#allocation2 + $0x28] sm:$0xff] %v2776
        %2783 = vst [vmem:[#allocation2 + $0x30] sm:$0xff] %v2778
        %v2784 = vld [vmem:[#allocation2] sm:$0xff]
        %v2785 = vld [vmem:[#allocation2 + $0x8] sm:$0xff]
        %v2786 = vld [vmem:[#allocation2 + $0x10] sm:$0xff]
        %v2787 = vld [vmem:[#allocation2 + $0x20] sm:$0xff]
        %v2788 = vld [vmem:[#allocation2 + $0x28] sm:$0xff]
        %v2789 = vld [vmem:[#allocation2 + $0x30] sm:$0xff]
        %v2790 = vmul.f32 %v2784, %v488
        %v2791 = vmul.f32 %v2785, %v492
        %v2792 = vmul.f32 %v2786, %v490
        %v2793 = vmul.f32 %v2787, %v488
        %v2794 = vmul.f32 %v2788, %v492
        %v2795 = vmul.f32 %v2789, %v490
        %2802 = vrot.lane.b32.xlu0 %v2790, 17
        %v2803 = vpop.permute.xlu0 %2802
        %2804 = vrot.lane.b32.xlu0 %v2791, 17
        %v2805 = vpop.permute.xlu0 %2804
        %2806 = vrot.lane.b32.xlu0 %v2792, 17
        %v2807 = vpop.permute.xlu0 %2806
        %2808 = vrot.lane.b32.xlu0 %v2793, 17
        %v2809 = vpop.permute.xlu0 %2808
        %2810 = vrot.lane.b32.xlu0 %v2794, 17
        %v2811 = vpop.permute.xlu0 %2810
        %2812 = vrot.lane.b32.xlu0 %v2795, 17
        %v2813 = vpop.permute.xlu0 %2812
        %v2814 = vsel %vm520, %v2803, %v2805
        %v2815 = vsel %vm520, %v2805, %v2807
        %v2816 = vsel %vm520, %v2809, %v2811
        %v2817 = vsel %vm520, %v2811, %v2813
        %2822 = vst [vmem:[#allocation3] sm:$0xff] %v2814
        %2823 = vst [vmem:[#allocation3 + $0x8] sm:$0xff] %v2815
        %2824 = vst [vmem:[#allocation3 + $0x10] sm:$0xff] %v2816
        %2825 = vst [vmem:[#allocation3 + $0x18] sm:$0xff] %v2817
        %v2826 = vld [vmem:[#allocation2] sm:$0xff]
        %v2827 = vld [vmem:[#allocation2 + $0x8] sm:$0xff]
        %v2828 = vld [vmem:[#allocation2 + $0x10] sm:$0xff]
        %v2829 = vld [vmem:[#allocation2 + $0x20] sm:$0xff]
        %v2830 = vld [vmem:[#allocation2 + $0x28] sm:$0xff]
        %v2831 = vld [vmem:[#allocation2 + $0x30] sm:$0xff]
        %2838 = vrot.lane.b32.xlu0 %v2826, 16
        %v2839 = vpop.permute.xlu0 %2838
        %2840 = vrot.lane.b32.xlu0 %v2827, 16
        %v2841 = vpop.permute.xlu0 %2840
        %2842 = vrot.lane.b32.xlu0 %v2828, 16
        %v2843 = vpop.permute.xlu0 %2842
        %2844 = vrot.lane.b32.xlu0 %v2829, 16
        %v2845 = vpop.permute.xlu0 %2844
        %2846 = vrot.lane.b32.xlu0 %v2830, 16
        %v2847 = vpop.permute.xlu0 %2846
        %2848 = vrot.lane.b32.xlu0 %v2831, 16
        %v2849 = vpop.permute.xlu0 %2848
        %v2850 = vsel %vm557, %v2839, %v2841
        %v2851 = vsel %vm557, %v2841, %v2843
        %v2852 = vsel %vm557, %v2845, %v2847
        %v2853 = vsel %vm557, %v2847, %v2849
        %2858 = vst [vmem:[#allocation3 + $0x20] sm:$0xff] %v2850
        %2859 = vst [vmem:[#allocation3 + $0x28] sm:$0xff] %v2851
        %2860 = vst [vmem:[#allocation3 + $0x30] sm:$0xff] %v2852
        %2861 = vst [vmem:[#allocation3 + $0x38] sm:$0xff] %v2853
        %v2862 = vld [vmem:[#allocation2] sm:$0xff]
        %v2863 = vld [vmem:[#allocation2 + $0x8] sm:$0xff]
        %v2864 = vld [vmem:[#allocation2 + $0x10] sm:$0xff]
        %v2865 = vld [vmem:[#allocation2 + $0x20] sm:$0xff]
        %v2866 = vld [vmem:[#allocation2 + $0x28] sm:$0xff]
        %v2867 = vld [vmem:[#allocation2 + $0x30] sm:$0xff]
        %v2868 = vmul.f32 %v2862, %v586
        %v2869 = vmul.f32 %v2863, %v590
        %v2870 = vmul.f32 %v2864, %v588
        %v2871 = vmul.f32 %v2865, %v586
        %v2872 = vmul.f32 %v2866, %v590
        %v2873 = vmul.f32 %v2867, %v588
        %2880 = vrot.lane.b32.xlu0 %v2868, 15
        %v2881 = vpop.permute.xlu0 %2880
        %2882 = vrot.lane.b32.xlu0 %v2869, 15
        %v2883 = vpop.permute.xlu0 %2882
        %2884 = vrot.lane.b32.xlu0 %v2870, 15
        %v2885 = vpop.permute.xlu0 %2884
        %2886 = vrot.lane.b32.xlu0 %v2871, 15
        %v2887 = vpop.permute.xlu0 %2886
        %2888 = vrot.lane.b32.xlu0 %v2872, 15
        %v2889 = vpop.permute.xlu0 %2888
        %2890 = vrot.lane.b32.xlu0 %v2873, 15
        %v2891 = vpop.permute.xlu0 %2890
        %v2892 = vsel %vm618, %v2881, %v2883
        %v2893 = vsel %vm618, %v2883, %v2885
        %v2894 = vsel %vm618, %v2887, %v2889
        %v2895 = vsel %vm618, %v2889, %v2891
        %2900 = vst [vmem:[#allocation3 + $0x40] sm:$0xff] %v2892
        %2901 = vst [vmem:[#allocation3 + $0x48] sm:$0xff] %v2893
        %2902 = vst [vmem:[#allocation3 + $0x50] sm:$0xff] %v2894
        %2903 = vst [vmem:[#allocation3 + $0x58] sm:$0xff] %v2895
        %v2904 = vld [vmem:[#allocation2] sm:$0xff]
        %v2905 = vld [vmem:[#allocation2 + $0x8] sm:$0xff]
        %v2906 = vld [vmem:[#allocation2 + $0x10] sm:$0xff]
        %v2907 = vld [vmem:[#allocation2 + $0x20] sm:$0xff]
        %v2908 = vld [vmem:[#allocation2 + $0x28] sm:$0xff]
        %v2909 = vld [vmem:[#allocation2 + $0x30] sm:$0xff]
        %v2910 = vmul.f32 %v2904, %v638
        %v2911 = vmul.f32 %v2905, %v642
        %v2912 = vmul.f32 %v2906, %v640
        %v2913 = vmul.f32 %v2907, %v638
        %v2914 = vmul.f32 %v2908, %v642
        %v2915 = vmul.f32 %v2909, %v640
        %2922 = vrot.lane.b32.xlu0 %v2910, 1
        %v2923 = vpop.permute.xlu0 %2922
        %2924 = vrot.lane.b32.xlu0 %v2911, 1
        %v2925 = vpop.permute.xlu0 %2924
        %2926 = vrot.lane.b32.xlu0 %v2912, 1
        %v2927 = vpop.permute.xlu0 %2926
        %2928 = vrot.lane.b32.xlu0 %v2913, 1
        %v2929 = vpop.permute.xlu0 %2928
        %2930 = vrot.lane.b32.xlu0 %v2914, 1
        %v2931 = vpop.permute.xlu0 %2930
        %2932 = vrot.lane.b32.xlu0 %v2915, 1
        %v2933 = vpop.permute.xlu0 %2932
        %v2934 = vsel %vm670, %v2923, %v2925
        %v2935 = vsel %vm670, %v2925, %v2927
        %v2936 = vsel %vm670, %v2929, %v2931
        %v2937 = vsel %vm670, %v2931, %v2933
        %2942 = vst [vmem:[#allocation3 + $0x60] sm:$0xff] %v2934
        %2943 = vst [vmem:[#allocation3 + $0x68] sm:$0xff] %v2935
        %2944 = vst [vmem:[#allocation3 + $0x70] sm:$0xff] %v2936
        %2945 = vst [vmem:[#allocation3 + $0x78] sm:$0xff] %v2937
        %v2946 = vld [vmem:[#allocation2 + $0x8] sm:$0xff]
        %v2947 = vld [vmem:[#allocation2 + $0x10] sm:$0xff]
        %v2948 = vld [vmem:[#allocation2 + $0x28] sm:$0xff]
        %v2949 = vld [vmem:[#allocation2 + $0x30] sm:$0xff]
        %2950 = vst [vmem:[#allocation3 + $0x80] sm:$0xff] %v2946
        %2951 = vst [vmem:[#allocation3 + $0x88] sm:$0xff] %v2947
        %2952 = vst [vmem:[#allocation3 + $0x90] sm:$0xff] %v2948
        %2953 = vst [vmem:[#allocation3 + $0x98] sm:$0xff] %v2949
        %v2954 = vld [vmem:[#allocation2 + $0x8] sm:$0xff]
        %v2955 = vld [vmem:[#allocation2 + $0x10] sm:$0xff]
        %v2956 = vld [vmem:[#allocation2 + $0x18] sm:$0xff]
        %v2957 = vld [vmem:[#allocation2 + $0x28] sm:$0xff]
        %v2958 = vld [vmem:[#allocation2 + $0x30] sm:$0xff]
        %v2959 = vld [vmem:[#allocation2 + $0x38] sm:$0xff]
        %v2960 = vmul.f32 %v2954, %v698
        %v2961 = vmul.f32 %v2955, %v701
        %v2962 = vmul.f32 %v2956, %v700
        %v2963 = vmul.f32 %v2957, %v698
        %v2964 = vmul.f32 %v2958, %v701
        %v2965 = vmul.f32 %v2959, %v700
        %2972 = vrot.lane.b32.xlu0 %v2960, 127
        %v2973 = vpop.permute.xlu0 %2972
        %2974 = vrot.lane.b32.xlu0 %v2961, 127
        %v2975 = vpop.permute.xlu0 %2974
        %2976 = vrot.lane.b32.xlu0 %v2962, 127
        %v2977 = vpop.permute.xlu0 %2976
        %2978 = vrot.lane.b32.xlu0 %v2963, 127
        %v2979 = vpop.permute.xlu0 %2978
        %2980 = vrot.lane.b32.xlu0 %v2964, 127
        %v2981 = vpop.permute.xlu0 %2980
        %2982 = vrot.lane.b32.xlu0 %v2965, 127
        %v2983 = vpop.permute.xlu0 %2982
        %v2984 = vsel %vm641, %v2973, %v2975
        %v2985 = vsel %vm641, %v2975, %v2977
        %v2986 = vsel %vm641, %v2979, %v2981
        %v2987 = vsel %vm641, %v2981, %v2983
        %2992 = vst [vmem:[#allocation3 + $0xa0] sm:$0xff] %v2984
        %2993 = vst [vmem:[#allocation3 + $0xa8] sm:$0xff] %v2985
        %2994 = vst [vmem:[#allocation3 + $0xb0] sm:$0xff] %v2986
        %2995 = vst [vmem:[#allocation3 + $0xb8] sm:$0xff] %v2987
        %v2996 = vld [vmem:[#allocation2 + $0x8] sm:$0xff]
        %v2997 = vld [vmem:[#allocation2 + $0x10] sm:$0xff]
        %v2998 = vld [vmem:[#allocation2 + $0x18] sm:$0xff]
        %v2999 = vld [vmem:[#allocation2 + $0x28] sm:$0xff]
        %v3000 = vld [vmem:[#allocation2 + $0x30] sm:$0xff]
        %v3001 = vld [vmem:[#allocation2 + $0x38] sm:$0xff]
        %v3002 = vmul.f32 %v2996, %v748
        %v3003 = vmul.f32 %v2997, %v751
        %v3004 = vmul.f32 %v2998, %v750
        %v3005 = vmul.f32 %v2999, %v748
        %v3006 = vmul.f32 %v3000, %v751
        %v3007 = vmul.f32 %v3001, %v750
        %3014 = vrot.lane.b32.xlu0 %v3002, 113
        %v3015 = vpop.permute.xlu0 %3014
        %3016 = vrot.lane.b32.xlu0 %v3003, 113
        %v3017 = vpop.permute.xlu0 %3016
        %3018 = vrot.lane.b32.xlu0 %v3004, 113
        %v3019 = vpop.permute.xlu0 %3018
        %3020 = vrot.lane.b32.xlu0 %v3005, 113
        %v3021 = vpop.permute.xlu0 %3020
        %3022 = vrot.lane.b32.xlu0 %v3006, 113
        %v3023 = vpop.permute.xlu0 %3022
        %3024 = vrot.lane.b32.xlu0 %v3007, 113
        %v3025 = vpop.permute.xlu0 %3024
        %v3026 = vsel %vm589, %v3015, %v3017
        %v3027 = vsel %vm589, %v3017, %v3019
        %v3028 = vsel %vm589, %v3021, %v3023
        %v3029 = vsel %vm589, %v3023, %v3025
        %3034 = vst [vmem:[#allocation3 + $0xc0] sm:$0xff] %v3026
        %3035 = vst [vmem:[#allocation3 + $0xc8] sm:$0xff] %v3027
        %3036 = vst [vmem:[#allocation3 + $0xd0] sm:$0xff] %v3028
        %3037 = vst [vmem:[#allocation3 + $0xd8] sm:$0xff] %v3029
        %v3038 = vld [vmem:[#allocation2 + $0x8] sm:$0xff]
        %v3039 = vld [vmem:[#allocation2 + $0x10] sm:$0xff]
        %v3040 = vld [vmem:[#allocation2 + $0x18] sm:$0xff]
        %v3041 = vld [vmem:[#allocation2 + $0x28] sm:$0xff]
        %v3042 = vld [vmem:[#allocation2 + $0x30] sm:$0xff]
        %v3043 = vld [vmem:[#allocation2 + $0x38] sm:$0xff]
        %3050 = vrot.lane.b32.xlu0 %v3038, 112
        %v3051 = vpop.permute.xlu0 %3050
        %3052 = vrot.lane.b32.xlu0 %v3039, 112
        %v3053 = vpop.permute.xlu0 %3052
        %3054 = vrot.lane.b32.xlu0 %v3040, 112
        %v3055 = vpop.permute.xlu0 %3054
        %3056 = vrot.lane.b32.xlu0 %v3041, 112
        %v3057 = vpop.permute.xlu0 %3056
        %3058 = vrot.lane.b32.xlu0 %v3042, 112
        %v3059 = vpop.permute.xlu0 %3058
        %3060 = vrot.lane.b32.xlu0 %v3043, 112
        %v3061 = vpop.permute.xlu0 %3060
        %v3062 = vsel %vm815, %v3051, %v3053
        %v3063 = vsel %vm815, %v3053, %v3055
        %v3064 = vsel %vm815, %v3057, %v3059
        %v3065 = vsel %vm815, %v3059, %v3061
        %3070 = vst [vmem:[#allocation3 + $0xe0] sm:$0xff] %v3062
        %3071 = vst [vmem:[#allocation3 + $0xe8] sm:$0xff] %v3063
        %3072 = vst [vmem:[#allocation3 + $0xf0] sm:$0xff] %v3064
        %3073 = vst [vmem:[#allocation3 + $0xf8] sm:$0xff] %v3065
        %v3074 = vld [vmem:[#allocation2 + $0x8] sm:$0xff]
        %v3075 = vld [vmem:[#allocation2 + $0x10] sm:$0xff]
        %v3076 = vld [vmem:[#allocation2 + $0x18] sm:$0xff]
        %v3077 = vld [vmem:[#allocation2 + $0x28] sm:$0xff]
        %v3078 = vld [vmem:[#allocation2 + $0x30] sm:$0xff]
        %v3079 = vld [vmem:[#allocation2 + $0x38] sm:$0xff]
        %v3080 = vmul.f32 %v3074, %v835
        %v3081 = vmul.f32 %v3075, %v838
        %v3082 = vmul.f32 %v3076, %v837
        %v3083 = vmul.f32 %v3077, %v835
        %v3084 = vmul.f32 %v3078, %v838
        %v3085 = vmul.f32 %v3079, %v837
        %3092 = vrot.lane.b32.xlu0 %v3080, 111
        %v3093 = vpop.permute.xlu0 %3092
        %3094 = vrot.lane.b32.xlu0 %v3081, 111
        %v3095 = vpop.permute.xlu0 %3094
        %3096 = vrot.lane.b32.xlu0 %v3082, 111
        %v3097 = vpop.permute.xlu0 %3096
        %3098 = vrot.lane.b32.xlu0 %v3083, 111
        %v3099 = vpop.permute.xlu0 %3098
        %3100 = vrot.lane.b32.xlu0 %v3084, 111
        %v3101 = vpop.permute.xlu0 %3100
        %3102 = vrot.lane.b32.xlu0 %v3085, 111
        %v3103 = vpop.permute.xlu0 %3102
        %v3104 = vsel %vm491, %v3093, %v3095
        %v3105 = vsel %vm491, %v3095, %v3097
        %v3106 = vsel %vm491, %v3099, %v3101
        %v3107 = vsel %vm491, %v3101, %v3103
        %3112 = vst [vmem:[#allocation3 + $0x100] sm:$0xff] %v3104
        %3113 = vst [vmem:[#allocation3 + $0x108] sm:$0xff] %v3105
        %3114 = vst [vmem:[#allocation3 + $0x110] sm:$0xff] %v3106
        %3115 = vst [vmem:[#allocation3 + $0x118] sm:$0xff] %v3107
        %v3116 = vld [vmem:[#allocation9] sm:$0xff]
        %v3117 = vld [vmem:[#allocation9 + $0x8] sm:$0xff]
        %v3118 = vld [vmem:[#allocation9 + $0x10] sm:$0xff]
        %v3119 = vld [vmem:[#allocation9 + $0x18] sm:$0xff]
        %v3120 = vld [vmem:[#allocation9 + $0x20] sm:$0xff]
        %v3121 = vld [vmem:[#allocation9 + $0x28] sm:$0xff]
        %v3122 = vld [vmem:[#allocation9 + $0x30] sm:$0xff]
        %v3123 = vld [vmem:[#allocation9 + $0x38] sm:$0xff]
        %v3124 = vld [vmem:[#allocation9 + $0x40] sm:$0xff]
        %v3125 = vld [vmem:[#allocation9 + $0x48] sm:$0xff]
        %v3126 = vld [vmem:[#allocation9 + $0x50] sm:$0xff]
        %v3127 = vld [vmem:[#allocation9 + $0x58] sm:$0xff]
        %v3128 = vld [vmem:[#allocation9 + $0x60] sm:$0xff]
        %v3129 = vld [vmem:[#allocation9 + $0x68] sm:$0xff]
        %v3130 = vld [vmem:[#allocation9 + $0x70] sm:$0xff]
        %v3131 = vld [vmem:[#allocation9 + $0x78] sm:$0xff]
        %v3132 = vld [vmem:[#allocation3] sm:$0xff]
        %v3133 = vld [vmem:[#allocation3 + $0x8] sm:$0xff]
        %v3134 = vld [vmem:[#allocation3 + $0x10] sm:$0xff]
        %v3135 = vld [vmem:[#allocation3 + $0x18] sm:$0xff]
        %v3136 = vld [vmem:[#allocation3 + $0x20] sm:$0xff]
        %v3137 = vld [vmem:[#allocation3 + $0x28] sm:$0xff]
        %v3138 = vld [vmem:[#allocation3 + $0x30] sm:$0xff]
        %v3139 = vld [vmem:[#allocation3 + $0x38] sm:$0xff]
        %v3140 = vld [vmem:[#allocation3 + $0x40] sm:$0xff]
        %v3141 = vld [vmem:[#allocation3 + $0x48] sm:$0xff]
        %v3142 = vld [vmem:[#allocation3 + $0x50] sm:$0xff]
        %v3143 = vld [vmem:[#allocation3 + $0x58] sm:$0xff]
        %v3144 = vld [vmem:[#allocation3 + $0x60] sm:$0xff]
        %v3145 = vld [vmem:[#allocation3 + $0x68] sm:$0xff]
        %v3146 = vld [vmem:[#allocation3 + $0x70] sm:$0xff]
        %v3147 = vld [vmem:[#allocation3 + $0x78] sm:$0xff]
        %v3148 = vld [vmem:[#allocation3 + $0x80] sm:$0xff]
        %v3149 = vld [vmem:[#allocation3 + $0x88] sm:$0xff]
        %v3150 = vld [vmem:[#allocation3 + $0x90] sm:$0xff]
        %v3151 = vld [vmem:[#allocation3 + $0x98] sm:$0xff]
        %v3152 = vld [vmem:[#allocation3 + $0xa0] sm:$0xff]
        %v3153 = vld [vmem:[#allocation3 + $0xa8] sm:$0xff]
        %v3154 = vld [vmem:[#allocation3 + $0xb0] sm:$0xff]
        %v3155 = vld [vmem:[#allocation3 + $0xb8] sm:$0xff]
        %v3156 = vld [vmem:[#allocation3 + $0xc0] sm:$0xff]
        %v3157 = vld [vmem:[#allocation3 + $0xc8] sm:$0xff]
        %v3158 = vld [vmem:[#allocation3 + $0xd0] sm:$0xff]
        %v3159 = vld [vmem:[#allocation3 + $0xd8] sm:$0xff]
        %v3160 = vld [vmem:[#allocation3 + $0xe0] sm:$0xff]
        %v3161 = vld [vmem:[#allocation3 + $0xe8] sm:$0xff]
        %v3162 = vld [vmem:[#allocation3 + $0xf0] sm:$0xff]
        %v3163 = vld [vmem:[#allocation3 + $0xf8] sm:$0xff]
        %v3164 = vld [vmem:[#allocation3 + $0x100] sm:$0xff]
        %v3165 = vld [vmem:[#allocation3 + $0x108] sm:$0xff]
        %v3166 = vld [vmem:[#allocation3 + $0x110] sm:$0xff]
        %v3167 = vld [vmem:[#allocation3 + $0x118] sm:$0xff]
        %v3168 = vld [vmem:[%s7] sm:$0xff]
        %v3169 = vld [vmem:[%s7 + $0x8] sm:$0xff]
        %v3170 = vld [vmem:[%s7 + $0x10] sm:$0xff]
        %v3171 = vld [vmem:[%s7 + $0x18] sm:$0xff]
        %v3172 = vld [vmem:[%s7 + $0x20] sm:$0xff]
        %v3173 = vld [vmem:[%s7 + $0x28] sm:$0xff]
        %v3174 = vld [vmem:[%s7 + $0x30] sm:$0xff]
        %v3175 = vld [vmem:[%s7 + $0x38] sm:$0xff]
        %3177 = vset.pattern.permute.xlu0 0
        %3178 = vperm.xlu0 %3177, %v3168
        %v3179 = vpop.permute.xlu0 %3178
        %3182 = vset.pattern.permute.xlu0 0
        %3183 = vperm.xlu0 %3182, %v3169
        %v3184 = vpop.permute.xlu0 %3183
        %3187 = vset.pattern.permute.xlu0 0
        %3188 = vperm.xlu0 %3187, %v3170
        %v3189 = vpop.permute.xlu0 %3188
        %3192 = vset.pattern.permute.xlu0 0
        %3193 = vperm.xlu0 %3192, %v3171
        %v3194 = vpop.permute.xlu0 %3193
        %3197 = vset.pattern.permute.xlu0 0
        %3198 = vperm.xlu0 %3197, %v3172
        %v3199 = vpop.permute.xlu0 %3198
        %3202 = vset.pattern.permute.xlu0 0
        %3203 = vperm.xlu0 %3202, %v3173
        %v3204 = vpop.permute.xlu0 %3203
        %3207 = vset.pattern.permute.xlu0 0
        %3208 = vperm.xlu0 %3207, %v3174
        %v3209 = vpop.permute.xlu0 %3208
        %3212 = vset.pattern.permute.xlu0 0
        %3213 = vperm.xlu0 %3212, %v3175
        %v3214 = vpop.permute.xlu0 %3213
        %v3217 = vsel %vm557, %v3117, 0
        %v3220 = vsel %vm557, %v3119, 0
        %v3223 = vsel %vm557, %v3121, 0
        %v3226 = vsel %vm557, %v3123, 0
        %v3229 = vsel %vm557, %v3125, 0
        %v3232 = vsel %vm557, %v3127, 0
        %v3235 = vsel %vm557, %v3129, 0
        %v3238 = vsel %vm557, %v3131, 0
        %v3240 = vand.u32 %v3133, 4294901760
        %3241 = vmatprep.subr.mxu0 %v3240
        %v3242 = vand.u32 %v3132, 4294901760
        %3243 = vmatpush1.msra.mxu0 %v3242
        %v3244 = vand.u32 %v3135, 4294901760
        %3245 = vmatprep.subr.mxu0 %v3244
        %v3246 = vand.u32 %v3134, 4294901760
        %3247 = vmatpush1.msra.mxu0 %v3246
        %v3248 = vand.u32 %v3137, 4294901760
        %3249 = vmatprep.subr.mxu0 %v3248
        %v3250 = vand.u32 %v3136, 4294901760
        %3251 = vmatpush1.msra.mxu0 %v3250
        %v3252 = vand.u32 %v3139, 4294901760
        %3253 = vmatprep.subr.mxu0 %v3252
        %v3254 = vand.u32 %v3138, 4294901760
        %3255 = vmatpush1.msra.mxu0 %v3254
        %v3256 = vand.u32 %v3141, 4294901760
        %3257 = vmatprep.subr.mxu0 %v3256
        %v3258 = vand.u32 %v3140, 4294901760
        %3259 = vmatpush1.msra.mxu0 %v3258
        %v3260 = vand.u32 %v3143, 4294901760
        %3261 = vmatprep.subr.mxu0 %v3260
        %v3262 = vand.u32 %v3142, 4294901760
        %3263 = vmatpush1.msra.mxu0 %v3262
        %v3264 = vand.u32 %v3145, 4294901760
        %3265 = vmatprep.subr.mxu0 %v3264
        %v3266 = vand.u32 %v3144, 4294901760
        %3267 = vmatpush1.msra.mxu0 %v3266
        %v3268 = vand.u32 %v3147, 4294901760
        %3269 = vmatprep.subr.mxu0 %v3268
        %v3270 = vand.u32 %v3146, 4294901760
        %3271 = vmatpush1.msra.mxu0 %v3270
        %v3272 = vand.u32 %v3149, 4294901760
        %3273 = vmatprep.subr.mxu0 %v3272
        %v3274 = vand.u32 %v3148, 4294901760
        %3275 = vmatpush1.msra.mxu0 %v3274
        %v3276 = vand.u32 %v3151, 4294901760
        %3277 = vmatprep.subr.mxu0 %v3276
        %v3278 = vand.u32 %v3150, 4294901760
        %3279 = vmatpush1.msra.mxu0 %v3278
        %v3280 = vand.u32 %v3153, 4294901760
        %3281 = vmatprep.subr.mxu0 %v3280
        %v3282 = vand.u32 %v3152, 4294901760
        %3283 = vmatpush1.msra.mxu0 %v3282
        %v3284 = vand.u32 %v3155, 4294901760
        %3285 = vmatprep.subr.mxu0 %v3284
        %v3286 = vand.u32 %v3154, 4294901760
        %3287 = vmatpush1.msra.mxu0 %v3286
        %v3288 = vand.u32 %v3157, 4294901760
        %3289 = vmatprep.subr.mxu0 %v3288
        %v3290 = vand.u32 %v3156, 4294901760
        %3291 = vmatpush1.msra.mxu0 %v3290
        %v3292 = vand.u32 %v3159, 4294901760
        %3293 = vmatprep.subr.mxu0 %v3292
        %v3294 = vand.u32 %v3158, 4294901760
        %3295 = vmatpush1.msra.mxu0 %v3294
        %v3296 = vand.u32 %v3161, 4294901760
        %3297 = vmatprep.subr.mxu0 %v3296
        %v3298 = vand.u32 %v3160, 4294901760
        %3299 = vmatpush1.msra.mxu0 %v3298
        %v3300 = vand.u32 %v3163, 4294901760
        %3301 = vmatprep.subr.mxu0 %v3300
        %v3302 = vand.u32 %v3162, 4294901760
        %3303 = vmatpush1.msra.mxu0 %v3302
        %v3304 = vand.u32 %v3165, 4294901760
        %3305 = vmatprep.subr.mxu0 %v3304
        %v3306 = vand.u32 %v3164, 4294901760
        %3307 = vmatpush1.msra.mxu0 %v3306
        %v3308 = vand.u32 %v3167, 4294901760
        %3309 = vmatprep.subr.mxu0 %v3308
        %v3310 = vand.u32 %v3166, 4294901760
        %3311 = vmatpush1.msra.mxu0 %v3310
        %3312 = vmatprep.subr.mxu0 0.0
        %3313 = vmatpush1.msra.mxu0 0.0
        %3314 = vmatprep.subr.mxu0 0.0
        %3315 = vmatpush1.msra.mxu0 0.0
        %3316 = vmatprep.subr.mxu0 0.0
        %3317 = vmatpush1.msra.mxu0 0.0
        %3318 = vmatprep.subr.mxu0 0.0
        %3319 = vmatpush1.msra.mxu0 0.0
        %3320 = vmatprep.subr.mxu0 0.0
        %3321 = vmatpush1.msra.mxu0 0.0
        %3322 = vmatprep.subr.mxu0 0.0
        %3323 = vmatpush1.msra.mxu0 0.0
        %3324 = vmatprep.subr.mxu0 0.0
        %3325 = vmatpush1.msra.mxu0 0.0
        %3326 = vmatprep.subr.mxu0 0.0
        %3327 = vmatpush1.msra.mxu0 0.0
        %3328 = vmatprep.subr.mxu0 0.0
        %3329 = vmatpush1.msra.mxu0 0.0
        %3330 = vmatprep.subr.mxu0 0.0
        %3331 = vmatpush1.msra.mxu0 0.0
        %3332 = vmatprep.subr.mxu0 0.0
        %3333 = vmatpush1.msra.mxu0 0.0
        %3334 = vmatprep.subr.mxu0 0.0
        %3335 = vmatpush1.msra.mxu0 0.0
        %3336 = vmatprep.subr.mxu0 0.0
        %3337 = vmatpush1.msra.mxu0 0.0
        %3338 = vmatprep.subr.mxu0 0.0
        %3339 = vmatpush1.msra.mxu0 0.0
        %v3340 = vand.u32 %v3217, 4294901760
        %v3341 = vsub.f32 %v3217, %v3340
        %v3342 = vand.u32 %v3341, 4294901760
        %v3343 = vsub.f32 %v3341, %v3342
        %v3344 = vand.u32 %v3343, 4294901760
        %3345 = vmatprep.mubr.f32.mxu0 %v3344
        %v3346 = vand.u32 %v3116, 4294901760
        %v3347 = vsub.f32 %v3116, %v3346
        %v3348 = vand.u32 %v3347, 4294901760
        %v3349 = vsub.f32 %v3347, %v3348
        %v3350 = vand.u32 %v3349, 4294901760
        %3351 = vmatmul.mubr.f32.gmra.mrb[0].mxu0 %v3350
        %v3352 = vpop.f32.mrb[0].mxu0
        %v3353 = vadd.f32 %v3179, %v3352
        %v3354 = vpop.f32.mrb[0].mxu0
        %v3355 = vadd.f32 %v3179, %v3354
        %v3356 = vand.u32 %v3220, 4294901760
        %v3357 = vsub.f32 %v3220, %v3356
        %v3358 = vand.u32 %v3357, 4294901760
        %v3359 = vsub.f32 %v3357, %v3358
        %v3360 = vand.u32 %v3359, 4294901760
        %3361 = vmatprep.mubr.f32.mxu0 %v3360
        %v3362 = vand.u32 %v3118, 4294901760
        %v3363 = vsub.f32 %v3118, %v3362
        %v3364 = vand.u32 %v3363, 4294901760
        %v3365 = vsub.f32 %v3363, %v3364
        %v3366 = vand.u32 %v3365, 4294901760
        %3367 = vmatmul.mubr.f32.gmra.mrb[0].mxu0 %v3366
        %v3368 = vpop.f32.mrb[0].mxu0
        %v3369 = vadd.f32 %v3184, %v3368
        %v3370 = vpop.f32.mrb[0].mxu0
        %v3371 = vadd.f32 %v3184, %v3370
        %v3372 = vand.u32 %v3223, 4294901760
        %v3373 = vsub.f32 %v3223, %v3372
        %v3374 = vand.u32 %v3373, 4294901760
        %v3375 = vsub.f32 %v3373, %v3374
        %v3376 = vand.u32 %v3375, 4294901760
        %3377 = vmatprep.mubr.f32.mxu0 %v3376
        %v3378 = vand.u32 %v3120, 4294901760
        %v3379 = vsub.f32 %v3120, %v3378
        %v3380 = vand.u32 %v3379, 4294901760
        %v3381 = vsub.f32 %v3379, %v3380
        %v3382 = vand.u32 %v3381, 4294901760
        %3383 = vmatmul.mubr.f32.gmra.mrb[0].mxu0 %v3382
        %v3384 = vpop.f32.mrb[0].mxu0
        %v3385 = vadd.f32 %v3189, %v3384
        %v3386 = vpop.f32.mrb[0].mxu0
        %v3387 = vadd.f32 %v3189, %v3386
        %v3388 = vand.u32 %v3226, 4294901760
        %v3389 = vsub.f32 %v3226, %v3388
        %v3390 = vand.u32 %v3389, 4294901760
        %v3391 = vsub.f32 %v3389, %v3390
        %v3392 = vand.u32 %v3391, 4294901760
        %3393 = vmatprep.mubr.f32.mxu0 %v3392
        %v3394 = vand.u32 %v3122, 4294901760
        %v3395 = vsub.f32 %v3122, %v3394
        %v3396 = vand.u32 %v3395, 4294901760
        %v3397 = vsub.f32 %v3395, %v3396
        %v3398 = vand.u32 %v3397, 4294901760
        %3399 = vmatmul.mubr.f32.gmra.mrb[0].mxu0 %v3398
        %v3400 = vpop.f32.mrb[0].mxu0
        %v3401 = vadd.f32 %v3194, %v3400
        %v3402 = vpop.f32.mrb[0].mxu0
        %v3403 = vadd.f32 %v3194, %v3402
        %v3404 = vand.u32 %v3229, 4294901760
        %v3405 = vsub.f32 %v3229, %v3404
        %v3406 = vand.u32 %v3405, 4294901760
        %v3407 = vsub.f32 %v3405, %v3406
        %v3408 = vand.u32 %v3407, 4294901760
        %3409 = vmatprep.mubr.f32.mxu0 %v3408
        %v3410 = vand.u32 %v3124, 4294901760
        %v3411 = vsub.f32 %v3124, %v3410
        %v3412 = vand.u32 %v3411, 4294901760
        %v3413 = vsub.f32 %v3411, %v3412
        %v3414 = vand.u32 %v3413, 4294901760
        %3415 = vmatmul.mubr.f32.gmra.mrb[0].mxu0 %v3414
        %v3416 = vpop.f32.mrb[0].mxu0
        %v3417 = vadd.f32 %v3199, %v3416
        %v3418 = vpop.f32.mrb[0].mxu0
        %v3419 = vadd.f32 %v3199, %v3418
        %v3420 = vand.u32 %v3232, 4294901760
        %v3421 = vsub.f32 %v3232, %v3420
        %v3422 = vand.u32 %v3421, 4294901760
        %v3423 = vsub.f32 %v3421, %v3422
        %v3424 = vand.u32 %v3423, 4294901760
        %3425 = vmatprep.mubr.f32.mxu0 %v3424
        %v3426 = vand.u32 %v3126, 4294901760
        %v3427 = vsub.f32 %v3126, %v3426
        %v3428 = vand.u32 %v3427, 4294901760
        %v3429 = vsub.f32 %v3427, %v3428
        %v3430 = vand.u32 %v3429, 4294901760
        %3431 = vmatmul.mubr.f32.gmra.mrb[0].mxu0 %v3430
        %v3432 = vpop.f32.mrb[0].mxu0
        %v3433 = vadd.f32 %v3204, %v3432
        %v3434 = vpop.f32.mrb[0].mxu0
        %v3435 = vadd.f32 %v3204, %v3434
        %v3436 = vand.u32 %v3235, 4294901760
        %v3437 = vsub.f32 %v3235, %v3436
        %v3438 = vand.u32 %v3437, 4294901760
        %v3439 = vsub.f32 %v3437, %v3438
        %v3440 = vand.u32 %v3439, 4294901760
        %3441 = vmatprep.mubr.f32.mxu0 %v3440
        %v3442 = vand.u32 %v3128, 4294901760
        %v3443 = vsub.f32 %v3128, %v3442
        %v3444 = vand.u32 %v3443, 4294901760
        %v3445 = vsub.f32 %v3443, %v3444
        %v3446 = vand.u32 %v3445, 4294901760
        %3447 = vmatmul.mubr.f32.gmra.mrb[0].mxu0 %v3446
        %v3448 = vpop.f32.mrb[0].mxu0
        %v3449 = vadd.f32 %v3209, %v3448
        %v3450 = vpop.f32.mrb[0].mxu0
        %v3451 = vadd.f32 %v3209, %v3450
        %v3452 = vand.u32 %v3238, 4294901760
        %v3453 = vsub.f32 %v3238, %v3452
        %v3454 = vand.u32 %v3453, 4294901760
        %v3455 = vsub.f32 %v3453, %v3454
        %v3456 = vand.u32 %v3455, 4294901760
        %3457 = vmatprep.mubr.f32.mxu0 %v3456
        %v3458 = vand.u32 %v3130, 4294901760
        %v3459 = vsub.f32 %v3130, %v3458
        %v3460 = vand.u32 %v3459, 4294901760
        %v3461 = vsub.f32 %v3459, %v3460
        %v3462 = vand.u32 %v3461, 4294901760
        %3463 = vmatmul.mubr.f32.gmra.mrb[0].mxu0 %v3462
        %v3464 = vpop.f32.mrb[0].mxu0
        %v3465 = vadd.f32 %v3214, %v3464
        %v3466 = vpop.f32.mrb[0].mxu0
        %v3467 = vadd.f32 %v3214, %v3466
        %3468 = vdwg.mxu0
        %v3469 = vand.u32 %v3133, 4294901760
        %v3470 = vsub.f32 %v3133, %v3469
        %v3471 = vand.u32 %v3470, 4294901760
        %v3472 = vsub.f32 %v3470, %v3471
        %v3473 = vand.u32 %v3472, 4294901760
        %3474 = vmatprep.subr.mxu0 %v3473
        %v3475 = vand.u32 %v3132, 4294901760
        %v3476 = vsub.f32 %v3132, %v3475
        %v3477 = vand.u32 %v3476, 4294901760
        %v3478 = vsub.f32 %v3476, %v3477
        %v3479 = vand.u32 %v3478, 4294901760
        %3480 = vmatpush1.msra.mxu0 %v3479
        %v3481 = vand.u32 %v3135, 4294901760
        %v3482 = vsub.f32 %v3135, %v3481
        %v3483 = vand.u32 %v3482, 4294901760
        %v3484 = vsub.f32 %v3482, %v3483
        %v3485 = vand.u32 %v3484, 4294901760
        %3486 = vmatprep.subr.mxu0 %v3485
        %v3487 = vand.u32 %v3134, 4294901760
        %v3488 = vsub.f32 %v3134, %v3487
        %v3489 = vand.u32 %v3488, 4294901760
        %v3490 = vsub.f32 %v3488, %v3489
        %v3491 = vand.u32 %v3490, 4294901760
        %3492 = vmatpush1.msra.mxu0 %v3491
        %v3493 = vand.u32 %v3137, 4294901760
        %v3494 = vsub.f32 %v3137, %v3493
        %v3495 = vand.u32 %v3494, 4294901760
        %v3496 = vsub.f32 %v3494, %v3495
        %v3497 = vand.u32 %v3496, 4294901760
        %3498 = vmatprep.subr.mxu0 %v3497
        %v3499 = vand.u32 %v3136, 4294901760
        %v3500 = vsub.f32 %v3136, %v3499
        %v3501 = vand.u32 %v3500, 4294901760
        %v3502 = vsub.f32 %v3500, %v3501
        %v3503 = vand.u32 %v3502, 4294901760
        %3504 = vmatpush1.msra.mxu0 %v3503
        %v3505 = vand.u32 %v3139, 4294901760
        %v3506 = vsub.f32 %v3139, %v3505
        %v3507 = vand.u32 %v3506, 4294901760
        %v3508 = vsub.f32 %v3506, %v3507
        %v3509 = vand.u32 %v3508, 4294901760
        %3510 = vmatprep.subr.mxu0 %v3509
        %v3511 = vand.u32 %v3138, 4294901760
        %v3512 = vsub.f32 %v3138, %v3511
        %v3513 = vand.u32 %v3512, 4294901760
        %v3514 = vsub.f32 %v3512, %v3513
        %v3515 = vand.u32 %v3514, 4294901760
        %3516 = vmatpush1.msra.mxu0 %v3515
        %v3517 = vand.u32 %v3141, 4294901760
        %v3518 = vsub.f32 %v3141, %v3517
        %v3519 = vand.u32 %v3518, 4294901760
        %v3520 = vsub.f32 %v3518, %v3519
        %v3521 = vand.u32 %v3520, 4294901760
        %3522 = vmatprep.subr.mxu0 %v3521
        %v3523 = vand.u32 %v3140, 4294901760
        %v3524 = vsub.f32 %v3140, %v3523
        %v3525 = vand.u32 %v3524, 4294901760
        %v3526 = vsub.f32 %v3524, %v3525
        %v3527 = vand.u32 %v3526, 4294901760
        %3528 = vmatpush1.msra.mxu0 %v3527
        %v3529 = vand.u32 %v3143, 4294901760
        %v3530 = vsub.f32 %v3143, %v3529
        %v3531 = vand.u32 %v3530, 4294901760
        %v3532 = vsub.f32 %v3530, %v3531
        %v3533 = vand.u32 %v3532, 4294901760
        %3534 = vmatprep.subr.mxu0 %v3533
        %v3535 = vand.u32 %v3142, 4294901760
        %v3536 = vsub.f32 %v3142, %v3535
        %v3537 = vand.u32 %v3536, 4294901760
        %v3538 = vsub.f32 %v3536, %v3537
        %v3539 = vand.u32 %v3538, 4294901760
        %3540 = vmatpush1.msra.mxu0 %v3539
        %v3541 = vand.u32 %v3145, 4294901760
        %v3542 = vsub.f32 %v3145, %v3541
        %v3543 = vand.u32 %v3542, 4294901760
        %v3544 = vsub.f32 %v3542, %v3543
        %v3545 = vand.u32 %v3544, 4294901760
        %3546 = vmatprep.subr.mxu0 %v3545
        %v3547 = vand.u32 %v3144, 4294901760
        %v3548 = vsub.f32 %v3144, %v3547
        %v3549 = vand.u32 %v3548, 4294901760
        %v3550 = vsub.f32 %v3548, %v3549
        %v3551 = vand.u32 %v3550, 4294901760
        %3552 = vmatpush1.msra.mxu0 %v3551
        %v3553 = vand.u32 %v3147, 4294901760
        %v3554 = vsub.f32 %v3147, %v3553
        %v3555 = vand.u32 %v3554, 4294901760
        %v3556 = vsub.f32 %v3554, %v3555
        %v3557 = vand.u32 %v3556, 4294901760
        %3558 = vmatprep.subr.mxu0 %v3557
        %v3559 = vand.u32 %v3146, 4294901760
        %v3560 = vsub.f32 %v3146, %v3559
        %v3561 = vand.u32 %v3560, 4294901760
        %v3562 = vsub.f32 %v3560, %v3561
        %v3563 = vand.u32 %v3562, 4294901760
        %3564 = vmatpush1.msra.mxu0 %v3563
        %v3565 = vand.u32 %v3149, 4294901760
        %v3566 = vsub.f32 %v3149, %v3565
        %v3567 = vand.u32 %v3566, 4294901760
        %v3568 = vsub.f32 %v3566, %v3567
        %v3569 = vand.u32 %v3568, 4294901760
        %3570 = vmatprep.subr.mxu0 %v3569
        %v3571 = vand.u32 %v3148, 4294901760
        %v3572 = vsub.f32 %v3148, %v3571
        %v3573 = vand.u32 %v3572, 4294901760
        %v3574 = vsub.f32 %v3572, %v3573
        %v3575 = vand.u32 %v3574, 4294901760
        %3576 = vmatpush1.msra.mxu0 %v3575
        %v3577 = vand.u32 %v3151, 4294901760
        %v3578 = vsub.f32 %v3151, %v3577
        %v3579 = vand.u32 %v3578, 4294901760
        %v3580 = vsub.f32 %v3578, %v3579
        %v3581 = vand.u32 %v3580, 4294901760
        %3582 = vmatprep.subr.mxu0 %v3581
        %v3583 = vand.u32 %v3150, 4294901760
        %v3584 = vsub.f32 %v3150, %v3583
        %v3585 = vand.u32 %v3584, 4294901760
        %v3586 = vsub.f32 %v3584, %v3585
        %v3587 = vand.u32 %v3586, 4294901760
        %3588 = vmatpush1.msra.mxu0 %v3587
        %v3589 = vand.u32 %v3153, 4294901760
        %v3590 = vsub.f32 %v3153, %v3589
        %v3591 = vand.u32 %v3590, 4294901760
        %v3592 = vsub.f32 %v3590, %v3591
        %v3593 = vand.u32 %v3592, 4294901760
        %3594 = vmatprep.subr.mxu0 %v3593
        %v3595 = vand.u32 %v3152, 4294901760
        %v3596 = vsub.f32 %v3152, %v3595
        %v3597 = vand.u32 %v3596, 4294901760
        %v3598 = vsub.f32 %v3596, %v3597
        %v3599 = vand.u32 %v3598, 4294901760
        %3600 = vmatpush1.msra.mxu0 %v3599
        %v3601 = vand.u32 %v3155, 4294901760
        %v3602 = vsub.f32 %v3155, %v3601
        %v3603 = vand.u32 %v3602, 4294901760
        %v3604 = vsub.f32 %v3602, %v3603
        %v3605 = vand.u32 %v3604, 4294901760
        %3606 = vmatprep.subr.mxu0 %v3605
        %v3607 = vand.u32 %v3154, 4294901760
        %v3608 = vsub.f32 %v3154, %v3607
        %v3609 = vand.u32 %v3608, 4294901760
        %v3610 = vsub.f32 %v3608, %v3609
        %v3611 = vand.u32 %v3610, 4294901760
        %3612 = vmatpush1.msra.mxu0 %v3611
        %v3613 = vand.u32 %v3157, 4294901760
        %v3614 = vsub.f32 %v3157, %v3613
        %v3615 = vand.u32 %v3614, 4294901760
        %v3616 = vsub.f32 %v3614, %v3615
        %v3617 = vand.u32 %v3616, 4294901760
        %3618 = vmatprep.subr.mxu0 %v3617
        %v3619 = vand.u32 %v3156, 4294901760
        %v3620 = vsub.f32 %v3156, %v3619
        %v3621 = vand.u32 %v3620, 4294901760
        %v3622 = vsub.f32 %v3620, %v3621
        %v3623 = vand.u32 %v3622, 4294901760
        %3624 = vmatpush1.msra.mxu0 %v3623
        %v3625 = vand.u32 %v3159, 4294901760
        %v3626 = vsub.f32 %v3159, %v3625
        %v3627 = vand.u32 %v3626, 4294901760
        %v3628 = vsub.f32 %v3626, %v3627
        %v3629 = vand.u32 %v3628, 4294901760
        %3630 = vmatprep.subr.mxu0 %v3629
        %v3631 = vand.u32 %v3158, 4294901760
        %v3632 = vsub.f32 %v3158, %v3631
        %v3633 = vand.u32 %v3632, 4294901760
        %v3634 = vsub.f32 %v3632, %v3633
        %v3635 = vand.u32 %v3634, 4294901760
        %3636 = vmatpush1.msra.mxu0 %v3635
        %v3637 = vand.u32 %v3161, 4294901760
        %v3638 = vsub.f32 %v3161, %v3637
        %v3639 = vand.u32 %v3638, 4294901760
        %v3640 = vsub.f32 %v3638, %v3639
        %v3641 = vand.u32 %v3640, 4294901760
        %3642 = vmatprep.subr.mxu0 %v3641
        %v3643 = vand.u32 %v3160, 4294901760
        %v3644 = vsub.f32 %v3160, %v3643
        %v3645 = vand.u32 %v3644, 4294901760
        %v3646 = vsub.f32 %v3644, %v3645
        %v3647 = vand.u32 %v3646, 4294901760
        %3648 = vmatpush1.msra.mxu0 %v3647
        %v3649 = vand.u32 %v3163, 4294901760
        %v3650 = vsub.f32 %v3163, %v3649
        %v3651 = vand.u32 %v3650, 4294901760
        %v3652 = vsub.f32 %v3650, %v3651
        %v3653 = vand.u32 %v3652, 4294901760
        %3654 = vmatprep.subr.mxu0 %v3653
        %v3655 = vand.u32 %v3162, 4294901760
        %v3656 = vsub.f32 %v3162, %v3655
        %v3657 = vand.u32 %v3656, 4294901760
        %v3658 = vsub.f32 %v3656, %v3657
        %v3659 = vand.u32 %v3658, 4294901760
        %3660 = vmatpush1.msra.mxu0 %v3659
        %v3661 = vand.u32 %v3165, 4294901760
        %v3662 = vsub.f32 %v3165, %v3661
        %v3663 = vand.u32 %v3662, 4294901760
        %v3664 = vsub.f32 %v3662, %v3663
        %v3665 = vand.u32 %v3664, 4294901760
        %3666 = vmatprep.subr.mxu0 %v3665
        %v3667 = vand.u32 %v3164, 4294901760
        %v3668 = vsub.f32 %v3164, %v3667
        %v3669 = vand.u32 %v3668, 4294901760
        %v3670 = vsub.f32 %v3668, %v3669
        %v3671 = vand.u32 %v3670, 4294901760
        %3672 = vmatpush1.msra.mxu0 %v3671
        %v3673 = vand.u32 %v3167, 4294901760
        %v3674 = vsub.f32 %v3167, %v3673
        %v3675 = vand.u32 %v3674, 4294901760
        %v3676 = vsub.f32 %v3674, %v3675
        %v3677 = vand.u32 %v3676, 4294901760
        %3678 = vmatprep.subr.mxu0 %v3677
        %v3679 = vand.u32 %v3166, 4294901760
        %v3680 = vsub.f32 %v3166, %v3679
        %v3681 = vand.u32 %v3680, 4294901760
        %v3682 = vsub.f32 %v3680, %v3681
        %v3683 = vand.u32 %v3682, 4294901760
        %3684 = vmatpush1.msra.mxu0 %v3683
        %3685 = vmatprep.subr.mxu0 0.0
        %3686 = vmatpush1.msra.mxu0 0.0
        %3687 = vmatprep.subr.mxu0 0.0
        %3688 = vmatpush1.msra.mxu0 0.0
        %3689 = vmatprep.subr.mxu0 0.0
        %3690 = vmatpush1.msra.mxu0 0.0
        %3691 = vmatprep.subr.mxu0 0.0
        %3692 = vmatpush1.msra.mxu0 0.0
        %3693 = vmatprep.subr.mxu0 0.0
        %3694 = vmatpush1.msra.mxu0 0.0
        %3695 = vmatprep.subr.mxu0 0.0
        %3696 = vmatpush1.msra.mxu0 0.0
        %3697 = vmatprep.subr.mxu0 0.0
        %3698 = vmatpush1.msra.mxu0 0.0
        %3699 = vmatprep.subr.mxu0 0.0
        %3700 = vmatpush1.msra.mxu0 0.0
        %3701 = vmatprep.subr.mxu0 0.0
        %3702 = vmatpush1.msra.mxu0 0.0
        %3703 = vmatprep.subr.mxu0 0.0
        %3704 = vmatpush1.msra.mxu0 0.0
        %3705 = vmatprep.subr.mxu0 0.0
        %3706 = vmatpush1.msra.mxu0 0.0
        %3707 = vmatprep.subr.mxu0 0.0
        %3708 = vmatpush1.msra.mxu0 0.0
        %3709 = vmatprep.subr.mxu0 0.0
        %3710 = vmatpush1.msra.mxu0 0.0
        %3711 = vmatprep.subr.mxu0 0.0
        %3712 = vmatpush1.msra.mxu0 0.0
        %v3713 = vand.u32 %v3217, 4294901760
        %3714 = vmatprep.mubr.f32.mxu0 %v3713
        %v3715 = vand.u32 %v3116, 4294901760
        %3716 = vmatmul.mubr.f32.gmra.mrb[0].mxu0 %v3715
        %v3717 = vpop.f32.mrb[0].mxu0
        %v3718 = vadd.f32 %v3353, %v3717
        %v3719 = vpop.f32.mrb[0].mxu0
        %v3720 = vadd.f32 %v3355, %v3719
        %v3721 = vand.u32 %v3220, 4294901760
        %3722 = vmatprep.mubr.f32.mxu0 %v3721
        %v3723 = vand.u32 %v3118, 4294901760
        %3724 = vmatmul.mubr.f32.gmra.mrb[0].mxu0 %v3723
        %v3725 = vpop.f32.mrb[0].mxu0
        %v3726 = vadd.f32 %v3369, %v3725
        %v3727 = vpop.f32.mrb[0].mxu0
        %v3728 = vadd.f32 %v3371, %v3727
        %v3729 = vand.u32 %v3223, 4294901760
        %3730 = vmatprep.mubr.f32.mxu0 %v3729
        %v3731 = vand.u32 %v3120, 4294901760
        %3732 = vmatmul.mubr.f32.gmra.mrb[0].mxu0 %v3731
        %v3733 = vpop.f32.mrb[0].mxu0
        %v3734 = vadd.f32 %v3385, %v3733
        %v3735 = vpop.f32.mrb[0].mxu0
        %v3736 = vadd.f32 %v3387, %v3735
        %v3737 = vand.u32 %v3226, 4294901760
        %3738 = vmatprep.mubr.f32.mxu0 %v3737
        %v3739 = vand.u32 %v3122, 4294901760
        %3740 = vmatmul.mubr.f32.gmra.mrb[0].mxu0 %v3739
        %v3741 = vpop.f32.mrb[0].mxu0
        %v3742 = vadd.f32 %v3401, %v3741
        %v3743 = vpop.f32.mrb[0].mxu0
        %v3744 = vadd.f32 %v3403, %v3743
        %v3745 = vand.u32 %v3229, 4294901760
        %3746 = vmatprep.mubr.f32.mxu0 %v3745
        %v3747 = vand.u32 %v3124, 4294901760
        %3748 = vmatmul.mubr.f32.gmra.mrb[0].mxu0 %v3747
        %v3749 = vpop.f32.mrb[0].mxu0
        %v3750 = vadd.f32 %v3417, %v3749
        %v3751 = vpop.f32.mrb[0].mxu0
        %v3752 = vadd.f32 %v3419, %v3751
        %v3753 = vand.u32 %v3232, 4294901760
        %3754 = vmatprep.mubr.f32.mxu0 %v3753
        %v3755 = vand.u32 %v3126, 4294901760
        %3756 = vmatmul.mubr.f32.gmra.mrb[0].mxu0 %v3755
        %v3757 = vpop.f32.mrb[0].mxu0
        %v3758 = vadd.f32 %v3433, %v3757
        %v3759 = vpop.f32.mrb[0].mxu0
        %v3760 = vadd.f32 %v3435, %v3759
        %v3761 = vand.u32 %v3235, 4294901760
        %3762 = vmatprep.mubr.f32.mxu0 %v3761
        %v3763 = vand.u32 %v3128, 4294901760
        %3764 = vmatmul.mubr.f32.gmra.mrb[0].mxu0 %v3763
        %v3765 = vpop.f32.mrb[0].mxu0
        %v3766 = vadd.f32 %v3449, %v3765
        %v3767 = vpop.f32.mrb[0].mxu0
        %v3768 = vadd.f32 %v3451, %v3767
        %v3769 = vand.u32 %v3238, 4294901760
        %3770 = vmatprep.mubr.f32.mxu0 %v3769
        %v3771 = vand.u32 %v3130, 4294901760
        %3772 = vmatmul.mubr.f32.gmra.mrb[0].mxu0 %v3771
        %v3773 = vpop.f32.mrb[0].mxu0
        %v3774 = vadd.f32 %v3465, %v3773
        %v3775 = vpop.f32.mrb[0].mxu0
        %v3776 = vadd.f32 %v3467, %v3775
        %3777 = vdwg.mxu0
        %v3778 = vand.u32 %v3133, 4294901760
        %v3779 = vsub.f32 %v3133, %v3778
        %3780 = vmatprep.subr.mxu0 %v3779
        %v3781 = vand.u32 %v3132, 4294901760
        %v3782 = vsub.f32 %v3132, %v3781
        %3783 = vmatpush1.msra.mxu0 %v3782
        %v3784 = vand.u32 %v3135, 4294901760
        %v3785 = vsub.f32 %v3135, %v3784
        %3786 = vmatprep.subr.mxu0 %v3785
        %v3787 = vand.u32 %v3134, 4294901760
        %v3788 = vsub.f32 %v3134, %v3787
        %3789 = vmatpush1.msra.mxu0 %v3788
        %v3790 = vand.u32 %v3137, 4294901760
        %v3791 = vsub.f32 %v3137, %v3790
        %3792 = vmatprep.subr.mxu0 %v3791
        %v3793 = vand.u32 %v3136, 4294901760
        %v3794 = vsub.f32 %v3136, %v3793
        %3795 = vmatpush1.msra.mxu0 %v3794
        %v3796 = vand.u32 %v3139, 4294901760
        %v3797 = vsub.f32 %v3139, %v3796
        %3798 = vmatprep.subr.mxu0 %v3797
        %v3799 = vand.u32 %v3138, 4294901760
        %v3800 = vsub.f32 %v3138, %v3799
        %3801 = vmatpush1.msra.mxu0 %v3800
        %v3802 = vand.u32 %v3141, 4294901760
        %v3803 = vsub.f32 %v3141, %v3802
        %3804 = vmatprep.subr.mxu0 %v3803
        %v3805 = vand.u32 %v3140, 4294901760
        %v3806 = vsub.f32 %v3140, %v3805
        %3807 = vmatpush1.msra.mxu0 %v3806
        %v3808 = vand.u32 %v3143, 4294901760
        %v3809 = vsub.f32 %v3143, %v3808
        %3810 = vmatprep.subr.mxu0 %v3809
        %v3811 = vand.u32 %v3142, 4294901760
        %v3812 = vsub.f32 %v3142, %v3811
        %3813 = vmatpush1.msra.mxu0 %v3812
        %v3814 = vand.u32 %v3145, 4294901760
        %v3815 = vsub.f32 %v3145, %v3814
        %3816 = vmatprep.subr.mxu0 %v3815
        %v3817 = vand.u32 %v3144, 4294901760
        %v3818 = vsub.f32 %v3144, %v3817
        %3819 = vmatpush1.msra.mxu0 %v3818
        %v3820 = vand.u32 %v3147, 4294901760
        %v3821 = vsub.f32 %v3147, %v3820
        %3822 = vmatprep.subr.mxu0 %v3821
        %v3823 = vand.u32 %v3146, 4294901760
        %v3824 = vsub.f32 %v3146, %v3823
        %3825 = vmatpush1.msra.mxu0 %v3824
        %v3826 = vand.u32 %v3149, 4294901760
        %v3827 = vsub.f32 %v3149, %v3826
        %3828 = vmatprep.subr.mxu0 %v3827
        %v3829 = vand.u32 %v3148, 4294901760
        %v3830 = vsub.f32 %v3148, %v3829
        %3831 = vmatpush1.msra.mxu0 %v3830
        %v3832 = vand.u32 %v3151, 4294901760
        %v3833 = vsub.f32 %v3151, %v3832
        %3834 = vmatprep.subr.mxu0 %v3833
        %v3835 = vand.u32 %v3150, 4294901760
        %v3836 = vsub.f32 %v3150, %v3835
        %3837 = vmatpush1.msra.mxu0 %v3836
        %v3838 = vand.u32 %v3153, 4294901760
        %v3839 = vsub.f32 %v3153, %v3838
        %3840 = vmatprep.subr.mxu0 %v3839
        %v3841 = vand.u32 %v3152, 4294901760
        %v3842 = vsub.f32 %v3152, %v3841
        %3843 = vmatpush1.msra.mxu0 %v3842
        %v3844 = vand.u32 %v3155, 4294901760
        %v3845 = vsub.f32 %v3155, %v3844
        %3846 = vmatprep.subr.mxu0 %v3845
        %v3847 = vand.u32 %v3154, 4294901760
        %v3848 = vsub.f32 %v3154, %v3847
        %3849 = vmatpush1.msra.mxu0 %v3848
        %v3850 = vand.u32 %v3157, 4294901760
        %v3851 = vsub.f32 %v3157, %v3850
        %3852 = vmatprep.subr.mxu0 %v3851
        %v3853 = vand.u32 %v3156, 4294901760
        %v3854 = vsub.f32 %v3156, %v3853
        %3855 = vmatpush1.msra.mxu0 %v3854
        %v3856 = vand.u32 %v3159, 4294901760
        %v3857 = vsub.f32 %v3159, %v3856
        %3858 = vmatprep.subr.mxu0 %v3857
        %v3859 = vand.u32 %v3158, 4294901760
        %v3860 = vsub.f32 %v3158, %v3859
        %3861 = vmatpush1.msra.mxu0 %v3860
        %v3862 = vand.u32 %v3161, 4294901760
        %v3863 = vsub.f32 %v3161, %v3862
        %3864 = vmatprep.subr.mxu0 %v3863
        %v3865 = vand.u32 %v3160, 4294901760
        %v3866 = vsub.f32 %v3160, %v3865
        %3867 = vmatpush1.msra.mxu0 %v3866
        %v3868 = vand.u32 %v3163, 4294901760
        %v3869 = vsub.f32 %v3163, %v3868
        %3870 = vmatprep.subr.mxu0 %v3869
        %v3871 = vand.u32 %v3162, 4294901760
        %v3872 = vsub.f32 %v3162, %v3871
        %3873 = vmatpush1.msra.mxu0 %v3872
        %v3874 = vand.u32 %v3165, 4294901760
        %v3875 = vsub.f32 %v3165, %v3874
        %3876 = vmatprep.subr.mxu0 %v3875
        %v3877 = vand.u32 %v3164, 4294901760
        %v3878 = vsub.f32 %v3164, %v3877
        %3879 = vmatpush1.msra.mxu0 %v3878
        %v3880 = vand.u32 %v3167, 4294901760
        %v3881 = vsub.f32 %v3167, %v3880
        %3882 = vmatprep.subr.mxu0 %v3881
        %v3883 = vand.u32 %v3166, 4294901760
        %v3884 = vsub.f32 %v3166, %v3883
        %3885 = vmatpush1.msra.mxu0 %v3884
        %3886 = vmatprep.subr.mxu0 0.0
        %3887 = vmatpush1.msra.mxu0 0.0
        %3888 = vmatprep.subr.mxu0 0.0
        %3889 = vmatpush1.msra.mxu0 0.0
        %3890 = vmatprep.subr.mxu0 0.0
        %3891 = vmatpush1.msra.mxu0 0.0
        %3892 = vmatprep.subr.mxu0 0.0
        %3893 = vmatpush1.msra.mxu0 0.0
        %3894 = vmatprep.subr.mxu0 0.0
        %3895 = vmatpush1.msra.mxu0 0.0
        %3896 = vmatprep.subr.mxu0 0.0
        %3897 = vmatpush1.msra.mxu0 0.0
        %3898 = vmatprep.subr.mxu0 0.0
        %3899 = vmatpush1.msra.mxu0 0.0
        %3900 = vmatprep.subr.mxu0 0.0
        %3901 = vmatpush1.msra.mxu0 0.0
        %3902 = vmatprep.subr.mxu0 0.0
        %3903 = vmatpush1.msra.mxu0 0.0
        %3904 = vmatprep.subr.mxu0 0.0
        %3905 = vmatpush1.msra.mxu0 0.0
        %3906 = vmatprep.subr.mxu0 0.0
        %3907 = vmatpush1.msra.mxu0 0.0
        %3908 = vmatprep.subr.mxu0 0.0
        %3909 = vmatpush1.msra.mxu0 0.0
        %3910 = vmatprep.subr.mxu0 0.0
        %3911 = vmatpush1.msra.mxu0 0.0
        %3912 = vmatprep.subr.mxu0 0.0
        %3913 = vmatpush1.msra.mxu0 0.0
        %v3914 = vand.u32 %v3217, 4294901760
        %v3915 = vsub.f32 %v3217, %v3914
        %3916 = vmatprep.mubr.f32.mxu0 %v3915
        %v3917 = vand.u32 %v3116, 4294901760
        %v3918 = vsub.f32 %v3116, %v3917
        %3919 = vmatmul.mubr.f32.gmra.mrb[0].mxu0 %v3918
        %v3920 = vpop.f32.mrb[0].mxu0
        %v3921 = vadd.f32 %v3718, %v3920
        %v3922 = vpop.f32.mrb[0].mxu0
        %v3923 = vadd.f32 %v3720, %v3922
        %v3924 = vand.u32 %v3220, 4294901760
        %v3925 = vsub.f32 %v3220, %v3924
        %3926 = vmatprep.mubr.f32.mxu0 %v3925
        %v3927 = vand.u32 %v3118, 4294901760
        %v3928 = vsub.f32 %v3118, %v3927
        %3929 = vmatmul.mubr.f32.gmra.mrb[0].mxu0 %v3928
        %v3930 = vpop.f32.mrb[0].mxu0
        %v3931 = vadd.f32 %v3726, %v3930
        %v3932 = vpop.f32.mrb[0].mxu0
        %v3933 = vadd.f32 %v3728, %v3932
        %v3934 = vand.u32 %v3223, 4294901760
        %v3935 = vsub.f32 %v3223, %v3934
        %3936 = vmatprep.mubr.f32.mxu0 %v3935
        %v3937 = vand.u32 %v3120, 4294901760
        %v3938 = vsub.f32 %v3120, %v3937
        %3939 = vmatmul.mubr.f32.gmra.mrb[0].mxu0 %v3938
        %v3940 = vpop.f32.mrb[0].mxu0
        %v3941 = vadd.f32 %v3734, %v3940
        %v3942 = vpop.f32.mrb[0].mxu0
        %v3943 = vadd.f32 %v3736, %v3942
        %v3944 = vand.u32 %v3226, 4294901760
        %v3945 = vsub.f32 %v3226, %v3944
        %3946 = vmatprep.mubr.f32.mxu0 %v3945
        %v3947 = vand.u32 %v3122, 4294901760
        %v3948 = vsub.f32 %v3122, %v3947
        %3949 = vmatmul.mubr.f32.gmra.mrb[0].mxu0 %v3948
        %v3950 = vpop.f32.mrb[0].mxu0
        %v3951 = vadd.f32 %v3742, %v3950
        %v3952 = vpop.f32.mrb[0].mxu0
        %v3953 = vadd.f32 %v3744, %v3952
        %v3954 = vand.u32 %v3229, 4294901760
        %v3955 = vsub.f32 %v3229, %v3954
        %3956 = vmatprep.mubr.f32.mxu0 %v3955
        %v3957 = vand.u32 %v3124, 4294901760
        %v3958 = vsub.f32 %v3124, %v3957
        %3959 = vmatmul.mubr.f32.gmra.mrb[0].mxu0 %v3958
        %v3960 = vpop.f32.mrb[0].mxu0
        %v3961 = vadd.f32 %v3750, %v3960
        %v3962 = vpop.f32.mrb[0].mxu0
        %v3963 = vadd.f32 %v3752, %v3962
        %v3964 = vand.u32 %v3232, 4294901760
        %v3965 = vsub.f32 %v3232, %v3964
        %3966 = vmatprep.mubr.f32.mxu0 %v3965
        %v3967 = vand.u32 %v3126, 4294901760
        %v3968 = vsub.f32 %v3126, %v3967
        %3969 = vmatmul.mubr.f32.gmra.mrb[0].mxu0 %v3968
        %v3970 = vpop.f32.mrb[0].mxu0
        %v3971 = vadd.f32 %v3758, %v3970
        %v3972 = vpop.f32.mrb[0].mxu0
        %v3973 = vadd.f32 %v3760, %v3972
        %v3974 = vand.u32 %v3235, 4294901760
        %v3975 = vsub.f32 %v3235, %v3974
        %3976 = vmatprep.mubr.f32.mxu0 %v3975
        %v3977 = vand.u32 %v3128, 4294901760
        %v3978 = vsub.f32 %v3128, %v3977
        %3979 = vmatmul.mubr.f32.gmra.mrb[0].mxu0 %v3978
        %v3980 = vpop.f32.mrb[0].mxu0
        %v3981 = vadd.f32 %v3766, %v3980
        %v3982 = vpop.f32.mrb[0].mxu0
        %v3983 = vadd.f32 %v3768, %v3982
        %v3984 = vand.u32 %v3238, 4294901760
        %v3985 = vsub.f32 %v3238, %v3984
        %3986 = vmatprep.mubr.f32.mxu0 %v3985
        %v3987 = vand.u32 %v3130, 4294901760
        %v3988 = vsub.f32 %v3130, %v3987
        %3989 = vmatmul.mubr.f32.gmra.mrb[0].mxu0 %v3988
        %v3990 = vpop.f32.mrb[0].mxu0
        %v3991 = vadd.f32 %v3774, %v3990
        %v3992 = vpop.f32.mrb[0].mxu0
        %v3993 = vadd.f32 %v3776, %v3992
        %3994 = vdwg.mxu0
        %v3995 = vand.u32 %v3133, 4294901760
        %3996 = vmatprep.subr.mxu0 %v3995
        %v3997 = vand.u32 %v3132, 4294901760
        %3998 = vmatpush1.msra.mxu0 %v3997
        %v3999 = vand.u32 %v3135, 4294901760
        %4000 = vmatprep.subr.mxu0 %v3999
        %v4001 = vand.u32 %v3134, 4294901760
        %4002 = vmatpush1.msra.mxu0 %v4001
        %v4003 = vand.u32 %v3137, 4294901760
        %4004 = vmatprep.subr.mxu0 %v4003
        %v4005 = vand.u32 %v3136, 4294901760
        %4006 = vmatpush1.msra.mxu0 %v4005
        %v4007 = vand.u32 %v3139, 4294901760
        %4008 = vmatprep.subr.mxu0 %v4007
        %v4009 = vand.u32 %v3138, 4294901760
        %4010 = vmatpush1.msra.mxu0 %v4009
        %v4011 = vand.u32 %v3141, 4294901760
        %4012 = vmatprep.subr.mxu0 %v4011
        %v4013 = vand.u32 %v3140, 4294901760
        %4014 = vmatpush1.msra.mxu0 %v4013
        %v4015 = vand.u32 %v3143, 4294901760
        %4016 = vmatprep.subr.mxu0 %v4015
        %v4017 = vand.u32 %v3142, 4294901760
        %4018 = vmatpush1.msra.mxu0 %v4017
        %v4019 = vand.u32 %v3145, 4294901760
        %4020 = vmatprep.subr.mxu0 %v4019
        %v4021 = vand.u32 %v3144, 4294901760
        %4022 = vmatpush1.msra.mxu0 %v4021
        %v4023 = vand.u32 %v3147, 4294901760
        %4024 = vmatprep.subr.mxu0 %v4023
        %v4025 = vand.u32 %v3146, 4294901760
        %4026 = vmatpush1.msra.mxu0 %v4025
        %v4027 = vand.u32 %v3149, 4294901760
        %4028 = vmatprep.subr.mxu0 %v4027
        %v4029 = vand.u32 %v3148, 4294901760
        %4030 = vmatpush1.msra.mxu0 %v4029
        %v4031 = vand.u32 %v3151, 4294901760
        %4032 = vmatprep.subr.mxu0 %v4031
        %v4033 = vand.u32 %v3150, 4294901760
        %4034 = vmatpush1.msra.mxu0 %v4033
        %v4035 = vand.u32 %v3153, 4294901760
        %4036 = vmatprep.subr.mxu0 %v4035
        %v4037 = vand.u32 %v3152, 4294901760
        %4038 = vmatpush1.msra.mxu0 %v4037
        %v4039 = vand.u32 %v3155, 4294901760
        %4040 = vmatprep.subr.mxu0 %v4039
        %v4041 = vand.u32 %v3154, 4294901760
        %4042 = vmatpush1.msra.mxu0 %v4041
        %v4043 = vand.u32 %v3157, 4294901760
        %4044 = vmatprep.subr.mxu0 %v4043
        %v4045 = vand.u32 %v3156, 4294901760
        %4046 = vmatpush1.msra.mxu0 %v4045
        %v4047 = vand.u32 %v3159, 4294901760
        %4048 = vmatprep.subr.mxu0 %v4047
        %v4049 = vand.u32 %v3158, 4294901760
        %4050 = vmatpush1.msra.mxu0 %v4049
        %v4051 = vand.u32 %v3161, 4294901760
        %4052 = vmatprep.subr.mxu0 %v4051
        %v4053 = vand.u32 %v3160, 4294901760
        %4054 = vmatpush1.msra.mxu0 %v4053
        %v4055 = vand.u32 %v3163, 4294901760
        %4056 = vmatprep.subr.mxu0 %v4055
        %v4057 = vand.u32 %v3162, 4294901760
        %4058 = vmatpush1.msra.mxu0 %v4057
        %v4059 = vand.u32 %v3165, 4294901760
        %4060 = vmatprep.subr.mxu0 %v4059
        %v4061 = vand.u32 %v3164, 4294901760
        %4062 = vmatpush1.msra.mxu0 %v4061
        %v4063 = vand.u32 %v3167, 4294901760
        %4064 = vmatprep.subr.mxu0 %v4063
        %v4065 = vand.u32 %v3166, 4294901760
        %4066 = vmatpush1.msra.mxu0 %v4065
        %4067 = vmatprep.subr.mxu0 0.0
        %4068 = vmatpush1.msra.mxu0 0.0
        %4069 = vmatprep.subr.mxu0 0.0
        %4070 = vmatpush1.msra.mxu0 0.0
        %4071 = vmatprep.subr.mxu0 0.0
        %4072 = vmatpush1.msra.mxu0 0.0
        %4073 = vmatprep.subr.mxu0 0.0
        %4074 = vmatpush1.msra.mxu0 0.0
        %4075 = vmatprep.subr.mxu0 0.0
        %4076 = vmatpush1.msra.mxu0 0.0
        %4077 = vmatprep.subr.mxu0 0.0
        %4078 = vmatpush1.msra.mxu0 0.0
        %4079 = vmatprep.subr.mxu0 0.0
        %4080 = vmatpush1.msra.mxu0 0.0
        %4081 = vmatprep.subr.mxu0 0.0
        %4082 = vmatpush1.msra.mxu0 0.0
        %4083 = vmatprep.subr.mxu0 0.0
        %4084 = vmatpush1.msra.mxu0 0.0
        %4085 = vmatprep.subr.mxu0 0.0
        %4086 = vmatpush1.msra.mxu0 0.0
        %4087 = vmatprep.subr.mxu0 0.0
        %4088 = vmatpush1.msra.mxu0 0.0
        %4089 = vmatprep.subr.mxu0 0.0
        %4090 = vmatpush1.msra.mxu0 0.0
        %4091 = vmatprep.subr.mxu0 0.0
        %4092 = vmatpush1.msra.mxu0 0.0
        %4093 = vmatprep.subr.mxu0 0.0
        %4094 = vmatpush1.msra.mxu0 0.0
        %v4095 = vand.u32 %v3217, 4294901760
        %v4096 = vsub.f32 %v3217, %v4095
        %v4097 = vand.u32 %v4096, 4294901760
        %4098 = vmatprep.mubr.f32.mxu0 %v4097
        %v4099 = vand.u32 %v3116, 4294901760
        %v4100 = vsub.f32 %v3116, %v4099
        %v4101 = vand.u32 %v4100, 4294901760
        %4102 = vmatmul.mubr.f32.gmra.mrb[0].mxu0 %v4101
        %v4103 = vpop.f32.mrb[0].mxu0
        %v4104 = vadd.f32 %v3921, %v4103
        %v4105 = vpop.f32.mrb[0].mxu0
        %v4106 = vadd.f32 %v3923, %v4105
        %v4107 = vand.u32 %v3220, 4294901760
        %v4108 = vsub.f32 %v3220, %v4107
        %v4109 = vand.u32 %v4108, 4294901760
        %4110 = vmatprep.mubr.f32.mxu0 %v4109
        %v4111 = vand.u32 %v3118, 4294901760
        %v4112 = vsub.f32 %v3118, %v4111
        %v4113 = vand.u32 %v4112, 4294901760
        %4114 = vmatmul.mubr.f32.gmra.mrb[0].mxu0 %v4113
        %v4115 = vpop.f32.mrb[0].mxu0
        %v4116 = vadd.f32 %v3931, %v4115
        %v4117 = vpop.f32.mrb[0].mxu0
        %v4118 = vadd.f32 %v3933, %v4117
        %v4119 = vand.u32 %v3223, 4294901760
        %v4120 = vsub.f32 %v3223, %v4119
        %v4121 = vand.u32 %v4120, 4294901760
        %4122 = vmatprep.mubr.f32.mxu0 %v4121
        %v4123 = vand.u32 %v3120, 4294901760
        %v4124 = vsub.f32 %v3120, %v4123
        %v4125 = vand.u32 %v4124, 4294901760
        %4126 = vmatmul.mubr.f32.gmra.mrb[0].mxu0 %v4125
        %v4127 = vpop.f32.mrb[0].mxu0
        %v4128 = vadd.f32 %v3941, %v4127
        %v4129 = vpop.f32.mrb[0].mxu0
        %v4130 = vadd.f32 %v3943, %v4129
        %v4131 = vand.u32 %v3226, 4294901760
        %v4132 = vsub.f32 %v3226, %v4131
        %v4133 = vand.u32 %v4132, 4294901760
        %4134 = vmatprep.mubr.f32.mxu0 %v4133
        %v4135 = vand.u32 %v3122, 4294901760
        %v4136 = vsub.f32 %v3122, %v4135
        %v4137 = vand.u32 %v4136, 4294901760
        %4138 = vmatmul.mubr.f32.gmra.mrb[0].mxu0 %v4137
        %v4139 = vpop.f32.mrb[0].mxu0
        %v4140 = vadd.f32 %v3951, %v4139
        %v4141 = vpop.f32.mrb[0].mxu0
        %v4142 = vadd.f32 %v3953, %v4141
        %v4143 = vand.u32 %v3229, 4294901760
        %v4144 = vsub.f32 %v3229, %v4143
        %v4145 = vand.u32 %v4144, 4294901760
        %4146 = vmatprep.mubr.f32.mxu0 %v4145
        %v4147 = vand.u32 %v3124, 4294901760
        %v4148 = vsub.f32 %v3124, %v4147
        %v4149 = vand.u32 %v4148, 4294901760
        %4150 = vmatmul.mubr.f32.gmra.mrb[0].mxu0 %v4149
        %v4151 = vpop.f32.mrb[0].mxu0
        %v4152 = vadd.f32 %v3961, %v4151
        %v4153 = vpop.f32.mrb[0].mxu0
        %v4154 = vadd.f32 %v3963, %v4153
        %v4155 = vand.u32 %v3232, 4294901760
        %v4156 = vsub.f32 %v3232, %v4155
        %v4157 = vand.u32 %v4156, 4294901760
        %4158 = vmatprep.mubr.f32.mxu0 %v4157
        %v4159 = vand.u32 %v3126, 4294901760
        %v4160 = vsub.f32 %v3126, %v4159
        %v4161 = vand.u32 %v4160, 4294901760
        %4162 = vmatmul.mubr.f32.gmra.mrb[0].mxu0 %v4161
        %v4163 = vpop.f32.mrb[0].mxu0
        %v4164 = vadd.f32 %v3971, %v4163
        %v4165 = vpop.f32.mrb[0].mxu0
        %v4166 = vadd.f32 %v3973, %v4165
        %v4167 = vand.u32 %v3235, 4294901760
        %v4168 = vsub.f32 %v3235, %v4167
        %v4169 = vand.u32 %v4168, 4294901760
        %4170 = vmatprep.mubr.f32.mxu0 %v4169
        %v4171 = vand.u32 %v3128, 4294901760
        %v4172 = vsub.f32 %v3128, %v4171
        %v4173 = vand.u32 %v4172, 4294901760
        %4174 = vmatmul.mubr.f32.gmra.mrb[0].mxu0 %v4173
        %v4175 = vpop.f32.mrb[0].mxu0
        %v4176 = vadd.f32 %v3981, %v4175
        %v4177 = vpop.f32.mrb[0].mxu0
        %v4178 = vadd.f32 %v3983, %v4177
        %v4179 = vand.u32 %v3238, 4294901760
        %v4180 = vsub.f32 %v3238, %v4179
        %v4181 = vand.u32 %v4180, 4294901760
        %4182 = vmatprep.mubr.f32.mxu0 %v4181
        %v4183 = vand.u32 %v3130, 4294901760
        %v4184 = vsub.f32 %v3130, %v4183
        %v4185 = vand.u32 %v4184, 4294901760
        %4186 = vmatmul.mubr.f32.gmra.mrb[0].mxu0 %v4185
        %v4187 = vpop.f32.mrb[0].mxu0
        %v4188 = vadd.f32 %v3991, %v4187
        %v4189 = vpop.f32.mrb[0].mxu0
        %v4190 = vadd.f32 %v3993, %v4189
        %4191 = vdwg.mxu0
        %v4192 = vand.u32 %v3133, 4294901760
        %v4193 = vsub.f32 %v3133, %v4192
        %v4194 = vand.u32 %v4193, 4294901760
        %4195 = vmatprep.subr.mxu0 %v4194
        %v4196 = vand.u32 %v3132, 4294901760
        %v4197 = vsub.f32 %v3132, %v4196
        %v4198 = vand.u32 %v4197, 4294901760
        %4199 = vmatpush1.msra.mxu0 %v4198
        %v4200 = vand.u32 %v3135, 4294901760
        %v4201 = vsub.f32 %v3135, %v4200
        %v4202 = vand.u32 %v4201, 4294901760
        %4203 = vmatprep.subr.mxu0 %v4202
        %v4204 = vand.u32 %v3134, 4294901760
        %v4205 = vsub.f32 %v3134, %v4204
        %v4206 = vand.u32 %v4205, 4294901760
        %4207 = vmatpush1.msra.mxu0 %v4206
        %v4208 = vand.u32 %v3137, 4294901760
        %v4209 = vsub.f32 %v3137, %v4208
        %v4210 = vand.u32 %v4209, 4294901760
        %4211 = vmatprep.subr.mxu0 %v4210
        %v4212 = vand.u32 %v3136, 4294901760
        %v4213 = vsub.f32 %v3136, %v4212
        %v4214 = vand.u32 %v4213, 4294901760
        %4215 = vmatpush1.msra.mxu0 %v4214
        %v4216 = vand.u32 %v3139, 4294901760
        %v4217 = vsub.f32 %v3139, %v4216
        %v4218 = vand.u32 %v4217, 4294901760
        %4219 = vmatprep.subr.mxu0 %v4218
        %v4220 = vand.u32 %v3138, 4294901760
        %v4221 = vsub.f32 %v3138, %v4220
        %v4222 = vand.u32 %v4221, 4294901760
        %4223 = vmatpush1.msra.mxu0 %v4222
        %v4224 = vand.u32 %v3141, 4294901760
        %v4225 = vsub.f32 %v3141, %v4224
        %v4226 = vand.u32 %v4225, 4294901760
        %4227 = vmatprep.subr.mxu0 %v4226
        %v4228 = vand.u32 %v3140, 4294901760
        %v4229 = vsub.f32 %v3140, %v4228
        %v4230 = vand.u32 %v4229, 4294901760
        %4231 = vmatpush1.msra.mxu0 %v4230
        %v4232 = vand.u32 %v3143, 4294901760
        %v4233 = vsub.f32 %v3143, %v4232
        %v4234 = vand.u32 %v4233, 4294901760
        %4235 = vmatprep.subr.mxu0 %v4234
        %v4236 = vand.u32 %v3142, 4294901760
        %v4237 = vsub.f32 %v3142, %v4236
        %v4238 = vand.u32 %v4237, 4294901760
        %4239 = vmatpush1.msra.mxu0 %v4238
        %v4240 = vand.u32 %v3145, 4294901760
        %v4241 = vsub.f32 %v3145, %v4240
        %v4242 = vand.u32 %v4241, 4294901760
        %4243 = vmatprep.subr.mxu0 %v4242
        %v4244 = vand.u32 %v3144, 4294901760
        %v4245 = vsub.f32 %v3144, %v4244
        %v4246 = vand.u32 %v4245, 4294901760
        %4247 = vmatpush1.msra.mxu0 %v4246
        %v4248 = vand.u32 %v3147, 4294901760
        %v4249 = vsub.f32 %v3147, %v4248
        %v4250 = vand.u32 %v4249, 4294901760
        %4251 = vmatprep.subr.mxu0 %v4250
        %v4252 = vand.u32 %v3146, 4294901760
        %v4253 = vsub.f32 %v3146, %v4252
        %v4254 = vand.u32 %v4253, 4294901760
        %4255 = vmatpush1.msra.mxu0 %v4254
        %v4256 = vand.u32 %v3149, 4294901760
        %v4257 = vsub.f32 %v3149, %v4256
        %v4258 = vand.u32 %v4257, 4294901760
        %4259 = vmatprep.subr.mxu0 %v4258
        %v4260 = vand.u32 %v3148, 4294901760
        %v4261 = vsub.f32 %v3148, %v4260
        %v4262 = vand.u32 %v4261, 4294901760
        %4263 = vmatpush1.msra.mxu0 %v4262
        %v4264 = vand.u32 %v3151, 4294901760
        %v4265 = vsub.f32 %v3151, %v4264
        %v4266 = vand.u32 %v4265, 4294901760
        %4267 = vmatprep.subr.mxu0 %v4266
        %v4268 = vand.u32 %v3150, 4294901760
        %v4269 = vsub.f32 %v3150, %v4268
        %v4270 = vand.u32 %v4269, 4294901760
        %4271 = vmatpush1.msra.mxu0 %v4270
        %v4272 = vand.u32 %v3153, 4294901760
        %v4273 = vsub.f32 %v3153, %v4272
        %v4274 = vand.u32 %v4273, 4294901760
        %4275 = vmatprep.subr.mxu0 %v4274
        %v4276 = vand.u32 %v3152, 4294901760
        %v4277 = vsub.f32 %v3152, %v4276
        %v4278 = vand.u32 %v4277, 4294901760
        %4279 = vmatpush1.msra.mxu0 %v4278
        %v4280 = vand.u32 %v3155, 4294901760
        %v4281 = vsub.f32 %v3155, %v4280
        %v4282 = vand.u32 %v4281, 4294901760
        %4283 = vmatprep.subr.mxu0 %v4282
        %v4284 = vand.u32 %v3154, 4294901760
        %v4285 = vsub.f32 %v3154, %v4284
        %v4286 = vand.u32 %v4285, 4294901760
        %4287 = vmatpush1.msra.mxu0 %v4286
        %v4288 = vand.u32 %v3157, 4294901760
        %v4289 = vsub.f32 %v3157, %v4288
        %v4290 = vand.u32 %v4289, 4294901760
        %4291 = vmatprep.subr.mxu0 %v4290
        %v4292 = vand.u32 %v3156, 4294901760
        %v4293 = vsub.f32 %v3156, %v4292
        %v4294 = vand.u32 %v4293, 4294901760
        %4295 = vmatpush1.msra.mxu0 %v4294
        %v4296 = vand.u32 %v3159, 4294901760
        %v4297 = vsub.f32 %v3159, %v4296
        %v4298 = vand.u32 %v4297, 4294901760
        %4299 = vmatprep.subr.mxu0 %v4298
        %v4300 = vand.u32 %v3158, 4294901760
        %v4301 = vsub.f32 %v3158, %v4300
        %v4302 = vand.u32 %v4301, 4294901760
        %4303 = vmatpush1.msra.mxu0 %v4302
        %v4304 = vand.u32 %v3161, 4294901760
        %v4305 = vsub.f32 %v3161, %v4304
        %v4306 = vand.u32 %v4305, 4294901760
        %4307 = vmatprep.subr.mxu0 %v4306
        %v4308 = vand.u32 %v3160, 4294901760
        %v4309 = vsub.f32 %v3160, %v4308
        %v4310 = vand.u32 %v4309, 4294901760
        %4311 = vmatpush1.msra.mxu0 %v4310
        %v4312 = vand.u32 %v3163, 4294901760
        %v4313 = vsub.f32 %v3163, %v4312
        %v4314 = vand.u32 %v4313, 4294901760
        %4315 = vmatprep.subr.mxu0 %v4314
        %v4316 = vand.u32 %v3162, 4294901760
        %v4317 = vsub.f32 %v3162, %v4316
        %v4318 = vand.u32 %v4317, 4294901760
        %4319 = vmatpush1.msra.mxu0 %v4318
        %v4320 = vand.u32 %v3165, 4294901760
        %v4321 = vsub.f32 %v3165, %v4320
        %v4322 = vand.u32 %v4321, 4294901760
        %4323 = vmatprep.subr.mxu0 %v4322
        %v4324 = vand.u32 %v3164, 4294901760
        %v4325 = vsub.f32 %v3164, %v4324
        %v4326 = vand.u32 %v4325, 4294901760
        %4327 = vmatpush1.msra.mxu0 %v4326
        %v4328 = vand.u32 %v3167, 4294901760
        %v4329 = vsub.f32 %v3167, %v4328
        %v4330 = vand.u32 %v4329, 4294901760
        %4331 = vmatprep.subr.mxu0 %v4330
        %v4332 = vand.u32 %v3166, 4294901760
        %v4333 = vsub.f32 %v3166, %v4332
        %v4334 = vand.u32 %v4333, 4294901760
        %4335 = vmatpush1.msra.mxu0 %v4334
        %4336 = vmatprep.subr.mxu0 0.0
        %4337 = vmatpush1.msra.mxu0 0.0
        %4338 = vmatprep.subr.mxu0 0.0
        %4339 = vmatpush1.msra.mxu0 0.0
        %4340 = vmatprep.subr.mxu0 0.0
        %4341 = vmatpush1.msra.mxu0 0.0
        %4342 = vmatprep.subr.mxu0 0.0
        %4343 = vmatpush1.msra.mxu0 0.0
        %4344 = vmatprep.subr.mxu0 0.0
        %4345 = vmatpush1.msra.mxu0 0.0
        %4346 = vmatprep.subr.mxu0 0.0
        %4347 = vmatpush1.msra.mxu0 0.0
        %4348 = vmatprep.subr.mxu0 0.0
        %4349 = vmatpush1.msra.mxu0 0.0
        %4350 = vmatprep.subr.mxu0 0.0
        %4351 = vmatpush1.msra.mxu0 0.0
        %4352 = vmatprep.subr.mxu0 0.0
        %4353 = vmatpush1.msra.mxu0 0.0
        %4354 = vmatprep.subr.mxu0 0.0
        %4355 = vmatpush1.msra.mxu0 0.0
        %4356 = vmatprep.subr.mxu0 0.0
        %4357 = vmatpush1.msra.mxu0 0.0
        %4358 = vmatprep.subr.mxu0 0.0
        %4359 = vmatpush1.msra.mxu0 0.0
        %4360 = vmatprep.subr.mxu0 0.0
        %4361 = vmatpush1.msra.mxu0 0.0
        %4362 = vmatprep.subr.mxu0 0.0
        %4363 = vmatpush1.msra.mxu0 0.0
        %v4364 = vand.u32 %v3217, 4294901760
        %4365 = vmatprep.mubr.f32.mxu0 %v4364
        %v4366 = vand.u32 %v3116, 4294901760
        %4367 = vmatmul.mubr.f32.gmra.mrb[0].mxu0 %v4366
        %v4368 = vpop.f32.mrb[0].mxu0
        %v4369 = vadd.f32 %v4104, %v4368
        %v4370 = vpop.f32.mrb[0].mxu0
        %v4371 = vadd.f32 %v4106, %v4370
        %v4372 = vand.u32 %v3220, 4294901760
        %4373 = vmatprep.mubr.f32.mxu0 %v4372
        %v4374 = vand.u32 %v3118, 4294901760
        %4375 = vmatmul.mubr.f32.gmra.mrb[0].mxu0 %v4374
        %v4376 = vpop.f32.mrb[0].mxu0
        %v4377 = vadd.f32 %v4116, %v4376
        %v4378 = vpop.f32.mrb[0].mxu0
        %v4379 = vadd.f32 %v4118, %v4378
        %v4380 = vand.u32 %v3223, 4294901760
        %4381 = vmatprep.mubr.f32.mxu0 %v4380
        %v4382 = vand.u32 %v3120, 4294901760
        %4383 = vmatmul.mubr.f32.gmra.mrb[0].mxu0 %v4382
        %v4384 = vpop.f32.mrb[0].mxu0
        %v4385 = vadd.f32 %v4128, %v4384
        %v4386 = vpop.f32.mrb[0].mxu0
        %v4387 = vadd.f32 %v4130, %v4386
        %v4388 = vand.u32 %v3226, 4294901760
        %4389 = vmatprep.mubr.f32.mxu0 %v4388
        %v4390 = vand.u32 %v3122, 4294901760
        %4391 = vmatmul.mubr.f32.gmra.mrb[0].mxu0 %v4390
        %v4392 = vpop.f32.mrb[0].mxu0
        %v4393 = vadd.f32 %v4140, %v4392
        %v4394 = vpop.f32.mrb[0].mxu0
        %v4395 = vadd.f32 %v4142, %v4394
        %v4396 = vand.u32 %v3229, 4294901760
        %4397 = vmatprep.mubr.f32.mxu0 %v4396
        %v4398 = vand.u32 %v3124, 4294901760
        %4399 = vmatmul.mubr.f32.gmra.mrb[0].mxu0 %v4398
        %v4400 = vpop.f32.mrb[0].mxu0
        %v4401 = vadd.f32 %v4152, %v4400
        %v4402 = vpop.f32.mrb[0].mxu0
        %v4403 = vadd.f32 %v4154, %v4402
        %v4404 = vand.u32 %v3232, 4294901760
        %4405 = vmatprep.mubr.f32.mxu0 %v4404
        %v4406 = vand.u32 %v3126, 4294901760
        %4407 = vmatmul.mubr.f32.gmra.mrb[0].mxu0 %v4406
        %v4408 = vpop.f32.mrb[0].mxu0
        %v4409 = vadd.f32 %v4164, %v4408
        %v4410 = vpop.f32.mrb[0].mxu0
        %v4411 = vadd.f32 %v4166, %v4410
        %v4412 = vand.u32 %v3235, 4294901760
        %4413 = vmatprep.mubr.f32.mxu0 %v4412
        %v4414 = vand.u32 %v3128, 4294901760
        %4415 = vmatmul.mubr.f32.gmra.mrb[0].mxu0 %v4414
        %v4416 = vpop.f32.mrb[0].mxu0
        %v4417 = vadd.f32 %v4176, %v4416
        %v4418 = vpop.f32.mrb[0].mxu0
        %v4419 = vadd.f32 %v4178, %v4418
        %v4420 = vand.u32 %v3238, 4294901760
        %4421 = vmatprep.mubr.f32.mxu0 %v4420
        %v4422 = vand.u32 %v3130, 4294901760
        %4423 = vmatmul.mubr.f32.gmra.mrb[0].mxu0 %v4422
        %v4424 = vpop.f32.mrb[0].mxu0
        %v4425 = vadd.f32 %v4188, %v4424
        %v4426 = vpop.f32.mrb[0].mxu0
        %v4427 = vadd.f32 %v4190, %v4426
        %4428 = vdwg.mxu0
        %v4429 = vand.u32 %v3133, 4294901760
        %4430 = vmatprep.subr.mxu0 %v4429
        %v4431 = vand.u32 %v3132, 4294901760
        %4432 = vmatpush1.msra.mxu0 %v4431
        %v4433 = vand.u32 %v3135, 4294901760
        %4434 = vmatprep.subr.mxu0 %v4433
        %v4435 = vand.u32 %v3134, 4294901760
        %4436 = vmatpush1.msra.mxu0 %v4435
        %v4437 = vand.u32 %v3137, 4294901760
        %4438 = vmatprep.subr.mxu0 %v4437
        %v4439 = vand.u32 %v3136, 4294901760
        %4440 = vmatpush1.msra.mxu0 %v4439
        %v4441 = vand.u32 %v3139, 4294901760
        %4442 = vmatprep.subr.mxu0 %v4441
        %v4443 = vand.u32 %v3138, 4294901760
        %4444 = vmatpush1.msra.mxu0 %v4443
        %v4445 = vand.u32 %v3141, 4294901760
        %4446 = vmatprep.subr.mxu0 %v4445
        %v4447 = vand.u32 %v3140, 4294901760
        %4448 = vmatpush1.msra.mxu0 %v4447
        %v4449 = vand.u32 %v3143, 4294901760
        %4450 = vmatprep.subr.mxu0 %v4449
        %v4451 = vand.u32 %v3142, 4294901760
        %4452 = vmatpush1.msra.mxu0 %v4451
        %v4453 = vand.u32 %v3145, 4294901760
        %4454 = vmatprep.subr.mxu0 %v4453
        %v4455 = vand.u32 %v3144, 4294901760
        %4456 = vmatpush1.msra.mxu0 %v4455
        %v4457 = vand.u32 %v3147, 4294901760
        %4458 = vmatprep.subr.mxu0 %v4457
        %v4459 = vand.u32 %v3146, 4294901760
        %4460 = vmatpush1.msra.mxu0 %v4459
        %v4461 = vand.u32 %v3149, 4294901760
        %4462 = vmatprep.subr.mxu0 %v4461
        %v4463 = vand.u32 %v3148, 4294901760
        %4464 = vmatpush1.msra.mxu0 %v4463
        %v4465 = vand.u32 %v3151, 4294901760
        %4466 = vmatprep.subr.mxu0 %v4465
        %v4467 = vand.u32 %v3150, 4294901760
        %4468 = vmatpush1.msra.mxu0 %v4467
        %v4469 = vand.u32 %v3153, 4294901760
        %4470 = vmatprep.subr.mxu0 %v4469
        %v4471 = vand.u32 %v3152, 4294901760
        %4472 = vmatpush1.msra.mxu0 %v4471
        %v4473 = vand.u32 %v3155, 4294901760
        %4474 = vmatprep.subr.mxu0 %v4473
        %v4475 = vand.u32 %v3154, 4294901760
        %4476 = vmatpush1.msra.mxu0 %v4475
        %v4477 = vand.u32 %v3157, 4294901760
        %4478 = vmatprep.subr.mxu0 %v4477
        %v4479 = vand.u32 %v3156, 4294901760
        %4480 = vmatpush1.msra.mxu0 %v4479
        %v4481 = vand.u32 %v3159, 4294901760
        %4482 = vmatprep.subr.mxu0 %v4481
        %v4483 = vand.u32 %v3158, 4294901760
        %4484 = vmatpush1.msra.mxu0 %v4483
        %v4485 = vand.u32 %v3161, 4294901760
        %4486 = vmatprep.subr.mxu0 %v4485
        %v4487 = vand.u32 %v3160, 4294901760
        %4488 = vmatpush1.msra.mxu0 %v4487
        %v4489 = vand.u32 %v3163, 4294901760
        %4490 = vmatprep.subr.mxu0 %v4489
        %v4491 = vand.u32 %v3162, 4294901760
        %4492 = vmatpush1.msra.mxu0 %v4491
        %v4493 = vand.u32 %v3165, 4294901760
        %4494 = vmatprep.subr.mxu0 %v4493
        %v4495 = vand.u32 %v3164, 4294901760
        %4496 = vmatpush1.msra.mxu0 %v4495
        %v4497 = vand.u32 %v3167, 4294901760
        %4498 = vmatprep.subr.mxu0 %v4497
        %v4499 = vand.u32 %v3166, 4294901760
        %4500 = vmatpush1.msra.mxu0 %v4499
        %4501 = vmatprep.subr.mxu0 0.0
        %4502 = vmatpush1.msra.mxu0 0.0
        %4503 = vmatprep.subr.mxu0 0.0
        %4504 = vmatpush1.msra.mxu0 0.0
        %4505 = vmatprep.subr.mxu0 0.0
        %4506 = vmatpush1.msra.mxu0 0.0
        %4507 = vmatprep.subr.mxu0 0.0
        %4508 = vmatpush1.msra.mxu0 0.0
        %4509 = vmatprep.subr.mxu0 0.0
        %4510 = vmatpush1.msra.mxu0 0.0
        %4511 = vmatprep.subr.mxu0 0.0
        %4512 = vmatpush1.msra.mxu0 0.0
        %4513 = vmatprep.subr.mxu0 0.0
        %4514 = vmatpush1.msra.mxu0 0.0
        %4515 = vmatprep.subr.mxu0 0.0
        %4516 = vmatpush1.msra.mxu0 0.0
        %4517 = vmatprep.subr.mxu0 0.0
        %4518 = vmatpush1.msra.mxu0 0.0
        %4519 = vmatprep.subr.mxu0 0.0
        %4520 = vmatpush1.msra.mxu0 0.0
        %4521 = vmatprep.subr.mxu0 0.0
        %4522 = vmatpush1.msra.mxu0 0.0
        %4523 = vmatprep.subr.mxu0 0.0
        %4524 = vmatpush1.msra.mxu0 0.0
        %4525 = vmatprep.subr.mxu0 0.0
        %4526 = vmatpush1.msra.mxu0 0.0
        %4527 = vmatprep.subr.mxu0 0.0
        %4528 = vmatpush1.msra.mxu0 0.0
        %v4529 = vand.u32 %v3217, 4294901760
        %4530 = vmatprep.mubr.f32.mxu0 %v4529
        %v4531 = vand.u32 %v3116, 4294901760
        %4532 = vmatmul.mubr.f32.gmra.mrb[0].mxu0 %v4531
        %v4533 = vpop.f32.mrb[0].mxu0
        %v4534 = vadd.f32 %v4369, %v4533
        %v4535 = vpop.f32.mrb[0].mxu0
        %v4536 = vadd.f32 %v4371, %v4535
        %v4537 = vand.u32 %v3220, 4294901760
        %4538 = vmatprep.mubr.f32.mxu0 %v4537
        %v4539 = vand.u32 %v3118, 4294901760
        %4540 = vmatmul.mubr.f32.gmra.mrb[0].mxu0 %v4539
        %v4541 = vpop.f32.mrb[0].mxu0
        %v4542 = vadd.f32 %v4377, %v4541
        %v4543 = vpop.f32.mrb[0].mxu0
        %v4544 = vadd.f32 %v4379, %v4543
        %v4545 = vand.u32 %v3223, 4294901760
        %4546 = vmatprep.mubr.f32.mxu0 %v4545
        %v4547 = vand.u32 %v3120, 4294901760
        %4548 = vmatmul.mubr.f32.gmra.mrb[0].mxu0 %v4547
        %v4549 = vpop.f32.mrb[0].mxu0
        %v4550 = vadd.f32 %v4385, %v4549
        %v4551 = vpop.f32.mrb[0].mxu0
        %v4552 = vadd.f32 %v4387, %v4551
        %v4553 = vand.u32 %v3226, 4294901760
        %4554 = vmatprep.mubr.f32.mxu0 %v4553
        %v4555 = vand.u32 %v3122, 4294901760
        %4556 = vmatmul.mubr.f32.gmra.mrb[0].mxu0 %v4555
        %v4557 = vpop.f32.mrb[0].mxu0
        %v4558 = vadd.f32 %v4393, %v4557
        %v4559 = vpop.f32.mrb[0].mxu0
        %v4560 = vadd.f32 %v4395, %v4559
        %v4561 = vand.u32 %v3229, 4294901760
        %4562 = vmatprep.mubr.f32.mxu0 %v4561
        %v4563 = vand.u32 %v3124, 4294901760
        %4564 = vmatmul.mubr.f32.gmra.mrb[0].mxu0 %v4563
        %v4565 = vpop.f32.mrb[0].mxu0
        %v4566 = vadd.f32 %v4401, %v4565
        %v4567 = vpop.f32.mrb[0].mxu0
        %v4568 = vadd.f32 %v4403, %v4567
        %v4569 = vand.u32 %v3232, 4294901760
        %4570 = vmatprep.mubr.f32.mxu0 %v4569
        %v4571 = vand.u32 %v3126, 4294901760
        %4572 = vmatmul.mubr.f32.gmra.mrb[0].mxu0 %v4571
        %v4573 = vpop.f32.mrb[0].mxu0
        %v4574 = vadd.f32 %v4409, %v4573
        %v4575 = vpop.f32.mrb[0].mxu0
        %v4576 = vadd.f32 %v4411, %v4575
        %v4577 = vand.u32 %v3235, 4294901760
        %4578 = vmatprep.mubr.f32.mxu0 %v4577
        %v4579 = vand.u32 %v3128, 4294901760
        %4580 = vmatmul.mubr.f32.gmra.mrb[0].mxu0 %v4579
        %v4581 = vpop.f32.mrb[0].mxu0
        %v4582 = vadd.f32 %v4417, %v4581
        %v4583 = vpop.f32.mrb[0].mxu0
        %v4584 = vadd.f32 %v4419, %v4583
        %v4585 = vand.u32 %v3238, 4294901760
        %4586 = vmatprep.mubr.f32.mxu0 %v4585
        %v4587 = vand.u32 %v3130, 4294901760
        %4588 = vmatmul.mubr.f32.gmra.mrb[0].mxu0 %v4587
        %v4589 = vpop.f32.mrb[0].mxu0
        %v4590 = vadd.f32 %v4425, %v4589
        %v4591 = vpop.f32.mrb[0].mxu0
        %v4592 = vadd.f32 %v4427, %v4591
        %4593 = vdwg.mxu0
        %4594 = vst [vmem:[#allocation2 + $0x8] sm:$0xff] %v4534
        %4595 = vst [vmem:[#allocation2 + $0x10] sm:$0xff] %v4536
        %4596 = vst [vmem:[#allocation2 + $0x28] sm:$0xff] %v4542
        %4597 = vst [vmem:[#allocation2 + $0x30] sm:$0xff] %v4544
        %4598 = vst [vmem:[#allocation2 + $0x48] sm:$0xff] %v4550
        %4599 = vst [vmem:[#allocation2 + $0x50] sm:$0xff] %v4552
        %4600 = vst [vmem:[#allocation2 + $0x68] sm:$0xff] %v4558
        %4601 = vst [vmem:[#allocation2 + $0x70] sm:$0xff] %v4560
        %4602 = vst [vmem:[#allocation2 + $0x88] sm:$0xff] %v4566
        %4603 = vst [vmem:[#allocation2 + $0x90] sm:$0xff] %v4568
        %4604 = vst [vmem:[#allocation2 + $0xa8] sm:$0xff] %v4574
        %4605 = vst [vmem:[#allocation2 + $0xb0] sm:$0xff] %v4576
        %4606 = vst [vmem:[#allocation2 + $0xc8] sm:$0xff] %v4582
        %4607 = vst [vmem:[#allocation2 + $0xd0] sm:$0xff] %v4584
        %4608 = vst [vmem:[#allocation2 + $0xe8] sm:$0xff] %v4590
        %4609 = vst [vmem:[#allocation2 + $0xf0] sm:$0xff] %v4592
        %v4610 = vld [vmem:[#allocation2] sm:$0xff]
        %v4611 = vld [vmem:[#allocation2 + $0x8] sm:$0xff]
        %v4612 = vld [vmem:[#allocation2 + $0x10] sm:$0xff]
        %v4613 = vld [vmem:[#allocation2 + $0x20] sm:$0xff]
        %v4614 = vld [vmem:[#allocation2 + $0x28] sm:$0xff]
        %v4615 = vld [vmem:[#allocation2 + $0x30] sm:$0xff]
        %v4616 = vld [vmem:[#allocation2 + $0x40] sm:$0xff]
        %v4617 = vld [vmem:[#allocation2 + $0x48] sm:$0xff]
        %v4618 = vld [vmem:[#allocation2 + $0x50] sm:$0xff]
        %v4619 = vld [vmem:[#allocation2 + $0x60] sm:$0xff]
        %v4620 = vld [vmem:[#allocation2 + $0x68] sm:$0xff]
        %v4621 = vld [vmem:[#allocation2 + $0x70] sm:$0xff]
        %v4622 = vld [vmem:[#allocation2 + $0x80] sm:$0xff]
        %v4623 = vld [vmem:[#allocation2 + $0x88] sm:$0xff]
        %v4624 = vld [vmem:[#allocation2 + $0x90] sm:$0xff]
        %v4625 = vld [vmem:[#allocation2 + $0xa0] sm:$0xff]
        %v4626 = vld [vmem:[#allocation2 + $0xa8] sm:$0xff]
        %v4627 = vld [vmem:[#allocation2 + $0xb0] sm:$0xff]
        %v4628 = vld [vmem:[#allocation2 + $0xc0] sm:$0xff]
        %v4629 = vld [vmem:[#allocation2 + $0xc8] sm:$0xff]
        %v4630 = vld [vmem:[#allocation2 + $0xd0] sm:$0xff]
        %v4631 = vld [vmem:[#allocation2 + $0xe0] sm:$0xff]
        %v4632 = vld [vmem:[#allocation2 + $0xe8] sm:$0xff]
        %v4633 = vld [vmem:[#allocation2 + $0xf0] sm:$0xff]
        %v4634 = vmul.f32 %v4610, %v488
        %v4635 = vmul.f32 %v4611, %v492
        %v4636 = vmul.f32 %v4612, %v490
        %v4637 = vmul.f32 %v4613, %v488
        %v4638 = vmul.f32 %v4614, %v492
        %v4639 = vmul.f32 %v4615, %v490
        %v4640 = vmul.f32 %v4616, %v488
        %v4641 = vmul.f32 %v4617, %v492
        %v4642 = vmul.f32 %v4618, %v490
        %v4643 = vmul.f32 %v4619, %v488
        %v4644 = vmul.f32 %v4620, %v492
        %v4645 = vmul.f32 %v4621, %v490
        %v4646 = vmul.f32 %v4622, %v488
        %v4647 = vmul.f32 %v4623, %v492
        %v4648 = vmul.f32 %v4624, %v490
        %v4649 = vmul.f32 %v4625, %v488
        %v4650 = vmul.f32 %v4626, %v492
        %v4651 = vmul.f32 %v4627, %v490
        %v4652 = vmul.f32 %v4628, %v488
        %v4653 = vmul.f32 %v4629, %v492
        %v4654 = vmul.f32 %v4630, %v490
        %v4655 = vmul.f32 %v4631, %v488
        %v4656 = vmul.f32 %v4632, %v492
        %v4657 = vmul.f32 %v4633, %v490
        %4682 = vrot.lane.b32.xlu0 %v4634, 17
        %v4683 = vpop.permute.xlu0 %4682
        %4684 = vrot.lane.b32.xlu0 %v4635, 17
        %v4685 = vpop.permute.xlu0 %4684
        %4686 = vrot.lane.b32.xlu0 %v4636, 17
        %v4687 = vpop.permute.xlu0 %4686
        %4688 = vrot.lane.b32.xlu0 %v4637, 17
        %v4689 = vpop.permute.xlu0 %4688
        %4690 = vrot.lane.b32.xlu0 %v4638, 17
        %v4691 = vpop.permute.xlu0 %4690
        %4692 = vrot.lane.b32.xlu0 %v4639, 17
        %v4693 = vpop.permute.xlu0 %4692
        %4694 = vrot.lane.b32.xlu0 %v4640, 17
        %v4695 = vpop.permute.xlu0 %4694
        %4696 = vrot.lane.b32.xlu0 %v4641, 17
        %v4697 = vpop.permute.xlu0 %4696
        %4698 = vrot.lane.b32.xlu0 %v4642, 17
        %v4699 = vpop.permute.xlu0 %4698
        %4700 = vrot.lane.b32.xlu0 %v4643, 17
        %v4701 = vpop.permute.xlu0 %4700
        %4702 = vrot.lane.b32.xlu0 %v4644, 17
        %v4703 = vpop.permute.xlu0 %4702
        %4704 = vrot.lane.b32.xlu0 %v4645, 17
        %v4705 = vpop.permute.xlu0 %4704
        %4706 = vrot.lane.b32.xlu0 %v4646, 17
        %v4707 = vpop.permute.xlu0 %4706
        %4708 = vrot.lane.b32.xlu0 %v4647, 17
        %v4709 = vpop.permute.xlu0 %4708
        %4710 = vrot.lane.b32.xlu0 %v4648, 17
        %v4711 = vpop.permute.xlu0 %4710
        %4712 = vrot.lane.b32.xlu0 %v4649, 17
        %v4713 = vpop.permute.xlu0 %4712
        %4714 = vrot.lane.b32.xlu0 %v4650, 17
        %v4715 = vpop.permute.xlu0 %4714
        %4716 = vrot.lane.b32.xlu0 %v4651, 17
        %v4717 = vpop.permute.xlu0 %4716
        %4718 = vrot.lane.b32.xlu0 %v4652, 17
        %v4719 = vpop.permute.xlu0 %4718
        %4720 = vrot.lane.b32.xlu0 %v4653, 17
        %v4721 = vpop.permute.xlu0 %4720
        %4722 = vrot.lane.b32.xlu0 %v4654, 17
        %v4723 = vpop.permute.xlu0 %4722
        %4724 = vrot.lane.b32.xlu0 %v4655, 17
        %v4725 = vpop.permute.xlu0 %4724
        %4726 = vrot.lane.b32.xlu0 %v4656, 17
        %v4727 = vpop.permute.xlu0 %4726
        %4728 = vrot.lane.b32.xlu0 %v4657, 17
        %v4729 = vpop.permute.xlu0 %4728
        %v4730 = vsel %vm520, %v4683, %v4685
        %v4731 = vsel %vm520, %v4685, %v4687
        %v4732 = vsel %vm520, %v4689, %v4691
        %v4733 = vsel %vm520, %v4691, %v4693
        %v4734 = vsel %vm520, %v4695, %v4697
        %v4735 = vsel %vm520, %v4697, %v4699
        %v4736 = vsel %vm520, %v4701, %v4703
        %v4737 = vsel %vm520, %v4703, %v4705
        %v4738 = vsel %vm520, %v4707, %v4709
        %v4739 = vsel %vm520, %v4709, %v4711
        %v4740 = vsel %vm520, %v4713, %v4715
        %v4741 = vsel %vm520, %v4715, %v4717
        %v4742 = vsel %vm520, %v4719, %v4721
        %v4743 = vsel %vm520, %v4721, %v4723
        %v4744 = vsel %vm520, %v4725, %v4727
        %v4745 = vsel %vm520, %v4727, %v4729
        %4762 = vst [vmem:[#allocation3] sm:$0xff] %v4730
        %4763 = vst [vmem:[#allocation3 + $0x8] sm:$0xff] %v4731
        %4764 = vst [vmem:[#allocation3 + $0x10] sm:$0xff] %v4732
        %4765 = vst [vmem:[#allocation3 + $0x18] sm:$0xff] %v4733
        %4766 = vst [vmem:[#allocation3 + $0x20] sm:$0xff] %v4734
        %4767 = vst [vmem:[#allocation3 + $0x28] sm:$0xff] %v4735
        %4768 = vst [vmem:[#allocation3 + $0x30] sm:$0xff] %v4736
        %4769 = vst [vmem:[#allocation3 + $0x38] sm:$0xff] %v4737
        %4770 = vst [vmem:[#allocation3 + $0x40] sm:$0xff] %v4738
        %4771 = vst [vmem:[#allocation3 + $0x48] sm:$0xff] %v4739
        %4772 = vst [vmem:[#allocation3 + $0x50] sm:$0xff] %v4740
        %4773 = vst [vmem:[#allocation3 + $0x58] sm:$0xff] %v4741
        %4774 = vst [vmem:[#allocation3 + $0x60] sm:$0xff] %v4742
        %4775 = vst [vmem:[#allocation3 + $0x68] sm:$0xff] %v4743
        %4776 = vst [vmem:[#allocation3 + $0x70] sm:$0xff] %v4744
        %4777 = vst [vmem:[#allocation3 + $0x78] sm:$0xff] %v4745
        %v4778 = vld [vmem:[#allocation2] sm:$0xff]
        %v4779 = vld [vmem:[#allocation2 + $0x8] sm:$0xff]
        %v4780 = vld [vmem:[#allocation2 + $0x10] sm:$0xff]
        %v4781 = vld [vmem:[#allocation2 + $0x20] sm:$0xff]
        %v4782 = vld [vmem:[#allocation2 + $0x28] sm:$0xff]
        %v4783 = vld [vmem:[#allocation2 + $0x30] sm:$0xff]
        %v4784 = vld [vmem:[#allocation2 + $0x40] sm:$0xff]
        %v4785 = vld [vmem:[#allocation2 + $0x48] sm:$0xff]
        %v4786 = vld [vmem:[#allocation2 + $0x50] sm:$0xff]
        %v4787 = vld [vmem:[#allocation2 + $0x60] sm:$0xff]
        %v4788 = vld [vmem:[#allocation2 + $0x68] sm:$0xff]
        %v4789 = vld [vmem:[#allocation2 + $0x70] sm:$0xff]
        %v4790 = vld [vmem:[#allocation2 + $0x80] sm:$0xff]
        %v4791 = vld [vmem:[#allocation2 + $0x88] sm:$0xff]
        %v4792 = vld [vmem:[#allocation2 + $0x90] sm:$0xff]
        %v4793 = vld [vmem:[#allocation2 + $0xa0] sm:$0xff]
        %v4794 = vld [vmem:[#allocation2 + $0xa8] sm:$0xff]
        %v4795 = vld [vmem:[#allocation2 + $0xb0] sm:$0xff]
        %v4796 = vld [vmem:[#allocation2 + $0xc0] sm:$0xff]
        %v4797 = vld [vmem:[#allocation2 + $0xc8] sm:$0xff]
        %v4798 = vld [vmem:[#allocation2 + $0xd0] sm:$0xff]
        %v4799 = vld [vmem:[#allocation2 + $0xe0] sm:$0xff]
        %v4800 = vld [vmem:[#allocation2 + $0xe8] sm:$0xff]
        %v4801 = vld [vmem:[#allocation2 + $0xf0] sm:$0xff]
        %4826 = vrot.lane.b32.xlu0 %v4778, 16
        %v4827 = vpop.permute.xlu0 %4826
        %4828 = vrot.lane.b32.xlu0 %v4779, 16
        %v4829 = vpop.permute.xlu0 %4828
        %4830 = vrot.lane.b32.xlu0 %v4780, 16
        %v4831 = vpop.permute.xlu0 %4830
        %4832 = vrot.lane.b32.xlu0 %v4781, 16
        %v4833 = vpop.permute.xlu0 %4832
        %4834 = vrot.lane.b32.xlu0 %v4782, 16
        %v4835 = vpop.permute.xlu0 %4834
        %4836 = vrot.lane.b32.xlu0 %v4783, 16
        %v4837 = vpop.permute.xlu0 %4836
        %4838 = vrot.lane.b32.xlu0 %v4784, 16
        %v4839 = vpop.permute.xlu0 %4838
        %4840 = vrot.lane.b32.xlu0 %v4785, 16
        %v4841 = vpop.permute.xlu0 %4840
        %4842 = vrot.lane.b32.xlu0 %v4786, 16
        %v4843 = vpop.permute.xlu0 %4842
        %4844 = vrot.lane.b32.xlu0 %v4787, 16
        %v4845 = vpop.permute.xlu0 %4844
        %4846 = vrot.lane.b32.xlu0 %v4788, 16
        %v4847 = vpop.permute.xlu0 %4846
        %4848 = vrot.lane.b32.xlu0 %v4789, 16
        %v4849 = vpop.permute.xlu0 %4848
        %4850 = vrot.lane.b32.xlu0 %v4790, 16
        %v4851 = vpop.permute.xlu0 %4850
        %4852 = vrot.lane.b32.xlu0 %v4791, 16
        %v4853 = vpop.permute.xlu0 %4852
        %4854 = vrot.lane.b32.xlu0 %v4792, 16
        %v4855 = vpop.permute.xlu0 %4854
        %4856 = vrot.lane.b32.xlu0 %v4793, 16
        %v4857 = vpop.permute.xlu0 %4856
        %4858 = vrot.lane.b32.xlu0 %v4794, 16
        %v4859 = vpop.permute.xlu0 %4858
        %4860 = vrot.lane.b32.xlu0 %v4795, 16
        %v4861 = vpop.permute.xlu0 %4860
        %4862 = vrot.lane.b32.xlu0 %v4796, 16
        %v4863 = vpop.permute.xlu0 %4862
        %4864 = vrot.lane.b32.xlu0 %v4797, 16
        %v4865 = vpop.permute.xlu0 %4864
        %4866 = vrot.lane.b32.xlu0 %v4798, 16
        %v4867 = vpop.permute.xlu0 %4866
        %4868 = vrot.lane.b32.xlu0 %v4799, 16
        %v4869 = vpop.permute.xlu0 %4868
        %4870 = vrot.lane.b32.xlu0 %v4800, 16
        %v4871 = vpop.permute.xlu0 %4870
        %4872 = vrot.lane.b32.xlu0 %v4801, 16
        %v4873 = vpop.permute.xlu0 %4872
        %v4874 = vsel %vm557, %v4827, %v4829
        %v4875 = vsel %vm557, %v4829, %v4831
        %v4876 = vsel %vm557, %v4833, %v4835
        %v4877 = vsel %vm557, %v4835, %v4837
        %v4878 = vsel %vm557, %v4839, %v4841
        %v4879 = vsel %vm557, %v4841, %v4843
        %v4880 = vsel %vm557, %v4845, %v4847
        %v4881 = vsel %vm557, %v4847, %v4849
        %v4882 = vsel %vm557, %v4851, %v4853
        %v4883 = vsel %vm557, %v4853, %v4855
        %v4884 = vsel %vm557, %v4857, %v4859
        %v4885 = vsel %vm557, %v4859, %v4861
        %v4886 = vsel %vm557, %v4863, %v4865
        %v4887 = vsel %vm557, %v4865, %v4867
        %v4888 = vsel %vm557, %v4869, %v4871
        %v4889 = vsel %vm557, %v4871, %v4873
        %4906 = vst [vmem:[#allocation3 + $0x80] sm:$0xff] %v4874
        %4907 = vst [vmem:[#allocation3 + $0x88] sm:$0xff] %v4875
        %4908 = vst [vmem:[#allocation3 + $0x90] sm:$0xff] %v4876
        %4909 = vst [vmem:[#allocation3 + $0x98] sm:$0xff] %v4877
        %4910 = vst [vmem:[#allocation3 + $0xa0] sm:$0xff] %v4878
        %4911 = vst [vmem:[#allocation3 + $0xa8] sm:$0xff] %v4879
        %4912 = vst [vmem:[#allocation3 + $0xb0] sm:$0xff] %v4880
        %4913 = vst [vmem:[#allocation3 + $0xb8] sm:$0xff] %v4881
        %4914 = vst [vmem:[#allocation3 + $0xc0] sm:$0xff] %v4882
        %4915 = vst [vmem:[#allocation3 + $0xc8] sm:$0xff] %v4883
        %4916 = vst [vmem:[#allocation3 + $0xd0] sm:$0xff] %v4884
        %4917 = vst [vmem:[#allocation3 + $0xd8] sm:$0xff] %v4885
        %4918 = vst [vmem:[#allocation3 + $0xe0] sm:$0xff] %v4886
        %4919 = vst [vmem:[#allocation3 + $0xe8] sm:$0xff] %v4887
        %4920 = vst [vmem:[#allocation3 + $0xf0] sm:$0xff] %v4888
        %4921 = vst [vmem:[#allocation3 + $0xf8] sm:$0xff] %v4889
        %v4922 = vld [vmem:[#allocation2] sm:$0xff]
        %v4923 = vld [vmem:[#allocation2 + $0x8] sm:$0xff]
        %v4924 = vld [vmem:[#allocation2 + $0x10] sm:$0xff]
        %v4925 = vld [vmem:[#allocation2 + $0x20] sm:$0xff]
        %v4926 = vld [vmem:[#allocation2 + $0x28] sm:$0xff]
        %v4927 = vld [vmem:[#allocation2 + $0x30] sm:$0xff]
        %v4928 = vld [vmem:[#allocation2 + $0x40] sm:$0xff]
        %v4929 = vld [vmem:[#allocation2 + $0x48] sm:$0xff]
        %v4930 = vld [vmem:[#allocation2 + $0x50] sm:$0xff]
        %v4931 = vld [vmem:[#allocation2 + $0x60] sm:$0xff]
        %v4932 = vld [vmem:[#allocation2 + $0x68] sm:$0xff]
        %v4933 = vld [vmem:[#allocation2 + $0x70] sm:$0xff]
        %v4934 = vld [vmem:[#allocation2 + $0x80] sm:$0xff]
        %v4935 = vld [vmem:[#allocation2 + $0x88] sm:$0xff]
        %v4936 = vld [vmem:[#allocation2 + $0x90] sm:$0xff]
        %v4937 = vld [vmem:[#allocation2 + $0xa0] sm:$0xff]
        %v4938 = vld [vmem:[#allocation2 + $0xa8] sm:$0xff]
        %v4939 = vld [vmem:[#allocation2 + $0xb0] sm:$0xff]
        %v4940 = vld [vmem:[#allocation2 + $0xc0] sm:$0xff]
        %v4941 = vld [vmem:[#allocation2 + $0xc8] sm:$0xff]
        %v4942 = vld [vmem:[#allocation2 + $0xd0] sm:$0xff]
        %v4943 = vld [vmem:[#allocation2 + $0xe0] sm:$0xff]
        %v4944 = vld [vmem:[#allocation2 + $0xe8] sm:$0xff]
        %v4945 = vld [vmem:[#allocation2 + $0xf0] sm:$0xff]
        %v4946 = vmul.f32 %v4922, %v586
        %v4947 = vmul.f32 %v4923, %v590
        %v4948 = vmul.f32 %v4924, %v588
        %v4949 = vmul.f32 %v4925, %v586
        %v4950 = vmul.f32 %v4926, %v590
        %v4951 = vmul.f32 %v4927, %v588
        %v4952 = vmul.f32 %v4928, %v586
        %v4953 = vmul.f32 %v4929, %v590
        %v4954 = vmul.f32 %v4930, %v588
        %v4955 = vmul.f32 %v4931, %v586
        %v4956 = vmul.f32 %v4932, %v590
        %v4957 = vmul.f32 %v4933, %v588
        %v4958 = vmul.f32 %v4934, %v586
        %v4959 = vmul.f32 %v4935, %v590
        %v4960 = vmul.f32 %v4936, %v588
        %v4961 = vmul.f32 %v4937, %v586
        %v4962 = vmul.f32 %v4938, %v590
        %v4963 = vmul.f32 %v4939, %v588
        %v4964 = vmul.f32 %v4940, %v586
        %v4965 = vmul.f32 %v4941, %v590
        %v4966 = vmul.f32 %v4942, %v588
        %v4967 = vmul.f32 %v4943, %v586
        %v4968 = vmul.f32 %v4944, %v590
        %v4969 = vmul.f32 %v4945, %v588
        %4994 = vrot.lane.b32.xlu0 %v4946, 15
        %v4995 = vpop.permute.xlu0 %4994
        %4996 = vrot.lane.b32.xlu0 %v4947, 15
        %v4997 = vpop.permute.xlu0 %4996
        %4998 = vrot.lane.b32.xlu0 %v4948, 15
        %v4999 = vpop.permute.xlu0 %4998
        %5000 = vrot.lane.b32.xlu0 %v4949, 15
        %v5001 = vpop.permute.xlu0 %5000
        %5002 = vrot.lane.b32.xlu0 %v4950, 15
        %v5003 = vpop.permute.xlu0 %5002
        %5004 = vrot.lane.b32.xlu0 %v4951, 15
        %v5005 = vpop.permute.xlu0 %5004
        %5006 = vrot.lane.b32.xlu0 %v4952, 15
        %v5007 = vpop.permute.xlu0 %5006
        %5008 = vrot.lane.b32.xlu0 %v4953, 15
        %v5009 = vpop.permute.xlu0 %5008
        %5010 = vrot.lane.b32.xlu0 %v4954, 15
        %v5011 = vpop.permute.xlu0 %5010
        %5012 = vrot.lane.b32.xlu0 %v4955, 15
        %v5013 = vpop.permute.xlu0 %5012
        %5014 = vrot.lane.b32.xlu0 %v4956, 15
        %v5015 = vpop.permute.xlu0 %5014
        %5016 = vrot.lane.b32.xlu0 %v4957, 15
        %v5017 = vpop.permute.xlu0 %5016
        %5018 = vrot.lane.b32.xlu0 %v4958, 15
        %v5019 = vpop.permute.xlu0 %5018
        %5020 = vrot.lane.b32.xlu0 %v4959, 15
        %v5021 = vpop.permute.xlu0 %5020
        %5022 = vrot.lane.b32.xlu0 %v4960, 15
        %v5023 = vpop.permute.xlu0 %5022
        %5024 = vrot.lane.b32.xlu0 %v4961, 15
        %v5025 = vpop.permute.xlu0 %5024
        %5026 = vrot.lane.b32.xlu0 %v4962, 15
        %v5027 = vpop.permute.xlu0 %5026
        %5028 = vrot.lane.b32.xlu0 %v4963, 15
        %v5029 = vpop.permute.xlu0 %5028
        %5030 = vrot.lane.b32.xlu0 %v4964, 15
        %v5031 = vpop.permute.xlu0 %5030
        %5032 = vrot.lane.b32.xlu0 %v4965, 15
        %v5033 = vpop.permute.xlu0 %5032
        %5034 = vrot.lane.b32.xlu0 %v4966, 15
        %v5035 = vpop.permute.xlu0 %5034
        %5036 = vrot.lane.b32.xlu0 %v4967, 15
        %v5037 = vpop.permute.xlu0 %5036
        %5038 = vrot.lane.b32.xlu0 %v4968, 15
        %v5039 = vpop.permute.xlu0 %5038
        %5040 = vrot.lane.b32.xlu0 %v4969, 15
        %v5041 = vpop.permute.xlu0 %5040
        %v5042 = vsel %vm618, %v4995, %v4997
        %v5043 = vsel %vm618, %v4997, %v4999
        %v5044 = vsel %vm618, %v5001, %v5003
        %v5045 = vsel %vm618, %v5003, %v5005
        %v5046 = vsel %vm618, %v5007, %v5009
        %v5047 = vsel %vm618, %v5009, %v5011
        %v5048 = vsel %vm618, %v5013, %v5015
        %v5049 = vsel %vm618, %v5015, %v5017
        %v5050 = vsel %vm618, %v5019, %v5021
        %v5051 = vsel %vm618, %v5021, %v5023
        %v5052 = vsel %vm618, %v5025, %v5027
        %v5053 = vsel %vm618, %v5027, %v5029
        %v5054 = vsel %vm618, %v5031, %v5033
        %v5055 = vsel %vm618, %v5033, %v5035
        %v5056 = vsel %vm618, %v5037, %v5039
        %v5057 = vsel %vm618, %v5039, %v5041
        %5074 = vst [vmem:[#allocation3 + $0x100] sm:$0xff] %v5042
        %5075 = vst [vmem:[#allocation3 + $0x108] sm:$0xff] %v5043
        %5076 = vst [vmem:[#allocation3 + $0x110] sm:$0xff] %v5044
        %5077 = vst [vmem:[#allocation3 + $0x118] sm:$0xff] %v5045
        %5078 = vst [vmem:[#allocation3 + $0x120] sm:$0xff] %v5046
        %5079 = vst [vmem:[#allocation3 + $0x128] sm:$0xff] %v5047
        %5080 = vst [vmem:[#allocation3 + $0x130] sm:$0xff] %v5048
        %5081 = vst [vmem:[#allocation3 + $0x138] sm:$0xff] %v5049
        %5082 = vst [vmem:[#allocation3 + $0x140] sm:$0xff] %v5050
        %5083 = vst [vmem:[#allocation3 + $0x148] sm:$0xff] %v5051
        %5084 = vst [vmem:[#allocation3 + $0x150] sm:$0xff] %v5052
        %5085 = vst [vmem:[#allocation3 + $0x158] sm:$0xff] %v5053
        %5086 = vst [vmem:[#allocation3 + $0x160] sm:$0xff] %v5054
        %5087 = vst [vmem:[#allocation3 + $0x168] sm:$0xff] %v5055
        %5088 = vst [vmem:[#allocation3 + $0x170] sm:$0xff] %v5056
        %5089 = vst [vmem:[#allocation3 + $0x178] sm:$0xff] %v5057
        %v5090 = vld [vmem:[#allocation2] sm:$0xff]
        %v5091 = vld [vmem:[#allocation2 + $0x8] sm:$0xff]
        %v5092 = vld [vmem:[#allocation2 + $0x10] sm:$0xff]
        %v5093 = vld [vmem:[#allocation2 + $0x20] sm:$0xff]
        %v5094 = vld [vmem:[#allocation2 + $0x28] sm:$0xff]
        %v5095 = vld [vmem:[#allocation2 + $0x30] sm:$0xff]
        %v5096 = vld [vmem:[#allocation2 + $0x40] sm:$0xff]
        %v5097 = vld [vmem:[#allocation2 + $0x48] sm:$0xff]
        %v5098 = vld [vmem:[#allocation2 + $0x50] sm:$0xff]
        %v5099 = vld [vmem:[#allocation2 + $0x60] sm:$0xff]
        %v5100 = vld [vmem:[#allocation2 + $0x68] sm:$0xff]
        %v5101 = vld [vmem:[#allocation2 + $0x70] sm:$0xff]
        %v5102 = vld [vmem:[#allocation2 + $0x80] sm:$0xff]
        %v5103 = vld [vmem:[#allocation2 + $0x88] sm:$0xff]
        %v5104 = vld [vmem:[#allocation2 + $0x90] sm:$0xff]
        %v5105 = vld [vmem:[#allocation2 + $0xa0] sm:$0xff]
        %v5106 = vld [vmem:[#allocation2 + $0xa8] sm:$0xff]
        %v5107 = vld [vmem:[#allocation2 + $0xb0] sm:$0xff]
        %v5108 = vld [vmem:[#allocation2 + $0xc0] sm:$0xff]
        %v5109 = vld [vmem:[#allocation2 + $0xc8] sm:$0xff]
        %v5110 = vld [vmem:[#allocation2 + $0xd0] sm:$0xff]
        %v5111 = vld [vmem:[#allocation2 + $0xe0] sm:$0xff]
        %v5112 = vld [vmem:[#allocation2 + $0xe8] sm:$0xff]
        %v5113 = vld [vmem:[#allocation2 + $0xf0] sm:$0xff]
        %v5114 = vmul.f32 %v5090, %v638
        %v5115 = vmul.f32 %v5091, %v642
        %v5116 = vmul.f32 %v5092, %v640
        %v5117 = vmul.f32 %v5093, %v638
        %v5118 = vmul.f32 %v5094, %v642
        %v5119 = vmul.f32 %v5095, %v640
        %v5120 = vmul.f32 %v5096, %v638
        %v5121 = vmul.f32 %v5097, %v642
        %v5122 = vmul.f32 %v5098, %v640
        %v5123 = vmul.f32 %v5099, %v638
        %v5124 = vmul.f32 %v5100, %v642
        %v5125 = vmul.f32 %v5101, %v640
        %v5126 = vmul.f32 %v5102, %v638
        %v5127 = vmul.f32 %v5103, %v642
        %v5128 = vmul.f32 %v5104, %v640
        %v5129 = vmul.f32 %v5105, %v638
        %v5130 = vmul.f32 %v5106, %v642
        %v5131 = vmul.f32 %v5107, %v640
        %v5132 = vmul.f32 %v5108, %v638
        %v5133 = vmul.f32 %v5109, %v642
        %v5134 = vmul.f32 %v5110, %v640
        %v5135 = vmul.f32 %v5111, %v638
        %v5136 = vmul.f32 %v5112, %v642
        %v5137 = vmul.f32 %v5113, %v640
        %5162 = vrot.lane.b32.xlu0 %v5114, 1
        %v5163 = vpop.permute.xlu0 %5162
        %5164 = vrot.lane.b32.xlu0 %v5115, 1
        %v5165 = vpop.permute.xlu0 %5164
        %5166 = vrot.lane.b32.xlu0 %v5116, 1
        %v5167 = vpop.permute.xlu0 %5166
        %5168 = vrot.lane.b32.xlu0 %v5117, 1
        %v5169 = vpop.permute.xlu0 %5168
        %5170 = vrot.lane.b32.xlu0 %v5118, 1
        %v5171 = vpop.permute.xlu0 %5170
        %5172 = vrot.lane.b32.xlu0 %v5119, 1
        %v5173 = vpop.permute.xlu0 %5172
        %5174 = vrot.lane.b32.xlu0 %v5120, 1
        %v5175 = vpop.permute.xlu0 %5174
        %5176 = vrot.lane.b32.xlu0 %v5121, 1
        %v5177 = vpop.permute.xlu0 %5176
        %5178 = vrot.lane.b32.xlu0 %v5122, 1
        %v5179 = vpop.permute.xlu0 %5178
        %5180 = vrot.lane.b32.xlu0 %v5123, 1
        %v5181 = vpop.permute.xlu0 %5180
        %5182 = vrot.lane.b32.xlu0 %v5124, 1
        %v5183 = vpop.permute.xlu0 %5182
        %5184 = vrot.lane.b32.xlu0 %v5125, 1
        %v5185 = vpop.permute.xlu0 %5184
        %5186 = vrot.lane.b32.xlu0 %v5126, 1
        %v5187 = vpop.permute.xlu0 %5186
        %5188 = vrot.lane.b32.xlu0 %v5127, 1
        %v5189 = vpop.permute.xlu0 %5188
        %5190 = vrot.lane.b32.xlu0 %v5128, 1
        %v5191 = vpop.permute.xlu0 %5190
        %5192 = vrot.lane.b32.xlu0 %v5129, 1
        %v5193 = vpop.permute.xlu0 %5192
        %5194 = vrot.lane.b32.xlu0 %v5130, 1
        %v5195 = vpop.permute.xlu0 %5194
        %5196 = vrot.lane.b32.xlu0 %v5131, 1
        %v5197 = vpop.permute.xlu0 %5196
        %5198 = vrot.lane.b32.xlu0 %v5132, 1
        %v5199 = vpop.permute.xlu0 %5198
        %5200 = vrot.lane.b32.xlu0 %v5133, 1
        %v5201 = vpop.permute.xlu0 %5200
        %5202 = vrot.lane.b32.xlu0 %v5134, 1
        %v5203 = vpop.permute.xlu0 %5202
        %5204 = vrot.lane.b32.xlu0 %v5135, 1
        %v5205 = vpop.permute.xlu0 %5204
        %5206 = vrot.lane.b32.xlu0 %v5136, 1
        %v5207 = vpop.permute.xlu0 %5206
        %5208 = vrot.lane.b32.xlu0 %v5137, 1
        %v5209 = vpop.permute.xlu0 %5208
        %v5210 = vsel %vm670, %v5163, %v5165
        %v5211 = vsel %vm670, %v5165, %v5167
        %v5212 = vsel %vm670, %v5169, %v5171
        %v5213 = vsel %vm670, %v5171, %v5173
        %v5214 = vsel %vm670, %v5175, %v5177
        %v5215 = vsel %vm670, %v5177, %v5179
        %v5216 = vsel %vm670, %v5181, %v5183
        %v5217 = vsel %vm670, %v5183, %v5185
        %v5218 = vsel %vm670, %v5187, %v5189
        %v5219 = vsel %vm670, %v5189, %v5191
        %v5220 = vsel %vm670, %v5193, %v5195
        %v5221 = vsel %vm670, %v5195, %v5197
        %v5222 = vsel %vm670, %v5199, %v5201
        %v5223 = vsel %vm670, %v5201, %v5203
        %v5224 = vsel %vm670, %v5205, %v5207
        %v5225 = vsel %vm670, %v5207, %v5209
        %5242 = vst [vmem:[#allocation3 + $0x180] sm:$0xff] %v5210
        %5243 = vst [vmem:[#allocation3 + $0x188] sm:$0xff] %v5211
        %5244 = vst [vmem:[#allocation3 + $0x190] sm:$0xff] %v5212
        %5245 = vst [vmem:[#allocation3 + $0x198] sm:$0xff] %v5213
        %5246 = vst [vmem:[#allocation3 + $0x1a0] sm:$0xff] %v5214
        %5247 = vst [vmem:[#allocation3 + $0x1a8] sm:$0xff] %v5215
        %5248 = vst [vmem:[#allocation3 + $0x1b0] sm:$0xff] %v5216
        %5249 = vst [vmem:[#allocation3 + $0x1b8] sm:$0xff] %v5217
        %5250 = vst [vmem:[#allocation3 + $0x1c0] sm:$0xff] %v5218
        %5251 = vst [vmem:[#allocation3 + $0x1c8] sm:$0xff] %v5219
        %5252 = vst [vmem:[#allocation3 + $0x1d0] sm:$0xff] %v5220
        %5253 = vst [vmem:[#allocation3 + $0x1d8] sm:$0xff] %v5221
        %5254 = vst [vmem:[#allocation3 + $0x1e0] sm:$0xff] %v5222
        %5255 = vst [vmem:[#allocation3 + $0x1e8] sm:$0xff] %v5223
        %5256 = vst [vmem:[#allocation3 + $0x1f0] sm:$0xff] %v5224
        %5257 = vst [vmem:[#allocation3 + $0x1f8] sm:$0xff] %v5225
        %v5258 = vld [vmem:[#allocation2 + $0x8] sm:$0xff]
        %v5259 = vld [vmem:[#allocation2 + $0x10] sm:$0xff]
        %v5260 = vld [vmem:[#allocation2 + $0x28] sm:$0xff]
        %v5261 = vld [vmem:[#allocation2 + $0x30] sm:$0xff]
        %v5262 = vld [vmem:[#allocation2 + $0x48] sm:$0xff]
        %v5263 = vld [vmem:[#allocation2 + $0x50] sm:$0xff]
        %v5264 = vld [vmem:[#allocation2 + $0x68] sm:$0xff]
        %v5265 = vld [vmem:[#allocation2 + $0x70] sm:$0xff]
        %v5266 = vld [vmem:[#allocation2 + $0x88] sm:$0xff]
        %v5267 = vld [vmem:[#allocation2 + $0x90] sm:$0xff]
        %v5268 = vld [vmem:[#allocation2 + $0xa8] sm:$0xff]
        %v5269 = vld [vmem:[#allocation2 + $0xb0] sm:$0xff]
        %v5270 = vld [vmem:[#allocation2 + $0xc8] sm:$0xff]
        %v5271 = vld [vmem:[#allocation2 + $0xd0] sm:$0xff]
        %v5272 = vld [vmem:[#allocation2 + $0xe8] sm:$0xff]
        %v5273 = vld [vmem:[#allocation2 + $0xf0] sm:$0xff]
        %5274 = vst [vmem:[#allocation3 + $0x200] sm:$0xff] %v5258
        %5275 = vst [vmem:[#allocation3 + $0x208] sm:$0xff] %v5259
        %5276 = vst [vmem:[#allocation3 + $0x210] sm:$0xff] %v5260
        %5277 = vst [vmem:[#allocation3 + $0x218] sm:$0xff] %v5261
        %5278 = vst [vmem:[#allocation3 + $0x220] sm:$0xff] %v5262
        %5279 = vst [vmem:[#allocation3 + $0x228] sm:$0xff] %v5263
        %5280 = vst [vmem:[#allocation3 + $0x230] sm:$0xff] %v5264
        %5281 = vst [vmem:[#allocation3 + $0x238] sm:$0xff] %v5265
        %5282 = vst [vmem:[#allocation3 + $0x240] sm:$0xff] %v5266
        %5283 = vst [vmem:[#allocation3 + $0x248] sm:$0xff] %v5267
        %5284 = vst [vmem:[#allocation3 + $0x250] sm:$0xff] %v5268
        %5285 = vst [vmem:[#allocation3 + $0x258] sm:$0xff] %v5269
        %5286 = vst [vmem:[#allocation3 + $0x260] sm:$0xff] %v5270
        %5287 = vst [vmem:[#allocation3 + $0x268] sm:$0xff] %v5271
        %5288 = vst [vmem:[#allocation3 + $0x270] sm:$0xff] %v5272
        %5289 = vst [vmem:[#allocation3 + $0x278] sm:$0xff] %v5273
        %v5290 = vld [vmem:[#allocation2 + $0x8] sm:$0xff]
        %v5291 = vld [vmem:[#allocation2 + $0x10] sm:$0xff]
        %v5292 = vld [vmem:[#allocation2 + $0x18] sm:$0xff]
        %v5293 = vld [vmem:[#allocation2 + $0x28] sm:$0xff]
        %v5294 = vld [vmem:[#allocation2 + $0x30] sm:$0xff]
        %v5295 = vld [vmem:[#allocation2 + $0x38] sm:$0xff]
        %v5296 = vld [vmem:[#allocation2 + $0x48] sm:$0xff]
        %v5297 = vld [vmem:[#allocation2 + $0x50] sm:$0xff]
        %v5298 = vld [vmem:[#allocation2 + $0x58] sm:$0xff]
        %v5299 = vld [vmem:[#allocation2 + $0x68] sm:$0xff]
        %v5300 = vld [vmem:[#allocation2 + $0x70] sm:$0xff]
        %v5301 = vld [vmem:[#allocation2 + $0x78] sm:$0xff]
        %v5302 = vld [vmem:[#allocation2 + $0x88] sm:$0xff]
        %v5303 = vld [vmem:[#allocation2 + $0x90] sm:$0xff]
        %v5304 = vld [vmem:[#allocation2 + $0x98] sm:$0xff]
        %v5305 = vld [vmem:[#allocation2 + $0xa8] sm:$0xff]
        %v5306 = vld [vmem:[#allocation2 + $0xb0] sm:$0xff]
        %v5307 = vld [vmem:[#allocation2 + $0xb8] sm:$0xff]
        %v5308 = vld [vmem:[#allocation2 + $0xc8] sm:$0xff]
        %v5309 = vld [vmem:[#allocation2 + $0xd0] sm:$0xff]
        %v5310 = vld [vmem:[#allocation2 + $0xd8] sm:$0xff]
        %v5311 = vld [vmem:[#allocation2 + $0xe8] sm:$0xff]
        %v5312 = vld [vmem:[#allocation2 + $0xf0] sm:$0xff]
        %v5313 = vld [vmem:[#allocation2 + $0xf8] sm:$0xff]
        %v5314 = vmul.f32 %v5290, %v698
        %v5315 = vmul.f32 %v5291, %v701
        %v5316 = vmul.f32 %v5292, %v700
        %v5317 = vmul.f32 %v5293, %v698
        %v5318 = vmul.f32 %v5294, %v701
        %v5319 = vmul.f32 %v5295, %v700
        %v5320 = vmul.f32 %v5296, %v698
        %v5321 = vmul.f32 %v5297, %v701
        %v5322 = vmul.f32 %v5298, %v700
        %v5323 = vmul.f32 %v5299, %v698
        %v5324 = vmul.f32 %v5300, %v701
        %v5325 = vmul.f32 %v5301, %v700
        %v5326 = vmul.f32 %v5302, %v698
        %v5327 = vmul.f32 %v5303, %v701
        %v5328 = vmul.f32 %v5304, %v700
        %v5329 = vmul.f32 %v5305, %v698
        %v5330 = vmul.f32 %v5306, %v701
        %v5331 = vmul.f32 %v5307, %v700
        %v5332 = vmul.f32 %v5308, %v698
        %v5333 = vmul.f32 %v5309, %v701
        %v5334 = vmul.f32 %v5310, %v700
        %v5335 = vmul.f32 %v5311, %v698
        %v5336 = vmul.f32 %v5312, %v701
        %v5337 = vmul.f32 %v5313, %v700
        %5362 = vrot.lane.b32.xlu0 %v5314, 127
        %v5363 = vpop.permute.xlu0 %5362
        %5364 = vrot.lane.b32.xlu0 %v5315, 127
        %v5365 = vpop.permute.xlu0 %5364
        %5366 = vrot.lane.b32.xlu0 %v5316, 127
        %v5367 = vpop.permute.xlu0 %5366
        %5368 = vrot.lane.b32.xlu0 %v5317, 127
        %v5369 = vpop.permute.xlu0 %5368
        %5370 = vrot.lane.b32.xlu0 %v5318, 127
        %v5371 = vpop.permute.xlu0 %5370
        %5372 = vrot.lane.b32.xlu0 %v5319, 127
        %v5373 = vpop.permute.xlu0 %5372
        %5374 = vrot.lane.b32.xlu0 %v5320, 127
        %v5375 = vpop.permute.xlu0 %5374
        %5376 = vrot.lane.b32.xlu0 %v5321, 127
        %v5377 = vpop.permute.xlu0 %5376
        %5378 = vrot.lane.b32.xlu0 %v5322, 127
        %v5379 = vpop.permute.xlu0 %5378
        %5380 = vrot.lane.b32.xlu0 %v5323, 127
        %v5381 = vpop.permute.xlu0 %5380
        %5382 = vrot.lane.b32.xlu0 %v5324, 127
        %v5383 = vpop.permute.xlu0 %5382
        %5384 = vrot.lane.b32.xlu0 %v5325, 127
        %v5385 = vpop.permute.xlu0 %5384
        %5386 = vrot.lane.b32.xlu0 %v5326, 127
        %v5387 = vpop.permute.xlu0 %5386
        %5388 = vrot.lane.b32.xlu0 %v5327, 127
        %v5389 = vpop.permute.xlu0 %5388
        %5390 = vrot.lane.b32.xlu0 %v5328, 127
        %v5391 = vpop.permute.xlu0 %5390
        %5392 = vrot.lane.b32.xlu0 %v5329, 127
        %v5393 = vpop.permute.xlu0 %5392
        %5394 = vrot.lane.b32.xlu0 %v5330, 127
        %v5395 = vpop.permute.xlu0 %5394
        %5396 = vrot.lane.b32.xlu0 %v5331, 127
        %v5397 = vpop.permute.xlu0 %5396
        %5398 = vrot.lane.b32.xlu0 %v5332, 127
        %v5399 = vpop.permute.xlu0 %5398
        %5400 = vrot.lane.b32.xlu0 %v5333, 127
        %v5401 = vpop.permute.xlu0 %5400
        %5402 = vrot.lane.b32.xlu0 %v5334, 127
        %v5403 = vpop.permute.xlu0 %5402
        %5404 = vrot.lane.b32.xlu0 %v5335, 127
        %v5405 = vpop.permute.xlu0 %5404
        %5406 = vrot.lane.b32.xlu0 %v5336, 127
        %v5407 = vpop.permute.xlu0 %5406
        %5408 = vrot.lane.b32.xlu0 %v5337, 127
        %v5409 = vpop.permute.xlu0 %5408
        %v5410 = vsel %vm641, %v5363, %v5365
        %v5411 = vsel %vm641, %v5365, %v5367
        %v5412 = vsel %vm641, %v5369, %v5371
        %v5413 = vsel %vm641, %v5371, %v5373
        %v5414 = vsel %vm641, %v5375, %v5377
        %v5415 = vsel %vm641, %v5377, %v5379
        %v5416 = vsel %vm641, %v5381, %v5383
        %v5417 = vsel %vm641, %v5383, %v5385
        %v5418 = vsel %vm641, %v5387, %v5389
        %v5419 = vsel %vm641, %v5389, %v5391
        %v5420 = vsel %vm641, %v5393, %v5395
        %v5421 = vsel %vm641, %v5395, %v5397
        %v5422 = vsel %vm641, %v5399, %v5401
        %v5423 = vsel %vm641, %v5401, %v5403
        %v5424 = vsel %vm641, %v5405, %v5407
        %v5425 = vsel %vm641, %v5407, %v5409
        %5442 = vst [vmem:[#allocation3 + $0x280] sm:$0xff] %v5410
        %5443 = vst [vmem:[#allocation3 + $0x288] sm:$0xff] %v5411
        %5444 = vst [vmem:[#allocation3 + $0x290] sm:$0xff] %v5412
        %5445 = vst [vmem:[#allocation3 + $0x298] sm:$0xff] %v5413
        %5446 = vst [vmem:[#allocation3 + $0x2a0] sm:$0xff] %v5414
        %5447 = vst [vmem:[#allocation3 + $0x2a8] sm:$0xff] %v5415
        %5448 = vst [vmem:[#allocation3 + $0x2b0] sm:$0xff] %v5416
        %5449 = vst [vmem:[#allocation3 + $0x2b8] sm:$0xff] %v5417
        %5450 = vst [vmem:[#allocation3 + $0x2c0] sm:$0xff] %v5418
        %5451 = vst [vmem:[#allocation3 + $0x2c8] sm:$0xff] %v5419
        %5452 = vst [vmem:[#allocation3 + $0x2d0] sm:$0xff] %v5420
        %5453 = vst [vmem:[#allocation3 + $0x2d8] sm:$0xff] %v5421
        %5454 = vst [vmem:[#allocation3 + $0x2e0] sm:$0xff] %v5422
        %5455 = vst [vmem:[#allocation3 + $0x2e8] sm:$0xff] %v5423
        %5456 = vst [vmem:[#allocation3 + $0x2f0] sm:$0xff] %v5424
        %5457 = vst [vmem:[#allocation3 + $0x2f8] sm:$0xff] %v5425
        %v5458 = vld [vmem:[#allocation2 + $0x8] sm:$0xff]
        %v5459 = vld [vmem:[#allocation2 + $0x10] sm:$0xff]
        %v5460 = vld [vmem:[#allocation2 + $0x18] sm:$0xff]
        %v5461 = vld [vmem:[#allocation2 + $0x28] sm:$0xff]
        %v5462 = vld [vmem:[#allocation2 + $0x30] sm:$0xff]
        %v5463 = vld [vmem:[#allocation2 + $0x38] sm:$0xff]
        %v5464 = vld [vmem:[#allocation2 + $0x48] sm:$0xff]
        %v5465 = vld [vmem:[#allocation2 + $0x50] sm:$0xff]
        %v5466 = vld [vmem:[#allocation2 + $0x58] sm:$0xff]
        %v5467 = vld [vmem:[#allocation2 + $0x68] sm:$0xff]
        %v5468 = vld [vmem:[#allocation2 + $0x70] sm:$0xff]
        %v5469 = vld [vmem:[#allocation2 + $0x78] sm:$0xff]
        %v5470 = vld [vmem:[#allocation2 + $0x88] sm:$0xff]
        %v5471 = vld [vmem:[#allocation2 + $0x90] sm:$0xff]
        %v5472 = vld [vmem:[#allocation2 + $0x98] sm:$0xff]
        %v5473 = vld [vmem:[#allocation2 + $0xa8] sm:$0xff]
        %v5474 = vld [vmem:[#allocation2 + $0xb0] sm:$0xff]
        %v5475 = vld [vmem:[#allocation2 + $0xb8] sm:$0xff]
        %v5476 = vld [vmem:[#allocation2 + $0xc8] sm:$0xff]
        %v5477 = vld [vmem:[#allocation2 + $0xd0] sm:$0xff]
        %v5478 = vld [vmem:[#allocation2 + $0xd8] sm:$0xff]
        %v5479 = vld [vmem:[#allocation2 + $0xe8] sm:$0xff]
        %v5480 = vld [vmem:[#allocation2 + $0xf0] sm:$0xff]
        %v5481 = vld [vmem:[#allocation2 + $0xf8] sm:$0xff]
        %v5482 = vmul.f32 %v5458, %v748
        %v5483 = vmul.f32 %v5459, %v751
        %v5484 = vmul.f32 %v5460, %v750
        %v5485 = vmul.f32 %v5461, %v748
        %v5486 = vmul.f32 %v5462, %v751
        %v5487 = vmul.f32 %v5463, %v750
        %v5488 = vmul.f32 %v5464, %v748
        %v5489 = vmul.f32 %v5465, %v751
        %v5490 = vmul.f32 %v5466, %v750
        %v5491 = vmul.f32 %v5467, %v748
        %v5492 = vmul.f32 %v5468, %v751
        %v5493 = vmul.f32 %v5469, %v750
        %v5494 = vmul.f32 %v5470, %v748
        %v5495 = vmul.f32 %v5471, %v751
        %v5496 = vmul.f32 %v5472, %v750
        %v5497 = vmul.f32 %v5473, %v748
        %v5498 = vmul.f32 %v5474, %v751
        %v5499 = vmul.f32 %v5475, %v750
        %v5500 = vmul.f32 %v5476, %v748
        %v5501 = vmul.f32 %v5477, %v751
        %v5502 = vmul.f32 %v5478, %v750
        %v5503 = vmul.f32 %v5479, %v748
        %v5504 = vmul.f32 %v5480, %v751
        %v5505 = vmul.f32 %v5481, %v750
        %5530 = vrot.lane.b32.xlu0 %v5482, 113
        %v5531 = vpop.permute.xlu0 %5530
        %5532 = vrot.lane.b32.xlu0 %v5483, 113
        %v5533 = vpop.permute.xlu0 %5532
        %5534 = vrot.lane.b32.xlu0 %v5484, 113
        %v5535 = vpop.permute.xlu0 %5534
        %5536 = vrot.lane.b32.xlu0 %v5485, 113
        %v5537 = vpop.permute.xlu0 %5536
        %5538 = vrot.lane.b32.xlu0 %v5486, 113
        %v5539 = vpop.permute.xlu0 %5538
        %5540 = vrot.lane.b32.xlu0 %v5487, 113
        %v5541 = vpop.permute.xlu0 %5540
        %5542 = vrot.lane.b32.xlu0 %v5488, 113
        %v5543 = vpop.permute.xlu0 %5542
        %5544 = vrot.lane.b32.xlu0 %v5489, 113
        %v5545 = vpop.permute.xlu0 %5544
        %5546 = vrot.lane.b32.xlu0 %v5490, 113
        %v5547 = vpop.permute.xlu0 %5546
        %5548 = vrot.lane.b32.xlu0 %v5491, 113
        %v5549 = vpop.permute.xlu0 %5548
        %5550 = vrot.lane.b32.xlu0 %v5492, 113
        %v5551 = vpop.permute.xlu0 %5550
        %5552 = vrot.lane.b32.xlu0 %v5493, 113
        %v5553 = vpop.permute.xlu0 %5552
        %5554 = vrot.lane.b32.xlu0 %v5494, 113
        %v5555 = vpop.permute.xlu0 %5554
        %5556 = vrot.lane.b32.xlu0 %v5495, 113
        %v5557 = vpop.permute.xlu0 %5556
        %5558 = vrot.lane.b32.xlu0 %v5496, 113
        %v5559 = vpop.permute.xlu0 %5558
        %5560 = vrot.lane.b32.xlu0 %v5497, 113
        %v5561 = vpop.permute.xlu0 %5560
        %5562 = vrot.lane.b32.xlu0 %v5498, 113
        %v5563 = vpop.permute.xlu0 %5562
        %5564 = vrot.lane.b32.xlu0 %v5499, 113
        %v5565 = vpop.permute.xlu0 %5564
        %5566 = vrot.lane.b32.xlu0 %v5500, 113
        %v5567 = vpop.permute.xlu0 %5566
        %5568 = vrot.lane.b32.xlu0 %v5501, 113
        %v5569 = vpop.permute.xlu0 %5568
        %5570 = vrot.lane.b32.xlu0 %v5502, 113
        %v5571 = vpop.permute.xlu0 %5570
        %5572 = vrot.lane.b32.xlu0 %v5503, 113
        %v5573 = vpop.permute.xlu0 %5572
        %5574 = vrot.lane.b32.xlu0 %v5504, 113
        %v5575 = vpop.permute.xlu0 %5574
        %5576 = vrot.lane.b32.xlu0 %v5505, 113
        %v5577 = vpop.permute.xlu0 %5576
        %v5578 = vsel %vm589, %v5531, %v5533
        %v5579 = vsel %vm589, %v5533, %v5535
        %v5580 = vsel %vm589, %v5537, %v5539
        %v5581 = vsel %vm589, %v5539, %v5541
        %v5582 = vsel %vm589, %v5543, %v5545
        %v5583 = vsel %vm589, %v5545, %v5547
        %v5584 = vsel %vm589, %v5549, %v5551
        %v5585 = vsel %vm589, %v5551, %v5553
        %v5586 = vsel %vm589, %v5555, %v5557
        %v5587 = vsel %vm589, %v5557, %v5559
        %v5588 = vsel %vm589, %v5561, %v5563
        %v5589 = vsel %vm589, %v5563, %v5565
        %v5590 = vsel %vm589, %v5567, %v5569
        %v5591 = vsel %vm589, %v5569, %v5571
        %v5592 = vsel %vm589, %v5573, %v5575
        %v5593 = vsel %vm589, %v5575, %v5577
        %5610 = vst [vmem:[#allocation3 + $0x300] sm:$0xff] %v5578
        %5611 = vst [vmem:[#allocation3 + $0x308] sm:$0xff] %v5579
        %5612 = vst [vmem:[#allocation3 + $0x310] sm:$0xff] %v5580
        %5613 = vst [vmem:[#allocation3 + $0x318] sm:$0xff] %v5581
        %5614 = vst [vmem:[#allocation3 + $0x320] sm:$0xff] %v5582
        %5615 = vst [vmem:[#allocation3 + $0x328] sm:$0xff] %v5583
        %5616 = vst [vmem:[#allocation3 + $0x330] sm:$0xff] %v5584
        %5617 = vst [vmem:[#allocation3 + $0x338] sm:$0xff] %v5585
        %5618 = vst [vmem:[#allocation3 + $0x340] sm:$0xff] %v5586
        %5619 = vst [vmem:[#allocation3 + $0x348] sm:$0xff] %v5587
        %5620 = vst [vmem:[#allocation3 + $0x350] sm:$0xff] %v5588
        %5621 = vst [vmem:[#allocation3 + $0x358] sm:$0xff] %v5589
        %5622 = vst [vmem:[#allocation3 + $0x360] sm:$0xff] %v5590
        %5623 = vst [vmem:[#allocation3 + $0x368] sm:$0xff] %v5591
        %5624 = vst [vmem:[#allocation3 + $0x370] sm:$0xff] %v5592
        %5625 = vst [vmem:[#allocation3 + $0x378] sm:$0xff] %v5593
        %v5626 = vld [vmem:[#allocation2 + $0x8] sm:$0xff]
        %v5627 = vld [vmem:[#allocation2 + $0x10] sm:$0xff]
        %v5628 = vld [vmem:[#allocation2 + $0x18] sm:$0xff]
        %v5629 = vld [vmem:[#allocation2 + $0x28] sm:$0xff]
        %v5630 = vld [vmem:[#allocation2 + $0x30] sm:$0xff]
        %v5631 = vld [vmem:[#allocation2 + $0x38] sm:$0xff]
        %v5632 = vld [vmem:[#allocation2 + $0x48] sm:$0xff]
        %v5633 = vld [vmem:[#allocation2 + $0x50] sm:$0xff]
        %v5634 = vld [vmem:[#allocation2 + $0x58] sm:$0xff]
        %v5635 = vld [vmem:[#allocation2 + $0x68] sm:$0xff]
        %v5636 = vld [vmem:[#allocation2 + $0x70] sm:$0xff]
        %v5637 = vld [vmem:[#allocation2 + $0x78] sm:$0xff]
        %v5638 = vld [vmem:[#allocation2 + $0x88] sm:$0xff]
        %v5639 = vld [vmem:[#allocation2 + $0x90] sm:$0xff]
        %v5640 = vld [vmem:[#allocation2 + $0x98] sm:$0xff]
        %v5641 = vld [vmem:[#allocation2 + $0xa8] sm:$0xff]
        %v5642 = vld [vmem:[#allocation2 + $0xb0] sm:$0xff]
        %v5643 = vld [vmem:[#allocation2 + $0xb8] sm:$0xff]
        %v5644 = vld [vmem:[#allocation2 + $0xc8] sm:$0xff]
        %v5645 = vld [vmem:[#allocation2 + $0xd0] sm:$0xff]
        %v5646 = vld [vmem:[#allocation2 + $0xd8] sm:$0xff]
        %v5647 = vld [vmem:[#allocation2 + $0xe8] sm:$0xff]
        %v5648 = vld [vmem:[#allocation2 + $0xf0] sm:$0xff]
        %v5649 = vld [vmem:[#allocation2 + $0xf8] sm:$0xff]
        %5674 = vrot.lane.b32.xlu0 %v5626, 112
        %v5675 = vpop.permute.xlu0 %5674
        %5676 = vrot.lane.b32.xlu0 %v5627, 112
        %v5677 = vpop.permute.xlu0 %5676
        %5678 = vrot.lane.b32.xlu0 %v5628, 112
        %v5679 = vpop.permute.xlu0 %5678
        %5680 = vrot.lane.b32.xlu0 %v5629, 112
        %v5681 = vpop.permute.xlu0 %5680
        %5682 = vrot.lane.b32.xlu0 %v5630, 112
        %v5683 = vpop.permute.xlu0 %5682
        %5684 = vrot.lane.b32.xlu0 %v5631, 112
        %v5685 = vpop.permute.xlu0 %5684
        %5686 = vrot.lane.b32.xlu0 %v5632, 112
        %v5687 = vpop.permute.xlu0 %5686
        %5688 = vrot.lane.b32.xlu0 %v5633, 112
        %v5689 = vpop.permute.xlu0 %5688
        %5690 = vrot.lane.b32.xlu0 %v5634, 112
        %v5691 = vpop.permute.xlu0 %5690
        %5692 = vrot.lane.b32.xlu0 %v5635, 112
        %v5693 = vpop.permute.xlu0 %5692
        %5694 = vrot.lane.b32.xlu0 %v5636, 112
        %v5695 = vpop.permute.xlu0 %5694
        %5696 = vrot.lane.b32.xlu0 %v5637, 112
        %v5697 = vpop.permute.xlu0 %5696
        %5698 = vrot.lane.b32.xlu0 %v5638, 112
        %v5699 = vpop.permute.xlu0 %5698
        %5700 = vrot.lane.b32.xlu0 %v5639, 112
        %v5701 = vpop.permute.xlu0 %5700
        %5702 = vrot.lane.b32.xlu0 %v5640, 112
        %v5703 = vpop.permute.xlu0 %5702
        %5704 = vrot.lane.b32.xlu0 %v5641, 112
        %v5705 = vpop.permute.xlu0 %5704
        %5706 = vrot.lane.b32.xlu0 %v5642, 112
        %v5707 = vpop.permute.xlu0 %5706
        %5708 = vrot.lane.b32.xlu0 %v5643, 112
        %v5709 = vpop.permute.xlu0 %5708
        %5710 = vrot.lane.b32.xlu0 %v5644, 112
        %v5711 = vpop.permute.xlu0 %5710
        %5712 = vrot.lane.b32.xlu0 %v5645, 112
        %v5713 = vpop.permute.xlu0 %5712
        %5714 = vrot.lane.b32.xlu0 %v5646, 112
        %v5715 = vpop.permute.xlu0 %5714
        %5716 = vrot.lane.b32.xlu0 %v5647, 112
        %v5717 = vpop.permute.xlu0 %5716
        %5718 = vrot.lane.b32.xlu0 %v5648, 112
        %v5719 = vpop.permute.xlu0 %5718
        %5720 = vrot.lane.b32.xlu0 %v5649, 112
        %v5721 = vpop.permute.xlu0 %5720
        %v5722 = vsel %vm815, %v5675, %v5677
        %v5723 = vsel %vm815, %v5677, %v5679
        %v5724 = vsel %vm815, %v5681, %v5683
        %v5725 = vsel %vm815, %v5683, %v5685
        %v5726 = vsel %vm815, %v5687, %v5689
        %v5727 = vsel %vm815, %v5689, %v5691
        %v5728 = vsel %vm815, %v5693, %v5695
        %v5729 = vsel %vm815, %v5695, %v5697
        %v5730 = vsel %vm815, %v5699, %v5701
        %v5731 = vsel %vm815, %v5701, %v5703
        %v5732 = vsel %vm815, %v5705, %v5707
        %v5733 = vsel %vm815, %v5707, %v5709
        %v5734 = vsel %vm815, %v5711, %v5713
        %v5735 = vsel %vm815, %v5713, %v5715
        %v5736 = vsel %vm815, %v5717, %v5719
        %v5737 = vsel %vm815, %v5719, %v5721
        %5754 = vst [vmem:[#allocation3 + $0x380] sm:$0xff] %v5722
        %5755 = vst [vmem:[#allocation3 + $0x388] sm:$0xff] %v5723
        %5756 = vst [vmem:[#allocation3 + $0x390] sm:$0xff] %v5724
        %5757 = vst [vmem:[#allocation3 + $0x398] sm:$0xff] %v5725
        %5758 = vst [vmem:[#allocation3 + $0x3a0] sm:$0xff] %v5726
        %5759 = vst [vmem:[#allocation3 + $0x3a8] sm:$0xff] %v5727
        %5760 = vst [vmem:[#allocation3 + $0x3b0] sm:$0xff] %v5728
        %5761 = vst [vmem:[#allocation3 + $0x3b8] sm:$0xff] %v5729
        %5762 = vst [vmem:[#allocation3 + $0x3c0] sm:$0xff] %v5730
        %5763 = vst [vmem:[#allocation3 + $0x3c8] sm:$0xff] %v5731
        %5764 = vst [vmem:[#allocation3 + $0x3d0] sm:$0xff] %v5732
        %5765 = vst [vmem:[#allocation3 + $0x3d8] sm:$0xff] %v5733
        %5766 = vst [vmem:[#allocation3 + $0x3e0] sm:$0xff] %v5734
        %5767 = vst [vmem:[#allocation3 + $0x3e8] sm:$0xff] %v5735
        %5768 = vst [vmem:[#allocation3 + $0x3f0] sm:$0xff] %v5736
        %5769 = vst [vmem:[#allocation3 + $0x3f8] sm:$0xff] %v5737
        %v5770 = vld [vmem:[#allocation2 + $0x8] sm:$0xff]
        %v5771 = vld [vmem:[#allocation2 + $0x10] sm:$0xff]
        %v5772 = vld [vmem:[#allocation2 + $0x18] sm:$0xff]
        %v5773 = vld [vmem:[#allocation2 + $0x28] sm:$0xff]
        %v5774 = vld [vmem:[#allocation2 + $0x30] sm:$0xff]
        %v5775 = vld [vmem:[#allocation2 + $0x38] sm:$0xff]
        %v5776 = vld [vmem:[#allocation2 + $0x48] sm:$0xff]
        %v5777 = vld [vmem:[#allocation2 + $0x50] sm:$0xff]
        %v5778 = vld [vmem:[#allocation2 + $0x58] sm:$0xff]
        %v5779 = vld [vmem:[#allocation2 + $0x68] sm:$0xff]
        %v5780 = vld [vmem:[#allocation2 + $0x70] sm:$0xff]
        %v5781 = vld [vmem:[#allocation2 + $0x78] sm:$0xff]
        %v5782 = vld [vmem:[#allocation2 + $0x88] sm:$0xff]
        %v5783 = vld [vmem:[#allocation2 + $0x90] sm:$0xff]
        %v5784 = vld [vmem:[#allocation2 + $0x98] sm:$0xff]
        %v5785 = vld [vmem:[#allocation2 + $0xa8] sm:$0xff]
        %v5786 = vld [vmem:[#allocation2 + $0xb0] sm:$0xff]
        %v5787 = vld [vmem:[#allocation2 + $0xb8] sm:$0xff]
        %v5788 = vld [vmem:[#allocation2 + $0xc8] sm:$0xff]
        %v5789 = vld [vmem:[#allocation2 + $0xd0] sm:$0xff]
        %v5790 = vld [vmem:[#allocation2 + $0xd8] sm:$0xff]
        %v5791 = vld [vmem:[#allocation2 + $0xe8] sm:$0xff]
        %v5792 = vld [vmem:[#allocation2 + $0xf0] sm:$0xff]
        %v5793 = vld [vmem:[#allocation2 + $0xf8] sm:$0xff]
        %v5794 = vmul.f32 %v5770, %v835
        %v5795 = vmul.f32 %v5771, %v838
        %v5796 = vmul.f32 %v5772, %v837
        %v5797 = vmul.f32 %v5773, %v835
        %v5798 = vmul.f32 %v5774, %v838
        %v5799 = vmul.f32 %v5775, %v837
        %v5800 = vmul.f32 %v5776, %v835
        %v5801 = vmul.f32 %v5777, %v838
        %v5802 = vmul.f32 %v5778, %v837
        %v5803 = vmul.f32 %v5779, %v835
        %v5804 = vmul.f32 %v5780, %v838
        %v5805 = vmul.f32 %v5781, %v837
        %v5806 = vmul.f32 %v5782, %v835
        %v5807 = vmul.f32 %v5783, %v838
        %v5808 = vmul.f32 %v5784, %v837
        %v5809 = vmul.f32 %v5785, %v835
        %v5810 = vmul.f32 %v5786, %v838
        %v5811 = vmul.f32 %v5787, %v837
        %v5812 = vmul.f32 %v5788, %v835
        %v5813 = vmul.f32 %v5789, %v838
        %v5814 = vmul.f32 %v5790, %v837
        %v5815 = vmul.f32 %v5791, %v835
        %v5816 = vmul.f32 %v5792, %v838
        %v5817 = vmul.f32 %v5793, %v837
        %5842 = vrot.lane.b32.xlu0 %v5794, 111
        %v5843 = vpop.permute.xlu0 %5842
        %5844 = vrot.lane.b32.xlu0 %v5795, 111
        %v5845 = vpop.permute.xlu0 %5844
        %5846 = vrot.lane.b32.xlu0 %v5796, 111
        %v5847 = vpop.permute.xlu0 %5846
        %5848 = vrot.lane.b32.xlu0 %v5797, 111
        %v5849 = vpop.permute.xlu0 %5848
        %5850 = vrot.lane.b32.xlu0 %v5798, 111
        %v5851 = vpop.permute.xlu0 %5850
        %5852 = vrot.lane.b32.xlu0 %v5799, 111
        %v5853 = vpop.permute.xlu0 %5852
        %5854 = vrot.lane.b32.xlu0 %v5800, 111
        %v5855 = vpop.permute.xlu0 %5854
        %5856 = vrot.lane.b32.xlu0 %v5801, 111
        %v5857 = vpop.permute.xlu0 %5856
        %5858 = vrot.lane.b32.xlu0 %v5802, 111
        %v5859 = vpop.permute.xlu0 %5858
        %5860 = vrot.lane.b32.xlu0 %v5803, 111
        %v5861 = vpop.permute.xlu0 %5860
        %5862 = vrot.lane.b32.xlu0 %v5804, 111
        %v5863 = vpop.permute.xlu0 %5862
        %5864 = vrot.lane.b32.xlu0 %v5805, 111
        %v5865 = vpop.permute.xlu0 %5864
        %5866 = vrot.lane.b32.xlu0 %v5806, 111
        %v5867 = vpop.permute.xlu0 %5866
        %5868 = vrot.lane.b32.xlu0 %v5807, 111
        %v5869 = vpop.permute.xlu0 %5868
        %5870 = vrot.lane.b32.xlu0 %v5808, 111
        %v5871 = vpop.permute.xlu0 %5870
        %5872 = vrot.lane.b32.xlu0 %v5809, 111
        %v5873 = vpop.permute.xlu0 %5872
        %5874 = vrot.lane.b32.xlu0 %v5810, 111
        %v5875 = vpop.permute.xlu0 %5874
        %5876 = vrot.lane.b32.xlu0 %v5811, 111
        %v5877 = vpop.permute.xlu0 %5876
        %5878 = vrot.lane.b32.xlu0 %v5812, 111
        %v5879 = vpop.permute.xlu0 %5878
        %5880 = vrot.lane.b32.xlu0 %v5813, 111
        %v5881 = vpop.permute.xlu0 %5880
        %5882 = vrot.lane.b32.xlu0 %v5814, 111
        %v5883 = vpop.permute.xlu0 %5882
        %5884 = vrot.lane.b32.xlu0 %v5815, 111
        %v5885 = vpop.permute.xlu0 %5884
        %5886 = vrot.lane.b32.xlu0 %v5816, 111
        %v5887 = vpop.permute.xlu0 %5886
        %5888 = vrot.lane.b32.xlu0 %v5817, 111
        %v5889 = vpop.permute.xlu0 %5888
        %v5890 = vsel %vm491, %v5843, %v5845
        %v5891 = vsel %vm491, %v5845, %v5847
        %v5892 = vsel %vm491, %v5849, %v5851
        %v5893 = vsel %vm491, %v5851, %v5853
        %v5894 = vsel %vm491, %v5855, %v5857
        %v5895 = vsel %vm491, %v5857, %v5859
        %v5896 = vsel %vm491, %v5861, %v5863
        %v5897 = vsel %vm491, %v5863, %v5865
        %v5898 = vsel %vm491, %v5867, %v5869
        %v5899 = vsel %vm491, %v5869, %v5871
        %v5900 = vsel %vm491, %v5873, %v5875
        %v5901 = vsel %vm491, %v5875, %v5877
        %v5902 = vsel %vm491, %v5879, %v5881
        %v5903 = vsel %vm491, %v5881, %v5883
        %v5904 = vsel %vm491, %v5885, %v5887
        %v5905 = vsel %vm491, %v5887, %v5889
        %5922 = vst [vmem:[#allocation3 + $0x400] sm:$0xff] %v5890
        %5923 = vst [vmem:[#allocation3 + $0x408] sm:$0xff] %v5891
        %5924 = vst [vmem:[#allocation3 + $0x410] sm:$0xff] %v5892
        %5925 = vst [vmem:[#allocation3 + $0x418] sm:$0xff] %v5893
        %5926 = vst [vmem:[#allocation3 + $0x420] sm:$0xff] %v5894
        %5927 = vst [vmem:[#allocation3 + $0x428] sm:$0xff] %v5895
        %5928 = vst [vmem:[#allocation3 + $0x430] sm:$0xff] %v5896
        %5929 = vst [vmem:[#allocation3 + $0x438] sm:$0xff] %v5897
        %5930 = vst [vmem:[#allocation3 + $0x440] sm:$0xff] %v5898
        %5931 = vst [vmem:[#allocation3 + $0x448] sm:$0xff] %v5899
        %5932 = vst [vmem:[#allocation3 + $0x450] sm:$0xff] %v5900
        %5933 = vst [vmem:[#allocation3 + $0x458] sm:$0xff] %v5901
        %5934 = vst [vmem:[#allocation3 + $0x460] sm:$0xff] %v5902
        %5935 = vst [vmem:[#allocation3 + $0x468] sm:$0xff] %v5903
        %5936 = vst [vmem:[#allocation3 + $0x470] sm:$0xff] %v5904
        %5937 = vst [vmem:[#allocation3 + $0x478] sm:$0xff] %v5905
        %v5938 = vld [vmem:[#allocation11] sm:$0xff]
        %v5939 = vld [vmem:[#allocation11 + $0x8] sm:$0xff]
        %v5940 = vld [vmem:[#allocation11 + $0x10] sm:$0xff]
        %v5941 = vld [vmem:[#allocation11 + $0x18] sm:$0xff]
        %v5942 = vld [vmem:[#allocation11 + $0x20] sm:$0xff]
        %v5943 = vld [vmem:[#allocation11 + $0x28] sm:$0xff]
        %v5944 = vld [vmem:[#allocation11 + $0x30] sm:$0xff]
        %v5945 = vld [vmem:[#allocation11 + $0x38] sm:$0xff]
        %v5946 = vld [vmem:[#allocation11 + $0x40] sm:$0xff]
        %v5947 = vld [vmem:[#allocation11 + $0x48] sm:$0xff]
        %v5948 = vld [vmem:[#allocation11 + $0x50] sm:$0xff]
        %v5949 = vld [vmem:[#allocation11 + $0x58] sm:$0xff]
        %v5950 = vld [vmem:[#allocation11 + $0x60] sm:$0xff]
        %v5951 = vld [vmem:[#allocation11 + $0x68] sm:$0xff]
        %v5952 = vld [vmem:[#allocation11 + $0x70] sm:$0xff]
        %v5953 = vld [vmem:[#allocation11 + $0x78] sm:$0xff]
        %v5954 = vld [vmem:[#allocation11 + $0x80] sm:$0xff]
        %v5955 = vld [vmem:[#allocation11 + $0x88] sm:$0xff]
        %v5956 = vld [vmem:[#allocation11 + $0x90] sm:$0xff]
        %v5957 = vld [vmem:[#allocation11 + $0x98] sm:$0xff]
        %v5958 = vld [vmem:[#allocation11 + $0xa0] sm:$0xff]
        %v5959 = vld [vmem:[#allocation11 + $0xa8] sm:$0xff]
        %v5960 = vld [vmem:[#allocation11 + $0xb0] sm:$0xff]
        %v5961 = vld [vmem:[#allocation11 + $0xb8] sm:$0xff]
        %v5962 = vld [vmem:[#allocation11 + $0xc0] sm:$0xff]
        %v5963 = vld [vmem:[#allocation11 + $0xc8] sm:$0xff]
        %v5964 = vld [vmem:[#allocation11 + $0xd0] sm:$0xff]
        %v5965 = vld [vmem:[#allocation11 + $0xd8] sm:$0xff]
        %v5966 = vld [vmem:[#allocation11 + $0xe0] sm:$0xff]
        %v5967 = vld [vmem:[#allocation11 + $0xe8] sm:$0xff]
        %v5968 = vld [vmem:[#allocation3] sm:$0xff]
        %v5969 = vld [vmem:[#allocation3 + $0x8] sm:$0xff]
        %v5970 = vld [vmem:[#allocation3 + $0x10] sm:$0xff]
        %v5971 = vld [vmem:[#allocation3 + $0x18] sm:$0xff]
        %v5972 = vld [vmem:[#allocation3 + $0x20] sm:$0xff]
        %v5973 = vld [vmem:[#allocation3 + $0x28] sm:$0xff]
        %v5974 = vld [vmem:[#allocation3 + $0x30] sm:$0xff]
        %v5975 = vld [vmem:[#allocation3 + $0x38] sm:$0xff]
        %v5976 = vld [vmem:[#allocation3 + $0x40] sm:$0xff]
        %v5977 = vld [vmem:[#allocation3 + $0x48] sm:$0xff]
        %v5978 = vld [vmem:[#allocation3 + $0x50] sm:$0xff]
        %v5979 = vld [vmem:[#allocation3 + $0x58] sm:$0xff]
        %v5980 = vld [vmem:[#allocation3 + $0x60] sm:$0xff]
        %v5981 = vld [vmem:[#allocation3 + $0x68] sm:$0xff]
        %v5982 = vld [vmem:[#allocation3 + $0x70] sm:$0xff]
        %v5983 = vld [vmem:[#allocation3 + $0x78] sm:$0xff]
        %v5984 = vld [vmem:[#allocation3 + $0x80] sm:$0xff]
        %v5985 = vld [vmem:[#allocation3 + $0x88] sm:$0xff]
        %v5986 = vld [vmem:[#allocation3 + $0x90] sm:$0xff]
        %v5987 = vld [vmem:[#allocation3 + $0x98] sm:$0xff]
        %v5988 = vld [vmem:[#allocation3 + $0xa0] sm:$0xff]
        %v5989 = vld [vmem:[#allocation3 + $0xa8] sm:$0xff]
        %v5990 = vld [vmem:[#allocation3 + $0xb0] sm:$0xff]
        %v5991 = vld [vmem:[#allocation3 + $0xb8] sm:$0xff]
        %v5992 = vld [vmem:[#allocation3 + $0xc0] sm:$0xff]
        %v5993 = vld [vmem:[#allocation3 + $0xc8] sm:$0xff]
        %v5994 = vld [vmem:[#allocation3 + $0xd0] sm:$0xff]
        %v5995 = vld [vmem:[#allocation3 + $0xd8] sm:$0xff]
        %v5996 = vld [vmem:[#allocation3 + $0xe0] sm:$0xff]
        %v5997 = vld [vmem:[#allocation3 + $0xe8] sm:$0xff]
        %v5998 = vld [vmem:[#allocation3 + $0xf0] sm:$0xff]
        %v5999 = vld [vmem:[#allocation3 + $0xf8] sm:$0xff]
        %v6000 = vld [vmem:[#allocation3 + $0x100] sm:$0xff]
        %v6001 = vld [vmem:[#allocation3 + $0x108] sm:$0xff]
        %v6002 = vld [vmem:[#allocation3 + $0x110] sm:$0xff]
        %v6003 = vld [vmem:[#allocation3 + $0x118] sm:$0xff]
        %v6004 = vld [vmem:[#allocation3 + $0x120] sm:$0xff]
        %v6005 = vld [vmem:[#allocation3 + $0x128] sm:$0xff]
        %v6006 = vld [vmem:[#allocation3 + $0x130] sm:$0xff]
        %v6007 = vld [vmem:[#allocation3 + $0x138] sm:$0xff]
        %v6008 = vld [vmem:[#allocation3 + $0x140] sm:$0xff]
        %v6009 = vld [vmem:[#allocation3 + $0x148] sm:$0xff]
        %v6010 = vld [vmem:[#allocation3 + $0x150] sm:$0xff]
        %v6011 = vld [vmem:[#allocation3 + $0x158] sm:$0xff]
        %v6012 = vld [vmem:[#allocation3 + $0x160] sm:$0xff]
        %v6013 = vld [vmem:[#allocation3 + $0x168] sm:$0xff]
        %v6014 = vld [vmem:[#allocation3 + $0x170] sm:$0xff]
        %v6015 = vld [vmem:[#allocation3 + $0x178] sm:$0xff]
        %v6016 = vld [vmem:[#allocation3 + $0x180] sm:$0xff]
        %v6017 = vld [vmem:[#allocation3 + $0x188] sm:$0xff]
        %v6018 = vld [vmem:[#allocation3 + $0x190] sm:$0xff]
        %v6019 = vld [vmem:[#allocation3 + $0x198] sm:$0xff]
        %v6020 = vld [vmem:[#allocation3 + $0x1a0] sm:$0xff]
        %v6021 = vld [vmem:[#allocation3 + $0x1a8] sm:$0xff]
        %v6022 = vld [vmem:[#allocation3 + $0x1b0] sm:$0xff]
        %v6023 = vld [vmem:[#allocation3 + $0x1b8] sm:$0xff]
        %v6024 = vld [vmem:[#allocation3 + $0x1c0] sm:$0xff]
        %v6025 = vld [vmem:[#allocation3 + $0x1c8] sm:$0xff]
        %v6026 = vld [vmem:[#allocation3 + $0x1d0] sm:$0xff]
        %v6027 = vld [vmem:[#allocation3 + $0x1d8] sm:$0xff]
        %v6028 = vld [vmem:[#allocation3 + $0x1e0] sm:$0xff]
        %v6029 = vld [vmem:[#allocation3 + $0x1e8] sm:$0xff]
        %v6030 = vld [vmem:[#allocation3 + $0x1f0] sm:$0xff]
        %v6031 = vld [vmem:[#allocation3 + $0x1f8] sm:$0xff]
        %v6032 = vld [vmem:[#allocation3 + $0x200] sm:$0xff]
        %v6033 = vld [vmem:[#allocation3 + $0x208] sm:$0xff]
        %v6034 = vld [vmem:[#allocation3 + $0x210] sm:$0xff]
        %v6035 = vld [vmem:[#allocation3 + $0x218] sm:$0xff]
        %v6036 = vld [vmem:[#allocation3 + $0x220] sm:$0xff]
        %v6037 = vld [vmem:[#allocation3 + $0x228] sm:$0xff]
        %v6038 = vld [vmem:[#allocation3 + $0x230] sm:$0xff]
        %v6039 = vld [vmem:[#allocation3 + $0x238] sm:$0xff]
        %v6040 = vld [vmem:[#allocation3 + $0x240] sm:$0xff]
        %v6041 = vld [vmem:[#allocation3 + $0x248] sm:$0xff]
        %v6042 = vld [vmem:[#allocation3 + $0x250] sm:$0xff]
        %v6043 = vld [vmem:[#allocation3 + $0x258] sm:$0xff]
        %v6044 = vld [vmem:[#allocation3 + $0x260] sm:$0xff]
        %v6045 = vld [vmem:[#allocation3 + $0x268] sm:$0xff]
        %v6046 = vld [vmem:[#allocation3 + $0x270] sm:$0xff]
        %v6047 = vld [vmem:[#allocation3 + $0x278] sm:$0xff]
        %v6048 = vld [vmem:[#allocation3 + $0x280] sm:$0xff]
        %v6049 = vld [vmem:[#allocation3 + $0x288] sm:$0xff]
        %v6050 = vld [vmem:[#allocation3 + $0x290] sm:$0xff]
        %v6051 = vld [vmem:[#allocation3 + $0x298] sm:$0xff]
        %v6052 = vld [vmem:[#allocation3 + $0x2a0] sm:$0xff]
        %v6053 = vld [vmem:[#allocation3 + $0x2a8] sm:$0xff]
        %v6054 = vld [vmem:[#allocation3 + $0x2b0] sm:$0xff]
        %v6055 = vld [vmem:[#allocation3 + $0x2b8] sm:$0xff]
        %v6056 = vld [vmem:[#allocation3 + $0x2c0] sm:$0xff]
        %v6057 = vld [vmem:[#allocation3 + $0x2c8] sm:$0xff]
        %v6058 = vld [vmem:[#allocation3 + $0x2d0] sm:$0xff]
        %v6059 = vld [vmem:[#allocation3 + $0x2d8] sm:$0xff]
        %v6060 = vld [vmem:[#allocation3 + $0x2e0] sm:$0xff]
        %v6061 = vld [vmem:[#allocation3 + $0x2e8] sm:$0xff]
        %v6062 = vld [vmem:[#allocation3 + $0x2f0] sm:$0xff]
        %v6063 = vld [vmem:[#allocation3 + $0x2f8] sm:$0xff]
        %v6064 = vld [vmem:[#allocation3 + $0x300] sm:$0xff]
        %v6065 = vld [vmem:[#allocation3 + $0x308] sm:$0xff]
        %v6066 = vld [vmem:[#allocation3 + $0x310] sm:$0xff]
        %v6067 = vld [vmem:[#allocation3 + $0x318] sm:$0xff]
        %v6068 = vld [vmem:[#allocation3 + $0x320] sm:$0xff]
        %v6069 = vld [vmem:[#allocation3 + $0x328] sm:$0xff]
        %v6070 = vld [vmem:[#allocation3 + $0x330] sm:$0xff]
        %v6071 = vld [vmem:[#allocation3 + $0x338] sm:$0xff]
        %v6072 = vld [vmem:[#allocation3 + $0x340] sm:$0xff]
        %v6073 = vld [vmem:[#allocation3 + $0x348] sm:$0xff]
        %v6074 = vld [vmem:[#allocation3 + $0x350] sm:$0xff]
        %v6075 = vld [vmem:[#allocation3 + $0x358] sm:$0xff]
        %v6076 = vld [vmem:[#allocation3 + $0x360] sm:$0xff]
        %v6077 = vld [vmem:[#allocation3 + $0x368] sm:$0xff]
        %v6078 = vld [vmem:[#allocation3 + $0x370] sm:$0xff]
        %v6079 = vld [vmem:[#allocation3 + $0x378] sm:$0xff]
        %v6080 = vld [vmem:[#allocation3 + $0x380] sm:$0xff]
        %v6081 = vld [vmem:[#allocation3 + $0x388] sm:$0xff]
        %v6082 = vld [vmem:[#allocation3 + $0x390] sm:$0xff]
        %v6083 = vld [vmem:[#allocation3 + $0x398] sm:$0xff]
        %v6084 = vld [vmem:[#allocation3 + $0x3a0] sm:$0xff]
        %v6085 = vld [vmem:[#allocation3 + $0x3a8] sm:$0xff]
        %v6086 = vld [vmem:[#allocation3 + $0x3b0] sm:$0xff]
        %v6087 = vld [vmem:[#allocation3 + $0x3b8] sm:$0xff]
        %v6088 = vld [vmem:[#allocation3 + $0x3c0] sm:$0xff]
        %v6089 = vld [vmem:[#allocation3 + $0x3c8] sm:$0xff]
        %v6090 = vld [vmem:[#allocation3 + $0x3d0] sm:$0xff]
        %v6091 = vld [vmem:[#allocation3 + $0x3d8] sm:$0xff]
        %v6092 = vld [vmem:[#allocation3 + $0x3e0] sm:$0xff]
        %v6093 = vld [vmem:[#allocation3 + $0x3e8] sm:$0xff]
        %v6094 = vld [vmem:[#allocation3 + $0x3f0] sm:$0xff]
        %v6095 = vld [vmem:[#allocation3 + $0x3f8] sm:$0xff]
        %v6096 = vld [vmem:[#allocation3 + $0x400] sm:$0xff]
        %v6097 = vld [vmem:[#allocation3 + $0x408] sm:$0xff]
        %v6098 = vld [vmem:[#allocation3 + $0x410] sm:$0xff]
        %v6099 = vld [vmem:[#allocation3 + $0x418] sm:$0xff]
        %v6100 = vld [vmem:[#allocation3 + $0x420] sm:$0xff]
        %v6101 = vld [vmem:[#allocation3 + $0x428] sm:$0xff]
        %v6102 = vld [vmem:[#allocation3 + $0x430] sm:$0xff]
        %v6103 = vld [vmem:[#allocation3 + $0x438] sm:$0xff]
        %v6104 = vld [vmem:[#allocation3 + $0x440] sm:$0xff]
        %v6105 = vld [vmem:[#allocation3 + $0x448] sm:$0xff]
        %v6106 = vld [vmem:[#allocation3 + $0x450] sm:$0xff]
        %v6107 = vld [vmem:[#allocation3 + $0x458] sm:$0xff]
        %v6108 = vld [vmem:[#allocation3 + $0x460] sm:$0xff]
        %v6109 = vld [vmem:[#allocation3 + $0x468] sm:$0xff]
        %v6110 = vld [vmem:[#allocation3 + $0x470] sm:$0xff]
        %v6111 = vld [vmem:[#allocation3 + $0x478] sm:$0xff]
        %v6112 = vld [vmem:[%s9] sm:$0xff]
        %v6113 = vld [vmem:[%s9 + $0x8] sm:$0xff]
        %v6114 = vld [vmem:[%s9 + $0x10] sm:$0xff]
        %v6115 = vld [vmem:[%s9 + $0x18] sm:$0xff]
        %v6116 = vld [vmem:[%s9 + $0x20] sm:$0xff]
        %v6117 = vld [vmem:[%s9 + $0x28] sm:$0xff]
        %6119 = vset.pattern.permute.xlu0 0
        %6120 = vperm.xlu0 %6119, %v6112
        %v6121 = vpop.permute.xlu0 %6120
        %6124 = vset.pattern.permute.xlu0 0
        %6125 = vperm.xlu0 %6124, %v6113
        %v6126 = vpop.permute.xlu0 %6125
        %6129 = vset.pattern.permute.xlu0 0
        %6130 = vperm.xlu0 %6129, %v6114
        %v6131 = vpop.permute.xlu0 %6130
        %6134 = vset.pattern.permute.xlu0 0
        %6135 = vperm.xlu0 %6134, %v6115
        %v6136 = vpop.permute.xlu0 %6135
        %6139 = vset.pattern.permute.xlu0 0
        %6140 = vperm.xlu0 %6139, %v6116
        %v6141 = vpop.permute.xlu0 %6140
        %6144 = vset.pattern.permute.xlu0 0
        %6145 = vperm.xlu0 %6144, %v6117
        %v6146 = vpop.permute.xlu0 %6145
        %vm6148 = vcmask 523264
        %v6150 = vsel %vm6148, %v5942, 0
        %v6153 = vsel %vm6148, %v5947, 0
        %v6156 = vsel %vm6148, %v5952, 0
        %v6159 = vsel %vm6148, %v5957, 0
        %v6162 = vsel %vm6148, %v5962, 0
        %v6165 = vsel %vm6148, %v5967, 0
        %v6167 = vand.u32 %v5969, 4294901760
        %6168 = vmatprep.subr.mxu0 %v6167
        %v6169 = vand.u32 %v5968, 4294901760
        %6170 = vmatpush1.msra.mxu0 %v6169
        %v6171 = vand.u32 %v5971, 4294901760
        %6172 = vmatprep.subr.mxu0 %v6171
        %v6173 = vand.u32 %v5970, 4294901760
        %6174 = vmatpush1.msra.mxu0 %v6173
        %v6175 = vand.u32 %v5973, 4294901760
        %6176 = vmatprep.subr.mxu0 %v6175
        %v6177 = vand.u32 %v5972, 4294901760
        %6178 = vmatpush1.msra.mxu0 %v6177
        %v6179 = vand.u32 %v5975, 4294901760
        %6180 = vmatprep.subr.mxu0 %v6179
        %v6181 = vand.u32 %v5974, 4294901760
        %6182 = vmatpush1.msra.mxu0 %v6181
        %v6183 = vand.u32 %v5977, 4294901760
        %6184 = vmatprep.subr.mxu0 %v6183
        %v6185 = vand.u32 %v5976, 4294901760
        %6186 = vmatpush1.msra.mxu0 %v6185
        %v6187 = vand.u32 %v5979, 4294901760
        %6188 = vmatprep.subr.mxu0 %v6187
        %v6189 = vand.u32 %v5978, 4294901760
        %6190 = vmatpush1.msra.mxu0 %v6189
        %v6191 = vand.u32 %v5981, 4294901760
        %6192 = vmatprep.subr.mxu0 %v6191
        %v6193 = vand.u32 %v5980, 4294901760
        %6194 = vmatpush1.msra.mxu0 %v6193
        %v6195 = vand.u32 %v5983, 4294901760
        %6196 = vmatprep.subr.mxu0 %v6195
        %v6197 = vand.u32 %v5982, 4294901760
        %6198 = vmatpush1.msra.mxu0 %v6197
        %v6199 = vand.u32 %v5985, 4294901760
        %6200 = vmatprep.subr.mxu0 %v6199
        %v6201 = vand.u32 %v5984, 4294901760
        %6202 = vmatpush1.msra.mxu0 %v6201
        %v6203 = vand.u32 %v5987, 4294901760
        %6204 = vmatprep.subr.mxu0 %v6203
        %v6205 = vand.u32 %v5986, 4294901760
        %6206 = vmatpush1.msra.mxu0 %v6205
        %v6207 = vand.u32 %v5989, 4294901760
        %6208 = vmatprep.subr.mxu0 %v6207
        %v6209 = vand.u32 %v5988, 4294901760
        %6210 = vmatpush1.msra.mxu0 %v6209
        %v6211 = vand.u32 %v5991, 4294901760
        %6212 = vmatprep.subr.mxu0 %v6211
        %v6213 = vand.u32 %v5990, 4294901760
        %6214 = vmatpush1.msra.mxu0 %v6213
        %v6215 = vand.u32 %v5993, 4294901760
        %6216 = vmatprep.subr.mxu0 %v6215
        %v6217 = vand.u32 %v5992, 4294901760
        %6218 = vmatpush1.msra.mxu0 %v6217
        %v6219 = vand.u32 %v5995, 4294901760
        %6220 = vmatprep.subr.mxu0 %v6219
        %v6221 = vand.u32 %v5994, 4294901760
        %6222 = vmatpush1.msra.mxu0 %v6221
        %v6223 = vand.u32 %v5997, 4294901760
        %6224 = vmatprep.subr.mxu0 %v6223
        %v6225 = vand.u32 %v5996, 4294901760
        %6226 = vmatpush1.msra.mxu0 %v6225
        %v6227 = vand.u32 %v5999, 4294901760
        %6228 = vmatprep.subr.mxu0 %v6227
        %v6229 = vand.u32 %v5998, 4294901760
        %6230 = vmatpush1.msra.mxu0 %v6229
        %v6231 = vand.u32 %v6001, 4294901760
        %6232 = vmatprep.subr.mxu0 %v6231
        %v6233 = vand.u32 %v6000, 4294901760
        %6234 = vmatpush1.msra.mxu0 %v6233
        %v6235 = vand.u32 %v6003, 4294901760
        %6236 = vmatprep.subr.mxu0 %v6235
        %v6237 = vand.u32 %v6002, 4294901760
        %6238 = vmatpush1.msra.mxu0 %v6237
        %v6239 = vand.u32 %v6005, 4294901760
        %6240 = vmatprep.subr.mxu0 %v6239
        %v6241 = vand.u32 %v6004, 4294901760
        %6242 = vmatpush1.msra.mxu0 %v6241
        %v6243 = vand.u32 %v6007, 4294901760
        %6244 = vmatprep.subr.mxu0 %v6243
        %v6245 = vand.u32 %v6006, 4294901760
        %6246 = vmatpush1.msra.mxu0 %v6245
        %v6247 = vand.u32 %v6009, 4294901760
        %6248 = vmatprep.subr.mxu0 %v6247
        %v6249 = vand.u32 %v6008, 4294901760
        %6250 = vmatpush1.msra.mxu0 %v6249
        %v6251 = vand.u32 %v6011, 4294901760
        %6252 = vmatprep.subr.mxu0 %v6251
        %v6253 = vand.u32 %v6010, 4294901760
        %6254 = vmatpush1.msra.mxu0 %v6253
        %v6255 = vand.u32 %v6013, 4294901760
        %6256 = vmatprep.subr.mxu0 %v6255
        %v6257 = vand.u32 %v6012, 4294901760
        %6258 = vmatpush1.msra.mxu0 %v6257
        %v6259 = vand.u32 %v6015, 4294901760
        %6260 = vmatprep.subr.mxu0 %v6259
        %v6261 = vand.u32 %v6014, 4294901760
        %6262 = vmatpush1.msra.mxu0 %v6261
        %v6263 = vand.u32 %v6017, 4294901760
        %6264 = vmatprep.subr.mxu0 %v6263
        %v6265 = vand.u32 %v6016, 4294901760
        %6266 = vmatpush1.msra.mxu0 %v6265
        %v6267 = vand.u32 %v6019, 4294901760
        %6268 = vmatprep.subr.mxu0 %v6267
        %v6269 = vand.u32 %v6018, 4294901760
        %6270 = vmatpush1.msra.mxu0 %v6269
        %v6271 = vand.u32 %v6021, 4294901760
        %6272 = vmatprep.subr.mxu0 %v6271
        %v6273 = vand.u32 %v6020, 4294901760
        %6274 = vmatpush1.msra.mxu0 %v6273
        %v6275 = vand.u32 %v6023, 4294901760
        %6276 = vmatprep.subr.mxu0 %v6275
        %v6277 = vand.u32 %v6022, 4294901760
        %6278 = vmatpush1.msra.mxu0 %v6277
        %v6279 = vand.u32 %v6025, 4294901760
        %6280 = vmatprep.subr.mxu0 %v6279
        %v6281 = vand.u32 %v6024, 4294901760
        %6282 = vmatpush1.msra.mxu0 %v6281
        %v6283 = vand.u32 %v6027, 4294901760
        %6284 = vmatprep.subr.mxu0 %v6283
        %v6285 = vand.u32 %v6026, 4294901760
        %6286 = vmatpush1.msra.mxu0 %v6285
        %v6287 = vand.u32 %v6029, 4294901760
        %6288 = vmatprep.subr.mxu0 %v6287
        %v6289 = vand.u32 %v6028, 4294901760
        %6290 = vmatpush1.msra.mxu0 %v6289
        %v6291 = vand.u32 %v6031, 4294901760
        %6292 = vmatprep.subr.mxu0 %v6291
        %v6293 = vand.u32 %v6030, 4294901760
        %6294 = vmatpush1.msra.mxu0 %v6293
        %v6295 = vand.u32 %v5939, 4294901760
        %v6296 = vsub.f32 %v5939, %v6295
        %v6297 = vand.u32 %v6296, 4294901760
        %v6298 = vsub.f32 %v6296, %v6297
        %v6299 = vand.u32 %v6298, 4294901760
        %6300 = vmatprep.mubr.f32.mxu0 %v6299
        %v6301 = vand.u32 %v5938, 4294901760
        %v6302 = vsub.f32 %v5938, %v6301
        %v6303 = vand.u32 %v6302, 4294901760
        %v6304 = vsub.f32 %v6302, %v6303
        %v6305 = vand.u32 %v6304, 4294901760
        %6306 = vmatmul.mubr.f32.gmra.mrb[0].mxu0 %v6305
        %v6307 = vpop.f32.mrb[0].mxu0
        %v6308 = vadd.f32 %v6121, %v6307
        %v6309 = vpop.f32.mrb[0].mxu0
        %v6310 = vadd.f32 %v6121, %v6309
        %v6311 = vand.u32 %v5944, 4294901760
        %v6312 = vsub.f32 %v5944, %v6311
        %v6313 = vand.u32 %v6312, 4294901760
        %v6314 = vsub.f32 %v6312, %v6313
        %v6315 = vand.u32 %v6314, 4294901760
        %6316 = vmatprep.mubr.f32.mxu0 %v6315
        %v6317 = vand.u32 %v5943, 4294901760
        %v6318 = vsub.f32 %v5943, %v6317
        %v6319 = vand.u32 %v6318, 4294901760
        %v6320 = vsub.f32 %v6318, %v6319
        %v6321 = vand.u32 %v6320, 4294901760
        %6322 = vmatmul.mubr.f32.gmra.mrb[0].mxu0 %v6321
        %v6323 = vpop.f32.mrb[0].mxu0
        %v6324 = vadd.f32 %v6126, %v6323
        %v6325 = vpop.f32.mrb[0].mxu0
        %v6326 = vadd.f32 %v6126, %v6325
        %v6327 = vand.u32 %v5949, 4294901760
        %v6328 = vsub.f32 %v5949, %v6327
        %v6329 = vand.u32 %v6328, 4294901760
        %v6330 = vsub.f32 %v6328, %v6329
        %v6331 = vand.u32 %v6330, 4294901760
        %6332 = vmatprep.mubr.f32.mxu0 %v6331
        %v6333 = vand.u32 %v5948, 4294901760
        %v6334 = vsub.f32 %v5948, %v6333
        %v6335 = vand.u32 %v6334, 4294901760
        %v6336 = vsub.f32 %v6334, %v6335
        %v6337 = vand.u32 %v6336, 4294901760
        %6338 = vmatmul.mubr.f32.gmra.mrb[0].mxu0 %v6337
        %v6339 = vpop.f32.mrb[0].mxu0
        %v6340 = vadd.f32 %v6131, %v6339
        %v6341 = vpop.f32.mrb[0].mxu0
        %v6342 = vadd.f32 %v6131, %v6341
        %v6343 = vand.u32 %v5954, 4294901760
        %v6344 = vsub.f32 %v5954, %v6343
        %v6345 = vand.u32 %v6344, 4294901760
        %v6346 = vsub.f32 %v6344, %v6345
        %v6347 = vand.u32 %v6346, 4294901760
        %6348 = vmatprep.mubr.f32.mxu0 %v6347
        %v6349 = vand.u32 %v5953, 4294901760
        %v6350 = vsub.f32 %v5953, %v6349
        %v6351 = vand.u32 %v6350, 4294901760
        %v6352 = vsub.f32 %v6350, %v6351
        %v6353 = vand.u32 %v6352, 4294901760
        %6354 = vmatmul.mubr.f32.gmra.mrb[0].mxu0 %v6353
        %v6355 = vpop.f32.mrb[0].mxu0
        %v6356 = vadd.f32 %v6136, %v6355
        %v6357 = vpop.f32.mrb[0].mxu0
        %v6358 = vadd.f32 %v6136, %v6357
        %v6359 = vand.u32 %v5959, 4294901760
        %v6360 = vsub.f32 %v5959, %v6359
        %v6361 = vand.u32 %v6360, 4294901760
        %v6362 = vsub.f32 %v6360, %v6361
        %v6363 = vand.u32 %v6362, 4294901760
        %6364 = vmatprep.mubr.f32.mxu0 %v6363
        %v6365 = vand.u32 %v5958, 4294901760
        %v6366 = vsub.f32 %v5958, %v6365
        %v6367 = vand.u32 %v6366, 4294901760
        %v6368 = vsub.f32 %v6366, %v6367
        %v6369 = vand.u32 %v6368, 4294901760
        %6370 = vmatmul.mubr.f32.gmra.mrb[0].mxu0 %v6369
        %v6371 = vpop.f32.mrb[0].mxu0
        %v6372 = vadd.f32 %v6141, %v6371
        %v6373 = vpop.f32.mrb[0].mxu0
        %v6374 = vadd.f32 %v6141, %v6373
        %v6375 = vand.u32 %v5964, 4294901760
        %v6376 = vsub.f32 %v5964, %v6375
        %v6377 = vand.u32 %v6376, 4294901760
        %v6378 = vsub.f32 %v6376, %v6377
        %v6379 = vand.u32 %v6378, 4294901760
        %6380 = vmatprep.mubr.f32.mxu0 %v6379
        %v6381 = vand.u32 %v5963, 4294901760
        %v6382 = vsub.f32 %v5963, %v6381
        %v6383 = vand.u32 %v6382, 4294901760
        %v6384 = vsub.f32 %v6382, %v6383
        %v6385 = vand.u32 %v6384, 4294901760
        %6386 = vmatmul.mubr.f32.gmra.mrb[0].mxu0 %v6385
        %v6387 = vpop.f32.mrb[0].mxu0
        %v6388 = vadd.f32 %v6146, %v6387
        %v6389 = vpop.f32.mrb[0].mxu0
        %v6390 = vadd.f32 %v6146, %v6389
        %6391 = vdwg.mxu0
        %v6392 = vand.u32 %v5969, 4294901760
        %v6393 = vsub.f32 %v5969, %v6392
        %v6394 = vand.u32 %v6393, 4294901760
        %v6395 = vsub.f32 %v6393, %v6394
        %v6396 = vand.u32 %v6395, 4294901760
        %6397 = vmatprep.subr.mxu0 %v6396
        %v6398 = vand.u32 %v5968, 4294901760
        %v6399 = vsub.f32 %v5968, %v6398
        %v6400 = vand.u32 %v6399, 4294901760
        %v6401 = vsub.f32 %v6399, %v6400
        %v6402 = vand.u32 %v6401, 4294901760
        %6403 = vmatpush1.msra.mxu0 %v6402
        %v6404 = vand.u32 %v5971, 4294901760
        %v6405 = vsub.f32 %v5971, %v6404
        %v6406 = vand.u32 %v6405, 4294901760
        %v6407 = vsub.f32 %v6405, %v6406
        %v6408 = vand.u32 %v6407, 4294901760
        %6409 = vmatprep.subr.mxu0 %v6408
        %v6410 = vand.u32 %v5970, 4294901760
        %v6411 = vsub.f32 %v5970, %v6410
        %v6412 = vand.u32 %v6411, 4294901760
        %v6413 = vsub.f32 %v6411, %v6412
        %v6414 = vand.u32 %v6413, 4294901760
        %6415 = vmatpush1.msra.mxu0 %v6414
        %v6416 = vand.u32 %v5973, 4294901760
        %v6417 = vsub.f32 %v5973, %v6416
        %v6418 = vand.u32 %v6417, 4294901760
        %v6419 = vsub.f32 %v6417, %v6418
        %v6420 = vand.u32 %v6419, 4294901760
        %6421 = vmatprep.subr.mxu0 %v6420
        %v6422 = vand.u32 %v5972, 4294901760
        %v6423 = vsub.f32 %v5972, %v6422
        %v6424 = vand.u32 %v6423, 4294901760
        %v6425 = vsub.f32 %v6423, %v6424
        %v6426 = vand.u32 %v6425, 4294901760
        %6427 = vmatpush1.msra.mxu0 %v6426
        %v6428 = vand.u32 %v5975, 4294901760
        %v6429 = vsub.f32 %v5975, %v6428
        %v6430 = vand.u32 %v6429, 4294901760
        %v6431 = vsub.f32 %v6429, %v6430
        %v6432 = vand.u32 %v6431, 4294901760
        %6433 = vmatprep.subr.mxu0 %v6432
        %v6434 = vand.u32 %v5974, 4294901760
        %v6435 = vsub.f32 %v5974, %v6434
        %v6436 = vand.u32 %v6435, 4294901760
        %v6437 = vsub.f32 %v6435, %v6436
        %v6438 = vand.u32 %v6437, 4294901760
        %6439 = vmatpush1.msra.mxu0 %v6438
        %v6440 = vand.u32 %v5977, 4294901760
        %v6441 = vsub.f32 %v5977, %v6440
        %v6442 = vand.u32 %v6441, 4294901760
        %v6443 = vsub.f32 %v6441, %v6442
        %v6444 = vand.u32 %v6443, 4294901760
        %6445 = vmatprep.subr.mxu0 %v6444
        %v6446 = vand.u32 %v5976, 4294901760
        %v6447 = vsub.f32 %v5976, %v6446
        %v6448 = vand.u32 %v6447, 4294901760
        %v6449 = vsub.f32 %v6447, %v6448
        %v6450 = vand.u32 %v6449, 4294901760
        %6451 = vmatpush1.msra.mxu0 %v6450
        %v6452 = vand.u32 %v5979, 4294901760
        %v6453 = vsub.f32 %v5979, %v6452
        %v6454 = vand.u32 %v6453, 4294901760
        %v6455 = vsub.f32 %v6453, %v6454
        %v6456 = vand.u32 %v6455, 4294901760
        %6457 = vmatprep.subr.mxu0 %v6456
        %v6458 = vand.u32 %v5978, 4294901760
        %v6459 = vsub.f32 %v5978, %v6458
        %v6460 = vand.u32 %v6459, 4294901760
        %v6461 = vsub.f32 %v6459, %v6460
        %v6462 = vand.u32 %v6461, 4294901760
        %6463 = vmatpush1.msra.mxu0 %v6462
        %v6464 = vand.u32 %v5981, 4294901760
        %v6465 = vsub.f32 %v5981, %v6464
        %v6466 = vand.u32 %v6465, 4294901760
        %v6467 = vsub.f32 %v6465, %v6466
        %v6468 = vand.u32 %v6467, 4294901760
        %6469 = vmatprep.subr.mxu0 %v6468
        %v6470 = vand.u32 %v5980, 4294901760
        %v6471 = vsub.f32 %v5980, %v6470
        %v6472 = vand.u32 %v6471, 4294901760
        %v6473 = vsub.f32 %v6471, %v6472
        %v6474 = vand.u32 %v6473, 4294901760
        %6475 = vmatpush1.msra.mxu0 %v6474
        %v6476 = vand.u32 %v5983, 4294901760
        %v6477 = vsub.f32 %v5983, %v6476
        %v6478 = vand.u32 %v6477, 4294901760
        %v6479 = vsub.f32 %v6477, %v6478
        %v6480 = vand.u32 %v6479, 4294901760
        %6481 = vmatprep.subr.mxu0 %v6480
        %v6482 = vand.u32 %v5982, 4294901760
        %v6483 = vsub.f32 %v5982, %v6482
        %v6484 = vand.u32 %v6483, 4294901760
        %v6485 = vsub.f32 %v6483, %v6484
        %v6486 = vand.u32 %v6485, 4294901760
        %6487 = vmatpush1.msra.mxu0 %v6486
        %v6488 = vand.u32 %v5985, 4294901760
        %v6489 = vsub.f32 %v5985, %v6488
        %v6490 = vand.u32 %v6489, 4294901760
        %v6491 = vsub.f32 %v6489, %v6490
        %v6492 = vand.u32 %v6491, 4294901760
        %6493 = vmatprep.subr.mxu0 %v6492
        %v6494 = vand.u32 %v5984, 4294901760
        %v6495 = vsub.f32 %v5984, %v6494
        %v6496 = vand.u32 %v6495, 4294901760
        %v6497 = vsub.f32 %v6495, %v6496
        %v6498 = vand.u32 %v6497, 4294901760
        %6499 = vmatpush1.msra.mxu0 %v6498
        %v6500 = vand.u32 %v5987, 4294901760
        %v6501 = vsub.f32 %v5987, %v6500
        %v6502 = vand.u32 %v6501, 4294901760
        %v6503 = vsub.f32 %v6501, %v6502
        %v6504 = vand.u32 %v6503, 4294901760
        %6505 = vmatprep.subr.mxu0 %v6504
        %v6506 = vand.u32 %v5986, 4294901760
        %v6507 = vsub.f32 %v5986, %v6506
        %v6508 = vand.u32 %v6507, 4294901760
        %v6509 = vsub.f32 %v6507, %v6508
        %v6510 = vand.u32 %v6509, 4294901760
        %6511 = vmatpush1.msra.mxu0 %v6510
        %v6512 = vand.u32 %v5989, 4294901760
        %v6513 = vsub.f32 %v5989, %v6512
        %v6514 = vand.u32 %v6513, 4294901760
        %v6515 = vsub.f32 %v6513, %v6514
        %v6516 = vand.u32 %v6515, 4294901760
        %6517 = vmatprep.subr.mxu0 %v6516
        %v6518 = vand.u32 %v5988, 4294901760
        %v6519 = vsub.f32 %v5988, %v6518
        %v6520 = vand.u32 %v6519, 4294901760
        %v6521 = vsub.f32 %v6519, %v6520
        %v6522 = vand.u32 %v6521, 4294901760
        %6523 = vmatpush1.msra.mxu0 %v6522
        %v6524 = vand.u32 %v5991, 4294901760
        %v6525 = vsub.f32 %v5991, %v6524
        %v6526 = vand.u32 %v6525, 4294901760
        %v6527 = vsub.f32 %v6525, %v6526
        %v6528 = vand.u32 %v6527, 4294901760
        %6529 = vmatprep.subr.mxu0 %v6528
        %v6530 = vand.u32 %v5990, 4294901760
        %v6531 = vsub.f32 %v5990, %v6530
        %v6532 = vand.u32 %v6531, 4294901760
        %v6533 = vsub.f32 %v6531, %v6532
        %v6534 = vand.u32 %v6533, 4294901760
        %6535 = vmatpush1.msra.mxu0 %v6534
        %v6536 = vand.u32 %v5993, 4294901760
        %v6537 = vsub.f32 %v5993, %v6536
        %v6538 = vand.u32 %v6537, 4294901760
        %v6539 = vsub.f32 %v6537, %v6538
        %v6540 = vand.u32 %v6539, 4294901760
        %6541 = vmatprep.subr.mxu0 %v6540
        %v6542 = vand.u32 %v5992, 4294901760
        %v6543 = vsub.f32 %v5992, %v6542
        %v6544 = vand.u32 %v6543, 4294901760
        %v6545 = vsub.f32 %v6543, %v6544
        %v6546 = vand.u32 %v6545, 4294901760
        %6547 = vmatpush1.msra.mxu0 %v6546
        %v6548 = vand.u32 %v5995, 4294901760
        %v6549 = vsub.f32 %v5995, %v6548
        %v6550 = vand.u32 %v6549, 4294901760
        %v6551 = vsub.f32 %v6549, %v6550
        %v6552 = vand.u32 %v6551, 4294901760
        %6553 = vmatprep.subr.mxu0 %v6552
        %v6554 = vand.u32 %v5994, 4294901760
        %v6555 = vsub.f32 %v5994, %v6554
        %v6556 = vand.u32 %v6555, 4294901760
        %v6557 = vsub.f32 %v6555, %v6556
        %v6558 = vand.u32 %v6557, 4294901760
        %6559 = vmatpush1.msra.mxu0 %v6558
        %v6560 = vand.u32 %v5997, 4294901760
        %v6561 = vsub.f32 %v5997, %v6560
        %v6562 = vand.u32 %v6561, 4294901760
        %v6563 = vsub.f32 %v6561, %v6562
        %v6564 = vand.u32 %v6563, 4294901760
        %6565 = vmatprep.subr.mxu0 %v6564
        %v6566 = vand.u32 %v5996, 4294901760
        %v6567 = vsub.f32 %v5996, %v6566
        %v6568 = vand.u32 %v6567, 4294901760
        %v6569 = vsub.f32 %v6567, %v6568
        %v6570 = vand.u32 %v6569, 4294901760
        %6571 = vmatpush1.msra.mxu0 %v6570
        %v6572 = vand.u32 %v5999, 4294901760
        %v6573 = vsub.f32 %v5999, %v6572
        %v6574 = vand.u32 %v6573, 4294901760
        %v6575 = vsub.f32 %v6573, %v6574
        %v6576 = vand.u32 %v6575, 4294901760
        %6577 = vmatprep.subr.mxu0 %v6576
        %v6578 = vand.u32 %v5998, 4294901760
        %v6579 = vsub.f32 %v5998, %v6578
        %v6580 = vand.u32 %v6579, 4294901760
        %v6581 = vsub.f32 %v6579, %v6580
        %v6582 = vand.u32 %v6581, 4294901760
        %6583 = vmatpush1.msra.mxu0 %v6582
        %v6584 = vand.u32 %v6001, 4294901760
        %v6585 = vsub.f32 %v6001, %v6584
        %v6586 = vand.u32 %v6585, 4294901760
        %v6587 = vsub.f32 %v6585, %v6586
        %v6588 = vand.u32 %v6587, 4294901760
        %6589 = vmatprep.subr.mxu0 %v6588
        %v6590 = vand.u32 %v6000, 4294901760
        %v6591 = vsub.f32 %v6000, %v6590
        %v6592 = vand.u32 %v6591, 4294901760
        %v6593 = vsub.f32 %v6591, %v6592
        %v6594 = vand.u32 %v6593, 4294901760
        %6595 = vmatpush1.msra.mxu0 %v6594
        %v6596 = vand.u32 %v6003, 4294901760
        %v6597 = vsub.f32 %v6003, %v6596
        %v6598 = vand.u32 %v6597, 4294901760
        %v6599 = vsub.f32 %v6597, %v6598
        %v6600 = vand.u32 %v6599, 4294901760
        %6601 = vmatprep.subr.mxu0 %v6600
        %v6602 = vand.u32 %v6002, 4294901760
        %v6603 = vsub.f32 %v6002, %v6602
        %v6604 = vand.u32 %v6603, 4294901760
        %v6605 = vsub.f32 %v6603, %v6604
        %v6606 = vand.u32 %v6605, 4294901760
        %6607 = vmatpush1.msra.mxu0 %v6606
        %v6608 = vand.u32 %v6005, 4294901760
        %v6609 = vsub.f32 %v6005, %v6608
        %v6610 = vand.u32 %v6609, 4294901760
        %v6611 = vsub.f32 %v6609, %v6610
        %v6612 = vand.u32 %v6611, 4294901760
        %6613 = vmatprep.subr.mxu0 %v6612
        %v6614 = vand.u32 %v6004, 4294901760
        %v6615 = vsub.f32 %v6004, %v6614
        %v6616 = vand.u32 %v6615, 4294901760
        %v6617 = vsub.f32 %v6615, %v6616
        %v6618 = vand.u32 %v6617, 4294901760
        %6619 = vmatpush1.msra.mxu0 %v6618
        %v6620 = vand.u32 %v6007, 4294901760
        %v6621 = vsub.f32 %v6007, %v6620
        %v6622 = vand.u32 %v6621, 4294901760
        %v6623 = vsub.f32 %v6621, %v6622
        %v6624 = vand.u32 %v6623, 4294901760
        %6625 = vmatprep.subr.mxu0 %v6624
        %v6626 = vand.u32 %v6006, 4294901760
        %v6627 = vsub.f32 %v6006, %v6626
        %v6628 = vand.u32 %v6627, 4294901760
        %v6629 = vsub.f32 %v6627, %v6628
        %v6630 = vand.u32 %v6629, 4294901760
        %6631 = vmatpush1.msra.mxu0 %v6630
        %v6632 = vand.u32 %v6009, 4294901760
        %v6633 = vsub.f32 %v6009, %v6632
        %v6634 = vand.u32 %v6633, 4294901760
        %v6635 = vsub.f32 %v6633, %v6634
        %v6636 = vand.u32 %v6635, 4294901760
        %6637 = vmatprep.subr.mxu0 %v6636
        %v6638 = vand.u32 %v6008, 4294901760
        %v6639 = vsub.f32 %v6008, %v6638
        %v6640 = vand.u32 %v6639, 4294901760
        %v6641 = vsub.f32 %v6639, %v6640
        %v6642 = vand.u32 %v6641, 4294901760
        %6643 = vmatpush1.msra.mxu0 %v6642
        %v6644 = vand.u32 %v6011, 4294901760
        %v6645 = vsub.f32 %v6011, %v6644
        %v6646 = vand.u32 %v6645, 4294901760
        %v6647 = vsub.f32 %v6645, %v6646
        %v6648 = vand.u32 %v6647, 4294901760
        %6649 = vmatprep.subr.mxu0 %v6648
        %v6650 = vand.u32 %v6010, 4294901760
        %v6651 = vsub.f32 %v6010, %v6650
        %v6652 = vand.u32 %v6651, 4294901760
        %v6653 = vsub.f32 %v6651, %v6652
        %v6654 = vand.u32 %v6653, 4294901760
        %6655 = vmatpush1.msra.mxu0 %v6654
        %v6656 = vand.u32 %v6013, 4294901760
        %v6657 = vsub.f32 %v6013, %v6656
        %v6658 = vand.u32 %v6657, 4294901760
        %v6659 = vsub.f32 %v6657, %v6658
        %v6660 = vand.u32 %v6659, 4294901760
        %6661 = vmatprep.subr.mxu0 %v6660
        %v6662 = vand.u32 %v6012, 4294901760
        %v6663 = vsub.f32 %v6012, %v6662
        %v6664 = vand.u32 %v6663, 4294901760
        %v6665 = vsub.f32 %v6663, %v6664
        %v6666 = vand.u32 %v6665, 4294901760
        %6667 = vmatpush1.msra.mxu0 %v6666
        %v6668 = vand.u32 %v6015, 4294901760
        %v6669 = vsub.f32 %v6015, %v6668
        %v6670 = vand.u32 %v6669, 4294901760
        %v6671 = vsub.f32 %v6669, %v6670
        %v6672 = vand.u32 %v6671, 4294901760
        %6673 = vmatprep.subr.mxu0 %v6672
        %v6674 = vand.u32 %v6014, 4294901760
        %v6675 = vsub.f32 %v6014, %v6674
        %v6676 = vand.u32 %v6675, 4294901760
        %v6677 = vsub.f32 %v6675, %v6676
        %v6678 = vand.u32 %v6677, 4294901760
        %6679 = vmatpush1.msra.mxu0 %v6678
        %v6680 = vand.u32 %v6017, 4294901760
        %v6681 = vsub.f32 %v6017, %v6680
        %v6682 = vand.u32 %v6681, 4294901760
        %v6683 = vsub.f32 %v6681, %v6682
        %v6684 = vand.u32 %v6683, 4294901760
        %6685 = vmatprep.subr.mxu0 %v6684
        %v6686 = vand.u32 %v6016, 4294901760
        %v6687 = vsub.f32 %v6016, %v6686
        %v6688 = vand.u32 %v6687, 4294901760
        %v6689 = vsub.f32 %v6687, %v6688
        %v6690 = vand.u32 %v6689, 4294901760
        %6691 = vmatpush1.msra.mxu0 %v6690
        %v6692 = vand.u32 %v6019, 4294901760
        %v6693 = vsub.f32 %v6019, %v6692
        %v6694 = vand.u32 %v6693, 4294901760
        %v6695 = vsub.f32 %v6693, %v6694
        %v6696 = vand.u32 %v6695, 4294901760
        %6697 = vmatprep.subr.mxu0 %v6696
        %v6698 = vand.u32 %v6018, 4294901760
        %v6699 = vsub.f32 %v6018, %v6698
        %v6700 = vand.u32 %v6699, 4294901760
        %v6701 = vsub.f32 %v6699, %v6700
        %v6702 = vand.u32 %v6701, 4294901760
        %6703 = vmatpush1.msra.mxu0 %v6702
        %v6704 = vand.u32 %v6021, 4294901760
        %v6705 = vsub.f32 %v6021, %v6704
        %v6706 = vand.u32 %v6705, 4294901760
        %v6707 = vsub.f32 %v6705, %v6706
        %v6708 = vand.u32 %v6707, 4294901760
        %6709 = vmatprep.subr.mxu0 %v6708
        %v6710 = vand.u32 %v6020, 4294901760
        %v6711 = vsub.f32 %v6020, %v6710
        %v6712 = vand.u32 %v6711, 4294901760
        %v6713 = vsub.f32 %v6711, %v6712
        %v6714 = vand.u32 %v6713, 4294901760
        %6715 = vmatpush1.msra.mxu0 %v6714
        %v6716 = vand.u32 %v6023, 4294901760
        %v6717 = vsub.f32 %v6023, %v6716
        %v6718 = vand.u32 %v6717, 4294901760
        %v6719 = vsub.f32 %v6717, %v6718
        %v6720 = vand.u32 %v6719, 4294901760
        %6721 = vmatprep.subr.mxu0 %v6720
        %v6722 = vand.u32 %v6022, 4294901760
        %v6723 = vsub.f32 %v6022, %v6722
        %v6724 = vand.u32 %v6723, 4294901760
        %v6725 = vsub.f32 %v6723, %v6724
        %v6726 = vand.u32 %v6725, 4294901760
        %6727 = vmatpush1.msra.mxu0 %v6726
        %v6728 = vand.u32 %v6025, 4294901760
        %v6729 = vsub.f32 %v6025, %v6728
        %v6730 = vand.u32 %v6729, 4294901760
        %v6731 = vsub.f32 %v6729, %v6730
        %v6732 = vand.u32 %v6731, 4294901760
        %6733 = vmatprep.subr.mxu0 %v6732
        %v6734 = vand.u32 %v6024, 4294901760
        %v6735 = vsub.f32 %v6024, %v6734
        %v6736 = vand.u32 %v6735, 4294901760
        %v6737 = vsub.f32 %v6735, %v6736
        %v6738 = vand.u32 %v6737, 4294901760
        %6739 = vmatpush1.msra.mxu0 %v6738
        %v6740 = vand.u32 %v6027, 4294901760
        %v6741 = vsub.f32 %v6027, %v6740
        %v6742 = vand.u32 %v6741, 4294901760
        %v6743 = vsub.f32 %v6741, %v6742
        %v6744 = vand.u32 %v6743, 4294901760
        %6745 = vmatprep.subr.mxu0 %v6744
        %v6746 = vand.u32 %v6026, 4294901760
        %v6747 = vsub.f32 %v6026, %v6746
        %v6748 = vand.u32 %v6747, 4294901760
        %v6749 = vsub.f32 %v6747, %v6748
        %v6750 = vand.u32 %v6749, 4294901760
        %6751 = vmatpush1.msra.mxu0 %v6750
        %v6752 = vand.u32 %v6029, 4294901760
        %v6753 = vsub.f32 %v6029, %v6752
        %v6754 = vand.u32 %v6753, 4294901760
        %v6755 = vsub.f32 %v6753, %v6754
        %v6756 = vand.u32 %v6755, 4294901760
        %6757 = vmatprep.subr.mxu0 %v6756
        %v6758 = vand.u32 %v6028, 4294901760
        %v6759 = vsub.f32 %v6028, %v6758
        %v6760 = vand.u32 %v6759, 4294901760
        %v6761 = vsub.f32 %v6759, %v6760
        %v6762 = vand.u32 %v6761, 4294901760
        %6763 = vmatpush1.msra.mxu0 %v6762
        %v6764 = vand.u32 %v6031, 4294901760
        %v6765 = vsub.f32 %v6031, %v6764
        %v6766 = vand.u32 %v6765, 4294901760
        %v6767 = vsub.f32 %v6765, %v6766
        %v6768 = vand.u32 %v6767, 4294901760
        %6769 = vmatprep.subr.mxu0 %v6768
        %v6770 = vand.u32 %v6030, 4294901760
        %v6771 = vsub.f32 %v6030, %v6770
        %v6772 = vand.u32 %v6771, 4294901760
        %v6773 = vsub.f32 %v6771, %v6772
        %v6774 = vand.u32 %v6773, 4294901760
        %6775 = vmatpush1.msra.mxu0 %v6774
        %v6776 = vand.u32 %v5939, 4294901760
        %6777 = vmatprep.mubr.f32.mxu0 %v6776
        %v6778 = vand.u32 %v5938, 4294901760
        %6779 = vmatmul.mubr.f32.gmra.mrb[0].mxu0 %v6778
        %v6780 = vpop.f32.mrb[0].mxu0
        %v6781 = vadd.f32 %v6308, %v6780
        %v6782 = vpop.f32.mrb[0].mxu0
        %v6783 = vadd.f32 %v6310, %v6782
        %v6784 = vand.u32 %v5944, 4294901760
        %6785 = vmatprep.mubr.f32.mxu0 %v6784
        %v6786 = vand.u32 %v5943, 4294901760
        %6787 = vmatmul.mubr.f32.gmra.mrb[0].mxu0 %v6786
        %v6788 = vpop.f32.mrb[0].mxu0
        %v6789 = vadd.f32 %v6324, %v6788
        %v6790 = vpop.f32.mrb[0].mxu0
        %v6791 = vadd.f32 %v6326, %v6790
        %v6792 = vand.u32 %v5949, 4294901760
        %6793 = vmatprep.mubr.f32.mxu0 %v6792
        %v6794 = vand.u32 %v5948, 4294901760
        %6795 = vmatmul.mubr.f32.gmra.mrb[0].mxu0 %v6794
        %v6796 = vpop.f32.mrb[0].mxu0
        %v6797 = vadd.f32 %v6340, %v6796
        %v6798 = vpop.f32.mrb[0].mxu0
        %v6799 = vadd.f32 %v6342, %v6798
        %v6800 = vand.u32 %v5954, 4294901760
        %6801 = vmatprep.mubr.f32.mxu0 %v6800
        %v6802 = vand.u32 %v5953, 4294901760
        %6803 = vmatmul.mubr.f32.gmra.mrb[0].mxu0 %v6802
        %v6804 = vpop.f32.mrb[0].mxu0
        %v6805 = vadd.f32 %v6356, %v6804
        %v6806 = vpop.f32.mrb[0].mxu0
        %v6807 = vadd.f32 %v6358, %v6806
        %v6808 = vand.u32 %v5959, 4294901760
        %6809 = vmatprep.mubr.f32.mxu0 %v6808
        %v6810 = vand.u32 %v5958, 4294901760
        %6811 = vmatmul.mubr.f32.gmra.mrb[0].mxu0 %v6810
        %v6812 = vpop.f32.mrb[0].mxu0
        %v6813 = vadd.f32 %v6372, %v6812
        %v6814 = vpop.f32.mrb[0].mxu0
        %v6815 = vadd.f32 %v6374, %v6814
        %v6816 = vand.u32 %v5964, 4294901760
        %6817 = vmatprep.mubr.f32.mxu0 %v6816
        %v6818 = vand.u32 %v5963, 4294901760
        %6819 = vmatmul.mubr.f32.gmra.mrb[0].mxu0 %v6818
        %v6820 = vpop.f32.mrb[0].mxu0
        %v6821 = vadd.f32 %v6388, %v6820
        %v6822 = vpop.f32.mrb[0].mxu0
        %v6823 = vadd.f32 %v6390, %v6822
        %6824 = vdwg.mxu0
        %v6825 = vand.u32 %v5969, 4294901760
        %v6826 = vsub.f32 %v5969, %v6825
        %6827 = vmatprep.subr.mxu0 %v6826
        %v6828 = vand.u32 %v5968, 4294901760
        %v6829 = vsub.f32 %v5968, %v6828
        %6830 = vmatpush1.msra.mxu0 %v6829
        %v6831 = vand.u32 %v5971, 4294901760
        %v6832 = vsub.f32 %v5971, %v6831
        %6833 = vmatprep.subr.mxu0 %v6832
        %v6834 = vand.u32 %v5970, 4294901760
        %v6835 = vsub.f32 %v5970, %v6834
        %6836 = vmatpush1.msra.mxu0 %v6835
        %v6837 = vand.u32 %v5973, 4294901760
        %v6838 = vsub.f32 %v5973, %v6837
        %6839 = vmatprep.subr.mxu0 %v6838
        %v6840 = vand.u32 %v5972, 4294901760
        %v6841 = vsub.f32 %v5972, %v6840
        %6842 = vmatpush1.msra.mxu0 %v6841
        %v6843 = vand.u32 %v5975, 4294901760
        %v6844 = vsub.f32 %v5975, %v6843
        %6845 = vmatprep.subr.mxu0 %v6844
        %v6846 = vand.u32 %v5974, 4294901760
        %v6847 = vsub.f32 %v5974, %v6846
        %6848 = vmatpush1.msra.mxu0 %v6847
        %v6849 = vand.u32 %v5977, 4294901760
        %v6850 = vsub.f32 %v5977, %v6849
        %6851 = vmatprep.subr.mxu0 %v6850
        %v6852 = vand.u32 %v5976, 4294901760
        %v6853 = vsub.f32 %v5976, %v6852
        %6854 = vmatpush1.msra.mxu0 %v6853
        %v6855 = vand.u32 %v5979, 4294901760
        %v6856 = vsub.f32 %v5979, %v6855
        %6857 = vmatprep.subr.mxu0 %v6856
        %v6858 = vand.u32 %v5978, 4294901760
        %v6859 = vsub.f32 %v5978, %v6858
        %6860 = vmatpush1.msra.mxu0 %v6859
        %v6861 = vand.u32 %v5981, 4294901760
        %v6862 = vsub.f32 %v5981, %v6861
        %6863 = vmatprep.subr.mxu0 %v6862
        %v6864 = vand.u32 %v5980, 4294901760
        %v6865 = vsub.f32 %v5980, %v6864
        %6866 = vmatpush1.msra.mxu0 %v6865
        %v6867 = vand.u32 %v5983, 4294901760
        %v6868 = vsub.f32 %v5983, %v6867
        %6869 = vmatprep.subr.mxu0 %v6868
        %v6870 = vand.u32 %v5982, 4294901760
        %v6871 = vsub.f32 %v5982, %v6870
        %6872 = vmatpush1.msra.mxu0 %v6871
        %v6873 = vand.u32 %v5985, 4294901760
        %v6874 = vsub.f32 %v5985, %v6873
        %6875 = vmatprep.subr.mxu0 %v6874
        %v6876 = vand.u32 %v5984, 4294901760
        %v6877 = vsub.f32 %v5984, %v6876
        %6878 = vmatpush1.msra.mxu0 %v6877
        %v6879 = vand.u32 %v5987, 4294901760
        %v6880 = vsub.f32 %v5987, %v6879
        %6881 = vmatprep.subr.mxu0 %v6880
        %v6882 = vand.u32 %v5986, 4294901760
        %v6883 = vsub.f32 %v5986, %v6882
        %6884 = vmatpush1.msra.mxu0 %v6883
        %v6885 = vand.u32 %v5989, 4294901760
        %v6886 = vsub.f32 %v5989, %v6885
        %6887 = vmatprep.subr.mxu0 %v6886
        %v6888 = vand.u32 %v5988, 4294901760
        %v6889 = vsub.f32 %v5988, %v6888
        %6890 = vmatpush1.msra.mxu0 %v6889
        %v6891 = vand.u32 %v5991, 4294901760
        %v6892 = vsub.f32 %v5991, %v6891
        %6893 = vmatprep.subr.mxu0 %v6892
        %v6894 = vand.u32 %v5990, 4294901760
        %v6895 = vsub.f32 %v5990, %v6894
        %6896 = vmatpush1.msra.mxu0 %v6895
        %v6897 = vand.u32 %v5993, 4294901760
        %v6898 = vsub.f32 %v5993, %v6897
        %6899 = vmatprep.subr.mxu0 %v6898
        %v6900 = vand.u32 %v5992, 4294901760
        %v6901 = vsub.f32 %v5992, %v6900
        %6902 = vmatpush1.msra.mxu0 %v6901
        %v6903 = vand.u32 %v5995, 4294901760
        %v6904 = vsub.f32 %v5995, %v6903
        %6905 = vmatprep.subr.mxu0 %v6904
        %v6906 = vand.u32 %v5994, 4294901760
        %v6907 = vsub.f32 %v5994, %v6906
        %6908 = vmatpush1.msra.mxu0 %v6907
        %v6909 = vand.u32 %v5997, 4294901760
        %v6910 = vsub.f32 %v5997, %v6909
        %6911 = vmatprep.subr.mxu0 %v6910
        %v6912 = vand.u32 %v5996, 4294901760
        %v6913 = vsub.f32 %v5996, %v6912
        %6914 = vmatpush1.msra.mxu0 %v6913
        %v6915 = vand.u32 %v5999, 4294901760
        %v6916 = vsub.f32 %v5999, %v6915
        %6917 = vmatprep.subr.mxu0 %v6916
        %v6918 = vand.u32 %v5998, 4294901760
        %v6919 = vsub.f32 %v5998, %v6918
        %6920 = vmatpush1.msra.mxu0 %v6919
        %v6921 = vand.u32 %v6001, 4294901760
        %v6922 = vsub.f32 %v6001, %v6921
        %6923 = vmatprep.subr.mxu0 %v6922
        %v6924 = vand.u32 %v6000, 4294901760
        %v6925 = vsub.f32 %v6000, %v6924
        %6926 = vmatpush1.msra.mxu0 %v6925
        %v6927 = vand.u32 %v6003, 4294901760
        %v6928 = vsub.f32 %v6003, %v6927
        %6929 = vmatprep.subr.mxu0 %v6928
        %v6930 = vand.u32 %v6002, 4294901760
        %v6931 = vsub.f32 %v6002, %v6930
        %6932 = vmatpush1.msra.mxu0 %v6931
        %v6933 = vand.u32 %v6005, 4294901760
        %v6934 = vsub.f32 %v6005, %v6933
        %6935 = vmatprep.subr.mxu0 %v6934
        %v6936 = vand.u32 %v6004, 4294901760
        %v6937 = vsub.f32 %v6004, %v6936
        %6938 = vmatpush1.msra.mxu0 %v6937
        %v6939 = vand.u32 %v6007, 4294901760
        %v6940 = vsub.f32 %v6007, %v6939
        %6941 = vmatprep.subr.mxu0 %v6940
        %v6942 = vand.u32 %v6006, 4294901760
        %v6943 = vsub.f32 %v6006, %v6942
        %6944 = vmatpush1.msra.mxu0 %v6943
        %v6945 = vand.u32 %v6009, 4294901760
        %v6946 = vsub.f32 %v6009, %v6945
        %6947 = vmatprep.subr.mxu0 %v6946
        %v6948 = vand.u32 %v6008, 4294901760
        %v6949 = vsub.f32 %v6008, %v6948
        %6950 = vmatpush1.msra.mxu0 %v6949
        %v6951 = vand.u32 %v6011, 4294901760
        %v6952 = vsub.f32 %v6011, %v6951
        %6953 = vmatprep.subr.mxu0 %v6952
        %v6954 = vand.u32 %v6010, 4294901760
        %v6955 = vsub.f32 %v6010, %v6954
        %6956 = vmatpush1.msra.mxu0 %v6955
        %v6957 = vand.u32 %v6013, 4294901760
        %v6958 = vsub.f32 %v6013, %v6957
        %6959 = vmatprep.subr.mxu0 %v6958
        %v6960 = vand.u32 %v6012, 4294901760
        %v6961 = vsub.f32 %v6012, %v6960
        %6962 = vmatpush1.msra.mxu0 %v6961
        %v6963 = vand.u32 %v6015, 4294901760
        %v6964 = vsub.f32 %v6015, %v6963
        %6965 = vmatprep.subr.mxu0 %v6964
        %v6966 = vand.u32 %v6014, 4294901760
        %v6967 = vsub.f32 %v6014, %v6966
        %6968 = vmatpush1.msra.mxu0 %v6967
        %v6969 = vand.u32 %v6017, 4294901760
        %v6970 = vsub.f32 %v6017, %v6969
        %6971 = vmatprep.subr.mxu0 %v6970
        %v6972 = vand.u32 %v6016, 4294901760
        %v6973 = vsub.f32 %v6016, %v6972
        %6974 = vmatpush1.msra.mxu0 %v6973
        %v6975 = vand.u32 %v6019, 4294901760
        %v6976 = vsub.f32 %v6019, %v6975
        %6977 = vmatprep.subr.mxu0 %v6976
        %v6978 = vand.u32 %v6018, 4294901760
        %v6979 = vsub.f32 %v6018, %v6978
        %6980 = vmatpush1.msra.mxu0 %v6979
        %v6981 = vand.u32 %v6021, 4294901760
        %v6982 = vsub.f32 %v6021, %v6981
        %6983 = vmatprep.subr.mxu0 %v6982
        %v6984 = vand.u32 %v6020, 4294901760
        %v6985 = vsub.f32 %v6020, %v6984
        %6986 = vmatpush1.msra.mxu0 %v6985
        %v6987 = vand.u32 %v6023, 4294901760
        %v6988 = vsub.f32 %v6023, %v6987
        %6989 = vmatprep.subr.mxu0 %v6988
        %v6990 = vand.u32 %v6022, 4294901760
        %v6991 = vsub.f32 %v6022, %v6990
        %6992 = vmatpush1.msra.mxu0 %v6991
        %v6993 = vand.u32 %v6025, 4294901760
        %v6994 = vsub.f32 %v6025, %v6993
        %6995 = vmatprep.subr.mxu0 %v6994
        %v6996 = vand.u32 %v6024, 4294901760
        %v6997 = vsub.f32 %v6024, %v6996
        %6998 = vmatpush1.msra.mxu0 %v6997
        %v6999 = vand.u32 %v6027, 4294901760
        %v7000 = vsub.f32 %v6027, %v6999
        %7001 = vmatprep.subr.mxu0 %v7000
        %v7002 = vand.u32 %v6026, 4294901760
        %v7003 = vsub.f32 %v6026, %v7002
        %7004 = vmatpush1.msra.mxu0 %v7003
        %v7005 = vand.u32 %v6029, 4294901760
        %v7006 = vsub.f32 %v6029, %v7005
        %7007 = vmatprep.subr.mxu0 %v7006
        %v7008 = vand.u32 %v6028, 4294901760
        %v7009 = vsub.f32 %v6028, %v7008
        %7010 = vmatpush1.msra.mxu0 %v7009
        %v7011 = vand.u32 %v6031, 4294901760
        %v7012 = vsub.f32 %v6031, %v7011
        %7013 = vmatprep.subr.mxu0 %v7012
        %v7014 = vand.u32 %v6030, 4294901760
        %v7015 = vsub.f32 %v6030, %v7014
        %7016 = vmatpush1.msra.mxu0 %v7015
        %v7017 = vand.u32 %v5939, 4294901760
        %v7018 = vsub.f32 %v5939, %v7017
        %7019 = vmatprep.mubr.f32.mxu0 %v7018
        %v7020 = vand.u32 %v5938, 4294901760
        %v7021 = vsub.f32 %v5938, %v7020
        %7022 = vmatmul.mubr.f32.gmra.mrb[0].mxu0 %v7021
        %v7023 = vpop.f32.mrb[0].mxu0
        %v7024 = vadd.f32 %v6781, %v7023
        %v7025 = vpop.f32.mrb[0].mxu0
        %v7026 = vadd.f32 %v6783, %v7025
        %v7027 = vand.u32 %v5944, 4294901760
        %v7028 = vsub.f32 %v5944, %v7027
        %7029 = vmatprep.mubr.f32.mxu0 %v7028
        %v7030 = vand.u32 %v5943, 4294901760
        %v7031 = vsub.f32 %v5943, %v7030
        %7032 = vmatmul.mubr.f32.gmra.mrb[0].mxu0 %v7031
        %v7033 = vpop.f32.mrb[0].mxu0
        %v7034 = vadd.f32 %v6789, %v7033
        %v7035 = vpop.f32.mrb[0].mxu0
        %v7036 = vadd.f32 %v6791, %v7035
        %v7037 = vand.u32 %v5949, 4294901760
        %v7038 = vsub.f32 %v5949, %v7037
        %7039 = vmatprep.mubr.f32.mxu0 %v7038
        %v7040 = vand.u32 %v5948, 4294901760
        %v7041 = vsub.f32 %v5948, %v7040
        %7042 = vmatmul.mubr.f32.gmra.mrb[0].mxu0 %v7041
        %v7043 = vpop.f32.mrb[0].mxu0
        %v7044 = vadd.f32 %v6797, %v7043
        %v7045 = vpop.f32.mrb[0].mxu0
        %v7046 = vadd.f32 %v6799, %v7045
        %v7047 = vand.u32 %v5954, 4294901760
        %v7048 = vsub.f32 %v5954, %v7047
        %7049 = vmatprep.mubr.f32.mxu0 %v7048
        %v7050 = vand.u32 %v5953, 4294901760
        %v7051 = vsub.f32 %v5953, %v7050
        %7052 = vmatmul.mubr.f32.gmra.mrb[0].mxu0 %v7051
        %v7053 = vpop.f32.mrb[0].mxu0
        %v7054 = vadd.f32 %v6805, %v7053
        %v7055 = vpop.f32.mrb[0].mxu0
        %v7056 = vadd.f32 %v6807, %v7055
        %v7057 = vand.u32 %v5959, 4294901760
        %v7058 = vsub.f32 %v5959, %v7057
        %7059 = vmatprep.mubr.f32.mxu0 %v7058
        %v7060 = vand.u32 %v5958, 4294901760
        %v7061 = vsub.f32 %v5958, %v7060
        %7062 = vmatmul.mubr.f32.gmra.mrb[0].mxu0 %v7061
        %v7063 = vpop.f32.mrb[0].mxu0
        %v7064 = vadd.f32 %v6813, %v7063
        %v7065 = vpop.f32.mrb[0].mxu0
        %v7066 = vadd.f32 %v6815, %v7065
        %v7067 = vand.u32 %v5964, 4294901760
        %v7068 = vsub.f32 %v5964, %v7067
        %7069 = vmatprep.mubr.f32.mxu0 %v7068
        %v7070 = vand.u32 %v5963, 4294901760
        %v7071 = vsub.f32 %v5963, %v7070
        %7072 = vmatmul.mubr.f32.gmra.mrb[0].mxu0 %v7071
        %v7073 = vpop.f32.mrb[0].mxu0
        %v7074 = vadd.f32 %v6821, %v7073
        %v7075 = vpop.f32.mrb[0].mxu0
        %v7076 = vadd.f32 %v6823, %v7075
        %7077 = vdwg.mxu0
        %v7078 = vand.u32 %v5969, 4294901760
        %7079 = vmatprep.subr.mxu0 %v7078
        %v7080 = vand.u32 %v5968, 4294901760
        %7081 = vmatpush1.msra.mxu0 %v7080
        %v7082 = vand.u32 %v5971, 4294901760
        %7083 = vmatprep.subr.mxu0 %v7082
        %v7084 = vand.u32 %v5970, 4294901760
        %7085 = vmatpush1.msra.mxu0 %v7084
        %v7086 = vand.u32 %v5973, 4294901760
        %7087 = vmatprep.subr.mxu0 %v7086
        %v7088 = vand.u32 %v5972, 4294901760
        %7089 = vmatpush1.msra.mxu0 %v7088
        %v7090 = vand.u32 %v5975, 4294901760
        %7091 = vmatprep.subr.mxu0 %v7090
        %v7092 = vand.u32 %v5974, 4294901760
        %7093 = vmatpush1.msra.mxu0 %v7092
        %v7094 = vand.u32 %v5977, 4294901760
        %7095 = vmatprep.subr.mxu0 %v7094
        %v7096 = vand.u32 %v5976, 4294901760
        %7097 = vmatpush1.msra.mxu0 %v7096
        %v7098 = vand.u32 %v5979, 4294901760
        %7099 = vmatprep.subr.mxu0 %v7098
        %v7100 = vand.u32 %v5978, 4294901760
        %7101 = vmatpush1.msra.mxu0 %v7100
        %v7102 = vand.u32 %v5981, 4294901760
        %7103 = vmatprep.subr.mxu0 %v7102
        %v7104 = vand.u32 %v5980, 4294901760
        %7105 = vmatpush1.msra.mxu0 %v7104
        %v7106 = vand.u32 %v5983, 4294901760
        %7107 = vmatprep.subr.mxu0 %v7106
        %v7108 = vand.u32 %v5982, 4294901760
        %7109 = vmatpush1.msra.mxu0 %v7108
        %v7110 = vand.u32 %v5985, 4294901760
        %7111 = vmatprep.subr.mxu0 %v7110
        %v7112 = vand.u32 %v5984, 4294901760
        %7113 = vmatpush1.msra.mxu0 %v7112
        %v7114 = vand.u32 %v5987, 4294901760
        %7115 = vmatprep.subr.mxu0 %v7114
        %v7116 = vand.u32 %v5986, 4294901760
        %7117 = vmatpush1.msra.mxu0 %v7116
        %v7118 = vand.u32 %v5989, 4294901760
        %7119 = vmatprep.subr.mxu0 %v7118
        %v7120 = vand.u32 %v5988, 4294901760
        %7121 = vmatpush1.msra.mxu0 %v7120
        %v7122 = vand.u32 %v5991, 4294901760
        %7123 = vmatprep.subr.mxu0 %v7122
        %v7124 = vand.u32 %v5990, 4294901760
        %7125 = vmatpush1.msra.mxu0 %v7124
        %v7126 = vand.u32 %v5993, 4294901760
        %7127 = vmatprep.subr.mxu0 %v7126
        %v7128 = vand.u32 %v5992, 4294901760
        %7129 = vmatpush1.msra.mxu0 %v7128
        %v7130 = vand.u32 %v5995, 4294901760
        %7131 = vmatprep.subr.mxu0 %v7130
        %v7132 = vand.u32 %v5994, 4294901760
        %7133 = vmatpush1.msra.mxu0 %v7132
        %v7134 = vand.u32 %v5997, 4294901760
        %7135 = vmatprep.subr.mxu0 %v7134
        %v7136 = vand.u32 %v5996, 4294901760
        %7137 = vmatpush1.msra.mxu0 %v7136
        %v7138 = vand.u32 %v5999, 4294901760
        %7139 = vmatprep.subr.mxu0 %v7138
        %v7140 = vand.u32 %v5998, 4294901760
        %7141 = vmatpush1.msra.mxu0 %v7140
        %v7142 = vand.u32 %v6001, 4294901760
        %7143 = vmatprep.subr.mxu0 %v7142
        %v7144 = vand.u32 %v6000, 4294901760
        %7145 = vmatpush1.msra.mxu0 %v7144
        %v7146 = vand.u32 %v6003, 4294901760
        %7147 = vmatprep.subr.mxu0 %v7146
        %v7148 = vand.u32 %v6002, 4294901760
        %7149 = vmatpush1.msra.mxu0 %v7148
        %v7150 = vand.u32 %v6005, 4294901760
        %7151 = vmatprep.subr.mxu0 %v7150
        %v7152 = vand.u32 %v6004, 4294901760
        %7153 = vmatpush1.msra.mxu0 %v7152
        %v7154 = vand.u32 %v6007, 4294901760
        %7155 = vmatprep.subr.mxu0 %v7154
        %v7156 = vand.u32 %v6006, 4294901760
        %7157 = vmatpush1.msra.mxu0 %v7156
        %v7158 = vand.u32 %v6009, 4294901760
        %7159 = vmatprep.subr.mxu0 %v7158
        %v7160 = vand.u32 %v6008, 4294901760
        %7161 = vmatpush1.msra.mxu0 %v7160
        %v7162 = vand.u32 %v6011, 4294901760
        %7163 = vmatprep.subr.mxu0 %v7162
        %v7164 = vand.u32 %v6010, 4294901760
        %7165 = vmatpush1.msra.mxu0 %v7164
        %v7166 = vand.u32 %v6013, 4294901760
        %7167 = vmatprep.subr.mxu0 %v7166
        %v7168 = vand.u32 %v6012, 4294901760
        %7169 = vmatpush1.msra.mxu0 %v7168
        %v7170 = vand.u32 %v6015, 4294901760
        %7171 = vmatprep.subr.mxu0 %v7170
        %v7172 = vand.u32 %v6014, 4294901760
        %7173 = vmatpush1.msra.mxu0 %v7172
        %v7174 = vand.u32 %v6017, 4294901760
        %7175 = vmatprep.subr.mxu0 %v7174
        %v7176 = vand.u32 %v6016, 4294901760
        %7177 = vmatpush1.msra.mxu0 %v7176
        %v7178 = vand.u32 %v6019, 4294901760
        %7179 = vmatprep.subr.mxu0 %v7178
        %v7180 = vand.u32 %v6018, 4294901760
        %7181 = vmatpush1.msra.mxu0 %v7180
        %v7182 = vand.u32 %v6021, 4294901760
        %7183 = vmatprep.subr.mxu0 %v7182
        %v7184 = vand.u32 %v6020, 4294901760
        %7185 = vmatpush1.msra.mxu0 %v7184
        %v7186 = vand.u32 %v6023, 4294901760
        %7187 = vmatprep.subr.mxu0 %v7186
        %v7188 = vand.u32 %v6022, 4294901760
        %7189 = vmatpush1.msra.mxu0 %v7188
        %v7190 = vand.u32 %v6025, 4294901760
        %7191 = vmatprep.subr.mxu0 %v7190
        %v7192 = vand.u32 %v6024, 4294901760
        %7193 = vmatpush1.msra.mxu0 %v7192
        %v7194 = vand.u32 %v6027, 4294901760
        %7195 = vmatprep.subr.mxu0 %v7194
        %v7196 = vand.u32 %v6026, 4294901760
        %7197 = vmatpush1.msra.mxu0 %v7196
        %v7198 = vand.u32 %v6029, 4294901760
        %7199 = vmatprep.subr.mxu0 %v7198
        %v7200 = vand.u32 %v6028, 4294901760
        %7201 = vmatpush1.msra.mxu0 %v7200
        %v7202 = vand.u32 %v6031, 4294901760
        %7203 = vmatprep.subr.mxu0 %v7202
        %v7204 = vand.u32 %v6030, 4294901760
        %7205 = vmatpush1.msra.mxu0 %v7204
        %v7206 = vand.u32 %v5939, 4294901760
        %v7207 = vsub.f32 %v5939, %v7206
        %v7208 = vand.u32 %v7207, 4294901760
        %7209 = vmatprep.mubr.f32.mxu0 %v7208
        %v7210 = vand.u32 %v5938, 4294901760
        %v7211 = vsub.f32 %v5938, %v7210
        %v7212 = vand.u32 %v7211, 4294901760
        %7213 = vmatmul.mubr.f32.gmra.mrb[0].mxu0 %v7212
        %v7214 = vpop.f32.mrb[0].mxu0
        %v7215 = vadd.f32 %v7024, %v7214
        %v7216 = vpop.f32.mrb[0].mxu0
        %v7217 = vadd.f32 %v7026, %v7216
        %v7218 = vand.u32 %v5944, 4294901760
        %v7219 = vsub.f32 %v5944, %v7218
        %v7220 = vand.u32 %v7219, 4294901760
        %7221 = vmatprep.mubr.f32.mxu0 %v7220
        %v7222 = vand.u32 %v5943, 4294901760
        %v7223 = vsub.f32 %v5943, %v7222
        %v7224 = vand.u32 %v7223, 4294901760
        %7225 = vmatmul.mubr.f32.gmra.mrb[0].mxu0 %v7224
        %v7226 = vpop.f32.mrb[0].mxu0
        %v7227 = vadd.f32 %v7034, %v7226
        %v7228 = vpop.f32.mrb[0].mxu0
        %v7229 = vadd.f32 %v7036, %v7228
        %v7230 = vand.u32 %v5949, 4294901760
        %v7231 = vsub.f32 %v5949, %v7230
        %v7232 = vand.u32 %v7231, 4294901760
        %7233 = vmatprep.mubr.f32.mxu0 %v7232
        %v7234 = vand.u32 %v5948, 4294901760
        %v7235 = vsub.f32 %v5948, %v7234
        %v7236 = vand.u32 %v7235, 4294901760
        %7237 = vmatmul.mubr.f32.gmra.mrb[0].mxu0 %v7236
        %v7238 = vpop.f32.mrb[0].mxu0
        %v7239 = vadd.f32 %v7044, %v7238
        %v7240 = vpop.f32.mrb[0].mxu0
        %v7241 = vadd.f32 %v7046, %v7240
        %v7242 = vand.u32 %v5954, 4294901760
        %v7243 = vsub.f32 %v5954, %v7242
        %v7244 = vand.u32 %v7243, 4294901760
        %7245 = vmatprep.mubr.f32.mxu0 %v7244
        %v7246 = vand.u32 %v5953, 4294901760
        %v7247 = vsub.f32 %v5953, %v7246
        %v7248 = vand.u32 %v7247, 4294901760
        %7249 = vmatmul.mubr.f32.gmra.mrb[0].mxu0 %v7248
        %v7250 = vpop.f32.mrb[0].mxu0
        %v7251 = vadd.f32 %v7054, %v7250
        %v7252 = vpop.f32.mrb[0].mxu0
        %v7253 = vadd.f32 %v7056, %v7252
        %v7254 = vand.u32 %v5959, 4294901760
        %v7255 = vsub.f32 %v5959, %v7254
        %v7256 = vand.u32 %v7255, 4294901760
        %7257 = vmatprep.mubr.f32.mxu0 %v7256
        %v7258 = vand.u32 %v5958, 4294901760
        %v7259 = vsub.f32 %v5958, %v7258
        %v7260 = vand.u32 %v7259, 4294901760
        %7261 = vmatmul.mubr.f32.gmra.mrb[0].mxu0 %v7260
        %v7262 = vpop.f32.mrb[0].mxu0
        %v7263 = vadd.f32 %v7064, %v7262
        %v7264 = vpop.f32.mrb[0].mxu0
        %v7265 = vadd.f32 %v7066, %v7264
        %v7266 = vand.u32 %v5964, 4294901760
        %v7267 = vsub.f32 %v5964, %v7266
        %v7268 = vand.u32 %v7267, 4294901760
        %7269 = vmatprep.mubr.f32.mxu0 %v7268
        %v7270 = vand.u32 %v5963, 4294901760
        %v7271 = vsub.f32 %v5963, %v7270
        %v7272 = vand.u32 %v7271, 4294901760
        %7273 = vmatmul.mubr.f32.gmra.mrb[0].mxu0 %v7272
        %v7274 = vpop.f32.mrb[0].mxu0
        %v7275 = vadd.f32 %v7074, %v7274
        %v7276 = vpop.f32.mrb[0].mxu0
        %v7277 = vadd.f32 %v7076, %v7276
        %7278 = vdwg.mxu0
        %v7279 = vand.u32 %v5969, 4294901760
        %v7280 = vsub.f32 %v5969, %v7279
        %v7281 = vand.u32 %v7280, 4294901760
        %7282 = vmatprep.subr.mxu0 %v7281
        %v7283 = vand.u32 %v5968, 4294901760
        %v7284 = vsub.f32 %v5968, %v7283
        %v7285 = vand.u32 %v7284, 4294901760
        %7286 = vmatpush1.msra.mxu0 %v7285
        %v7287 = vand.u32 %v5971, 4294901760
        %v7288 = vsub.f32 %v5971, %v7287
        %v7289 = vand.u32 %v7288, 4294901760
        %7290 = vmatprep.subr.mxu0 %v7289
        %v7291 = vand.u32 %v5970, 4294901760
        %v7292 = vsub.f32 %v5970, %v7291
        %v7293 = vand.u32 %v7292, 4294901760
        %7294 = vmatpush1.msra.mxu0 %v7293
        %v7295 = vand.u32 %v5973, 4294901760
        %v7296 = vsub.f32 %v5973, %v7295
        %v7297 = vand.u32 %v7296, 4294901760
        %7298 = vmatprep.subr.mxu0 %v7297
        %v7299 = vand.u32 %v5972, 4294901760
        %v7300 = vsub.f32 %v5972, %v7299
        %v7301 = vand.u32 %v7300, 4294901760
        %7302 = vmatpush1.msra.mxu0 %v7301
        %v7303 = vand.u32 %v5975, 4294901760
        %v7304 = vsub.f32 %v5975, %v7303
        %v7305 = vand.u32 %v7304, 4294901760
        %7306 = vmatprep.subr.mxu0 %v7305
        %v7307 = vand.u32 %v5974, 4294901760
        %v7308 = vsub.f32 %v5974, %v7307
        %v7309 = vand.u32 %v7308, 4294901760
        %7310 = vmatpush1.msra.mxu0 %v7309
        %v7311 = vand.u32 %v5977, 4294901760
        %v7312 = vsub.f32 %v5977, %v7311
        %v7313 = vand.u32 %v7312, 4294901760
        %7314 = vmatprep.subr.mxu0 %v7313
        %v7315 = vand.u32 %v5976, 4294901760
        %v7316 = vsub.f32 %v5976, %v7315
        %v7317 = vand.u32 %v7316, 4294901760
        %7318 = vmatpush1.msra.mxu0 %v7317
        %v7319 = vand.u32 %v5979, 4294901760
        %v7320 = vsub.f32 %v5979, %v7319
        %v7321 = vand.u32 %v7320, 4294901760
        %7322 = vmatprep.subr.mxu0 %v7321
        %v7323 = vand.u32 %v5978, 4294901760
        %v7324 = vsub.f32 %v5978, %v7323
        %v7325 = vand.u32 %v7324, 4294901760
        %7326 = vmatpush1.msra.mxu0 %v7325
        %v7327 = vand.u32 %v5981, 4294901760
        %v7328 = vsub.f32 %v5981, %v7327
        %v7329 = vand.u32 %v7328, 4294901760
        %7330 = vmatprep.subr.mxu0 %v7329
        %v7331 = vand.u32 %v5980, 4294901760
        %v7332 = vsub.f32 %v5980, %v7331
        %v7333 = vand.u32 %v7332, 4294901760
        %7334 = vmatpush1.msra.mxu0 %v7333
        %v7335 = vand.u32 %v5983, 4294901760
        %v7336 = vsub.f32 %v5983, %v7335
        %v7337 = vand.u32 %v7336, 4294901760
        %7338 = vmatprep.subr.mxu0 %v7337
        %v7339 = vand.u32 %v5982, 4294901760
        %v7340 = vsub.f32 %v5982, %v7339
        %v7341 = vand.u32 %v7340, 4294901760
        %7342 = vmatpush1.msra.mxu0 %v7341
        %v7343 = vand.u32 %v5985, 4294901760
        %v7344 = vsub.f32 %v5985, %v7343
        %v7345 = vand.u32 %v7344, 4294901760
        %7346 = vmatprep.subr.mxu0 %v7345
        %v7347 = vand.u32 %v5984, 4294901760
        %v7348 = vsub.f32 %v5984, %v7347
        %v7349 = vand.u32 %v7348, 4294901760
        %7350 = vmatpush1.msra.mxu0 %v7349
        %v7351 = vand.u32 %v5987, 4294901760
        %v7352 = vsub.f32 %v5987, %v7351
        %v7353 = vand.u32 %v7352, 4294901760
        %7354 = vmatprep.subr.mxu0 %v7353
        %v7355 = vand.u32 %v5986, 4294901760
        %v7356 = vsub.f32 %v5986, %v7355
        %v7357 = vand.u32 %v7356, 4294901760
        %7358 = vmatpush1.msra.mxu0 %v7357
        %v7359 = vand.u32 %v5989, 4294901760
        %v7360 = vsub.f32 %v5989, %v7359
        %v7361 = vand.u32 %v7360, 4294901760
        %7362 = vmatprep.subr.mxu0 %v7361
        %v7363 = vand.u32 %v5988, 4294901760
        %v7364 = vsub.f32 %v5988, %v7363
        %v7365 = vand.u32 %v7364, 4294901760
        %7366 = vmatpush1.msra.mxu0 %v7365
        %v7367 = vand.u32 %v5991, 4294901760
        %v7368 = vsub.f32 %v5991, %v7367
        %v7369 = vand.u32 %v7368, 4294901760
        %7370 = vmatprep.subr.mxu0 %v7369
        %v7371 = vand.u32 %v5990, 4294901760
        %v7372 = vsub.f32 %v5990, %v7371
        %v7373 = vand.u32 %v7372, 4294901760
        %7374 = vmatpush1.msra.mxu0 %v7373
        %v7375 = vand.u32 %v5993, 4294901760
        %v7376 = vsub.f32 %v5993, %v7375
        %v7377 = vand.u32 %v7376, 4294901760
        %7378 = vmatprep.subr.mxu0 %v7377
        %v7379 = vand.u32 %v5992, 4294901760
        %v7380 = vsub.f32 %v5992, %v7379
        %v7381 = vand.u32 %v7380, 4294901760
        %7382 = vmatpush1.msra.mxu0 %v7381
        %v7383 = vand.u32 %v5995, 4294901760
        %v7384 = vsub.f32 %v5995, %v7383
        %v7385 = vand.u32 %v7384, 4294901760
        %7386 = vmatprep.subr.mxu0 %v7385
        %v7387 = vand.u32 %v5994, 4294901760
        %v7388 = vsub.f32 %v5994, %v7387
        %v7389 = vand.u32 %v7388, 4294901760
        %7390 = vmatpush1.msra.mxu0 %v7389
        %v7391 = vand.u32 %v5997, 4294901760
        %v7392 = vsub.f32 %v5997, %v7391
        %v7393 = vand.u32 %v7392, 4294901760
        %7394 = vmatprep.subr.mxu0 %v7393
        %v7395 = vand.u32 %v5996, 4294901760
        %v7396 = vsub.f32 %v5996, %v7395
        %v7397 = vand.u32 %v7396, 4294901760
        %7398 = vmatpush1.msra.mxu0 %v7397
        %v7399 = vand.u32 %v5999, 4294901760
        %v7400 = vsub.f32 %v5999, %v7399
        %v7401 = vand.u32 %v7400, 4294901760
        %7402 = vmatprep.subr.mxu0 %v7401
        %v7403 = vand.u32 %v5998, 4294901760
        %v7404 = vsub.f32 %v5998, %v7403
        %v7405 = vand.u32 %v7404, 4294901760
        %7406 = vmatpush1.msra.mxu0 %v7405
        %v7407 = vand.u32 %v6001, 4294901760
        %v7408 = vsub.f32 %v6001, %v7407
        %v7409 = vand.u32 %v7408, 4294901760
        %7410 = vmatprep.subr.mxu0 %v7409
        %v7411 = vand.u32 %v6000, 4294901760
        %v7412 = vsub.f32 %v6000, %v7411
        %v7413 = vand.u32 %v7412, 4294901760
        %7414 = vmatpush1.msra.mxu0 %v7413
        %v7415 = vand.u32 %v6003, 4294901760
        %v7416 = vsub.f32 %v6003, %v7415
        %v7417 = vand.u32 %v7416, 4294901760
        %7418 = vmatprep.subr.mxu0 %v7417
        %v7419 = vand.u32 %v6002, 4294901760
        %v7420 = vsub.f32 %v6002, %v7419
        %v7421 = vand.u32 %v7420, 4294901760
        %7422 = vmatpush1.msra.mxu0 %v7421
        %v7423 = vand.u32 %v6005, 4294901760
        %v7424 = vsub.f32 %v6005, %v7423
        %v7425 = vand.u32 %v7424, 4294901760
        %7426 = vmatprep.subr.mxu0 %v7425
        %v7427 = vand.u32 %v6004, 4294901760
        %v7428 = vsub.f32 %v6004, %v7427
        %v7429 = vand.u32 %v7428, 4294901760
        %7430 = vmatpush1.msra.mxu0 %v7429
        %v7431 = vand.u32 %v6007, 4294901760
        %v7432 = vsub.f32 %v6007, %v7431
        %v7433 = vand.u32 %v7432, 4294901760
        %7434 = vmatprep.subr.mxu0 %v7433
        %v7435 = vand.u32 %v6006, 4294901760
        %v7436 = vsub.f32 %v6006, %v7435
        %v7437 = vand.u32 %v7436, 4294901760
        %7438 = vmatpush1.msra.mxu0 %v7437
        %v7439 = vand.u32 %v6009, 4294901760
        %v7440 = vsub.f32 %v6009, %v7439
        %v7441 = vand.u32 %v7440, 4294901760
        %7442 = vmatprep.subr.mxu0 %v7441
        %v7443 = vand.u32 %v6008, 4294901760
        %v7444 = vsub.f32 %v6008, %v7443
        %v7445 = vand.u32 %v7444, 4294901760
        %7446 = vmatpush1.msra.mxu0 %v7445
        %v7447 = vand.u32 %v6011, 4294901760
        %v7448 = vsub.f32 %v6011, %v7447
        %v7449 = vand.u32 %v7448, 4294901760
        %7450 = vmatprep.subr.mxu0 %v7449
        %v7451 = vand.u32 %v6010, 4294901760
        %v7452 = vsub.f32 %v6010, %v7451
        %v7453 = vand.u32 %v7452, 4294901760
        %7454 = vmatpush1.msra.mxu0 %v7453
        %v7455 = vand.u32 %v6013, 4294901760
        %v7456 = vsub.f32 %v6013, %v7455
        %v7457 = vand.u32 %v7456, 4294901760
        %7458 = vmatprep.subr.mxu0 %v7457
        %v7459 = vand.u32 %v6012, 4294901760
        %v7460 = vsub.f32 %v6012, %v7459
        %v7461 = vand.u32 %v7460, 4294901760
        %7462 = vmatpush1.msra.mxu0 %v7461
        %v7463 = vand.u32 %v6015, 4294901760
        %v7464 = vsub.f32 %v6015, %v7463
        %v7465 = vand.u32 %v7464, 4294901760
        %7466 = vmatprep.subr.mxu0 %v7465
        %v7467 = vand.u32 %v6014, 4294901760
        %v7468 = vsub.f32 %v6014, %v7467
        %v7469 = vand.u32 %v7468, 4294901760
        %7470 = vmatpush1.msra.mxu0 %v7469
        %v7471 = vand.u32 %v6017, 4294901760
        %v7472 = vsub.f32 %v6017, %v7471
        %v7473 = vand.u32 %v7472, 4294901760
        %7474 = vmatprep.subr.mxu0 %v7473
        %v7475 = vand.u32 %v6016, 4294901760
        %v7476 = vsub.f32 %v6016, %v7475
        %v7477 = vand.u32 %v7476, 4294901760
        %7478 = vmatpush1.msra.mxu0 %v7477
        %v7479 = vand.u32 %v6019, 4294901760
        %v7480 = vsub.f32 %v6019, %v7479
        %v7481 = vand.u32 %v7480, 4294901760
        %7482 = vmatprep.subr.mxu0 %v7481
        %v7483 = vand.u32 %v6018, 4294901760
        %v7484 = vsub.f32 %v6018, %v7483
        %v7485 = vand.u32 %v7484, 4294901760
        %7486 = vmatpush1.msra.mxu0 %v7485
        %v7487 = vand.u32 %v6021, 4294901760
        %v7488 = vsub.f32 %v6021, %v7487
        %v7489 = vand.u32 %v7488, 4294901760
        %7490 = vmatprep.subr.mxu0 %v7489
        %v7491 = vand.u32 %v6020, 4294901760
        %v7492 = vsub.f32 %v6020, %v7491
        %v7493 = vand.u32 %v7492, 4294901760
        %7494 = vmatpush1.msra.mxu0 %v7493
        %v7495 = vand.u32 %v6023, 4294901760
        %v7496 = vsub.f32 %v6023, %v7495
        %v7497 = vand.u32 %v7496, 4294901760
        %7498 = vmatprep.subr.mxu0 %v7497
        %v7499 = vand.u32 %v6022, 4294901760
        %v7500 = vsub.f32 %v6022, %v7499
        %v7501 = vand.u32 %v7500, 4294901760
        %7502 = vmatpush1.msra.mxu0 %v7501
        %v7503 = vand.u32 %v6025, 4294901760
        %v7504 = vsub.f32 %v6025, %v7503
        %v7505 = vand.u32 %v7504, 4294901760
        %7506 = vmatprep.subr.mxu0 %v7505
        %v7507 = vand.u32 %v6024, 4294901760
        %v7508 = vsub.f32 %v6024, %v7507
        %v7509 = vand.u32 %v7508, 4294901760
        %7510 = vmatpush1.msra.mxu0 %v7509
        %v7511 = vand.u32 %v6027, 4294901760
        %v7512 = vsub.f32 %v6027, %v7511
        %v7513 = vand.u32 %v7512, 4294901760
        %7514 = vmatprep.subr.mxu0 %v7513
        %v7515 = vand.u32 %v6026, 4294901760
        %v7516 = vsub.f32 %v6026, %v7515
        %v7517 = vand.u32 %v7516, 4294901760
        %7518 = vmatpush1.msra.mxu0 %v7517
        %v7519 = vand.u32 %v6029, 4294901760
        %v7520 = vsub.f32 %v6029, %v7519
        %v7521 = vand.u32 %v7520, 4294901760
        %7522 = vmatprep.subr.mxu0 %v7521
        %v7523 = vand.u32 %v6028, 4294901760
        %v7524 = vsub.f32 %v6028, %v7523
        %v7525 = vand.u32 %v7524, 4294901760
        %7526 = vmatpush1.msra.mxu0 %v7525
        %v7527 = vand.u32 %v6031, 4294901760
        %v7528 = vsub.f32 %v6031, %v7527
        %v7529 = vand.u32 %v7528, 4294901760
        %7530 = vmatprep.subr.mxu0 %v7529
        %v7531 = vand.u32 %v6030, 4294901760
        %v7532 = vsub.f32 %v6030, %v7531
        %v7533 = vand.u32 %v7532, 4294901760
        %7534 = vmatpush1.msra.mxu0 %v7533
        %v7535 = vand.u32 %v5939, 4294901760
        %7536 = vmatprep.mubr.f32.mxu0 %v7535
        %v7537 = vand.u32 %v5938, 4294901760
        %7538 = vmatmul.mubr.f32.gmra.mrb[0].mxu0 %v7537
        %v7539 = vpop.f32.mrb[0].mxu0
        %v7540 = vadd.f32 %v7215, %v7539
        %v7541 = vpop.f32.mrb[0].mxu0
        %v7542 = vadd.f32 %v7217, %v7541
        %v7543 = vand.u32 %v5944, 4294901760
        %7544 = vmatprep.mubr.f32.mxu0 %v7543
        %v7545 = vand.u32 %v5943, 4294901760
        %7546 = vmatmul.mubr.f32.gmra.mrb[0].mxu0 %v7545
        %v7547 = vpop.f32.mrb[0].mxu0
        %v7548 = vadd.f32 %v7227, %v7547
        %v7549 = vpop.f32.mrb[0].mxu0
        %v7550 = vadd.f32 %v7229, %v7549
        %v7551 = vand.u32 %v5949, 4294901760
        %7552 = vmatprep.mubr.f32.mxu0 %v7551
        %v7553 = vand.u32 %v5948, 4294901760
        %7554 = vmatmul.mubr.f32.gmra.mrb[0].mxu0 %v7553
        %v7555 = vpop.f32.mrb[0].mxu0
        %v7556 = vadd.f32 %v7239, %v7555
        %v7557 = vpop.f32.mrb[0].mxu0
        %v7558 = vadd.f32 %v7241, %v7557
        %v7559 = vand.u32 %v5954, 4294901760
        %7560 = vmatprep.mubr.f32.mxu0 %v7559
        %v7561 = vand.u32 %v5953, 4294901760
        %7562 = vmatmul.mubr.f32.gmra.mrb[0].mxu0 %v7561
        %v7563 = vpop.f32.mrb[0].mxu0
        %v7564 = vadd.f32 %v7251, %v7563
        %v7565 = vpop.f32.mrb[0].mxu0
        %v7566 = vadd.f32 %v7253, %v7565
        %v7567 = vand.u32 %v5959, 4294901760
        %7568 = vmatprep.mubr.f32.mxu0 %v7567
        %v7569 = vand.u32 %v5958, 4294901760
        %7570 = vmatmul.mubr.f32.gmra.mrb[0].mxu0 %v7569
        %v7571 = vpop.f32.mrb[0].mxu0
        %v7572 = vadd.f32 %v7263, %v7571
        %v7573 = vpop.f32.mrb[0].mxu0
        %v7574 = vadd.f32 %v7265, %v7573
        %v7575 = vand.u32 %v5964, 4294901760
        %7576 = vmatprep.mubr.f32.mxu0 %v7575
        %v7577 = vand.u32 %v5963, 4294901760
        %7578 = vmatmul.mubr.f32.gmra.mrb[0].mxu0 %v7577
        %v7579 = vpop.f32.mrb[0].mxu0
        %v7580 = vadd.f32 %v7275, %v7579
        %v7581 = vpop.f32.mrb[0].mxu0
        %v7582 = vadd.f32 %v7277, %v7581
        %7583 = vdwg.mxu0
        %v7584 = vand.u32 %v5969, 4294901760
        %7585 = vmatprep.subr.mxu0 %v7584
        %v7586 = vand.u32 %v5968, 4294901760
        %7587 = vmatpush1.msra.mxu0 %v7586
        %v7588 = vand.u32 %v5971, 4294901760
        %7589 = vmatprep.subr.mxu0 %v7588
        %v7590 = vand.u32 %v5970, 4294901760
        %7591 = vmatpush1.msra.mxu0 %v7590
        %v7592 = vand.u32 %v5973, 4294901760
        %7593 = vmatprep.subr.mxu0 %v7592
        %v7594 = vand.u32 %v5972, 4294901760
        %7595 = vmatpush1.msra.mxu0 %v7594
        %v7596 = vand.u32 %v5975, 4294901760
        %7597 = vmatprep.subr.mxu0 %v7596
        %v7598 = vand.u32 %v5974, 4294901760
        %7599 = vmatpush1.msra.mxu0 %v7598
        %v7600 = vand.u32 %v5977, 4294901760
        %7601 = vmatprep.subr.mxu0 %v7600
        %v7602 = vand.u32 %v5976, 4294901760
        %7603 = vmatpush1.msra.mxu0 %v7602
        %v7604 = vand.u32 %v5979, 4294901760
        %7605 = vmatprep.subr.mxu0 %v7604
        %v7606 = vand.u32 %v5978, 4294901760
        %7607 = vmatpush1.msra.mxu0 %v7606
        %v7608 = vand.u32 %v5981, 4294901760
        %7609 = vmatprep.subr.mxu0 %v7608
        %v7610 = vand.u32 %v5980, 4294901760
        %7611 = vmatpush1.msra.mxu0 %v7610
        %v7612 = vand.u32 %v5983, 4294901760
        %7613 = vmatprep.subr.mxu0 %v7612
        %v7614 = vand.u32 %v5982, 4294901760
        %7615 = vmatpush1.msra.mxu0 %v7614
        %v7616 = vand.u32 %v5985, 4294901760
        %7617 = vmatprep.subr.mxu0 %v7616
        %v7618 = vand.u32 %v5984, 4294901760
        %7619 = vmatpush1.msra.mxu0 %v7618
        %v7620 = vand.u32 %v5987, 4294901760
        %7621 = vmatprep.subr.mxu0 %v7620
        %v7622 = vand.u32 %v5986, 4294901760
        %7623 = vmatpush1.msra.mxu0 %v7622
        %v7624 = vand.u32 %v5989, 4294901760
        %7625 = vmatprep.subr.mxu0 %v7624
        %v7626 = vand.u32 %v5988, 4294901760
        %7627 = vmatpush1.msra.mxu0 %v7626
        %v7628 = vand.u32 %v5991, 4294901760
        %7629 = vmatprep.subr.mxu0 %v7628
        %v7630 = vand.u32 %v5990, 4294901760
        %7631 = vmatpush1.msra.mxu0 %v7630
        %v7632 = vand.u32 %v5993, 4294901760
        %7633 = vmatprep.subr.mxu0 %v7632
        %v7634 = vand.u32 %v5992, 4294901760
        %7635 = vmatpush1.msra.mxu0 %v7634
        %v7636 = vand.u32 %v5995, 4294901760
        %7637 = vmatprep.subr.mxu0 %v7636
        %v7638 = vand.u32 %v5994, 4294901760
        %7639 = vmatpush1.msra.mxu0 %v7638
        %v7640 = vand.u32 %v5997, 4294901760
        %7641 = vmatprep.subr.mxu0 %v7640
        %v7642 = vand.u32 %v5996, 4294901760
        %7643 = vmatpush1.msra.mxu0 %v7642
        %v7644 = vand.u32 %v5999, 4294901760
        %7645 = vmatprep.subr.mxu0 %v7644
        %v7646 = vand.u32 %v5998, 4294901760
        %7647 = vmatpush1.msra.mxu0 %v7646
        %v7648 = vand.u32 %v6001, 4294901760
        %7649 = vmatprep.subr.mxu0 %v7648
        %v7650 = vand.u32 %v6000, 4294901760
        %7651 = vmatpush1.msra.mxu0 %v7650
        %v7652 = vand.u32 %v6003, 4294901760
        %7653 = vmatprep.subr.mxu0 %v7652
        %v7654 = vand.u32 %v6002, 4294901760
        %7655 = vmatpush1.msra.mxu0 %v7654
        %v7656 = vand.u32 %v6005, 4294901760
        %7657 = vmatprep.subr.mxu0 %v7656
        %v7658 = vand.u32 %v6004, 4294901760
        %7659 = vmatpush1.msra.mxu0 %v7658
        %v7660 = vand.u32 %v6007, 4294901760
        %7661 = vmatprep.subr.mxu0 %v7660
        %v7662 = vand.u32 %v6006, 4294901760
        %7663 = vmatpush1.msra.mxu0 %v7662
        %v7664 = vand.u32 %v6009, 4294901760
        %7665 = vmatprep.subr.mxu0 %v7664
        %v7666 = vand.u32 %v6008, 4294901760
        %7667 = vmatpush1.msra.mxu0 %v7666
        %v7668 = vand.u32 %v6011, 4294901760
        %7669 = vmatprep.subr.mxu0 %v7668
        %v7670 = vand.u32 %v6010, 4294901760
        %7671 = vmatpush1.msra.mxu0 %v7670
        %v7672 = vand.u32 %v6013, 4294901760
        %7673 = vmatprep.subr.mxu0 %v7672
        %v7674 = vand.u32 %v6012, 4294901760
        %7675 = vmatpush1.msra.mxu0 %v7674
        %v7676 = vand.u32 %v6015, 4294901760
        %7677 = vmatprep.subr.mxu0 %v7676
        %v7678 = vand.u32 %v6014, 4294901760
        %7679 = vmatpush1.msra.mxu0 %v7678
        %v7680 = vand.u32 %v6017, 4294901760
        %7681 = vmatprep.subr.mxu0 %v7680
        %v7682 = vand.u32 %v6016, 4294901760
        %7683 = vmatpush1.msra.mxu0 %v7682
        %v7684 = vand.u32 %v6019, 4294901760
        %7685 = vmatprep.subr.mxu0 %v7684
        %v7686 = vand.u32 %v6018, 4294901760
        %7687 = vmatpush1.msra.mxu0 %v7686
        %v7688 = vand.u32 %v6021, 4294901760
        %7689 = vmatprep.subr.mxu0 %v7688
        %v7690 = vand.u32 %v6020, 4294901760
        %7691 = vmatpush1.msra.mxu0 %v7690
        %v7692 = vand.u32 %v6023, 4294901760
        %7693 = vmatprep.subr.mxu0 %v7692
        %v7694 = vand.u32 %v6022, 4294901760
        %7695 = vmatpush1.msra.mxu0 %v7694
        %v7696 = vand.u32 %v6025, 4294901760
        %7697 = vmatprep.subr.mxu0 %v7696
        %v7698 = vand.u32 %v6024, 4294901760
        %7699 = vmatpush1.msra.mxu0 %v7698
        %v7700 = vand.u32 %v6027, 4294901760
        %7701 = vmatprep.subr.mxu0 %v7700
        %v7702 = vand.u32 %v6026, 4294901760
        %7703 = vmatpush1.msra.mxu0 %v7702
        %v7704 = vand.u32 %v6029, 4294901760
        %7705 = vmatprep.subr.mxu0 %v7704
        %v7706 = vand.u32 %v6028, 4294901760
        %7707 = vmatpush1.msra.mxu0 %v7706
        %v7708 = vand.u32 %v6031, 4294901760
        %7709 = vmatprep.subr.mxu0 %v7708
        %v7710 = vand.u32 %v6030, 4294901760
        %7711 = vmatpush1.msra.mxu0 %v7710
        %v7712 = vand.u32 %v5939, 4294901760
        %7713 = vmatprep.mubr.f32.mxu0 %v7712
        %v7714 = vand.u32 %v5938, 4294901760
        %7715 = vmatmul.mubr.f32.gmra.mrb[0].mxu0 %v7714
        %v7716 = vpop.f32.mrb[0].mxu0
        %v7717 = vadd.f32 %v7540, %v7716
        %v7718 = vpop.f32.mrb[0].mxu0
        %v7719 = vadd.f32 %v7542, %v7718
        %v7720 = vand.u32 %v5944, 4294901760
        %7721 = vmatprep.mubr.f32.mxu0 %v7720
        %v7722 = vand.u32 %v5943, 4294901760
        %7723 = vmatmul.mubr.f32.gmra.mrb[0].mxu0 %v7722
        %v7724 = vpop.f32.mrb[0].mxu0
        %v7725 = vadd.f32 %v7548, %v7724
        %v7726 = vpop.f32.mrb[0].mxu0
        %v7727 = vadd.f32 %v7550, %v7726
        %v7728 = vand.u32 %v5949, 4294901760
        %7729 = vmatprep.mubr.f32.mxu0 %v7728
        %v7730 = vand.u32 %v5948, 4294901760
        %7731 = vmatmul.mubr.f32.gmra.mrb[0].mxu0 %v7730
        %v7732 = vpop.f32.mrb[0].mxu0
        %v7733 = vadd.f32 %v7556, %v7732
        %v7734 = vpop.f32.mrb[0].mxu0
        %v7735 = vadd.f32 %v7558, %v7734
        %v7736 = vand.u32 %v5954, 4294901760
        %7737 = vmatprep.mubr.f32.mxu0 %v7736
        %v7738 = vand.u32 %v5953, 4294901760
        %7739 = vmatmul.mubr.f32.gmra.mrb[0].mxu0 %v7738
        %v7740 = vpop.f32.mrb[0].mxu0
        %v7741 = vadd.f32 %v7564, %v7740
        %v7742 = vpop.f32.mrb[0].mxu0
        %v7743 = vadd.f32 %v7566, %v7742
        %v7744 = vand.u32 %v5959, 4294901760
        %7745 = vmatprep.mubr.f32.mxu0 %v7744
        %v7746 = vand.u32 %v5958, 4294901760
        %7747 = vmatmul.mubr.f32.gmra.mrb[0].mxu0 %v7746
        %v7748 = vpop.f32.mrb[0].mxu0
        %v7749 = vadd.f32 %v7572, %v7748
        %v7750 = vpop.f32.mrb[0].mxu0
        %v7751 = vadd.f32 %v7574, %v7750
        %v7752 = vand.u32 %v5964, 4294901760
        %7753 = vmatprep.mubr.f32.mxu0 %v7752
        %v7754 = vand.u32 %v5963, 4294901760
        %7755 = vmatmul.mubr.f32.gmra.mrb[0].mxu0 %v7754
        %v7756 = vpop.f32.mrb[0].mxu0
        %v7757 = vadd.f32 %v7580, %v7756
        %v7758 = vpop.f32.mrb[0].mxu0
        %v7759 = vadd.f32 %v7582, %v7758
        %7760 = vdwg.mxu0
        %v7761 = vand.u32 %v6033, 4294901760
        %7762 = vmatprep.subr.mxu0 %v7761
        %v7763 = vand.u32 %v6032, 4294901760
        %7764 = vmatpush1.msra.mxu0 %v7763
        %v7765 = vand.u32 %v6035, 4294901760
        %7766 = vmatprep.subr.mxu0 %v7765
        %v7767 = vand.u32 %v6034, 4294901760
        %7768 = vmatpush1.msra.mxu0 %v7767
        %v7769 = vand.u32 %v6037, 4294901760
        %7770 = vmatprep.subr.mxu0 %v7769
        %v7771 = vand.u32 %v6036, 4294901760
        %7772 = vmatpush1.msra.mxu0 %v7771
        %v7773 = vand.u32 %v6039, 4294901760
        %7774 = vmatprep.subr.mxu0 %v7773
        %v7775 = vand.u32 %v6038, 4294901760
        %7776 = vmatpush1.msra.mxu0 %v7775
        %v7777 = vand.u32 %v6041, 4294901760
        %7778 = vmatprep.subr.mxu0 %v7777
        %v7779 = vand.u32 %v6040, 4294901760
        %7780 = vmatpush1.msra.mxu0 %v7779
        %v7781 = vand.u32 %v6043, 4294901760
        %7782 = vmatprep.subr.mxu0 %v7781
        %v7783 = vand.u32 %v6042, 4294901760
        %7784 = vmatpush1.msra.mxu0 %v7783
        %v7785 = vand.u32 %v6045, 4294901760
        %7786 = vmatprep.subr.mxu0 %v7785
        %v7787 = vand.u32 %v6044, 4294901760
        %7788 = vmatpush1.msra.mxu0 %v7787
        %v7789 = vand.u32 %v6047, 4294901760
        %7790 = vmatprep.subr.mxu0 %v7789
        %v7791 = vand.u32 %v6046, 4294901760
        %7792 = vmatpush1.msra.mxu0 %v7791
        %v7793 = vand.u32 %v6049, 4294901760
        %7794 = vmatprep.subr.mxu0 %v7793
        %v7795 = vand.u32 %v6048, 4294901760
        %7796 = vmatpush1.msra.mxu0 %v7795
        %v7797 = vand.u32 %v6051, 4294901760
        %7798 = vmatprep.subr.mxu0 %v7797
        %v7799 = vand.u32 %v6050, 4294901760
        %7800 = vmatpush1.msra.mxu0 %v7799
        %v7801 = vand.u32 %v6053, 4294901760
        %7802 = vmatprep.subr.mxu0 %v7801
        %v7803 = vand.u32 %v6052, 4294901760
        %7804 = vmatpush1.msra.mxu0 %v7803
        %v7805 = vand.u32 %v6055, 4294901760
        %7806 = vmatprep.subr.mxu0 %v7805
        %v7807 = vand.u32 %v6054, 4294901760
        %7808 = vmatpush1.msra.mxu0 %v7807
        %v7809 = vand.u32 %v6057, 4294901760
        %7810 = vmatprep.subr.mxu0 %v7809
        %v7811 = vand.u32 %v6056, 4294901760
        %7812 = vmatpush1.msra.mxu0 %v7811
        %v7813 = vand.u32 %v6059, 4294901760
        %7814 = vmatprep.subr.mxu0 %v7813
        %v7815 = vand.u32 %v6058, 4294901760
        %7816 = vmatpush1.msra.mxu0 %v7815
        %v7817 = vand.u32 %v6061, 4294901760
        %7818 = vmatprep.subr.mxu0 %v7817
        %v7819 = vand.u32 %v6060, 4294901760
        %7820 = vmatpush1.msra.mxu0 %v7819
        %v7821 = vand.u32 %v6063, 4294901760
        %7822 = vmatprep.subr.mxu0 %v7821
        %v7823 = vand.u32 %v6062, 4294901760
        %7824 = vmatpush1.msra.mxu0 %v7823
        %v7825 = vand.u32 %v6065, 4294901760
        %7826 = vmatprep.subr.mxu0 %v7825
        %v7827 = vand.u32 %v6064, 4294901760
        %7828 = vmatpush1.msra.mxu0 %v7827
        %v7829 = vand.u32 %v6067, 4294901760
        %7830 = vmatprep.subr.mxu0 %v7829
        %v7831 = vand.u32 %v6066, 4294901760
        %7832 = vmatpush1.msra.mxu0 %v7831
        %v7833 = vand.u32 %v6069, 4294901760
        %7834 = vmatprep.subr.mxu0 %v7833
        %v7835 = vand.u32 %v6068, 4294901760
        %7836 = vmatpush1.msra.mxu0 %v7835
        %v7837 = vand.u32 %v6071, 4294901760
        %7838 = vmatprep.subr.mxu0 %v7837
        %v7839 = vand.u32 %v6070, 4294901760
        %7840 = vmatpush1.msra.mxu0 %v7839
        %v7841 = vand.u32 %v6073, 4294901760
        %7842 = vmatprep.subr.mxu0 %v7841
        %v7843 = vand.u32 %v6072, 4294901760
        %7844 = vmatpush1.msra.mxu0 %v7843
        %v7845 = vand.u32 %v6075, 4294901760
        %7846 = vmatprep.subr.mxu0 %v7845
        %v7847 = vand.u32 %v6074, 4294901760
        %7848 = vmatpush1.msra.mxu0 %v7847
        %v7849 = vand.u32 %v6077, 4294901760
        %7850 = vmatprep.subr.mxu0 %v7849
        %v7851 = vand.u32 %v6076, 4294901760
        %7852 = vmatpush1.msra.mxu0 %v7851
        %v7853 = vand.u32 %v6079, 4294901760
        %7854 = vmatprep.subr.mxu0 %v7853
        %v7855 = vand.u32 %v6078, 4294901760
        %7856 = vmatpush1.msra.mxu0 %v7855
        %v7857 = vand.u32 %v6081, 4294901760
        %7858 = vmatprep.subr.mxu0 %v7857
        %v7859 = vand.u32 %v6080, 4294901760
        %7860 = vmatpush1.msra.mxu0 %v7859
        %v7861 = vand.u32 %v6083, 4294901760
        %7862 = vmatprep.subr.mxu0 %v7861
        %v7863 = vand.u32 %v6082, 4294901760
        %7864 = vmatpush1.msra.mxu0 %v7863
        %v7865 = vand.u32 %v6085, 4294901760
        %7866 = vmatprep.subr.mxu0 %v7865
        %v7867 = vand.u32 %v6084, 4294901760
        %7868 = vmatpush1.msra.mxu0 %v7867
        %v7869 = vand.u32 %v6087, 4294901760
        %7870 = vmatprep.subr.mxu0 %v7869
        %v7871 = vand.u32 %v6086, 4294901760
        %7872 = vmatpush1.msra.mxu0 %v7871
        %v7873 = vand.u32 %v6089, 4294901760
        %7874 = vmatprep.subr.mxu0 %v7873
        %v7875 = vand.u32 %v6088, 4294901760
        %7876 = vmatpush1.msra.mxu0 %v7875
        %v7877 = vand.u32 %v6091, 4294901760
        %7878 = vmatprep.subr.mxu0 %v7877
        %v7879 = vand.u32 %v6090, 4294901760
        %7880 = vmatpush1.msra.mxu0 %v7879
        %v7881 = vand.u32 %v6093, 4294901760
        %7882 = vmatprep.subr.mxu0 %v7881
        %v7883 = vand.u32 %v6092, 4294901760
        %7884 = vmatpush1.msra.mxu0 %v7883
        %v7885 = vand.u32 %v6095, 4294901760
        %7886 = vmatprep.subr.mxu0 %v7885
        %v7887 = vand.u32 %v6094, 4294901760
        %7888 = vmatpush1.msra.mxu0 %v7887
        %v7889 = vand.u32 %v5941, 4294901760
        %v7890 = vsub.f32 %v5941, %v7889
        %v7891 = vand.u32 %v7890, 4294901760
        %v7892 = vsub.f32 %v7890, %v7891
        %v7893 = vand.u32 %v7892, 4294901760
        %7894 = vmatprep.mubr.f32.mxu0 %v7893
        %v7895 = vand.u32 %v5940, 4294901760
        %v7896 = vsub.f32 %v5940, %v7895
        %v7897 = vand.u32 %v7896, 4294901760
        %v7898 = vsub.f32 %v7896, %v7897
        %v7899 = vand.u32 %v7898, 4294901760
        %7900 = vmatmul.mubr.f32.gmra.mrb[0].mxu0 %v7899
        %v7901 = vpop.f32.mrb[0].mxu0
        %v7902 = vadd.f32 %v7717, %v7901
        %v7903 = vpop.f32.mrb[0].mxu0
        %v7904 = vadd.f32 %v7719, %v7903
        %v7905 = vand.u32 %v5946, 4294901760
        %v7906 = vsub.f32 %v5946, %v7905
        %v7907 = vand.u32 %v7906, 4294901760
        %v7908 = vsub.f32 %v7906, %v7907
        %v7909 = vand.u32 %v7908, 4294901760
        %7910 = vmatprep.mubr.f32.mxu0 %v7909
        %v7911 = vand.u32 %v5945, 4294901760
        %v7912 = vsub.f32 %v5945, %v7911
        %v7913 = vand.u32 %v7912, 4294901760
        %v7914 = vsub.f32 %v7912, %v7913
        %v7915 = vand.u32 %v7914, 4294901760
        %7916 = vmatmul.mubr.f32.gmra.mrb[0].mxu0 %v7915
        %v7917 = vpop.f32.mrb[0].mxu0
        %v7918 = vadd.f32 %v7725, %v7917
        %v7919 = vpop.f32.mrb[0].mxu0
        %v7920 = vadd.f32 %v7727, %v7919
        %v7921 = vand.u32 %v5951, 4294901760
        %v7922 = vsub.f32 %v5951, %v7921
        %v7923 = vand.u32 %v7922, 4294901760
        %v7924 = vsub.f32 %v7922, %v7923
        %v7925 = vand.u32 %v7924, 4294901760
        %7926 = vmatprep.mubr.f32.mxu0 %v7925
        %v7927 = vand.u32 %v5950, 4294901760
        %v7928 = vsub.f32 %v5950, %v7927
        %v7929 = vand.u32 %v7928, 4294901760
        %v7930 = vsub.f32 %v7928, %v7929
        %v7931 = vand.u32 %v7930, 4294901760
        %7932 = vmatmul.mubr.f32.gmra.mrb[0].mxu0 %v7931
        %v7933 = vpop.f32.mrb[0].mxu0
        %v7934 = vadd.f32 %v7733, %v7933
        %v7935 = vpop.f32.mrb[0].mxu0
        %v7936 = vadd.f32 %v7735, %v7935
        %v7937 = vand.u32 %v5956, 4294901760
        %v7938 = vsub.f32 %v5956, %v7937
        %v7939 = vand.u32 %v7938, 4294901760
        %v7940 = vsub.f32 %v7938, %v7939
        %v7941 = vand.u32 %v7940, 4294901760
        %7942 = vmatprep.mubr.f32.mxu0 %v7941
        %v7943 = vand.u32 %v5955, 4294901760
        %v7944 = vsub.f32 %v5955, %v7943
        %v7945 = vand.u32 %v7944, 4294901760
        %v7946 = vsub.f32 %v7944, %v7945
        %v7947 = vand.u32 %v7946, 4294901760
        %7948 = vmatmul.mubr.f32.gmra.mrb[0].mxu0 %v7947
        %v7949 = vpop.f32.mrb[0].mxu0
        %v7950 = vadd.f32 %v7741, %v7949
        %v7951 = vpop.f32.mrb[0].mxu0
        %v7952 = vadd.f32 %v7743, %v7951
        %v7953 = vand.u32 %v5961, 4294901760
        %v7954 = vsub.f32 %v5961, %v7953
        %v7955 = vand.u32 %v7954, 4294901760
        %v7956 = vsub.f32 %v7954, %v7955
        %v7957 = vand.u32 %v7956, 4294901760
        %7958 = vmatprep.mubr.f32.mxu0 %v7957
        %v7959 = vand.u32 %v5960, 4294901760
        %v7960 = vsub.f32 %v5960, %v7959
        %v7961 = vand.u32 %v7960, 4294901760
        %v7962 = vsub.f32 %v7960, %v7961
        %v7963 = vand.u32 %v7962, 4294901760
        %7964 = vmatmul.mubr.f32.gmra.mrb[0].mxu0 %v7963
        %v7965 = vpop.f32.mrb[0].mxu0
        %v7966 = vadd.f32 %v7749, %v7965
        %v7967 = vpop.f32.mrb[0].mxu0
        %v7968 = vadd.f32 %v7751, %v7967
        %v7969 = vand.u32 %v5966, 4294901760
        %v7970 = vsub.f32 %v5966, %v7969
        %v7971 = vand.u32 %v7970, 4294901760
        %v7972 = vsub.f32 %v7970, %v7971
        %v7973 = vand.u32 %v7972, 4294901760
        %7974 = vmatprep.mubr.f32.mxu0 %v7973
        %v7975 = vand.u32 %v5965, 4294901760
        %v7976 = vsub.f32 %v5965, %v7975
        %v7977 = vand.u32 %v7976, 4294901760
        %v7978 = vsub.f32 %v7976, %v7977
        %v7979 = vand.u32 %v7978, 4294901760
        %7980 = vmatmul.mubr.f32.gmra.mrb[0].mxu0 %v7979
        %v7981 = vpop.f32.mrb[0].mxu0
        %v7982 = vadd.f32 %v7757, %v7981
        %v7983 = vpop.f32.mrb[0].mxu0
        %v7984 = vadd.f32 %v7759, %v7983
        %7985 = vdwg.mxu0
        %v7986 = vand.u32 %v6033, 4294901760
        %v7987 = vsub.f32 %v6033, %v7986
        %v7988 = vand.u32 %v7987, 4294901760
        %v7989 = vsub.f32 %v7987, %v7988
        %v7990 = vand.u32 %v7989, 4294901760
        %7991 = vmatprep.subr.mxu0 %v7990
        %v7992 = vand.u32 %v6032, 4294901760
        %v7993 = vsub.f32 %v6032, %v7992
        %v7994 = vand.u32 %v7993, 4294901760
        %v7995 = vsub.f32 %v7993, %v7994
        %v7996 = vand.u32 %v7995, 4294901760
        %7997 = vmatpush1.msra.mxu0 %v7996
        %v7998 = vand.u32 %v6035, 4294901760
        %v7999 = vsub.f32 %v6035, %v7998
        %v8000 = vand.u32 %v7999, 4294901760
        %v8001 = vsub.f32 %v7999, %v8000
        %v8002 = vand.u32 %v8001, 4294901760
        %8003 = vmatprep.subr.mxu0 %v8002
        %v8004 = vand.u32 %v6034, 4294901760
        %v8005 = vsub.f32 %v6034, %v8004
        %v8006 = vand.u32 %v8005, 4294901760
        %v8007 = vsub.f32 %v8005, %v8006
        %v8008 = vand.u32 %v8007, 4294901760
        %8009 = vmatpush1.msra.mxu0 %v8008
        %v8010 = vand.u32 %v6037, 4294901760
        %v8011 = vsub.f32 %v6037, %v8010
        %v8012 = vand.u32 %v8011, 4294901760
        %v8013 = vsub.f32 %v8011, %v8012
        %v8014 = vand.u32 %v8013, 4294901760
        %8015 = vmatprep.subr.mxu0 %v8014
        %v8016 = vand.u32 %v6036, 4294901760
        %v8017 = vsub.f32 %v6036, %v8016
        %v8018 = vand.u32 %v8017, 4294901760
        %v8019 = vsub.f32 %v8017, %v8018
        %v8020 = vand.u32 %v8019, 4294901760
        %8021 = vmatpush1.msra.mxu0 %v8020
        %v8022 = vand.u32 %v6039, 4294901760
        %v8023 = vsub.f32 %v6039, %v8022
        %v8024 = vand.u32 %v8023, 4294901760
        %v8025 = vsub.f32 %v8023, %v8024
        %v8026 = vand.u32 %v8025, 4294901760
        %8027 = vmatprep.subr.mxu0 %v8026
        %v8028 = vand.u32 %v6038, 4294901760
        %v8029 = vsub.f32 %v6038, %v8028
        %v8030 = vand.u32 %v8029, 4294901760
        %v8031 = vsub.f32 %v8029, %v8030
        %v8032 = vand.u32 %v8031, 4294901760
        %8033 = vmatpush1.msra.mxu0 %v8032
        %v8034 = vand.u32 %v6041, 4294901760
        %v8035 = vsub.f32 %v6041, %v8034
        %v8036 = vand.u32 %v8035, 4294901760
        %v8037 = vsub.f32 %v8035, %v8036
        %v8038 = vand.u32 %v8037, 4294901760
        %8039 = vmatprep.subr.mxu0 %v8038
        %v8040 = vand.u32 %v6040, 4294901760
        %v8041 = vsub.f32 %v6040, %v8040
        %v8042 = vand.u32 %v8041, 4294901760
        %v8043 = vsub.f32 %v8041, %v8042
        %v8044 = vand.u32 %v8043, 4294901760
        %8045 = vmatpush1.msra.mxu0 %v8044
        %v8046 = vand.u32 %v6043, 4294901760
        %v8047 = vsub.f32 %v6043, %v8046
        %v8048 = vand.u32 %v8047, 4294901760
        %v8049 = vsub.f32 %v8047, %v8048
        %v8050 = vand.u32 %v8049, 4294901760
        %8051 = vmatprep.subr.mxu0 %v8050
        %v8052 = vand.u32 %v6042, 4294901760
        %v8053 = vsub.f32 %v6042, %v8052
        %v8054 = vand.u32 %v8053, 4294901760
        %v8055 = vsub.f32 %v8053, %v8054
        %v8056 = vand.u32 %v8055, 4294901760
        %8057 = vmatpush1.msra.mxu0 %v8056
        %v8058 = vand.u32 %v6045, 4294901760
        %v8059 = vsub.f32 %v6045, %v8058
        %v8060 = vand.u32 %v8059, 4294901760
        %v8061 = vsub.f32 %v8059, %v8060
        %v8062 = vand.u32 %v8061, 4294901760
        %8063 = vmatprep.subr.mxu0 %v8062
        %v8064 = vand.u32 %v6044, 4294901760
        %v8065 = vsub.f32 %v6044, %v8064
        %v8066 = vand.u32 %v8065, 4294901760
        %v8067 = vsub.f32 %v8065, %v8066
        %v8068 = vand.u32 %v8067, 4294901760
        %8069 = vmatpush1.msra.mxu0 %v8068
        %v8070 = vand.u32 %v6047, 4294901760
        %v8071 = vsub.f32 %v6047, %v8070
        %v8072 = vand.u32 %v8071, 4294901760
        %v8073 = vsub.f32 %v8071, %v8072
        %v8074 = vand.u32 %v8073, 4294901760
        %8075 = vmatprep.subr.mxu0 %v8074
        %v8076 = vand.u32 %v6046, 4294901760
        %v8077 = vsub.f32 %v6046, %v8076
        %v8078 = vand.u32 %v8077, 4294901760
        %v8079 = vsub.f32 %v8077, %v8078
        %v8080 = vand.u32 %v8079, 4294901760
        %8081 = vmatpush1.msra.mxu0 %v8080
        %v8082 = vand.u32 %v6049, 4294901760
        %v8083 = vsub.f32 %v6049, %v8082
        %v8084 = vand.u32 %v8083, 4294901760
        %v8085 = vsub.f32 %v8083, %v8084
        %v8086 = vand.u32 %v8085, 4294901760
        %8087 = vmatprep.subr.mxu0 %v8086
        %v8088 = vand.u32 %v6048, 4294901760
        %v8089 = vsub.f32 %v6048, %v8088
        %v8090 = vand.u32 %v8089, 4294901760
        %v8091 = vsub.f32 %v8089, %v8090
        %v8092 = vand.u32 %v8091, 4294901760
        %8093 = vmatpush1.msra.mxu0 %v8092
        %v8094 = vand.u32 %v6051, 4294901760
        %v8095 = vsub.f32 %v6051, %v8094
        %v8096 = vand.u32 %v8095, 4294901760
        %v8097 = vsub.f32 %v8095, %v8096
        %v8098 = vand.u32 %v8097, 4294901760
        %8099 = vmatprep.subr.mxu0 %v8098
        %v8100 = vand.u32 %v6050, 4294901760
        %v8101 = vsub.f32 %v6050, %v8100
        %v8102 = vand.u32 %v8101, 4294901760
        %v8103 = vsub.f32 %v8101, %v8102
        %v8104 = vand.u32 %v8103, 4294901760
        %8105 = vmatpush1.msra.mxu0 %v8104
        %v8106 = vand.u32 %v6053, 4294901760
        %v8107 = vsub.f32 %v6053, %v8106
        %v8108 = vand.u32 %v8107, 4294901760
        %v8109 = vsub.f32 %v8107, %v8108
        %v8110 = vand.u32 %v8109, 4294901760
        %8111 = vmatprep.subr.mxu0 %v8110
        %v8112 = vand.u32 %v6052, 4294901760
        %v8113 = vsub.f32 %v6052, %v8112
        %v8114 = vand.u32 %v8113, 4294901760
        %v8115 = vsub.f32 %v8113, %v8114
        %v8116 = vand.u32 %v8115, 4294901760
        %8117 = vmatpush1.msra.mxu0 %v8116
        %v8118 = vand.u32 %v6055, 4294901760
        %v8119 = vsub.f32 %v6055, %v8118
        %v8120 = vand.u32 %v8119, 4294901760
        %v8121 = vsub.f32 %v8119, %v8120
        %v8122 = vand.u32 %v8121, 4294901760
        %8123 = vmatprep.subr.mxu0 %v8122
        %v8124 = vand.u32 %v6054, 4294901760
        %v8125 = vsub.f32 %v6054, %v8124
        %v8126 = vand.u32 %v8125, 4294901760
        %v8127 = vsub.f32 %v8125, %v8126
        %v8128 = vand.u32 %v8127, 4294901760
        %8129 = vmatpush1.msra.mxu0 %v8128
        %v8130 = vand.u32 %v6057, 4294901760
        %v8131 = vsub.f32 %v6057, %v8130
        %v8132 = vand.u32 %v8131, 4294901760
        %v8133 = vsub.f32 %v8131, %v8132
        %v8134 = vand.u32 %v8133, 4294901760
        %8135 = vmatprep.subr.mxu0 %v8134
        %v8136 = vand.u32 %v6056, 4294901760
        %v8137 = vsub.f32 %v6056, %v8136
        %v8138 = vand.u32 %v8137, 4294901760
        %v8139 = vsub.f32 %v8137, %v8138
        %v8140 = vand.u32 %v8139, 4294901760
        %8141 = vmatpush1.msra.mxu0 %v8140
        %v8142 = vand.u32 %v6059, 4294901760
        %v8143 = vsub.f32 %v6059, %v8142
        %v8144 = vand.u32 %v8143, 4294901760
        %v8145 = vsub.f32 %v8143, %v8144
        %v8146 = vand.u32 %v8145, 4294901760
        %8147 = vmatprep.subr.mxu0 %v8146
        %v8148 = vand.u32 %v6058, 4294901760
        %v8149 = vsub.f32 %v6058, %v8148
        %v8150 = vand.u32 %v8149, 4294901760
        %v8151 = vsub.f32 %v8149, %v8150
        %v8152 = vand.u32 %v8151, 4294901760
        %8153 = vmatpush1.msra.mxu0 %v8152
        %v8154 = vand.u32 %v6061, 4294901760
        %v8155 = vsub.f32 %v6061, %v8154
        %v8156 = vand.u32 %v8155, 4294901760
        %v8157 = vsub.f32 %v8155, %v8156
        %v8158 = vand.u32 %v8157, 4294901760
        %8159 = vmatprep.subr.mxu0 %v8158
        %v8160 = vand.u32 %v6060, 4294901760
        %v8161 = vsub.f32 %v6060, %v8160
        %v8162 = vand.u32 %v8161, 4294901760
        %v8163 = vsub.f32 %v8161, %v8162
        %v8164 = vand.u32 %v8163, 4294901760
        %8165 = vmatpush1.msra.mxu0 %v8164
        %v8166 = vand.u32 %v6063, 4294901760
        %v8167 = vsub.f32 %v6063, %v8166
        %v8168 = vand.u32 %v8167, 4294901760
        %v8169 = vsub.f32 %v8167, %v8168
        %v8170 = vand.u32 %v8169, 4294901760
        %8171 = vmatprep.subr.mxu0 %v8170
        %v8172 = vand.u32 %v6062, 4294901760
        %v8173 = vsub.f32 %v6062, %v8172
        %v8174 = vand.u32 %v8173, 4294901760
        %v8175 = vsub.f32 %v8173, %v8174
        %v8176 = vand.u32 %v8175, 4294901760
        %8177 = vmatpush1.msra.mxu0 %v8176
        %v8178 = vand.u32 %v6065, 4294901760
        %v8179 = vsub.f32 %v6065, %v8178
        %v8180 = vand.u32 %v8179, 4294901760
        %v8181 = vsub.f32 %v8179, %v8180
        %v8182 = vand.u32 %v8181, 4294901760
        %8183 = vmatprep.subr.mxu0 %v8182
        %v8184 = vand.u32 %v6064, 4294901760
        %v8185 = vsub.f32 %v6064, %v8184
        %v8186 = vand.u32 %v8185, 4294901760
        %v8187 = vsub.f32 %v8185, %v8186
        %v8188 = vand.u32 %v8187, 4294901760
        %8189 = vmatpush1.msra.mxu0 %v8188
        %v8190 = vand.u32 %v6067, 4294901760
        %v8191 = vsub.f32 %v6067, %v8190
        %v8192 = vand.u32 %v8191, 4294901760
        %v8193 = vsub.f32 %v8191, %v8192
        %v8194 = vand.u32 %v8193, 4294901760
        %8195 = vmatprep.subr.mxu0 %v8194
        %v8196 = vand.u32 %v6066, 4294901760
        %v8197 = vsub.f32 %v6066, %v8196
        %v8198 = vand.u32 %v8197, 4294901760
        %v8199 = vsub.f32 %v8197, %v8198
        %v8200 = vand.u32 %v8199, 4294901760
        %8201 = vmatpush1.msra.mxu0 %v8200
        %v8202 = vand.u32 %v6069, 4294901760
        %v8203 = vsub.f32 %v6069, %v8202
        %v8204 = vand.u32 %v8203, 4294901760
        %v8205 = vsub.f32 %v8203, %v8204
        %v8206 = vand.u32 %v8205, 4294901760
        %8207 = vmatprep.subr.mxu0 %v8206
        %v8208 = vand.u32 %v6068, 4294901760
        %v8209 = vsub.f32 %v6068, %v8208
        %v8210 = vand.u32 %v8209, 4294901760
        %v8211 = vsub.f32 %v8209, %v8210
        %v8212 = vand.u32 %v8211, 4294901760
        %8213 = vmatpush1.msra.mxu0 %v8212
        %v8214 = vand.u32 %v6071, 4294901760
        %v8215 = vsub.f32 %v6071, %v8214
        %v8216 = vand.u32 %v8215, 4294901760
        %v8217 = vsub.f32 %v8215, %v8216
        %v8218 = vand.u32 %v8217, 4294901760
        %8219 = vmatprep.subr.mxu0 %v8218
        %v8220 = vand.u32 %v6070, 4294901760
        %v8221 = vsub.f32 %v6070, %v8220
        %v8222 = vand.u32 %v8221, 4294901760
        %v8223 = vsub.f32 %v8221, %v8222
        %v8224 = vand.u32 %v8223, 4294901760
        %8225 = vmatpush1.msra.mxu0 %v8224
        %v8226 = vand.u32 %v6073, 4294901760
        %v8227 = vsub.f32 %v6073, %v8226
        %v8228 = vand.u32 %v8227, 4294901760
        %v8229 = vsub.f32 %v8227, %v8228
        %v8230 = vand.u32 %v8229, 4294901760
        %8231 = vmatprep.subr.mxu0 %v8230
        %v8232 = vand.u32 %v6072, 4294901760
        %v8233 = vsub.f32 %v6072, %v8232
        %v8234 = vand.u32 %v8233, 4294901760
        %v8235 = vsub.f32 %v8233, %v8234
        %v8236 = vand.u32 %v8235, 4294901760
        %8237 = vmatpush1.msra.mxu0 %v8236
        %v8238 = vand.u32 %v6075, 4294901760
        %v8239 = vsub.f32 %v6075, %v8238
        %v8240 = vand.u32 %v8239, 4294901760
        %v8241 = vsub.f32 %v8239, %v8240
        %v8242 = vand.u32 %v8241, 4294901760
        %8243 = vmatprep.subr.mxu0 %v8242
        %v8244 = vand.u32 %v6074, 4294901760
        %v8245 = vsub.f32 %v6074, %v8244
        %v8246 = vand.u32 %v8245, 4294901760
        %v8247 = vsub.f32 %v8245, %v8246
        %v8248 = vand.u32 %v8247, 4294901760
        %8249 = vmatpush1.msra.mxu0 %v8248
        %v8250 = vand.u32 %v6077, 4294901760
        %v8251 = vsub.f32 %v6077, %v8250
        %v8252 = vand.u32 %v8251, 4294901760
        %v8253 = vsub.f32 %v8251, %v8252
        %v8254 = vand.u32 %v8253, 4294901760
        %8255 = vmatprep.subr.mxu0 %v8254
        %v8256 = vand.u32 %v6076, 4294901760
        %v8257 = vsub.f32 %v6076, %v8256
        %v8258 = vand.u32 %v8257, 4294901760
        %v8259 = vsub.f32 %v8257, %v8258
        %v8260 = vand.u32 %v8259, 4294901760
        %8261 = vmatpush1.msra.mxu0 %v8260
        %v8262 = vand.u32 %v6079, 4294901760
        %v8263 = vsub.f32 %v6079, %v8262
        %v8264 = vand.u32 %v8263, 4294901760
        %v8265 = vsub.f32 %v8263, %v8264
        %v8266 = vand.u32 %v8265, 4294901760
        %8267 = vmatprep.subr.mxu0 %v8266
        %v8268 = vand.u32 %v6078, 4294901760
        %v8269 = vsub.f32 %v6078, %v8268
        %v8270 = vand.u32 %v8269, 4294901760
        %v8271 = vsub.f32 %v8269, %v8270
        %v8272 = vand.u32 %v8271, 4294901760
        %8273 = vmatpush1.msra.mxu0 %v8272
        %v8274 = vand.u32 %v6081, 4294901760
        %v8275 = vsub.f32 %v6081, %v8274
        %v8276 = vand.u32 %v8275, 4294901760
        %v8277 = vsub.f32 %v8275, %v8276
        %v8278 = vand.u32 %v8277, 4294901760
        %8279 = vmatprep.subr.mxu0 %v8278
        %v8280 = vand.u32 %v6080, 4294901760
        %v8281 = vsub.f32 %v6080, %v8280
        %v8282 = vand.u32 %v8281, 4294901760
        %v8283 = vsub.f32 %v8281, %v8282
        %v8284 = vand.u32 %v8283, 4294901760
        %8285 = vmatpush1.msra.mxu0 %v8284
        %v8286 = vand.u32 %v6083, 4294901760
        %v8287 = vsub.f32 %v6083, %v8286
        %v8288 = vand.u32 %v8287, 4294901760
        %v8289 = vsub.f32 %v8287, %v8288
        %v8290 = vand.u32 %v8289, 4294901760
        %8291 = vmatprep.subr.mxu0 %v8290
        %v8292 = vand.u32 %v6082, 4294901760
        %v8293 = vsub.f32 %v6082, %v8292
        %v8294 = vand.u32 %v8293, 4294901760
        %v8295 = vsub.f32 %v8293, %v8294
        %v8296 = vand.u32 %v8295, 4294901760
        %8297 = vmatpush1.msra.mxu0 %v8296
        %v8298 = vand.u32 %v6085, 4294901760
        %v8299 = vsub.f32 %v6085, %v8298
        %v8300 = vand.u32 %v8299, 4294901760
        %v8301 = vsub.f32 %v8299, %v8300
        %v8302 = vand.u32 %v8301, 4294901760
        %8303 = vmatprep.subr.mxu0 %v8302
        %v8304 = vand.u32 %v6084, 4294901760
        %v8305 = vsub.f32 %v6084, %v8304
        %v8306 = vand.u32 %v8305, 4294901760
        %v8307 = vsub.f32 %v8305, %v8306
        %v8308 = vand.u32 %v8307, 4294901760
        %8309 = vmatpush1.msra.mxu0 %v8308
        %v8310 = vand.u32 %v6087, 4294901760
        %v8311 = vsub.f32 %v6087, %v8310
        %v8312 = vand.u32 %v8311, 4294901760
        %v8313 = vsub.f32 %v8311, %v8312
        %v8314 = vand.u32 %v8313, 4294901760
        %8315 = vmatprep.subr.mxu0 %v8314
        %v8316 = vand.u32 %v6086, 4294901760
        %v8317 = vsub.f32 %v6086, %v8316
        %v8318 = vand.u32 %v8317, 4294901760
        %v8319 = vsub.f32 %v8317, %v8318
        %v8320 = vand.u32 %v8319, 4294901760
        %8321 = vmatpush1.msra.mxu0 %v8320
        %v8322 = vand.u32 %v6089, 4294901760
        %v8323 = vsub.f32 %v6089, %v8322
        %v8324 = vand.u32 %v8323, 4294901760
        %v8325 = vsub.f32 %v8323, %v8324
        %v8326 = vand.u32 %v8325, 4294901760
        %8327 = vmatprep.subr.mxu0 %v8326
        %v8328 = vand.u32 %v6088, 4294901760
        %v8329 = vsub.f32 %v6088, %v8328
        %v8330 = vand.u32 %v8329, 4294901760
        %v8331 = vsub.f32 %v8329, %v8330
        %v8332 = vand.u32 %v8331, 4294901760
        %8333 = vmatpush1.msra.mxu0 %v8332
        %v8334 = vand.u32 %v6091, 4294901760
        %v8335 = vsub.f32 %v6091, %v8334
        %v8336 = vand.u32 %v8335, 4294901760
        %v8337 = vsub.f32 %v8335, %v8336
        %v8338 = vand.u32 %v8337, 4294901760
        %8339 = vmatprep.subr.mxu0 %v8338
        %v8340 = vand.u32 %v6090, 4294901760
        %v8341 = vsub.f32 %v6090, %v8340
        %v8342 = vand.u32 %v8341, 4294901760
        %v8343 = vsub.f32 %v8341, %v8342
        %v8344 = vand.u32 %v8343, 4294901760
        %8345 = vmatpush1.msra.mxu0 %v8344
        %v8346 = vand.u32 %v6093, 4294901760
        %v8347 = vsub.f32 %v6093, %v8346
        %v8348 = vand.u32 %v8347, 4294901760
        %v8349 = vsub.f32 %v8347, %v8348
        %v8350 = vand.u32 %v8349, 4294901760
        %8351 = vmatprep.subr.mxu0 %v8350
        %v8352 = vand.u32 %v6092, 4294901760
        %v8353 = vsub.f32 %v6092, %v8352
        %v8354 = vand.u32 %v8353, 4294901760
        %v8355 = vsub.f32 %v8353, %v8354
        %v8356 = vand.u32 %v8355, 4294901760
        %8357 = vmatpush1.msra.mxu0 %v8356
        %v8358 = vand.u32 %v6095, 4294901760
        %v8359 = vsub.f32 %v6095, %v8358
        %v8360 = vand.u32 %v8359, 4294901760
        %v8361 = vsub.f32 %v8359, %v8360
        %v8362 = vand.u32 %v8361, 4294901760
        %8363 = vmatprep.subr.mxu0 %v8362
        %v8364 = vand.u32 %v6094, 4294901760
        %v8365 = vsub.f32 %v6094, %v8364
        %v8366 = vand.u32 %v8365, 4294901760
        %v8367 = vsub.f32 %v8365, %v8366
        %v8368 = vand.u32 %v8367, 4294901760
        %8369 = vmatpush1.msra.mxu0 %v8368
        %v8370 = vand.u32 %v5941, 4294901760
        %8371 = vmatprep.mubr.f32.mxu0 %v8370
        %v8372 = vand.u32 %v5940, 4294901760
        %8373 = vmatmul.mubr.f32.gmra.mrb[0].mxu0 %v8372
        %v8374 = vpop.f32.mrb[0].mxu0
        %v8375 = vadd.f32 %v7902, %v8374
        %v8376 = vpop.f32.mrb[0].mxu0
        %v8377 = vadd.f32 %v7904, %v8376
        %v8378 = vand.u32 %v5946, 4294901760
        %8379 = vmatprep.mubr.f32.mxu0 %v8378
        %v8380 = vand.u32 %v5945, 4294901760
        %8381 = vmatmul.mubr.f32.gmra.mrb[0].mxu0 %v8380
        %v8382 = vpop.f32.mrb[0].mxu0
        %v8383 = vadd.f32 %v7918, %v8382
        %v8384 = vpop.f32.mrb[0].mxu0
        %v8385 = vadd.f32 %v7920, %v8384
        %v8386 = vand.u32 %v5951, 4294901760
        %8387 = vmatprep.mubr.f32.mxu0 %v8386
        %v8388 = vand.u32 %v5950, 4294901760
        %8389 = vmatmul.mubr.f32.gmra.mrb[0].mxu0 %v8388
        %v8390 = vpop.f32.mrb[0].mxu0
        %v8391 = vadd.f32 %v7934, %v8390
        %v8392 = vpop.f32.mrb[0].mxu0
        %v8393 = vadd.f32 %v7936, %v8392
        %v8394 = vand.u32 %v5956, 4294901760
        %8395 = vmatprep.mubr.f32.mxu0 %v8394
        %v8396 = vand.u32 %v5955, 4294901760
        %8397 = vmatmul.mubr.f32.gmra.mrb[0].mxu0 %v8396
        %v8398 = vpop.f32.mrb[0].mxu0
        %v8399 = vadd.f32 %v7950, %v8398
        %v8400 = vpop.f32.mrb[0].mxu0
        %v8401 = vadd.f32 %v7952, %v8400
        %v8402 = vand.u32 %v5961, 4294901760
        %8403 = vmatprep.mubr.f32.mxu0 %v8402
        %v8404 = vand.u32 %v5960, 4294901760
        %8405 = vmatmul.mubr.f32.gmra.mrb[0].mxu0 %v8404
        %v8406 = vpop.f32.mrb[0].mxu0
        %v8407 = vadd.f32 %v7966, %v8406
        %v8408 = vpop.f32.mrb[0].mxu0
        %v8409 = vadd.f32 %v7968, %v8408
        %v8410 = vand.u32 %v5966, 4294901760
        %8411 = vmatprep.mubr.f32.mxu0 %v8410
        %v8412 = vand.u32 %v5965, 4294901760
        %8413 = vmatmul.mubr.f32.gmra.mrb[0].mxu0 %v8412
        %v8414 = vpop.f32.mrb[0].mxu0
        %v8415 = vadd.f32 %v7982, %v8414
        %v8416 = vpop.f32.mrb[0].mxu0
        %v8417 = vadd.f32 %v7984, %v8416
        %8418 = vdwg.mxu0
        %v8419 = vand.u32 %v6033, 4294901760
        %v8420 = vsub.f32 %v6033, %v8419
        %8421 = vmatprep.subr.mxu0 %v8420
        %v8422 = vand.u32 %v6032, 4294901760
        %v8423 = vsub.f32 %v6032, %v8422
        %8424 = vmatpush1.msra.mxu0 %v8423
        %v8425 = vand.u32 %v6035, 4294901760
        %v8426 = vsub.f32 %v6035, %v8425
        %8427 = vmatprep.subr.mxu0 %v8426
        %v8428 = vand.u32 %v6034, 4294901760
        %v8429 = vsub.f32 %v6034, %v8428
        %8430 = vmatpush1.msra.mxu0 %v8429
        %v8431 = vand.u32 %v6037, 4294901760
        %v8432 = vsub.f32 %v6037, %v8431
        %8433 = vmatprep.subr.mxu0 %v8432
        %v8434 = vand.u32 %v6036, 4294901760
        %v8435 = vsub.f32 %v6036, %v8434
        %8436 = vmatpush1.msra.mxu0 %v8435
        %v8437 = vand.u32 %v6039, 4294901760
        %v8438 = vsub.f32 %v6039, %v8437
        %8439 = vmatprep.subr.mxu0 %v8438
        %v8440 = vand.u32 %v6038, 4294901760
        %v8441 = vsub.f32 %v6038, %v8440
        %8442 = vmatpush1.msra.mxu0 %v8441
        %v8443 = vand.u32 %v6041, 4294901760
        %v8444 = vsub.f32 %v6041, %v8443
        %8445 = vmatprep.subr.mxu0 %v8444
        %v8446 = vand.u32 %v6040, 4294901760
        %v8447 = vsub.f32 %v6040, %v8446
        %8448 = vmatpush1.msra.mxu0 %v8447
        %v8449 = vand.u32 %v6043, 4294901760
        %v8450 = vsub.f32 %v6043, %v8449
        %8451 = vmatprep.subr.mxu0 %v8450
        %v8452 = vand.u32 %v6042, 4294901760
        %v8453 = vsub.f32 %v6042, %v8452
        %8454 = vmatpush1.msra.mxu0 %v8453
        %v8455 = vand.u32 %v6045, 4294901760
        %v8456 = vsub.f32 %v6045, %v8455
        %8457 = vmatprep.subr.mxu0 %v8456
        %v8458 = vand.u32 %v6044, 4294901760
        %v8459 = vsub.f32 %v6044, %v8458
        %8460 = vmatpush1.msra.mxu0 %v8459
        %v8461 = vand.u32 %v6047, 4294901760
        %v8462 = vsub.f32 %v6047, %v8461
        %8463 = vmatprep.subr.mxu0 %v8462
        %v8464 = vand.u32 %v6046, 4294901760
        %v8465 = vsub.f32 %v6046, %v8464
        %8466 = vmatpush1.msra.mxu0 %v8465
        %v8467 = vand.u32 %v6049, 4294901760
        %v8468 = vsub.f32 %v6049, %v8467
        %8469 = vmatprep.subr.mxu0 %v8468
        %v8470 = vand.u32 %v6048, 4294901760
        %v8471 = vsub.f32 %v6048, %v8470
        %8472 = vmatpush1.msra.mxu0 %v8471
        %v8473 = vand.u32 %v6051, 4294901760
        %v8474 = vsub.f32 %v6051, %v8473
        %8475 = vmatprep.subr.mxu0 %v8474
        %v8476 = vand.u32 %v6050, 4294901760
        %v8477 = vsub.f32 %v6050, %v8476
        %8478 = vmatpush1.msra.mxu0 %v8477
        %v8479 = vand.u32 %v6053, 4294901760
        %v8480 = vsub.f32 %v6053, %v8479
        %8481 = vmatprep.subr.mxu0 %v8480
        %v8482 = vand.u32 %v6052, 4294901760
        %v8483 = vsub.f32 %v6052, %v8482
        %8484 = vmatpush1.msra.mxu0 %v8483
        %v8485 = vand.u32 %v6055, 4294901760
        %v8486 = vsub.f32 %v6055, %v8485
        %8487 = vmatprep.subr.mxu0 %v8486
        %v8488 = vand.u32 %v6054, 4294901760
        %v8489 = vsub.f32 %v6054, %v8488
        %8490 = vmatpush1.msra.mxu0 %v8489
        %v8491 = vand.u32 %v6057, 4294901760
        %v8492 = vsub.f32 %v6057, %v8491
        %8493 = vmatprep.subr.mxu0 %v8492
        %v8494 = vand.u32 %v6056, 4294901760
        %v8495 = vsub.f32 %v6056, %v8494
        %8496 = vmatpush1.msra.mxu0 %v8495
        %v8497 = vand.u32 %v6059, 4294901760
        %v8498 = vsub.f32 %v6059, %v8497
        %8499 = vmatprep.subr.mxu0 %v8498
        %v8500 = vand.u32 %v6058, 4294901760
        %v8501 = vsub.f32 %v6058, %v8500
        %8502 = vmatpush1.msra.mxu0 %v8501
        %v8503 = vand.u32 %v6061, 4294901760
        %v8504 = vsub.f32 %v6061, %v8503
        %8505 = vmatprep.subr.mxu0 %v8504
        %v8506 = vand.u32 %v6060, 4294901760
        %v8507 = vsub.f32 %v6060, %v8506
        %8508 = vmatpush1.msra.mxu0 %v8507
        %v8509 = vand.u32 %v6063, 4294901760
        %v8510 = vsub.f32 %v6063, %v8509
        %8511 = vmatprep.subr.mxu0 %v8510
        %v8512 = vand.u32 %v6062, 4294901760
        %v8513 = vsub.f32 %v6062, %v8512
        %8514 = vmatpush1.msra.mxu0 %v8513
        %v8515 = vand.u32 %v6065, 4294901760
        %v8516 = vsub.f32 %v6065, %v8515
        %8517 = vmatprep.subr.mxu0 %v8516
        %v8518 = vand.u32 %v6064, 4294901760
        %v8519 = vsub.f32 %v6064, %v8518
        %8520 = vmatpush1.msra.mxu0 %v8519
        %v8521 = vand.u32 %v6067, 4294901760
        %v8522 = vsub.f32 %v6067, %v8521
        %8523 = vmatprep.subr.mxu0 %v8522
        %v8524 = vand.u32 %v6066, 4294901760
        %v8525 = vsub.f32 %v6066, %v8524
        %8526 = vmatpush1.msra.mxu0 %v8525
        %v8527 = vand.u32 %v6069, 4294901760
        %v8528 = vsub.f32 %v6069, %v8527
        %8529 = vmatprep.subr.mxu0 %v8528
        %v8530 = vand.u32 %v6068, 4294901760
        %v8531 = vsub.f32 %v6068, %v8530
        %8532 = vmatpush1.msra.mxu0 %v8531
        %v8533 = vand.u32 %v6071, 4294901760
        %v8534 = vsub.f32 %v6071, %v8533
        %8535 = vmatprep.subr.mxu0 %v8534
        %v8536 = vand.u32 %v6070, 4294901760
        %v8537 = vsub.f32 %v6070, %v8536
        %8538 = vmatpush1.msra.mxu0 %v8537
        %v8539 = vand.u32 %v6073, 4294901760
        %v8540 = vsub.f32 %v6073, %v8539
        %8541 = vmatprep.subr.mxu0 %v8540
        %v8542 = vand.u32 %v6072, 4294901760
        %v8543 = vsub.f32 %v6072, %v8542
        %8544 = vmatpush1.msra.mxu0 %v8543
        %v8545 = vand.u32 %v6075, 4294901760
        %v8546 = vsub.f32 %v6075, %v8545
        %8547 = vmatprep.subr.mxu0 %v8546
        %v8548 = vand.u32 %v6074, 4294901760
        %v8549 = vsub.f32 %v6074, %v8548
        %8550 = vmatpush1.msra.mxu0 %v8549
        %v8551 = vand.u32 %v6077, 4294901760
        %v8552 = vsub.f32 %v6077, %v8551
        %8553 = vmatprep.subr.mxu0 %v8552
        %v8554 = vand.u32 %v6076, 4294901760
        %v8555 = vsub.f32 %v6076, %v8554
        %8556 = vmatpush1.msra.mxu0 %v8555
        %v8557 = vand.u32 %v6079, 4294901760
        %v8558 = vsub.f32 %v6079, %v8557
        %8559 = vmatprep.subr.mxu0 %v8558
        %v8560 = vand.u32 %v6078, 4294901760
        %v8561 = vsub.f32 %v6078, %v8560
        %8562 = vmatpush1.msra.mxu0 %v8561
        %v8563 = vand.u32 %v6081, 4294901760
        %v8564 = vsub.f32 %v6081, %v8563
        %8565 = vmatprep.subr.mxu0 %v8564
        %v8566 = vand.u32 %v6080, 4294901760
        %v8567 = vsub.f32 %v6080, %v8566
        %8568 = vmatpush1.msra.mxu0 %v8567
        %v8569 = vand.u32 %v6083, 4294901760
        %v8570 = vsub.f32 %v6083, %v8569
        %8571 = vmatprep.subr.mxu0 %v8570
        %v8572 = vand.u32 %v6082, 4294901760
        %v8573 = vsub.f32 %v6082, %v8572
        %8574 = vmatpush1.msra.mxu0 %v8573
        %v8575 = vand.u32 %v6085, 4294901760
        %v8576 = vsub.f32 %v6085, %v8575
        %8577 = vmatprep.subr.mxu0 %v8576
        %v8578 = vand.u32 %v6084, 4294901760
        %v8579 = vsub.f32 %v6084, %v8578
        %8580 = vmatpush1.msra.mxu0 %v8579
        %v8581 = vand.u32 %v6087, 4294901760
        %v8582 = vsub.f32 %v6087, %v8581
        %8583 = vmatprep.subr.mxu0 %v8582
        %v8584 = vand.u32 %v6086, 4294901760
        %v8585 = vsub.f32 %v6086, %v8584
        %8586 = vmatpush1.msra.mxu0 %v8585
        %v8587 = vand.u32 %v6089, 4294901760
        %v8588 = vsub.f32 %v6089, %v8587
        %8589 = vmatprep.subr.mxu0 %v8588
        %v8590 = vand.u32 %v6088, 4294901760
        %v8591 = vsub.f32 %v6088, %v8590
        %8592 = vmatpush1.msra.mxu0 %v8591
        %v8593 = vand.u32 %v6091, 4294901760
        %v8594 = vsub.f32 %v6091, %v8593
        %8595 = vmatprep.subr.mxu0 %v8594
        %v8596 = vand.u32 %v6090, 4294901760
        %v8597 = vsub.f32 %v6090, %v8596
        %8598 = vmatpush1.msra.mxu0 %v8597
        %v8599 = vand.u32 %v6093, 4294901760
        %v8600 = vsub.f32 %v6093, %v8599
        %8601 = vmatprep.subr.mxu0 %v8600
        %v8602 = vand.u32 %v6092, 4294901760
        %v8603 = vsub.f32 %v6092, %v8602
        %8604 = vmatpush1.msra.mxu0 %v8603
        %v8605 = vand.u32 %v6095, 4294901760
        %v8606 = vsub.f32 %v6095, %v8605
        %8607 = vmatprep.subr.mxu0 %v8606
        %v8608 = vand.u32 %v6094, 4294901760
        %v8609 = vsub.f32 %v6094, %v8608
        %8610 = vmatpush1.msra.mxu0 %v8609
        %v8611 = vand.u32 %v5941, 4294901760
        %v8612 = vsub.f32 %v5941, %v8611
        %8613 = vmatprep.mubr.f32.mxu0 %v8612
        %v8614 = vand.u32 %v5940, 4294901760
        %v8615 = vsub.f32 %v5940, %v8614
        %8616 = vmatmul.mubr.f32.gmra.mrb[0].mxu0 %v8615
        %v8617 = vpop.f32.mrb[0].mxu0
        %v8618 = vadd.f32 %v8375, %v8617
        %v8619 = vpop.f32.mrb[0].mxu0
        %v8620 = vadd.f32 %v8377, %v8619
        %v8621 = vand.u32 %v5946, 4294901760
        %v8622 = vsub.f32 %v5946, %v8621
        %8623 = vmatprep.mubr.f32.mxu0 %v8622
        %v8624 = vand.u32 %v5945, 4294901760
        %v8625 = vsub.f32 %v5945, %v8624
        %8626 = vmatmul.mubr.f32.gmra.mrb[0].mxu0 %v8625
        %v8627 = vpop.f32.mrb[0].mxu0
        %v8628 = vadd.f32 %v8383, %v8627
        %v8629 = vpop.f32.mrb[0].mxu0
        %v8630 = vadd.f32 %v8385, %v8629
        %v8631 = vand.u32 %v5951, 4294901760
        %v8632 = vsub.f32 %v5951, %v8631
        %8633 = vmatprep.mubr.f32.mxu0 %v8632
        %v8634 = vand.u32 %v5950, 4294901760
        %v8635 = vsub.f32 %v5950, %v8634
        %8636 = vmatmul.mubr.f32.gmra.mrb[0].mxu0 %v8635
        %v8637 = vpop.f32.mrb[0].mxu0
        %v8638 = vadd.f32 %v8391, %v8637
        %v8639 = vpop.f32.mrb[0].mxu0
        %v8640 = vadd.f32 %v8393, %v8639
        %v8641 = vand.u32 %v5956, 4294901760
        %v8642 = vsub.f32 %v5956, %v8641
        %8643 = vmatprep.mubr.f32.mxu0 %v8642
        %v8644 = vand.u32 %v5955, 4294901760
        %v8645 = vsub.f32 %v5955, %v8644
        %8646 = vmatmul.mubr.f32.gmra.mrb[0].mxu0 %v8645
        %v8647 = vpop.f32.mrb[0].mxu0
        %v8648 = vadd.f32 %v8399, %v8647
        %v8649 = vpop.f32.mrb[0].mxu0
        %v8650 = vadd.f32 %v8401, %v8649
        %v8651 = vand.u32 %v5961, 4294901760
        %v8652 = vsub.f32 %v5961, %v8651
        %8653 = vmatprep.mubr.f32.mxu0 %v8652
        %v8654 = vand.u32 %v5960, 4294901760
        %v8655 = vsub.f32 %v5960, %v8654
        %8656 = vmatmul.mubr.f32.gmra.mrb[0].mxu0 %v8655
        %v8657 = vpop.f32.mrb[0].mxu0
        %v8658 = vadd.f32 %v8407, %v8657
        %v8659 = vpop.f32.mrb[0].mxu0
        %v8660 = vadd.f32 %v8409, %v8659
        %v8661 = vand.u32 %v5966, 4294901760
        %v8662 = vsub.f32 %v5966, %v8661
        %8663 = vmatprep.mubr.f32.mxu0 %v8662
        %v8664 = vand.u32 %v5965, 4294901760
        %v8665 = vsub.f32 %v5965, %v8664
        %8666 = vmatmul.mubr.f32.gmra.mrb[0].mxu0 %v8665
        %v8667 = vpop.f32.mrb[0].mxu0
        %v8668 = vadd.f32 %v8415, %v8667
        %v8669 = vpop.f32.mrb[0].mxu0
        %v8670 = vadd.f32 %v8417, %v8669
        %8671 = vdwg.mxu0
        %v8672 = vand.u32 %v6033, 4294901760
        %8673 = vmatprep.subr.mxu0 %v8672
        %v8674 = vand.u32 %v6032, 4294901760
        %8675 = vmatpush1.msra.mxu0 %v8674
        %v8676 = vand.u32 %v6035, 4294901760
        %8677 = vmatprep.subr.mxu0 %v8676
        %v8678 = vand.u32 %v6034, 4294901760
        %8679 = vmatpush1.msra.mxu0 %v8678
        %v8680 = vand.u32 %v6037, 4294901760
        %8681 = vmatprep.subr.mxu0 %v8680
        %v8682 = vand.u32 %v6036, 4294901760
        %8683 = vmatpush1.msra.mxu0 %v8682
        %v8684 = vand.u32 %v6039, 4294901760
        %8685 = vmatprep.subr.mxu0 %v8684
        %v8686 = vand.u32 %v6038, 4294901760
        %8687 = vmatpush1.msra.mxu0 %v8686
        %v8688 = vand.u32 %v6041, 4294901760
        %8689 = vmatprep.subr.mxu0 %v8688
        %v8690 = vand.u32 %v6040, 4294901760
        %8691 = vmatpush1.msra.mxu0 %v8690
        %v8692 = vand.u32 %v6043, 4294901760
        %8693 = vmatprep.subr.mxu0 %v8692
        %v8694 = vand.u32 %v6042, 4294901760
        %8695 = vmatpush1.msra.mxu0 %v8694
        %v8696 = vand.u32 %v6045, 4294901760
        %8697 = vmatprep.subr.mxu0 %v8696
        %v8698 = vand.u32 %v6044, 4294901760
        %8699 = vmatpush1.msra.mxu0 %v8698
        %v8700 = vand.u32 %v6047, 4294901760
        %8701 = vmatprep.subr.mxu0 %v8700
        %v8702 = vand.u32 %v6046, 4294901760
        %8703 = vmatpush1.msra.mxu0 %v8702
        %v8704 = vand.u32 %v6049, 4294901760
        %8705 = vmatprep.subr.mxu0 %v8704
        %v8706 = vand.u32 %v6048, 4294901760
        %8707 = vmatpush1.msra.mxu0 %v8706
        %v8708 = vand.u32 %v6051, 4294901760
        %8709 = vmatprep.subr.mxu0 %v8708
        %v8710 = vand.u32 %v6050, 4294901760
        %8711 = vmatpush1.msra.mxu0 %v8710
        %v8712 = vand.u32 %v6053, 4294901760
        %8713 = vmatprep.subr.mxu0 %v8712
        %v8714 = vand.u32 %v6052, 4294901760
        %8715 = vmatpush1.msra.mxu0 %v8714
        %v8716 = vand.u32 %v6055, 4294901760
        %8717 = vmatprep.subr.mxu0 %v8716
        %v8718 = vand.u32 %v6054, 4294901760
        %8719 = vmatpush1.msra.mxu0 %v8718
        %v8720 = vand.u32 %v6057, 4294901760
        %8721 = vmatprep.subr.mxu0 %v8720
        %v8722 = vand.u32 %v6056, 4294901760
        %8723 = vmatpush1.msra.mxu0 %v8722
        %v8724 = vand.u32 %v6059, 4294901760
        %8725 = vmatprep.subr.mxu0 %v8724
        %v8726 = vand.u32 %v6058, 4294901760
        %8727 = vmatpush1.msra.mxu0 %v8726
        %v8728 = vand.u32 %v6061, 4294901760
        %8729 = vmatprep.subr.mxu0 %v8728
        %v8730 = vand.u32 %v6060, 4294901760
        %8731 = vmatpush1.msra.mxu0 %v8730
        %v8732 = vand.u32 %v6063, 4294901760
        %8733 = vmatprep.subr.mxu0 %v8732
        %v8734 = vand.u32 %v6062, 4294901760
        %8735 = vmatpush1.msra.mxu0 %v8734
        %v8736 = vand.u32 %v6065, 4294901760
        %8737 = vmatprep.subr.mxu0 %v8736
        %v8738 = vand.u32 %v6064, 4294901760
        %8739 = vmatpush1.msra.mxu0 %v8738
        %v8740 = vand.u32 %v6067, 4294901760
        %8741 = vmatprep.subr.mxu0 %v8740
        %v8742 = vand.u32 %v6066, 4294901760
        %8743 = vmatpush1.msra.mxu0 %v8742
        %v8744 = vand.u32 %v6069, 4294901760
        %8745 = vmatprep.subr.mxu0 %v8744
        %v8746 = vand.u32 %v6068, 4294901760
        %8747 = vmatpush1.msra.mxu0 %v8746
        %v8748 = vand.u32 %v6071, 4294901760
        %8749 = vmatprep.subr.mxu0 %v8748
        %v8750 = vand.u32 %v6070, 4294901760
        %8751 = vmatpush1.msra.mxu0 %v8750
        %v8752 = vand.u32 %v6073, 4294901760
        %8753 = vmatprep.subr.mxu0 %v8752
        %v8754 = vand.u32 %v6072, 4294901760
        %8755 = vmatpush1.msra.mxu0 %v8754
        %v8756 = vand.u32 %v6075, 4294901760
        %8757 = vmatprep.subr.mxu0 %v8756
        %v8758 = vand.u32 %v6074, 4294901760
        %8759 = vmatpush1.msra.mxu0 %v8758
        %v8760 = vand.u32 %v6077, 4294901760
        %8761 = vmatprep.subr.mxu0 %v8760
        %v8762 = vand.u32 %v6076, 4294901760
        %8763 = vmatpush1.msra.mxu0 %v8762
        %v8764 = vand.u32 %v6079, 4294901760
        %8765 = vmatprep.subr.mxu0 %v8764
        %v8766 = vand.u32 %v6078, 4294901760
        %8767 = vmatpush1.msra.mxu0 %v8766
        %v8768 = vand.u32 %v6081, 4294901760
        %8769 = vmatprep.subr.mxu0 %v8768
        %v8770 = vand.u32 %v6080, 4294901760
        %8771 = vmatpush1.msra.mxu0 %v8770
        %v8772 = vand.u32 %v6083, 4294901760
        %8773 = vmatprep.subr.mxu0 %v8772
        %v8774 = vand.u32 %v6082, 4294901760
        %8775 = vmatpush1.msra.mxu0 %v8774
        %v8776 = vand.u32 %v6085, 4294901760
        %8777 = vmatprep.subr.mxu0 %v8776
        %v8778 = vand.u32 %v6084, 4294901760
        %8779 = vmatpush1.msra.mxu0 %v8778
        %v8780 = vand.u32 %v6087, 4294901760
        %8781 = vmatprep.subr.mxu0 %v8780
        %v8782 = vand.u32 %v6086, 4294901760
        %8783 = vmatpush1.msra.mxu0 %v8782
        %v8784 = vand.u32 %v6089, 4294901760
        %8785 = vmatprep.subr.mxu0 %v8784
        %v8786 = vand.u32 %v6088, 4294901760
        %8787 = vmatpush1.msra.mxu0 %v8786
        %v8788 = vand.u32 %v6091, 4294901760
        %8789 = vmatprep.subr.mxu0 %v8788
        %v8790 = vand.u32 %v6090, 4294901760
        %8791 = vmatpush1.msra.mxu0 %v8790
        %v8792 = vand.u32 %v6093, 4294901760
        %8793 = vmatprep.subr.mxu0 %v8792
        %v8794 = vand.u32 %v6092, 4294901760
        %8795 = vmatpush1.msra.mxu0 %v8794
        %v8796 = vand.u32 %v6095, 4294901760
        %8797 = vmatprep.subr.mxu0 %v8796
        %v8798 = vand.u32 %v6094, 4294901760
        %8799 = vmatpush1.msra.mxu0 %v8798
        %v8800 = vand.u32 %v5941, 4294901760
        %v8801 = vsub.f32 %v5941, %v8800
        %v8802 = vand.u32 %v8801, 4294901760
        %8803 = vmatprep.mubr.f32.mxu0 %v8802
        %v8804 = vand.u32 %v5940, 4294901760
        %v8805 = vsub.f32 %v5940, %v8804
        %v8806 = vand.u32 %v8805, 4294901760
        %8807 = vmatmul.mubr.f32.gmra.mrb[0].mxu0 %v8806
        %v8808 = vpop.f32.mrb[0].mxu0
        %v8809 = vadd.f32 %v8618, %v8808
        %v8810 = vpop.f32.mrb[0].mxu0
        %v8811 = vadd.f32 %v8620, %v8810
        %v8812 = vand.u32 %v5946, 4294901760
        %v8813 = vsub.f32 %v5946, %v8812
        %v8814 = vand.u32 %v8813, 4294901760
        %8815 = vmatprep.mubr.f32.mxu0 %v8814
        %v8816 = vand.u32 %v5945, 4294901760
        %v8817 = vsub.f32 %v5945, %v8816
        %v8818 = vand.u32 %v8817, 4294901760
        %8819 = vmatmul.mubr.f32.gmra.mrb[0].mxu0 %v8818
        %v8820 = vpop.f32.mrb[0].mxu0
        %v8821 = vadd.f32 %v8628, %v8820
        %v8822 = vpop.f32.mrb[0].mxu0
        %v8823 = vadd.f32 %v8630, %v8822
        %v8824 = vand.u32 %v5951, 4294901760
        %v8825 = vsub.f32 %v5951, %v8824
        %v8826 = vand.u32 %v8825, 4294901760
        %8827 = vmatprep.mubr.f32.mxu0 %v8826
        %v8828 = vand.u32 %v5950, 4294901760
        %v8829 = vsub.f32 %v5950, %v8828
        %v8830 = vand.u32 %v8829, 4294901760
        %8831 = vmatmul.mubr.f32.gmra.mrb[0].mxu0 %v8830
        %v8832 = vpop.f32.mrb[0].mxu0
        %v8833 = vadd.f32 %v8638, %v8832
        %v8834 = vpop.f32.mrb[0].mxu0
        %v8835 = vadd.f32 %v8640, %v8834
        %v8836 = vand.u32 %v5956, 4294901760
        %v8837 = vsub.f32 %v5956, %v8836
        %v8838 = vand.u32 %v8837, 4294901760
        %8839 = vmatprep.mubr.f32.mxu0 %v8838
        %v8840 = vand.u32 %v5955, 4294901760
        %v8841 = vsub.f32 %v5955, %v8840
        %v8842 = vand.u32 %v8841, 4294901760
        %8843 = vmatmul.mubr.f32.gmra.mrb[0].mxu0 %v8842
        %v8844 = vpop.f32.mrb[0].mxu0
        %v8845 = vadd.f32 %v8648, %v8844
        %v8846 = vpop.f32.mrb[0].mxu0
        %v8847 = vadd.f32 %v8650, %v8846
        %v8848 = vand.u32 %v5961, 4294901760
        %v8849 = vsub.f32 %v5961, %v8848
        %v8850 = vand.u32 %v8849, 4294901760
        %8851 = vmatprep.mubr.f32.mxu0 %v8850
        %v8852 = vand.u32 %v5960, 4294901760
        %v8853 = vsub.f32 %v5960, %v8852
        %v8854 = vand.u32 %v8853, 4294901760
        %8855 = vmatmul.mubr.f32.gmra.mrb[0].mxu0 %v8854
        %v8856 = vpop.f32.mrb[0].mxu0
        %v8857 = vadd.f32 %v8658, %v8856
        %v8858 = vpop.f32.mrb[0].mxu0
        %v8859 = vadd.f32 %v8660, %v8858
        %v8860 = vand.u32 %v5966, 4294901760
        %v8861 = vsub.f32 %v5966, %v8860
        %v8862 = vand.u32 %v8861, 4294901760
        %8863 = vmatprep.mubr.f32.mxu0 %v8862
        %v8864 = vand.u32 %v5965, 4294901760
        %v8865 = vsub.f32 %v5965, %v8864
        %v8866 = vand.u32 %v8865, 4294901760
        %8867 = vmatmul.mubr.f32.gmra.mrb[0].mxu0 %v8866
        %v8868 = vpop.f32.mrb[0].mxu0
        %v8869 = vadd.f32 %v8668, %v8868
        %v8870 = vpop.f32.mrb[0].mxu0
        %v8871 = vadd.f32 %v8670, %v8870
        %8872 = vdwg.mxu0
        %v8873 = vand.u32 %v6033, 4294901760
        %v8874 = vsub.f32 %v6033, %v8873
        %v8875 = vand.u32 %v8874, 4294901760
        %8876 = vmatprep.subr.mxu0 %v8875
        %v8877 = vand.u32 %v6032, 4294901760
        %v8878 = vsub.f32 %v6032, %v8877
        %v8879 = vand.u32 %v8878, 4294901760
        %8880 = vmatpush1.msra.mxu0 %v8879
        %v8881 = vand.u32 %v6035, 4294901760
        %v8882 = vsub.f32 %v6035, %v8881
        %v8883 = vand.u32 %v8882, 4294901760
        %8884 = vmatprep.subr.mxu0 %v8883
        %v8885 = vand.u32 %v6034, 4294901760
        %v8886 = vsub.f32 %v6034, %v8885
        %v8887 = vand.u32 %v8886, 4294901760
        %8888 = vmatpush1.msra.mxu0 %v8887
        %v8889 = vand.u32 %v6037, 4294901760
        %v8890 = vsub.f32 %v6037, %v8889
        %v8891 = vand.u32 %v8890, 4294901760
        %8892 = vmatprep.subr.mxu0 %v8891
        %v8893 = vand.u32 %v6036, 4294901760
        %v8894 = vsub.f32 %v6036, %v8893
        %v8895 = vand.u32 %v8894, 4294901760
        %8896 = vmatpush1.msra.mxu0 %v8895
        %v8897 = vand.u32 %v6039, 4294901760
        %v8898 = vsub.f32 %v6039, %v8897
        %v8899 = vand.u32 %v8898, 4294901760
        %8900 = vmatprep.subr.mxu0 %v8899
        %v8901 = vand.u32 %v6038, 4294901760
        %v8902 = vsub.f32 %v6038, %v8901
        %v8903 = vand.u32 %v8902, 4294901760
        %8904 = vmatpush1.msra.mxu0 %v8903
        %v8905 = vand.u32 %v6041, 4294901760
        %v8906 = vsub.f32 %v6041, %v8905
        %v8907 = vand.u32 %v8906, 4294901760
        %8908 = vmatprep.subr.mxu0 %v8907
        %v8909 = vand.u32 %v6040, 4294901760
        %v8910 = vsub.f32 %v6040, %v8909
        %v8911 = vand.u32 %v8910, 4294901760
        %8912 = vmatpush1.msra.mxu0 %v8911
        %v8913 = vand.u32 %v6043, 4294901760
        %v8914 = vsub.f32 %v6043, %v8913
        %v8915 = vand.u32 %v8914, 4294901760
        %8916 = vmatprep.subr.mxu0 %v8915
        %v8917 = vand.u32 %v6042, 4294901760
        %v8918 = vsub.f32 %v6042, %v8917
        %v8919 = vand.u32 %v8918, 4294901760
        %8920 = vmatpush1.msra.mxu0 %v8919
        %v8921 = vand.u32 %v6045, 4294901760
        %v8922 = vsub.f32 %v6045, %v8921
        %v8923 = vand.u32 %v8922, 4294901760
        %8924 = vmatprep.subr.mxu0 %v8923
        %v8925 = vand.u32 %v6044, 4294901760
        %v8926 = vsub.f32 %v6044, %v8925
        %v8927 = vand.u32 %v8926, 4294901760
        %8928 = vmatpush1.msra.mxu0 %v8927
        %v8929 = vand.u32 %v6047, 4294901760
        %v8930 = vsub.f32 %v6047, %v8929
        %v8931 = vand.u32 %v8930, 4294901760
        %8932 = vmatprep.subr.mxu0 %v8931
        %v8933 = vand.u32 %v6046, 4294901760
        %v8934 = vsub.f32 %v6046, %v8933
        %v8935 = vand.u32 %v8934, 4294901760
        %8936 = vmatpush1.msra.mxu0 %v8935
        %v8937 = vand.u32 %v6049, 4294901760
        %v8938 = vsub.f32 %v6049, %v8937
        %v8939 = vand.u32 %v8938, 4294901760
        %8940 = vmatprep.subr.mxu0 %v8939
        %v8941 = vand.u32 %v6048, 4294901760
        %v8942 = vsub.f32 %v6048, %v8941
        %v8943 = vand.u32 %v8942, 4294901760
        %8944 = vmatpush1.msra.mxu0 %v8943
        %v8945 = vand.u32 %v6051, 4294901760
        %v8946 = vsub.f32 %v6051, %v8945
        %v8947 = vand.u32 %v8946, 4294901760
        %8948 = vmatprep.subr.mxu0 %v8947
        %v8949 = vand.u32 %v6050, 4294901760
        %v8950 = vsub.f32 %v6050, %v8949
        %v8951 = vand.u32 %v8950, 4294901760
        %8952 = vmatpush1.msra.mxu0 %v8951
        %v8953 = vand.u32 %v6053, 4294901760
        %v8954 = vsub.f32 %v6053, %v8953
        %v8955 = vand.u32 %v8954, 4294901760
        %8956 = vmatprep.subr.mxu0 %v8955
        %v8957 = vand.u32 %v6052, 4294901760
        %v8958 = vsub.f32 %v6052, %v8957
        %v8959 = vand.u32 %v8958, 4294901760
        %8960 = vmatpush1.msra.mxu0 %v8959
        %v8961 = vand.u32 %v6055, 4294901760
        %v8962 = vsub.f32 %v6055, %v8961
        %v8963 = vand.u32 %v8962, 4294901760
        %8964 = vmatprep.subr.mxu0 %v8963
        %v8965 = vand.u32 %v6054, 4294901760
        %v8966 = vsub.f32 %v6054, %v8965
        %v8967 = vand.u32 %v8966, 4294901760
        %8968 = vmatpush1.msra.mxu0 %v8967
        %v8969 = vand.u32 %v6057, 4294901760
        %v8970 = vsub.f32 %v6057, %v8969
        %v8971 = vand.u32 %v8970, 4294901760
        %8972 = vmatprep.subr.mxu0 %v8971
        %v8973 = vand.u32 %v6056, 4294901760
        %v8974 = vsub.f32 %v6056, %v8973
        %v8975 = vand.u32 %v8974, 4294901760
        %8976 = vmatpush1.msra.mxu0 %v8975
        %v8977 = vand.u32 %v6059, 4294901760
        %v8978 = vsub.f32 %v6059, %v8977
        %v8979 = vand.u32 %v8978, 4294901760
        %8980 = vmatprep.subr.mxu0 %v8979
        %v8981 = vand.u32 %v6058, 4294901760
        %v8982 = vsub.f32 %v6058, %v8981
        %v8983 = vand.u32 %v8982, 4294901760
        %8984 = vmatpush1.msra.mxu0 %v8983
        %v8985 = vand.u32 %v6061, 4294901760
        %v8986 = vsub.f32 %v6061, %v8985
        %v8987 = vand.u32 %v8986, 4294901760
        %8988 = vmatprep.subr.mxu0 %v8987
        %v8989 = vand.u32 %v6060, 4294901760
        %v8990 = vsub.f32 %v6060, %v8989
        %v8991 = vand.u32 %v8990, 4294901760
        %8992 = vmatpush1.msra.mxu0 %v8991
        %v8993 = vand.u32 %v6063, 4294901760
        %v8994 = vsub.f32 %v6063, %v8993
        %v8995 = vand.u32 %v8994, 4294901760
        %8996 = vmatprep.subr.mxu0 %v8995
        %v8997 = vand.u32 %v6062, 4294901760
        %v8998 = vsub.f32 %v6062, %v8997
        %v8999 = vand.u32 %v8998, 4294901760
        %9000 = vmatpush1.msra.mxu0 %v8999
        %v9001 = vand.u32 %v6065, 4294901760
        %v9002 = vsub.f32 %v6065, %v9001
        %v9003 = vand.u32 %v9002, 4294901760
        %9004 = vmatprep.subr.mxu0 %v9003
        %v9005 = vand.u32 %v6064, 4294901760
        %v9006 = vsub.f32 %v6064, %v9005
        %v9007 = vand.u32 %v9006, 4294901760
        %9008 = vmatpush1.msra.mxu0 %v9007
        %v9009 = vand.u32 %v6067, 4294901760
        %v9010 = vsub.f32 %v6067, %v9009
        %v9011 = vand.u32 %v9010, 4294901760
        %9012 = vmatprep.subr.mxu0 %v9011
        %v9013 = vand.u32 %v6066, 4294901760
        %v9014 = vsub.f32 %v6066, %v9013
        %v9015 = vand.u32 %v9014, 4294901760
        %9016 = vmatpush1.msra.mxu0 %v9015
        %v9017 = vand.u32 %v6069, 4294901760
        %v9018 = vsub.f32 %v6069, %v9017
        %v9019 = vand.u32 %v9018, 4294901760
        %9020 = vmatprep.subr.mxu0 %v9019
        %v9021 = vand.u32 %v6068, 4294901760
        %v9022 = vsub.f32 %v6068, %v9021
        %v9023 = vand.u32 %v9022, 4294901760
        %9024 = vmatpush1.msra.mxu0 %v9023
        %v9025 = vand.u32 %v6071, 4294901760
        %v9026 = vsub.f32 %v6071, %v9025
        %v9027 = vand.u32 %v9026, 4294901760
        %9028 = vmatprep.subr.mxu0 %v9027
        %v9029 = vand.u32 %v6070, 4294901760
        %v9030 = vsub.f32 %v6070, %v9029
        %v9031 = vand.u32 %v9030, 4294901760
        %9032 = vmatpush1.msra.mxu0 %v9031
        %v9033 = vand.u32 %v6073, 4294901760
        %v9034 = vsub.f32 %v6073, %v9033
        %v9035 = vand.u32 %v9034, 4294901760
        %9036 = vmatprep.subr.mxu0 %v9035
        %v9037 = vand.u32 %v6072, 4294901760
        %v9038 = vsub.f32 %v6072, %v9037
        %v9039 = vand.u32 %v9038, 4294901760
        %9040 = vmatpush1.msra.mxu0 %v9039
        %v9041 = vand.u32 %v6075, 4294901760
        %v9042 = vsub.f32 %v6075, %v9041
        %v9043 = vand.u32 %v9042, 4294901760
        %9044 = vmatprep.subr.mxu0 %v9043
        %v9045 = vand.u32 %v6074, 4294901760
        %v9046 = vsub.f32 %v6074, %v9045
        %v9047 = vand.u32 %v9046, 4294901760
        %9048 = vmatpush1.msra.mxu0 %v9047
        %v9049 = vand.u32 %v6077, 4294901760
        %v9050 = vsub.f32 %v6077, %v9049
        %v9051 = vand.u32 %v9050, 4294901760
        %9052 = vmatprep.subr.mxu0 %v9051
        %v9053 = vand.u32 %v6076, 4294901760
        %v9054 = vsub.f32 %v6076, %v9053
        %v9055 = vand.u32 %v9054, 4294901760
        %9056 = vmatpush1.msra.mxu0 %v9055
        %v9057 = vand.u32 %v6079, 4294901760
        %v9058 = vsub.f32 %v6079, %v9057
        %v9059 = vand.u32 %v9058, 4294901760
        %9060 = vmatprep.subr.mxu0 %v9059
        %v9061 = vand.u32 %v6078, 4294901760
        %v9062 = vsub.f32 %v6078, %v9061
        %v9063 = vand.u32 %v9062, 4294901760
        %9064 = vmatpush1.msra.mxu0 %v9063
        %v9065 = vand.u32 %v6081, 4294901760
        %v9066 = vsub.f32 %v6081, %v9065
        %v9067 = vand.u32 %v9066, 4294901760
        %9068 = vmatprep.subr.mxu0 %v9067
        %v9069 = vand.u32 %v6080, 4294901760
        %v9070 = vsub.f32 %v6080, %v9069
        %v9071 = vand.u32 %v9070, 4294901760
        %9072 = vmatpush1.msra.mxu0 %v9071
        %v9073 = vand.u32 %v6083, 4294901760
        %v9074 = vsub.f32 %v6083, %v9073
        %v9075 = vand.u32 %v9074, 4294901760
        %9076 = vmatprep.subr.mxu0 %v9075
        %v9077 = vand.u32 %v6082, 4294901760
        %v9078 = vsub.f32 %v6082, %v9077
        %v9079 = vand.u32 %v9078, 4294901760
        %9080 = vmatpush1.msra.mxu0 %v9079
        %v9081 = vand.u32 %v6085, 4294901760
        %v9082 = vsub.f32 %v6085, %v9081
        %v9083 = vand.u32 %v9082, 4294901760
        %9084 = vmatprep.subr.mxu0 %v9083
        %v9085 = vand.u32 %v6084, 4294901760
        %v9086 = vsub.f32 %v6084, %v9085
        %v9087 = vand.u32 %v9086, 4294901760
        %9088 = vmatpush1.msra.mxu0 %v9087
        %v9089 = vand.u32 %v6087, 4294901760
        %v9090 = vsub.f32 %v6087, %v9089
        %v9091 = vand.u32 %v9090, 4294901760
        %9092 = vmatprep.subr.mxu0 %v9091
        %v9093 = vand.u32 %v6086, 4294901760
        %v9094 = vsub.f32 %v6086, %v9093
        %v9095 = vand.u32 %v9094, 4294901760
        %9096 = vmatpush1.msra.mxu0 %v9095
        %v9097 = vand.u32 %v6089, 4294901760
        %v9098 = vsub.f32 %v6089, %v9097
        %v9099 = vand.u32 %v9098, 4294901760
        %9100 = vmatprep.subr.mxu0 %v9099
        %v9101 = vand.u32 %v6088, 4294901760
        %v9102 = vsub.f32 %v6088, %v9101
        %v9103 = vand.u32 %v9102, 4294901760
        %9104 = vmatpush1.msra.mxu0 %v9103
        %v9105 = vand.u32 %v6091, 4294901760
        %v9106 = vsub.f32 %v6091, %v9105
        %v9107 = vand.u32 %v9106, 4294901760
        %9108 = vmatprep.subr.mxu0 %v9107
        %v9109 = vand.u32 %v6090, 4294901760
        %v9110 = vsub.f32 %v6090, %v9109
        %v9111 = vand.u32 %v9110, 4294901760
        %9112 = vmatpush1.msra.mxu0 %v9111
        %v9113 = vand.u32 %v6093, 4294901760
        %v9114 = vsub.f32 %v6093, %v9113
        %v9115 = vand.u32 %v9114, 4294901760
        %9116 = vmatprep.subr.mxu0 %v9115
        %v9117 = vand.u32 %v6092, 4294901760
        %v9118 = vsub.f32 %v6092, %v9117
        %v9119 = vand.u32 %v9118, 4294901760
        %9120 = vmatpush1.msra.mxu0 %v9119
        %v9121 = vand.u32 %v6095, 4294901760
        %v9122 = vsub.f32 %v6095, %v9121
        %v9123 = vand.u32 %v9122, 4294901760
        %9124 = vmatprep.subr.mxu0 %v9123
        %v9125 = vand.u32 %v6094, 4294901760
        %v9126 = vsub.f32 %v6094, %v9125
        %v9127 = vand.u32 %v9126, 4294901760
        %9128 = vmatpush1.msra.mxu0 %v9127
        %v9129 = vand.u32 %v5941, 4294901760
        %9130 = vmatprep.mubr.f32.mxu0 %v9129
        %v9131 = vand.u32 %v5940, 4294901760
        %9132 = vmatmul.mubr.f32.gmra.mrb[0].mxu0 %v9131
        %v9133 = vpop.f32.mrb[0].mxu0
        %v9134 = vadd.f32 %v8809, %v9133
        %v9135 = vpop.f32.mrb[0].mxu0
        %v9136 = vadd.f32 %v8811, %v9135
        %v9137 = vand.u32 %v5946, 4294901760
        %9138 = vmatprep.mubr.f32.mxu0 %v9137
        %v9139 = vand.u32 %v5945, 4294901760
        %9140 = vmatmul.mubr.f32.gmra.mrb[0].mxu0 %v9139
        %v9141 = vpop.f32.mrb[0].mxu0
        %v9142 = vadd.f32 %v8821, %v9141
        %v9143 = vpop.f32.mrb[0].mxu0
        %v9144 = vadd.f32 %v8823, %v9143
        %v9145 = vand.u32 %v5951, 4294901760
        %9146 = vmatprep.mubr.f32.mxu0 %v9145
        %v9147 = vand.u32 %v5950, 4294901760
        %9148 = vmatmul.mubr.f32.gmra.mrb[0].mxu0 %v9147
        %v9149 = vpop.f32.mrb[0].mxu0
        %v9150 = vadd.f32 %v8833, %v9149
        %v9151 = vpop.f32.mrb[0].mxu0
        %v9152 = vadd.f32 %v8835, %v9151
        %v9153 = vand.u32 %v5956, 4294901760
        %9154 = vmatprep.mubr.f32.mxu0 %v9153
        %v9155 = vand.u32 %v5955, 4294901760
        %9156 = vmatmul.mubr.f32.gmra.mrb[0].mxu0 %v9155
        %v9157 = vpop.f32.mrb[0].mxu0
        %v9158 = vadd.f32 %v8845, %v9157
        %v9159 = vpop.f32.mrb[0].mxu0
        %v9160 = vadd.f32 %v8847, %v9159
        %v9161 = vand.u32 %v5961, 4294901760
        %9162 = vmatprep.mubr.f32.mxu0 %v9161
        %v9163 = vand.u32 %v5960, 4294901760
        %9164 = vmatmul.mubr.f32.gmra.mrb[0].mxu0 %v9163
        %v9165 = vpop.f32.mrb[0].mxu0
        %v9166 = vadd.f32 %v8857, %v9165
        %v9167 = vpop.f32.mrb[0].mxu0
        %v9168 = vadd.f32 %v8859, %v9167
        %v9169 = vand.u32 %v5966, 4294901760
        %9170 = vmatprep.mubr.f32.mxu0 %v9169
        %v9171 = vand.u32 %v5965, 4294901760
        %9172 = vmatmul.mubr.f32.gmra.mrb[0].mxu0 %v9171
        %v9173 = vpop.f32.mrb[0].mxu0
        %v9174 = vadd.f32 %v8869, %v9173
        %v9175 = vpop.f32.mrb[0].mxu0
        %v9176 = vadd.f32 %v8871, %v9175
        %9177 = vdwg.mxu0
        %v9178 = vand.u32 %v6033, 4294901760
        %9179 = vmatprep.subr.mxu0 %v9178
        %v9180 = vand.u32 %v6032, 4294901760
        %9181 = vmatpush1.msra.mxu0 %v9180
        %v9182 = vand.u32 %v6035, 4294901760
        %9183 = vmatprep.subr.mxu0 %v9182
        %v9184 = vand.u32 %v6034, 4294901760
        %9185 = vmatpush1.msra.mxu0 %v9184
        %v9186 = vand.u32 %v6037, 4294901760
        %9187 = vmatprep.subr.mxu0 %v9186
        %v9188 = vand.u32 %v6036, 4294901760
        %9189 = vmatpush1.msra.mxu0 %v9188
        %v9190 = vand.u32 %v6039, 4294901760
        %9191 = vmatprep.subr.mxu0 %v9190
        %v9192 = vand.u32 %v6038, 4294901760
        %9193 = vmatpush1.msra.mxu0 %v9192
        %v9194 = vand.u32 %v6041, 4294901760
        %9195 = vmatprep.subr.mxu0 %v9194
        %v9196 = vand.u32 %v6040, 4294901760
        %9197 = vmatpush1.msra.mxu0 %v9196
        %v9198 = vand.u32 %v6043, 4294901760
        %9199 = vmatprep.subr.mxu0 %v9198
        %v9200 = vand.u32 %v6042, 4294901760
        %9201 = vmatpush1.msra.mxu0 %v9200
        %v9202 = vand.u32 %v6045, 4294901760
        %9203 = vmatprep.subr.mxu0 %v9202
        %v9204 = vand.u32 %v6044, 4294901760
        %9205 = vmatpush1.msra.mxu0 %v9204
        %v9206 = vand.u32 %v6047, 4294901760
        %9207 = vmatprep.subr.mxu0 %v9206
        %v9208 = vand.u32 %v6046, 4294901760
        %9209 = vmatpush1.msra.mxu0 %v9208
        %v9210 = vand.u32 %v6049, 4294901760
        %9211 = vmatprep.subr.mxu0 %v9210
        %v9212 = vand.u32 %v6048, 4294901760
        %9213 = vmatpush1.msra.mxu0 %v9212
        %v9214 = vand.u32 %v6051, 4294901760
        %9215 = vmatprep.subr.mxu0 %v9214
        %v9216 = vand.u32 %v6050, 4294901760
        %9217 = vmatpush1.msra.mxu0 %v9216
        %v9218 = vand.u32 %v6053, 4294901760
        %9219 = vmatprep.subr.mxu0 %v9218
        %v9220 = vand.u32 %v6052, 4294901760
        %9221 = vmatpush1.msra.mxu0 %v9220
        %v9222 = vand.u32 %v6055, 4294901760
        %9223 = vmatprep.subr.mxu0 %v9222
        %v9224 = vand.u32 %v6054, 4294901760
        %9225 = vmatpush1.msra.mxu0 %v9224
        %v9226 = vand.u32 %v6057, 4294901760
        %9227 = vmatprep.subr.mxu0 %v9226
        %v9228 = vand.u32 %v6056, 4294901760
        %9229 = vmatpush1.msra.mxu0 %v9228
        %v9230 = vand.u32 %v6059, 4294901760
        %9231 = vmatprep.subr.mxu0 %v9230
        %v9232 = vand.u32 %v6058, 4294901760
        %9233 = vmatpush1.msra.mxu0 %v9232
        %v9234 = vand.u32 %v6061, 4294901760
        %9235 = vmatprep.subr.mxu0 %v9234
        %v9236 = vand.u32 %v6060, 4294901760
        %9237 = vmatpush1.msra.mxu0 %v9236
        %v9238 = vand.u32 %v6063, 4294901760
        %9239 = vmatprep.subr.mxu0 %v9238
        %v9240 = vand.u32 %v6062, 4294901760
        %9241 = vmatpush1.msra.mxu0 %v9240
        %v9242 = vand.u32 %v6065, 4294901760
        %9243 = vmatprep.subr.mxu0 %v9242
        %v9244 = vand.u32 %v6064, 4294901760
        %9245 = vmatpush1.msra.mxu0 %v9244
        %v9246 = vand.u32 %v6067, 4294901760
        %9247 = vmatprep.subr.mxu0 %v9246
        %v9248 = vand.u32 %v6066, 4294901760
        %9249 = vmatpush1.msra.mxu0 %v9248
        %v9250 = vand.u32 %v6069, 4294901760
        %9251 = vmatprep.subr.mxu0 %v9250
        %v9252 = vand.u32 %v6068, 4294901760
        %9253 = vmatpush1.msra.mxu0 %v9252
        %v9254 = vand.u32 %v6071, 4294901760
        %9255 = vmatprep.subr.mxu0 %v9254
        %v9256 = vand.u32 %v6070, 4294901760
        %9257 = vmatpush1.msra.mxu0 %v9256
        %v9258 = vand.u32 %v6073, 4294901760
        %9259 = vmatprep.subr.mxu0 %v9258
        %v9260 = vand.u32 %v6072, 4294901760
        %9261 = vmatpush1.msra.mxu0 %v9260
        %v9262 = vand.u32 %v6075, 4294901760
        %9263 = vmatprep.subr.mxu0 %v9262
        %v9264 = vand.u32 %v6074, 4294901760
        %9265 = vmatpush1.msra.mxu0 %v9264
        %v9266 = vand.u32 %v6077, 4294901760
        %9267 = vmatprep.subr.mxu0 %v9266
        %v9268 = vand.u32 %v6076, 4294901760
        %9269 = vmatpush1.msra.mxu0 %v9268
        %v9270 = vand.u32 %v6079, 4294901760
        %9271 = vmatprep.subr.mxu0 %v9270
        %v9272 = vand.u32 %v6078, 4294901760
        %9273 = vmatpush1.msra.mxu0 %v9272
        %v9274 = vand.u32 %v6081, 4294901760
        %9275 = vmatprep.subr.mxu0 %v9274
        %v9276 = vand.u32 %v6080, 4294901760
        %9277 = vmatpush1.msra.mxu0 %v9276
        %v9278 = vand.u32 %v6083, 4294901760
        %9279 = vmatprep.subr.mxu0 %v9278
        %v9280 = vand.u32 %v6082, 4294901760
        %9281 = vmatpush1.msra.mxu0 %v9280
        %v9282 = vand.u32 %v6085, 4294901760
        %9283 = vmatprep.subr.mxu0 %v9282
        %v9284 = vand.u32 %v6084, 4294901760
        %9285 = vmatpush1.msra.mxu0 %v9284
        %v9286 = vand.u32 %v6087, 4294901760
        %9287 = vmatprep.subr.mxu0 %v9286
        %v9288 = vand.u32 %v6086, 4294901760
        %9289 = vmatpush1.msra.mxu0 %v9288
        %v9290 = vand.u32 %v6089, 4294901760
        %9291 = vmatprep.subr.mxu0 %v9290
        %v9292 = vand.u32 %v6088, 4294901760
        %9293 = vmatpush1.msra.mxu0 %v9292
        %v9294 = vand.u32 %v6091, 4294901760
        %9295 = vmatprep.subr.mxu0 %v9294
        %v9296 = vand.u32 %v6090, 4294901760
        %9297 = vmatpush1.msra.mxu0 %v9296
        %v9298 = vand.u32 %v6093, 4294901760
        %9299 = vmatprep.subr.mxu0 %v9298
        %v9300 = vand.u32 %v6092, 4294901760
        %9301 = vmatpush1.msra.mxu0 %v9300
        %v9302 = vand.u32 %v6095, 4294901760
        %9303 = vmatprep.subr.mxu0 %v9302
        %v9304 = vand.u32 %v6094, 4294901760
        %9305 = vmatpush1.msra.mxu0 %v9304
        %v9306 = vand.u32 %v5941, 4294901760
        %9307 = vmatprep.mubr.f32.mxu0 %v9306
        %v9308 = vand.u32 %v5940, 4294901760
        %9309 = vmatmul.mubr.f32.gmra.mrb[0].mxu0 %v9308
        %v9310 = vpop.f32.mrb[0].mxu0
        %v9311 = vadd.f32 %v9134, %v9310
        %v9312 = vpop.f32.mrb[0].mxu0
        %v9313 = vadd.f32 %v9136, %v9312
        %v9314 = vand.u32 %v5946, 4294901760
        %9315 = vmatprep.mubr.f32.mxu0 %v9314
        %v9316 = vand.u32 %v5945, 4294901760
        %9317 = vmatmul.mubr.f32.gmra.mrb[0].mxu0 %v9316
        %v9318 = vpop.f32.mrb[0].mxu0
        %v9319 = vadd.f32 %v9142, %v9318
        %v9320 = vpop.f32.mrb[0].mxu0
        %v9321 = vadd.f32 %v9144, %v9320
        %v9322 = vand.u32 %v5951, 4294901760
        %9323 = vmatprep.mubr.f32.mxu0 %v9322
        %v9324 = vand.u32 %v5950, 4294901760
        %9325 = vmatmul.mubr.f32.gmra.mrb[0].mxu0 %v9324
        %v9326 = vpop.f32.mrb[0].mxu0
        %v9327 = vadd.f32 %v9150, %v9326
        %v9328 = vpop.f32.mrb[0].mxu0
        %v9329 = vadd.f32 %v9152, %v9328
        %v9330 = vand.u32 %v5956, 4294901760
        %9331 = vmatprep.mubr.f32.mxu0 %v9330
        %v9332 = vand.u32 %v5955, 4294901760
        %9333 = vmatmul.mubr.f32.gmra.mrb[0].mxu0 %v9332
        %v9334 = vpop.f32.mrb[0].mxu0
        %v9335 = vadd.f32 %v9158, %v9334
        %v9336 = vpop.f32.mrb[0].mxu0
        %v9337 = vadd.f32 %v9160, %v9336
        %v9338 = vand.u32 %v5961, 4294901760
        %9339 = vmatprep.mubr.f32.mxu0 %v9338
        %v9340 = vand.u32 %v5960, 4294901760
        %9341 = vmatmul.mubr.f32.gmra.mrb[0].mxu0 %v9340
        %v9342 = vpop.f32.mrb[0].mxu0
        %v9343 = vadd.f32 %v9166, %v9342
        %v9344 = vpop.f32.mrb[0].mxu0
        %v9345 = vadd.f32 %v9168, %v9344
        %v9346 = vand.u32 %v5966, 4294901760
        %9347 = vmatprep.mubr.f32.mxu0 %v9346
        %v9348 = vand.u32 %v5965, 4294901760
        %9349 = vmatmul.mubr.f32.gmra.mrb[0].mxu0 %v9348
        %v9350 = vpop.f32.mrb[0].mxu0
        %v9351 = vadd.f32 %v9174, %v9350
        %v9352 = vpop.f32.mrb[0].mxu0
        %v9353 = vadd.f32 %v9176, %v9352
        %9354 = vdwg.mxu0
        %v9355 = vand.u32 %v6097, 4294901760
        %9356 = vmatprep.subr.mxu0 %v9355
        %v9357 = vand.u32 %v6096, 4294901760
        %9358 = vmatpush1.msra.mxu0 %v9357
        %v9359 = vand.u32 %v6099, 4294901760
        %9360 = vmatprep.subr.mxu0 %v9359
        %v9361 = vand.u32 %v6098, 4294901760
        %9362 = vmatpush1.msra.mxu0 %v9361
        %v9363 = vand.u32 %v6101, 4294901760
        %9364 = vmatprep.subr.mxu0 %v9363
        %v9365 = vand.u32 %v6100, 4294901760
        %9366 = vmatpush1.msra.mxu0 %v9365
        %v9367 = vand.u32 %v6103, 4294901760
        %9368 = vmatprep.subr.mxu0 %v9367
        %v9369 = vand.u32 %v6102, 4294901760
        %9370 = vmatpush1.msra.mxu0 %v9369
        %v9371 = vand.u32 %v6105, 4294901760
        %9372 = vmatprep.subr.mxu0 %v9371
        %v9373 = vand.u32 %v6104, 4294901760
        %9374 = vmatpush1.msra.mxu0 %v9373
        %v9375 = vand.u32 %v6107, 4294901760
        %9376 = vmatprep.subr.mxu0 %v9375
        %v9377 = vand.u32 %v6106, 4294901760
        %9378 = vmatpush1.msra.mxu0 %v9377
        %v9379 = vand.u32 %v6109, 4294901760
        %9380 = vmatprep.subr.mxu0 %v9379
        %v9381 = vand.u32 %v6108, 4294901760
        %9382 = vmatpush1.msra.mxu0 %v9381
        %v9383 = vand.u32 %v6111, 4294901760
        %9384 = vmatprep.subr.mxu0 %v9383
        %v9385 = vand.u32 %v6110, 4294901760
        %9386 = vmatpush1.msra.mxu0 %v9385
        %9387 = vmatprep.subr.mxu0 0.0
        %9388 = vmatpush1.msra.mxu0 0.0
        %9389 = vmatprep.subr.mxu0 0.0
        %9390 = vmatpush1.msra.mxu0 0.0
        %9391 = vmatprep.subr.mxu0 0.0
        %9392 = vmatpush1.msra.mxu0 0.0
        %9393 = vmatprep.subr.mxu0 0.0
        %9394 = vmatpush1.msra.mxu0 0.0
        %9395 = vmatprep.subr.mxu0 0.0
        %9396 = vmatpush1.msra.mxu0 0.0
        %9397 = vmatprep.subr.mxu0 0.0
        %9398 = vmatpush1.msra.mxu0 0.0
        %9399 = vmatprep.subr.mxu0 0.0
        %9400 = vmatpush1.msra.mxu0 0.0
        %9401 = vmatprep.subr.mxu0 0.0
        %9402 = vmatpush1.msra.mxu0 0.0
        %9403 = vmatprep.subr.mxu0 0.0
        %9404 = vmatpush1.msra.mxu0 0.0
        %9405 = vmatprep.subr.mxu0 0.0
        %9406 = vmatpush1.msra.mxu0 0.0
        %9407 = vmatprep.subr.mxu0 0.0
        %9408 = vmatpush1.msra.mxu0 0.0
        %9409 = vmatprep.subr.mxu0 0.0
        %9410 = vmatpush1.msra.mxu0 0.0
        %9411 = vmatprep.subr.mxu0 0.0
        %9412 = vmatpush1.msra.mxu0 0.0
        %9413 = vmatprep.subr.mxu0 0.0
        %9414 = vmatpush1.msra.mxu0 0.0
        %9415 = vmatprep.subr.mxu0 0.0
        %9416 = vmatpush1.msra.mxu0 0.0
        %9417 = vmatprep.subr.mxu0 0.0
        %9418 = vmatpush1.msra.mxu0 0.0
        %9419 = vmatprep.subr.mxu0 0.0
        %9420 = vmatpush1.msra.mxu0 0.0
        %9421 = vmatprep.subr.mxu0 0.0
        %9422 = vmatpush1.msra.mxu0 0.0
        %9423 = vmatprep.subr.mxu0 0.0
        %9424 = vmatpush1.msra.mxu0 0.0
        %9425 = vmatprep.subr.mxu0 0.0
        %9426 = vmatpush1.msra.mxu0 0.0
        %9427 = vmatprep.subr.mxu0 0.0
        %9428 = vmatpush1.msra.mxu0 0.0
        %9429 = vmatprep.subr.mxu0 0.0
        %9430 = vmatpush1.msra.mxu0 0.0
        %9431 = vmatprep.subr.mxu0 0.0
        %9432 = vmatpush1.msra.mxu0 0.0
        %9433 = vmatprep.subr.mxu0 0.0
        %9434 = vmatpush1.msra.mxu0 0.0
        %9435 = vmatprep.mubr.f32.mxu0 0.0
        %v9436 = vand.u32 %v6150, 4294901760
        %v9437 = vsub.f32 %v6150, %v9436
        %v9438 = vand.u32 %v9437, 4294901760
        %v9439 = vsub.f32 %v9437, %v9438
        %v9440 = vand.u32 %v9439, 4294901760
        %9441 = vmatmul.mubr.f32.gmra.mrb[0].mxu0 %v9440
        %v9442 = vpop.f32.mrb[0].mxu0
        %v9443 = vadd.f32 %v9311, %v9442
        %v9444 = vpop.f32.mrb[0].mxu0
        %v9445 = vadd.f32 %v9313, %v9444
        %9446 = vmatprep.mubr.f32.mxu0 0.0
        %v9447 = vand.u32 %v6153, 4294901760
        %v9448 = vsub.f32 %v6153, %v9447
        %v9449 = vand.u32 %v9448, 4294901760
        %v9450 = vsub.f32 %v9448, %v9449
        %v9451 = vand.u32 %v9450, 4294901760
        %9452 = vmatmul.mubr.f32.gmra.mrb[0].mxu0 %v9451
        %v9453 = vpop.f32.mrb[0].mxu0
        %v9454 = vadd.f32 %v9319, %v9453
        %v9455 = vpop.f32.mrb[0].mxu0
        %v9456 = vadd.f32 %v9321, %v9455
        %9457 = vmatprep.mubr.f32.mxu0 0.0
        %v9458 = vand.u32 %v6156, 4294901760
        %v9459 = vsub.f32 %v6156, %v9458
        %v9460 = vand.u32 %v9459, 4294901760
        %v9461 = vsub.f32 %v9459, %v9460
        %v9462 = vand.u32 %v9461, 4294901760
        %9463 = vmatmul.mubr.f32.gmra.mrb[0].mxu0 %v9462
        %v9464 = vpop.f32.mrb[0].mxu0
        %v9465 = vadd.f32 %v9327, %v9464
        %v9466 = vpop.f32.mrb[0].mxu0
        %v9467 = vadd.f32 %v9329, %v9466
        %9468 = vmatprep.mubr.f32.mxu0 0.0
        %v9469 = vand.u32 %v6159, 4294901760
        %v9470 = vsub.f32 %v6159, %v9469
        %v9471 = vand.u32 %v9470, 4294901760
        %v9472 = vsub.f32 %v9470, %v9471
        %v9473 = vand.u32 %v9472, 4294901760
        %9474 = vmatmul.mubr.f32.gmra.mrb[0].mxu0 %v9473
        %v9475 = vpop.f32.mrb[0].mxu0
        %v9476 = vadd.f32 %v9335, %v9475
        %v9477 = vpop.f32.mrb[0].mxu0
        %v9478 = vadd.f32 %v9337, %v9477
        %9479 = vmatprep.mubr.f32.mxu0 0.0
        %v9480 = vand.u32 %v6162, 4294901760
        %v9481 = vsub.f32 %v6162, %v9480
        %v9482 = vand.u32 %v9481, 4294901760
        %v9483 = vsub.f32 %v9481, %v9482
        %v9484 = vand.u32 %v9483, 4294901760
        %9485 = vmatmul.mubr.f32.gmra.mrb[0].mxu0 %v9484
        %v9486 = vpop.f32.mrb[0].mxu0
        %v9487 = vadd.f32 %v9343, %v9486
        %v9488 = vpop.f32.mrb[0].mxu0
        %v9489 = vadd.f32 %v9345, %v9488
        %9490 = vmatprep.mubr.f32.mxu0 0.0
        %v9491 = vand.u32 %v6165, 4294901760
        %v9492 = vsub.f32 %v6165, %v9491
        %v9493 = vand.u32 %v9492, 4294901760
        %v9494 = vsub.f32 %v9492, %v9493
        %v9495 = vand.u32 %v9494, 4294901760
        %9496 = vmatmul.mubr.f32.gmra.mrb[0].mxu0 %v9495
        %v9497 = vpop.f32.mrb[0].mxu0
        %v9498 = vadd.f32 %v9351, %v9497
        %v9499 = vpop.f32.mrb[0].mxu0
        %v9500 = vadd.f32 %v9353, %v9499
        %9501 = vdwg.mxu0
        %v9502 = vand.u32 %v6097, 4294901760
        %v9503 = vsub.f32 %v6097, %v9502
        %v9504 = vand.u32 %v9503, 4294901760
        %v9505 = vsub.f32 %v9503, %v9504
        %v9506 = vand.u32 %v9505, 4294901760
        %9507 = vmatprep.subr.mxu0 %v9506
        %v9508 = vand.u32 %v6096, 4294901760
        %v9509 = vsub.f32 %v6096, %v9508
        %v9510 = vand.u32 %v9509, 4294901760
        %v9511 = vsub.f32 %v9509, %v9510
        %v9512 = vand.u32 %v9511, 4294901760
        %9513 = vmatpush1.msra.mxu0 %v9512
        %v9514 = vand.u32 %v6099, 4294901760
        %v9515 = vsub.f32 %v6099, %v9514
        %v9516 = vand.u32 %v9515, 4294901760
        %v9517 = vsub.f32 %v9515, %v9516
        %v9518 = vand.u32 %v9517, 4294901760
        %9519 = vmatprep.subr.mxu0 %v9518
        %v9520 = vand.u32 %v6098, 4294901760
        %v9521 = vsub.f32 %v6098, %v9520
        %v9522 = vand.u32 %v9521, 4294901760
        %v9523 = vsub.f32 %v9521, %v9522
        %v9524 = vand.u32 %v9523, 4294901760
        %9525 = vmatpush1.msra.mxu0 %v9524
        %v9526 = vand.u32 %v6101, 4294901760
        %v9527 = vsub.f32 %v6101, %v9526
        %v9528 = vand.u32 %v9527, 4294901760
        %v9529 = vsub.f32 %v9527, %v9528
        %v9530 = vand.u32 %v9529, 4294901760
        %9531 = vmatprep.subr.mxu0 %v9530
        %v9532 = vand.u32 %v6100, 4294901760
        %v9533 = vsub.f32 %v6100, %v9532
        %v9534 = vand.u32 %v9533, 4294901760
        %v9535 = vsub.f32 %v9533, %v9534
        %v9536 = vand.u32 %v9535, 4294901760
        %9537 = vmatpush1.msra.mxu0 %v9536
        %v9538 = vand.u32 %v6103, 4294901760
        %v9539 = vsub.f32 %v6103, %v9538
        %v9540 = vand.u32 %v9539, 4294901760
        %v9541 = vsub.f32 %v9539, %v9540
        %v9542 = vand.u32 %v9541, 4294901760
        %9543 = vmatprep.subr.mxu0 %v9542
        %v9544 = vand.u32 %v6102, 4294901760
        %v9545 = vsub.f32 %v6102, %v9544
        %v9546 = vand.u32 %v9545, 4294901760
        %v9547 = vsub.f32 %v9545, %v9546
        %v9548 = vand.u32 %v9547, 4294901760
        %9549 = vmatpush1.msra.mxu0 %v9548
        %v9550 = vand.u32 %v6105, 4294901760
        %v9551 = vsub.f32 %v6105, %v9550
        %v9552 = vand.u32 %v9551, 4294901760
        %v9553 = vsub.f32 %v9551, %v9552
        %v9554 = vand.u32 %v9553, 4294901760
        %9555 = vmatprep.subr.mxu0 %v9554
        %v9556 = vand.u32 %v6104, 4294901760
        %v9557 = vsub.f32 %v6104, %v9556
        %v9558 = vand.u32 %v9557, 4294901760
        %v9559 = vsub.f32 %v9557, %v9558
        %v9560 = vand.u32 %v9559, 4294901760
        %9561 = vmatpush1.msra.mxu0 %v9560
        %v9562 = vand.u32 %v6107, 4294901760
        %v9563 = vsub.f32 %v6107, %v9562
        %v9564 = vand.u32 %v9563, 4294901760
        %v9565 = vsub.f32 %v9563, %v9564
        %v9566 = vand.u32 %v9565, 4294901760
        %9567 = vmatprep.subr.mxu0 %v9566
        %v9568 = vand.u32 %v6106, 4294901760
        %v9569 = vsub.f32 %v6106, %v9568
        %v9570 = vand.u32 %v9569, 4294901760
        %v9571 = vsub.f32 %v9569, %v9570
        %v9572 = vand.u32 %v9571, 4294901760
        %9573 = vmatpush1.msra.mxu0 %v9572
        %v9574 = vand.u32 %v6109, 4294901760
        %v9575 = vsub.f32 %v6109, %v9574
        %v9576 = vand.u32 %v9575, 4294901760
        %v9577 = vsub.f32 %v9575, %v9576
        %v9578 = vand.u32 %v9577, 4294901760
        %9579 = vmatprep.subr.mxu0 %v9578
        %v9580 = vand.u32 %v6108, 4294901760
        %v9581 = vsub.f32 %v6108, %v9580
        %v9582 = vand.u32 %v9581, 4294901760
        %v9583 = vsub.f32 %v9581, %v9582
        %v9584 = vand.u32 %v9583, 4294901760
        %9585 = vmatpush1.msra.mxu0 %v9584
        %v9586 = vand.u32 %v6111, 4294901760
        %v9587 = vsub.f32 %v6111, %v9586
        %v9588 = vand.u32 %v9587, 4294901760
        %v9589 = vsub.f32 %v9587, %v9588
        %v9590 = vand.u32 %v9589, 4294901760
        %9591 = vmatprep.subr.mxu0 %v9590
        %v9592 = vand.u32 %v6110, 4294901760
        %v9593 = vsub.f32 %v6110, %v9592
        %v9594 = vand.u32 %v9593, 4294901760
        %v9595 = vsub.f32 %v9593, %v9594
        %v9596 = vand.u32 %v9595, 4294901760
        %9597 = vmatpush1.msra.mxu0 %v9596
        %9598 = vmatprep.subr.mxu0 0.0
        %9599 = vmatpush1.msra.mxu0 0.0
        %9600 = vmatprep.subr.mxu0 0.0
        %9601 = vmatpush1.msra.mxu0 0.0
        %9602 = vmatprep.subr.mxu0 0.0
        %9603 = vmatpush1.msra.mxu0 0.0
        %9604 = vmatprep.subr.mxu0 0.0
        %9605 = vmatpush1.msra.mxu0 0.0
        %9606 = vmatprep.subr.mxu0 0.0
        %9607 = vmatpush1.msra.mxu0 0.0
        %9608 = vmatprep.subr.mxu0 0.0
        %9609 = vmatpush1.msra.mxu0 0.0
        %9610 = vmatprep.subr.mxu0 0.0
        %9611 = vmatpush1.msra.mxu0 0.0
        %9612 = vmatprep.subr.mxu0 0.0
        %9613 = vmatpush1.msra.mxu0 0.0
        %9614 = vmatprep.subr.mxu0 0.0
        %9615 = vmatpush1.msra.mxu0 0.0
        %9616 = vmatprep.subr.mxu0 0.0
        %9617 = vmatpush1.msra.mxu0 0.0
        %9618 = vmatprep.subr.mxu0 0.0
        %9619 = vmatpush1.msra.mxu0 0.0
        %9620 = vmatprep.subr.mxu0 0.0
        %9621 = vmatpush1.msra.mxu0 0.0
        %9622 = vmatprep.subr.mxu0 0.0
        %9623 = vmatpush1.msra.mxu0 0.0
        %9624 = vmatprep.subr.mxu0 0.0
        %9625 = vmatpush1.msra.mxu0 0.0
        %9626 = vmatprep.subr.mxu0 0.0
        %9627 = vmatpush1.msra.mxu0 0.0
        %9628 = vmatprep.subr.mxu0 0.0
        %9629 = vmatpush1.msra.mxu0 0.0
        %9630 = vmatprep.subr.mxu0 0.0
        %9631 = vmatpush1.msra.mxu0 0.0
        %9632 = vmatprep.subr.mxu0 0.0
        %9633 = vmatpush1.msra.mxu0 0.0
        %9634 = vmatprep.subr.mxu0 0.0
        %9635 = vmatpush1.msra.mxu0 0.0
        %9636 = vmatprep.subr.mxu0 0.0
        %9637 = vmatpush1.msra.mxu0 0.0
        %9638 = vmatprep.subr.mxu0 0.0
        %9639 = vmatpush1.msra.mxu0 0.0
        %9640 = vmatprep.subr.mxu0 0.0
        %9641 = vmatpush1.msra.mxu0 0.0
        %9642 = vmatprep.subr.mxu0 0.0
        %9643 = vmatpush1.msra.mxu0 0.0
        %9644 = vmatprep.subr.mxu0 0.0
        %9645 = vmatpush1.msra.mxu0 0.0
        %9646 = vmatprep.mubr.f32.mxu0 0.0
        %v9647 = vand.u32 %v6150, 4294901760
        %9648 = vmatmul.mubr.f32.gmra.mrb[0].mxu0 %v9647
        %v9649 = vpop.f32.mrb[0].mxu0
        %v9650 = vadd.f32 %v9443, %v9649
        %v9651 = vpop.f32.mrb[0].mxu0
        %v9652 = vadd.f32 %v9445, %v9651
        %9653 = vmatprep.mubr.f32.mxu0 0.0
        %v9654 = vand.u32 %v6153, 4294901760
        %9655 = vmatmul.mubr.f32.gmra.mrb[0].mxu0 %v9654
        %v9656 = vpop.f32.mrb[0].mxu0
        %v9657 = vadd.f32 %v9454, %v9656
        %v9658 = vpop.f32.mrb[0].mxu0
        %v9659 = vadd.f32 %v9456, %v9658
        %9660 = vmatprep.mubr.f32.mxu0 0.0
        %v9661 = vand.u32 %v6156, 4294901760
        %9662 = vmatmul.mubr.f32.gmra.mrb[0].mxu0 %v9661
        %v9663 = vpop.f32.mrb[0].mxu0
        %v9664 = vadd.f32 %v9465, %v9663
        %v9665 = vpop.f32.mrb[0].mxu0
        %v9666 = vadd.f32 %v9467, %v9665
        %9667 = vmatprep.mubr.f32.mxu0 0.0
        %v9668 = vand.u32 %v6159, 4294901760
        %9669 = vmatmul.mubr.f32.gmra.mrb[0].mxu0 %v9668
        %v9670 = vpop.f32.mrb[0].mxu0
        %v9671 = vadd.f32 %v9476, %v9670
        %v9672 = vpop.f32.mrb[0].mxu0
        %v9673 = vadd.f32 %v9478, %v9672
        %9674 = vmatprep.mubr.f32.mxu0 0.0
        %v9675 = vand.u32 %v6162, 4294901760
        %9676 = vmatmul.mubr.f32.gmra.mrb[0].mxu0 %v9675
        %v9677 = vpop.f32.mrb[0].mxu0
        %v9678 = vadd.f32 %v9487, %v9677
        %v9679 = vpop.f32.mrb[0].mxu0
        %v9680 = vadd.f32 %v9489, %v9679
        %9681 = vmatprep.mubr.f32.mxu0 0.0
        %v9682 = vand.u32 %v6165, 4294901760
        %9683 = vmatmul.mubr.f32.gmra.mrb[0].mxu0 %v9682
        %v9684 = vpop.f32.mrb[0].mxu0
        %v9685 = vadd.f32 %v9498, %v9684
        %v9686 = vpop.f32.mrb[0].mxu0
        %v9687 = vadd.f32 %v9500, %v9686
        %9688 = vdwg.mxu0
        %v9689 = vand.u32 %v6097, 4294901760
        %v9690 = vsub.f32 %v6097, %v9689
        %9691 = vmatprep.subr.mxu0 %v9690
        %v9692 = vand.u32 %v6096, 4294901760
        %v9693 = vsub.f32 %v6096, %v9692
        %9694 = vmatpush1.msra.mxu0 %v9693
        %v9695 = vand.u32 %v6099, 4294901760
        %v9696 = vsub.f32 %v6099, %v9695
        %9697 = vmatprep.subr.mxu0 %v9696
        %v9698 = vand.u32 %v6098, 4294901760
        %v9699 = vsub.f32 %v6098, %v9698
        %9700 = vmatpush1.msra.mxu0 %v9699
        %v9701 = vand.u32 %v6101, 4294901760
        %v9702 = vsub.f32 %v6101, %v9701
        %9703 = vmatprep.subr.mxu0 %v9702
        %v9704 = vand.u32 %v6100, 4294901760
        %v9705 = vsub.f32 %v6100, %v9704
        %9706 = vmatpush1.msra.mxu0 %v9705
        %v9707 = vand.u32 %v6103, 4294901760
        %v9708 = vsub.f32 %v6103, %v9707
        %9709 = vmatprep.subr.mxu0 %v9708
        %v9710 = vand.u32 %v6102, 4294901760
        %v9711 = vsub.f32 %v6102, %v9710
        %9712 = vmatpush1.msra.mxu0 %v9711
        %v9713 = vand.u32 %v6105, 4294901760
        %v9714 = vsub.f32 %v6105, %v9713
        %9715 = vmatprep.subr.mxu0 %v9714
        %v9716 = vand.u32 %v6104, 4294901760
        %v9717 = vsub.f32 %v6104, %v9716
        %9718 = vmatpush1.msra.mxu0 %v9717
        %v9719 = vand.u32 %v6107, 4294901760
        %v9720 = vsub.f32 %v6107, %v9719
        %9721 = vmatprep.subr.mxu0 %v9720
        %v9722 = vand.u32 %v6106, 4294901760
        %v9723 = vsub.f32 %v6106, %v9722
        %9724 = vmatpush1.msra.mxu0 %v9723
        %v9725 = vand.u32 %v6109, 4294901760
        %v9726 = vsub.f32 %v6109, %v9725
        %9727 = vmatprep.subr.mxu0 %v9726
        %v9728 = vand.u32 %v6108, 4294901760
        %v9729 = vsub.f32 %v6108, %v9728
        %9730 = vmatpush1.msra.mxu0 %v9729
        %v9731 = vand.u32 %v6111, 4294901760
        %v9732 = vsub.f32 %v6111, %v9731
        %9733 = vmatprep.subr.mxu0 %v9732
        %v9734 = vand.u32 %v6110, 4294901760
        %v9735 = vsub.f32 %v6110, %v9734
        %9736 = vmatpush1.msra.mxu0 %v9735
        %9737 = vmatprep.subr.mxu0 0.0
        %9738 = vmatpush1.msra.mxu0 0.0
        %9739 = vmatprep.subr.mxu0 0.0
        %9740 = vmatpush1.msra.mxu0 0.0
        %9741 = vmatprep.subr.mxu0 0.0
        %9742 = vmatpush1.msra.mxu0 0.0
        %9743 = vmatprep.subr.mxu0 0.0
        %9744 = vmatpush1.msra.mxu0 0.0
        %9745 = vmatprep.subr.mxu0 0.0
        %9746 = vmatpush1.msra.mxu0 0.0
        %9747 = vmatprep.subr.mxu0 0.0
        %9748 = vmatpush1.msra.mxu0 0.0
        %9749 = vmatprep.subr.mxu0 0.0
        %9750 = vmatpush1.msra.mxu0 0.0
        %9751 = vmatprep.subr.mxu0 0.0
        %9752 = vmatpush1.msra.mxu0 0.0
        %9753 = vmatprep.subr.mxu0 0.0
        %9754 = vmatpush1.msra.mxu0 0.0
        %9755 = vmatprep.subr.mxu0 0.0
        %9756 = vmatpush1.msra.mxu0 0.0
        %9757 = vmatprep.subr.mxu0 0.0
        %9758 = vmatpush1.msra.mxu0 0.0
        %9759 = vmatprep.subr.mxu0 0.0
        %9760 = vmatpush1.msra.mxu0 0.0
        %9761 = vmatprep.subr.mxu0 0.0
        %9762 = vmatpush1.msra.mxu0 0.0
        %9763 = vmatprep.subr.mxu0 0.0
        %9764 = vmatpush1.msra.mxu0 0.0
        %9765 = vmatprep.subr.mxu0 0.0
        %9766 = vmatpush1.msra.mxu0 0.0
        %9767 = vmatprep.subr.mxu0 0.0
        %9768 = vmatpush1.msra.mxu0 0.0
        %9769 = vmatprep.subr.mxu0 0.0
        %9770 = vmatpush1.msra.mxu0 0.0
        %9771 = vmatprep.subr.mxu0 0.0
        %9772 = vmatpush1.msra.mxu0 0.0
        %9773 = vmatprep.subr.mxu0 0.0
        %9774 = vmatpush1.msra.mxu0 0.0
        %9775 = vmatprep.subr.mxu0 0.0
        %9776 = vmatpush1.msra.mxu0 0.0
        %9777 = vmatprep.subr.mxu0 0.0
        %9778 = vmatpush1.msra.mxu0 0.0
        %9779 = vmatprep.subr.mxu0 0.0
        %9780 = vmatpush1.msra.mxu0 0.0
        %9781 = vmatprep.subr.mxu0 0.0
        %9782 = vmatpush1.msra.mxu0 0.0
        %9783 = vmatprep.subr.mxu0 0.0
        %9784 = vmatpush1.msra.mxu0 0.0
        %9785 = vmatprep.mubr.f32.mxu0 0.0
        %v9786 = vand.u32 %v6150, 4294901760
        %v9787 = vsub.f32 %v6150, %v9786
        %9788 = vmatmul.mubr.f32.gmra.mrb[0].mxu0 %v9787
        %v9789 = vpop.f32.mrb[0].mxu0
        %v9790 = vadd.f32 %v9650, %v9789
        %v9791 = vpop.f32.mrb[0].mxu0
        %v9792 = vadd.f32 %v9652, %v9791
        %9793 = vmatprep.mubr.f32.mxu0 0.0
        %v9794 = vand.u32 %v6153, 4294901760
        %v9795 = vsub.f32 %v6153, %v9794
        %9796 = vmatmul.mubr.f32.gmra.mrb[0].mxu0 %v9795
        %v9797 = vpop.f32.mrb[0].mxu0
        %v9798 = vadd.f32 %v9657, %v9797
        %v9799 = vpop.f32.mrb[0].mxu0
        %v9800 = vadd.f32 %v9659, %v9799
        %9801 = vmatprep.mubr.f32.mxu0 0.0
        %v9802 = vand.u32 %v6156, 4294901760
        %v9803 = vsub.f32 %v6156, %v9802
        %9804 = vmatmul.mubr.f32.gmra.mrb[0].mxu0 %v9803
        %v9805 = vpop.f32.mrb[0].mxu0
        %v9806 = vadd.f32 %v9664, %v9805
        %v9807 = vpop.f32.mrb[0].mxu0
        %v9808 = vadd.f32 %v9666, %v9807
        %9809 = vmatprep.mubr.f32.mxu0 0.0
        %v9810 = vand.u32 %v6159, 4294901760
        %v9811 = vsub.f32 %v6159, %v9810
        %9812 = vmatmul.mubr.f32.gmra.mrb[0].mxu0 %v9811
        %v9813 = vpop.f32.mrb[0].mxu0
        %v9814 = vadd.f32 %v9671, %v9813
        %v9815 = vpop.f32.mrb[0].mxu0
        %v9816 = vadd.f32 %v9673, %v9815
        %9817 = vmatprep.mubr.f32.mxu0 0.0
        %v9818 = vand.u32 %v6162, 4294901760
        %v9819 = vsub.f32 %v6162, %v9818
        %9820 = vmatmul.mubr.f32.gmra.mrb[0].mxu0 %v9819
        %v9821 = vpop.f32.mrb[0].mxu0
        %v9822 = vadd.f32 %v9678, %v9821
        %v9823 = vpop.f32.mrb[0].mxu0
        %v9824 = vadd.f32 %v9680, %v9823
        %9825 = vmatprep.mubr.f32.mxu0 0.0
        %v9826 = vand.u32 %v6165, 4294901760
        %v9827 = vsub.f32 %v6165, %v9826
        %9828 = vmatmul.mubr.f32.gmra.mrb[0].mxu0 %v9827
        %v9829 = vpop.f32.mrb[0].mxu0
        %v9830 = vadd.f32 %v9685, %v9829
        %v9831 = vpop.f32.mrb[0].mxu0
        %v9832 = vadd.f32 %v9687, %v9831
        %9833 = vdwg.mxu0
        %v9834 = vand.u32 %v6097, 4294901760
        %9835 = vmatprep.subr.mxu0 %v9834
        %v9836 = vand.u32 %v6096, 4294901760
        %9837 = vmatpush1.msra.mxu0 %v9836
        %v9838 = vand.u32 %v6099, 4294901760
        %9839 = vmatprep.subr.mxu0 %v9838
        %v9840 = vand.u32 %v6098, 4294901760
        %9841 = vmatpush1.msra.mxu0 %v9840
        %v9842 = vand.u32 %v6101, 4294901760
        %9843 = vmatprep.subr.mxu0 %v9842
        %v9844 = vand.u32 %v6100, 4294901760
        %9845 = vmatpush1.msra.mxu0 %v9844
        %v9846 = vand.u32 %v6103, 4294901760
        %9847 = vmatprep.subr.mxu0 %v9846
        %v9848 = vand.u32 %v6102, 4294901760
        %9849 = vmatpush1.msra.mxu0 %v9848
        %v9850 = vand.u32 %v6105, 4294901760
        %9851 = vmatprep.subr.mxu0 %v9850
        %v9852 = vand.u32 %v6104, 4294901760
        %9853 = vmatpush1.msra.mxu0 %v9852
        %v9854 = vand.u32 %v6107, 4294901760
        %9855 = vmatprep.subr.mxu0 %v9854
        %v9856 = vand.u32 %v6106, 4294901760
        %9857 = vmatpush1.msra.mxu0 %v9856
        %v9858 = vand.u32 %v6109, 4294901760
        %9859 = vmatprep.subr.mxu0 %v9858
        %v9860 = vand.u32 %v6108, 4294901760
        %9861 = vmatpush1.msra.mxu0 %v9860
        %v9862 = vand.u32 %v6111, 4294901760
        %9863 = vmatprep.subr.mxu0 %v9862
        %v9864 = vand.u32 %v6110, 4294901760
        %9865 = vmatpush1.msra.mxu0 %v9864
        %9866 = vmatprep.subr.mxu0 0.0
        %9867 = vmatpush1.msra.mxu0 0.0
        %9868 = vmatprep.subr.mxu0 0.0
        %9869 = vmatpush1.msra.mxu0 0.0
        %9870 = vmatprep.subr.mxu0 0.0
        %9871 = vmatpush1.msra.mxu0 0.0
        %9872 = vmatprep.subr.mxu0 0.0
        %9873 = vmatpush1.msra.mxu0 0.0
        %9874 = vmatprep.subr.mxu0 0.0
        %9875 = vmatpush1.msra.mxu0 0.0
        %9876 = vmatprep.subr.mxu0 0.0
        %9877 = vmatpush1.msra.mxu0 0.0
        %9878 = vmatprep.subr.mxu0 0.0
        %9879 = vmatpush1.msra.mxu0 0.0
        %9880 = vmatprep.subr.mxu0 0.0
        %9881 = vmatpush1.msra.mxu0 0.0
        %9882 = vmatprep.subr.mxu0 0.0
        %9883 = vmatpush1.msra.mxu0 0.0
        %9884 = vmatprep.subr.mxu0 0.0
        %9885 = vmatpush1.msra.mxu0 0.0
        %9886 = vmatprep.subr.mxu0 0.0
        %9887 = vmatpush1.msra.mxu0 0.0
        %9888 = vmatprep.subr.mxu0 0.0
        %9889 = vmatpush1.msra.mxu0 0.0
        %9890 = vmatprep.subr.mxu0 0.0
        %9891 = vmatpush1.msra.mxu0 0.0
        %9892 = vmatprep.subr.mxu0 0.0
        %9893 = vmatpush1.msra.mxu0 0.0
        %9894 = vmatprep.subr.mxu0 0.0
        %9895 = vmatpush1.msra.mxu0 0.0
        %9896 = vmatprep.subr.mxu0 0.0
        %9897 = vmatpush1.msra.mxu0 0.0
        %9898 = vmatprep.subr.mxu0 0.0
        %9899 = vmatpush1.msra.mxu0 0.0
        %9900 = vmatprep.subr.mxu0 0.0
        %9901 = vmatpush1.msra.mxu0 0.0
        %9902 = vmatprep.subr.mxu0 0.0
        %9903 = vmatpush1.msra.mxu0 0.0
        %9904 = vmatprep.subr.mxu0 0.0
        %9905 = vmatpush1.msra.mxu0 0.0
        %9906 = vmatprep.subr.mxu0 0.0
        %9907 = vmatpush1.msra.mxu0 0.0
        %9908 = vmatprep.subr.mxu0 0.0
        %9909 = vmatpush1.msra.mxu0 0.0
        %9910 = vmatprep.subr.mxu0 0.0
        %9911 = vmatpush1.msra.mxu0 0.0
        %9912 = vmatprep.subr.mxu0 0.0
        %9913 = vmatpush1.msra.mxu0 0.0
        %9914 = vmatprep.mubr.f32.mxu0 0.0
        %v9915 = vand.u32 %v6150, 4294901760
        %v9916 = vsub.f32 %v6150, %v9915
        %v9917 = vand.u32 %v9916, 4294901760
        %9918 = vmatmul.mubr.f32.gmra.mrb[0].mxu0 %v9917
        %v9919 = vpop.f32.mrb[0].mxu0
        %v9920 = vadd.f32 %v9790, %v9919
        %v9921 = vpop.f32.mrb[0].mxu0
        %v9922 = vadd.f32 %v9792, %v9921
        %9923 = vmatprep.mubr.f32.mxu0 0.0
        %v9924 = vand.u32 %v6153, 4294901760
        %v9925 = vsub.f32 %v6153, %v9924
        %v9926 = vand.u32 %v9925, 4294901760
        %9927 = vmatmul.mubr.f32.gmra.mrb[0].mxu0 %v9926
        %v9928 = vpop.f32.mrb[0].mxu0
        %v9929 = vadd.f32 %v9798, %v9928
        %v9930 = vpop.f32.mrb[0].mxu0
        %v9931 = vadd.f32 %v9800, %v9930
        %9932 = vmatprep.mubr.f32.mxu0 0.0
        %v9933 = vand.u32 %v6156, 4294901760
        %v9934 = vsub.f32 %v6156, %v9933
        %v9935 = vand.u32 %v9934, 4294901760
        %9936 = vmatmul.mubr.f32.gmra.mrb[0].mxu0 %v9935
        %v9937 = vpop.f32.mrb[0].mxu0
        %v9938 = vadd.f32 %v9806, %v9937
        %v9939 = vpop.f32.mrb[0].mxu0
        %v9940 = vadd.f32 %v9808, %v9939
        %9941 = vmatprep.mubr.f32.mxu0 0.0
        %v9942 = vand.u32 %v6159, 4294901760
        %v9943 = vsub.f32 %v6159, %v9942
        %v9944 = vand.u32 %v9943, 4294901760
        %9945 = vmatmul.mubr.f32.gmra.mrb[0].mxu0 %v9944
        %v9946 = vpop.f32.mrb[0].mxu0
        %v9947 = vadd.f32 %v9814, %v9946
        %v9948 = vpop.f32.mrb[0].mxu0
        %v9949 = vadd.f32 %v9816, %v9948
        %9950 = vmatprep.mubr.f32.mxu0 0.0
        %v9951 = vand.u32 %v6162, 4294901760
        %v9952 = vsub.f32 %v6162, %v9951
        %v9953 = vand.u32 %v9952, 4294901760
        %9954 = vmatmul.mubr.f32.gmra.mrb[0].mxu0 %v9953
        %v9955 = vpop.f32.mrb[0].mxu0
        %v9956 = vadd.f32 %v9822, %v9955
        %v9957 = vpop.f32.mrb[0].mxu0
        %v9958 = vadd.f32 %v9824, %v9957
        %9959 = vmatprep.mubr.f32.mxu0 0.0
        %v9960 = vand.u32 %v6165, 4294901760
        %v9961 = vsub.f32 %v6165, %v9960
        %v9962 = vand.u32 %v9961, 4294901760
        %9963 = vmatmul.mubr.f32.gmra.mrb[0].mxu0 %v9962
        %v9964 = vpop.f32.mrb[0].mxu0
        %v9965 = vadd.f32 %v9830, %v9964
        %v9966 = vpop.f32.mrb[0].mxu0
        %v9967 = vadd.f32 %v9832, %v9966
        %9968 = vdwg.mxu0
        %v9969 = vand.u32 %v6097, 4294901760
        %v9970 = vsub.f32 %v6097, %v9969
        %v9971 = vand.u32 %v9970, 4294901760
        %9972 = vmatprep.subr.mxu0 %v9971
        %v9973 = vand.u32 %v6096, 4294901760
        %v9974 = vsub.f32 %v6096, %v9973
        %v9975 = vand.u32 %v9974, 4294901760
        %9976 = vmatpush1.msra.mxu0 %v9975
        %v9977 = vand.u32 %v6099, 4294901760
        %v9978 = vsub.f32 %v6099, %v9977
        %v9979 = vand.u32 %v9978, 4294901760
        %9980 = vmatprep.subr.mxu0 %v9979
        %v9981 = vand.u32 %v6098, 4294901760
        %v9982 = vsub.f32 %v6098, %v9981
        %v9983 = vand.u32 %v9982, 4294901760
        %9984 = vmatpush1.msra.mxu0 %v9983
        %v9985 = vand.u32 %v6101, 4294901760
        %v9986 = vsub.f32 %v6101, %v9985
        %v9987 = vand.u32 %v9986, 4294901760
        %9988 = vmatprep.subr.mxu0 %v9987
        %v9989 = vand.u32 %v6100, 4294901760
        %v9990 = vsub.f32 %v6100, %v9989
        %v9991 = vand.u32 %v9990, 4294901760
        %9992 = vmatpush1.msra.mxu0 %v9991
        %v9993 = vand.u32 %v6103, 4294901760
        %v9994 = vsub.f32 %v6103, %v9993
        %v9995 = vand.u32 %v9994, 4294901760
        %9996 = vmatprep.subr.mxu0 %v9995
        %v9997 = vand.u32 %v6102, 4294901760
        %v9998 = vsub.f32 %v6102, %v9997
        %v9999 = vand.u32 %v9998, 4294901760
        %10000 = vmatpush1.msra.mxu0 %v9999
        %v10001 = vand.u32 %v6105, 4294901760
        %v10002 = vsub.f32 %v6105, %v10001
        %v10003 = vand.u32 %v10002, 4294901760
        %10004 = vmatprep.subr.mxu0 %v10003
        %v10005 = vand.u32 %v6104, 4294901760
        %v10006 = vsub.f32 %v6104, %v10005
        %v10007 = vand.u32 %v10006, 4294901760
        %10008 = vmatpush1.msra.mxu0 %v10007
        %v10009 = vand.u32 %v6107, 4294901760
        %v10010 = vsub.f32 %v6107, %v10009
        %v10011 = vand.u32 %v10010, 4294901760
        %10012 = vmatprep.subr.mxu0 %v10011
        %v10013 = vand.u32 %v6106, 4294901760
        %v10014 = vsub.f32 %v6106, %v10013
        %v10015 = vand.u32 %v10014, 4294901760
        %10016 = vmatpush1.msra.mxu0 %v10015
        %v10017 = vand.u32 %v6109, 4294901760
        %v10018 = vsub.f32 %v6109, %v10017
        %v10019 = vand.u32 %v10018, 4294901760
        %10020 = vmatprep.subr.mxu0 %v10019
        %v10021 = vand.u32 %v6108, 4294901760
        %v10022 = vsub.f32 %v6108, %v10021
        %v10023 = vand.u32 %v10022, 4294901760
        %10024 = vmatpush1.msra.mxu0 %v10023
        %v10025 = vand.u32 %v6111, 4294901760
        %v10026 = vsub.f32 %v6111, %v10025
        %v10027 = vand.u32 %v10026, 4294901760
        %10028 = vmatprep.subr.mxu0 %v10027
        %v10029 = vand.u32 %v6110, 4294901760
        %v10030 = vsub.f32 %v6110, %v10029
        %v10031 = vand.u32 %v10030, 4294901760
        %10032 = vmatpush1.msra.mxu0 %v10031
        %10033 = vmatprep.subr.mxu0 0.0
        %10034 = vmatpush1.msra.mxu0 0.0
        %10035 = vmatprep.subr.mxu0 0.0
        %10036 = vmatpush1.msra.mxu0 0.0
        %10037 = vmatprep.subr.mxu0 0.0
        %10038 = vmatpush1.msra.mxu0 0.0
        %10039 = vmatprep.subr.mxu0 0.0
        %10040 = vmatpush1.msra.mxu0 0.0
        %10041 = vmatprep.subr.mxu0 0.0
        %10042 = vmatpush1.msra.mxu0 0.0
        %10043 = vmatprep.subr.mxu0 0.0
        %10044 = vmatpush1.msra.mxu0 0.0
        %10045 = vmatprep.subr.mxu0 0.0
        %10046 = vmatpush1.msra.mxu0 0.0
        %10047 = vmatprep.subr.mxu0 0.0
        %10048 = vmatpush1.msra.mxu0 0.0
        %10049 = vmatprep.subr.mxu0 0.0
        %10050 = vmatpush1.msra.mxu0 0.0
        %10051 = vmatprep.subr.mxu0 0.0
        %10052 = vmatpush1.msra.mxu0 0.0
        %10053 = vmatprep.subr.mxu0 0.0
        %10054 = vmatpush1.msra.mxu0 0.0
        %10055 = vmatprep.subr.mxu0 0.0
        %10056 = vmatpush1.msra.mxu0 0.0
        %10057 = vmatprep.subr.mxu0 0.0
        %10058 = vmatpush1.msra.mxu0 0.0
        %10059 = vmatprep.subr.mxu0 0.0
        %10060 = vmatpush1.msra.mxu0 0.0
        %10061 = vmatprep.subr.mxu0 0.0
        %10062 = vmatpush1.msra.mxu0 0.0
        %10063 = vmatprep.subr.mxu0 0.0
        %10064 = vmatpush1.msra.mxu0 0.0
        %10065 = vmatprep.subr.mxu0 0.0
        %10066 = vmatpush1.msra.mxu0 0.0
        %10067 = vmatprep.subr.mxu0 0.0
        %10068 = vmatpush1.msra.mxu0 0.0
        %10069 = vmatprep.subr.mxu0 0.0
        %10070 = vmatpush1.msra.mxu0 0.0
        %10071 = vmatprep.subr.mxu0 0.0
        %10072 = vmatpush1.msra.mxu0 0.0
        %10073 = vmatprep.subr.mxu0 0.0
        %10074 = vmatpush1.msra.mxu0 0.0
        %10075 = vmatprep.subr.mxu0 0.0
        %10076 = vmatpush1.msra.mxu0 0.0
        %10077 = vmatprep.subr.mxu0 0.0
        %10078 = vmatpush1.msra.mxu0 0.0
        %10079 = vmatprep.subr.mxu0 0.0
        %10080 = vmatpush1.msra.mxu0 0.0
        %10081 = vmatprep.mubr.f32.mxu0 0.0
        %v10082 = vand.u32 %v6150, 4294901760
        %10083 = vmatmul.mubr.f32.gmra.mrb[0].mxu0 %v10082
        %v10084 = vpop.f32.mrb[0].mxu0
        %v10085 = vadd.f32 %v9920, %v10084
        %v10086 = vpop.f32.mrb[0].mxu0
        %v10087 = vadd.f32 %v9922, %v10086
        %10088 = vmatprep.mubr.f32.mxu0 0.0
        %v10089 = vand.u32 %v6153, 4294901760
        %10090 = vmatmul.mubr.f32.gmra.mrb[0].mxu0 %v10089
        %v10091 = vpop.f32.mrb[0].mxu0
        %v10092 = vadd.f32 %v9929, %v10091
        %v10093 = vpop.f32.mrb[0].mxu0
        %v10094 = vadd.f32 %v9931, %v10093
        %10095 = vmatprep.mubr.f32.mxu0 0.0
        %v10096 = vand.u32 %v6156, 4294901760
        %10097 = vmatmul.mubr.f32.gmra.mrb[0].mxu0 %v10096
        %v10098 = vpop.f32.mrb[0].mxu0
        %v10099 = vadd.f32 %v9938, %v10098
        %v10100 = vpop.f32.mrb[0].mxu0
        %v10101 = vadd.f32 %v9940, %v10100
        %10102 = vmatprep.mubr.f32.mxu0 0.0
        %v10103 = vand.u32 %v6159, 4294901760
        %10104 = vmatmul.mubr.f32.gmra.mrb[0].mxu0 %v10103
        %v10105 = vpop.f32.mrb[0].mxu0
        %v10106 = vadd.f32 %v9947, %v10105
        %v10107 = vpop.f32.mrb[0].mxu0
        %v10108 = vadd.f32 %v9949, %v10107
        %10109 = vmatprep.mubr.f32.mxu0 0.0
        %v10110 = vand.u32 %v6162, 4294901760
        %10111 = vmatmul.mubr.f32.gmra.mrb[0].mxu0 %v10110
        %v10112 = vpop.f32.mrb[0].mxu0
        %v10113 = vadd.f32 %v9956, %v10112
        %v10114 = vpop.f32.mrb[0].mxu0
        %v10115 = vadd.f32 %v9958, %v10114
        %10116 = vmatprep.mubr.f32.mxu0 0.0
        %v10117 = vand.u32 %v6165, 4294901760
        %10118 = vmatmul.mubr.f32.gmra.mrb[0].mxu0 %v10117
        %v10119 = vpop.f32.mrb[0].mxu0
        %v10120 = vadd.f32 %v9965, %v10119
        %v10121 = vpop.f32.mrb[0].mxu0
        %v10122 = vadd.f32 %v9967, %v10121
        %10123 = vdwg.mxu0
        %v10124 = vand.u32 %v6097, 4294901760
        %10125 = vmatprep.subr.mxu0 %v10124
        %v10126 = vand.u32 %v6096, 4294901760
        %10127 = vmatpush1.msra.mxu0 %v10126
        %v10128 = vand.u32 %v6099, 4294901760
        %10129 = vmatprep.subr.mxu0 %v10128
        %v10130 = vand.u32 %v6098, 4294901760
        %10131 = vmatpush1.msra.mxu0 %v10130
        %v10132 = vand.u32 %v6101, 4294901760
        %10133 = vmatprep.subr.mxu0 %v10132
        %v10134 = vand.u32 %v6100, 4294901760
        %10135 = vmatpush1.msra.mxu0 %v10134
        %v10136 = vand.u32 %v6103, 4294901760
        %10137 = vmatprep.subr.mxu0 %v10136
        %v10138 = vand.u32 %v6102, 4294901760
        %10139 = vmatpush1.msra.mxu0 %v10138
        %v10140 = vand.u32 %v6105, 4294901760
        %10141 = vmatprep.subr.mxu0 %v10140
        %v10142 = vand.u32 %v6104, 4294901760
        %10143 = vmatpush1.msra.mxu0 %v10142
        %v10144 = vand.u32 %v6107, 4294901760
        %10145 = vmatprep.subr.mxu0 %v10144
        %v10146 = vand.u32 %v6106, 4294901760
        %10147 = vmatpush1.msra.mxu0 %v10146
        %v10148 = vand.u32 %v6109, 4294901760
        %10149 = vmatprep.subr.mxu0 %v10148
        %v10150 = vand.u32 %v6108, 4294901760
        %10151 = vmatpush1.msra.mxu0 %v10150
        %v10152 = vand.u32 %v6111, 4294901760
        %10153 = vmatprep.subr.mxu0 %v10152
        %v10154 = vand.u32 %v6110, 4294901760
        %10155 = vmatpush1.msra.mxu0 %v10154
        %10156 = vmatprep.subr.mxu0 0.0
        %10157 = vmatpush1.msra.mxu0 0.0
        %10158 = vmatprep.subr.mxu0 0.0
        %10159 = vmatpush1.msra.mxu0 0.0
        %10160 = vmatprep.subr.mxu0 0.0
        %10161 = vmatpush1.msra.mxu0 0.0
        %10162 = vmatprep.subr.mxu0 0.0
        %10163 = vmatpush1.msra.mxu0 0.0
        %10164 = vmatprep.subr.mxu0 0.0
        %10165 = vmatpush1.msra.mxu0 0.0
        %10166 = vmatprep.subr.mxu0 0.0
        %10167 = vmatpush1.msra.mxu0 0.0
        %10168 = vmatprep.subr.mxu0 0.0
        %10169 = vmatpush1.msra.mxu0 0.0
        %10170 = vmatprep.subr.mxu0 0.0
        %10171 = vmatpush1.msra.mxu0 0.0
        %10172 = vmatprep.subr.mxu0 0.0
        %10173 = vmatpush1.msra.mxu0 0.0
        %10174 = vmatprep.subr.mxu0 0.0
        %10175 = vmatpush1.msra.mxu0 0.0
        %10176 = vmatprep.subr.mxu0 0.0
        %10177 = vmatpush1.msra.mxu0 0.0
        %10178 = vmatprep.subr.mxu0 0.0
        %10179 = vmatpush1.msra.mxu0 0.0
        %10180 = vmatprep.subr.mxu0 0.0
        %10181 = vmatpush1.msra.mxu0 0.0
        %10182 = vmatprep.subr.mxu0 0.0
        %10183 = vmatpush1.msra.mxu0 0.0
        %10184 = vmatprep.subr.mxu0 0.0
        %10185 = vmatpush1.msra.mxu0 0.0
        %10186 = vmatprep.subr.mxu0 0.0
        %10187 = vmatpush1.msra.mxu0 0.0
        %10188 = vmatprep.subr.mxu0 0.0
        %10189 = vmatpush1.msra.mxu0 0.0
        %10190 = vmatprep.subr.mxu0 0.0
        %10191 = vmatpush1.msra.mxu0 0.0
        %10192 = vmatprep.subr.mxu0 0.0
        %10193 = vmatpush1.msra.mxu0 0.0
        %10194 = vmatprep.subr.mxu0 0.0
        %10195 = vmatpush1.msra.mxu0 0.0
        %10196 = vmatprep.subr.mxu0 0.0
        %10197 = vmatpush1.msra.mxu0 0.0
        %10198 = vmatprep.subr.mxu0 0.0
        %10199 = vmatpush1.msra.mxu0 0.0
        %10200 = vmatprep.subr.mxu0 0.0
        %10201 = vmatpush1.msra.mxu0 0.0
        %10202 = vmatprep.subr.mxu0 0.0
        %10203 = vmatpush1.msra.mxu0 0.0
        %10204 = vmatprep.mubr.f32.mxu0 0.0
        %v10205 = vand.u32 %v6150, 4294901760
        %10206 = vmatmul.mubr.f32.gmra.mrb[0].mxu0 %v10205
        %v10207 = vpop.f32.mrb[0].mxu0
        %v10208 = vadd.f32 %v10085, %v10207
        %v10209 = vpop.f32.mrb[0].mxu0
        %v10210 = vadd.f32 %v10087, %v10209
        %10211 = vmatprep.mubr.f32.mxu0 0.0
        %v10212 = vand.u32 %v6153, 4294901760
        %10213 = vmatmul.mubr.f32.gmra.mrb[0].mxu0 %v10212
        %v10214 = vpop.f32.mrb[0].mxu0
        %v10215 = vadd.f32 %v10092, %v10214
        %v10216 = vpop.f32.mrb[0].mxu0
        %v10217 = vadd.f32 %v10094, %v10216
        %10218 = vmatprep.mubr.f32.mxu0 0.0
        %v10219 = vand.u32 %v6156, 4294901760
        %10220 = vmatmul.mubr.f32.gmra.mrb[0].mxu0 %v10219
        %v10221 = vpop.f32.mrb[0].mxu0
        %v10222 = vadd.f32 %v10099, %v10221
        %v10223 = vpop.f32.mrb[0].mxu0
        %v10224 = vadd.f32 %v10101, %v10223
        %10225 = vmatprep.mubr.f32.mxu0 0.0
        %v10226 = vand.u32 %v6159, 4294901760
        %10227 = vmatmul.mubr.f32.gmra.mrb[0].mxu0 %v10226
        %v10228 = vpop.f32.mrb[0].mxu0
        %v10229 = vadd.f32 %v10106, %v10228
        %v10230 = vpop.f32.mrb[0].mxu0
        %v10231 = vadd.f32 %v10108, %v10230
        %10232 = vmatprep.mubr.f32.mxu0 0.0
        %v10233 = vand.u32 %v6162, 4294901760
        %10234 = vmatmul.mubr.f32.gmra.mrb[0].mxu0 %v10233
        %v10235 = vpop.f32.mrb[0].mxu0
        %v10236 = vadd.f32 %v10113, %v10235
        %v10237 = vpop.f32.mrb[0].mxu0
        %v10238 = vadd.f32 %v10115, %v10237
        %10239 = vmatprep.mubr.f32.mxu0 0.0
        %v10240 = vand.u32 %v6165, 4294901760
        %10241 = vmatmul.mubr.f32.gmra.mrb[0].mxu0 %v10240
        %v10242 = vpop.f32.mrb[0].mxu0
        %v10243 = vadd.f32 %v10120, %v10242
        %v10244 = vpop.f32.mrb[0].mxu0
        %v10245 = vadd.f32 %v10122, %v10244
        %10246 = vdwg.mxu0
        %10247 = vst [vmem:[%s428] sm:$0xff] %v10208
        %10248 = vst [vmem:[%s428 + $0x8] sm:$0xff] %v10210
        %10249 = vst [vmem:[%s428 + $0x10] sm:$0xff] %v10215
        %10250 = vst [vmem:[%s428 + $0x18] sm:$0xff] %v10217
        %10251 = vst [vmem:[%s428 + $0x20] sm:$0xff] %v10222
        %10252 = vst [vmem:[%s428 + $0x28] sm:$0xff] %v10224
        %10253 = vst [vmem:[%s428 + $0x30] sm:$0xff] %v10229
        %10254 = vst [vmem:[%s428 + $0x38] sm:$0xff] %v10231
        %10255 = vst [vmem:[%s428 + $0x40] sm:$0xff] %v10236
        %10256 = vst [vmem:[%s428 + $0x48] sm:$0xff] %v10238
        %10257 = vst [vmem:[%s428 + $0x50] sm:$0xff] %v10243
        %10258 = vst [vmem:[%s428 + $0x58] sm:$0xff] %v10245
        %p10259 = scmp.lt.s32.totalorder %s24, 1
        %s10260 = scalar_select %p10259, %s24, 1
        %s10261 = smul.addr %s10260, 12
        %s10262 = smul.addr %s10261, 8
        %s10263 = scalar_lea.vmem %s10, %s10262
        // Predicated region
        $region81: #{hq_img_recon.1} parent=59 // pred_check
          %p10264 = pneg %p257
        $region82: #{hq_img_recon.1} parent=59 // pred_check_branch
          %10266 = sbr.rel (%p10264) target = $region84
        $region83: #{hq_img_recon.1} parent=59 // pred_region
          _
        $region84: #{hq_img_recon.1} parent=59 // pred_fallthru
          _
      $region60: #{hq_img_recon.1} parent=5 // pred_fallthru
        _
      %p10267 = scmp.le.s32.totalorder 2, %s19
      // Predicated region
      $region85: #{hq_img_recon.1} parent=5 // pred_check
        %p10268 = pneg %p10267
      $region86: #{hq_img_recon.1} parent=5 // pred_check_branch
        %10270 = sbr.rel (%p10268) target = $region88
      $region87: #{hq_img_recon.1} parent=5 // pred_region
        %s10271 = ssub.s32 %s19, 2
        // Predicated region
        $region89: #{hq_img_recon.1} parent=87 // pred_check
          %p10272 = pneg %p263
        $region90: #{hq_img_recon.1} parent=87 // pred_check_branch
          %10274 = sbr.rel (%p10272) target = $region92
        $region91: #{hq_img_recon.1} parent=87 // pred_region
          %p10275 = scmp.lt.s32.totalorder %s25, 1
          %s10276 = scalar_select %p10275, %s25, 1
          %s10277 = smul.addr %s10276, 12
          %s10278 = smul.addr %s10277, 8
          %s10279 = scalar_lea.vmem %s10, %s10278
        $region92: #{hq_img_recon.1} parent=87 // pred_fallthru
          _
      $region88: #{hq_img_recon.1} parent=5 // pred_fallthru
        _
    $region6: #{hq_img_recon.1} parent=1 // loop_footer
      %s23 = sadd.s32 1, %s19
    $region7: #{hq_img_recon.1} parent=1 // loop_footer_branch
      %18 = sbr.rel target = $region3
    $region8: #{hq_img_recon.1} parent=1 // loop_exit
      _
    %10280 = vsyncpa [#allocation5], 1
    %s10281 = scalar_lea.sflag [#allocation5], 1
    %10282 = vsyncpa %s10281, 1
    %10283 = vsyncpa [#allocation7], 1
    %10284 = vsyncpa [#allocation10], 1

</llo_original>
